<compile_context>
chip_gen: v7x
topology: tpu7x:2x2x1
jax: 0.10.0
libtpu: 0.0.40
codegen_flags: <defaults>
</compile_context>

<pallas_src>
import jax
import jax.numpy as jnp
from jax.experimental import pallas as pl
from jax.experimental.pallas import tpu as pltpu


def _chr_word_kernel(chrs_ref, wlens_ref, nsyls_ref, emb_ref,
                     w1_ref, b1_ref, w2_ref, b2_ref, w3_ref, b3_ref,
                     wc_ref, scal_ref, out_ref):
    tb, seq_len = chrs_ref.shape
    num_chr = emb_ref.shape[0]

    chrs = chrs_ref[...]                                             # (TB, L) int32
    col_ids = jax.lax.broadcasted_iota(jnp.int32, (tb, num_chr), 1)  # (TB, NC)

    # emb(chrs).mean(-2) == counts @ (emb / L); 1/L already folded into emb_ref.
    # Short unrolled loop keeps everything in (TB, lanes) 2-D tiles (L is small);
    # a 3-D one-hot would force per-row (L, NC) mini-tiles plus a result relayout.
    counts = jnp.zeros((tb, num_chr), jnp.float32)
    for l in range(seq_len):                                         # static, small L
        counts += (chrs[:, l:l + 1] == col_ids).astype(jnp.float32)
    x = jnp.dot(counts, emb_ref[...],
                preferred_element_type=jnp.float32)                  # (TB, EMB_DIM)

    # locked_dropout: identity in eval mode.

    # emb_lns: [Linear + ReLU] x 3 -- bf16 weights/activations, f32 accumulation.
    x = jnp.maximum(
        jnp.dot(x.astype(jnp.bfloat16), w1_ref[...],
                preferred_element_type=jnp.float32) + b1_ref[...], 0.0)
    x = jnp.maximum(
        jnp.dot(x.astype(jnp.bfloat16), w2_ref[...],
                preferred_element_type=jnp.float32) + b2_ref[...], 0.0)
    x = jnp.maximum(
        jnp.dot(x.astype(jnp.bfloat16), w3_ref[...],
                preferred_element_type=jnp.float32) + b3_ref[...], 0.0)

    # cls on concat([x, wlens, nsyls], -1): VPU row-dot for the x part (avoids an
    # N=1 MXU matmul), scalar terms for the wlen/nsyl columns and the bias.
    y = jnp.sum(x * wc_ref[...], axis=-1, keepdims=True)             # (TB, 1)
    y = y + wlens_ref[...] * scal_ref[0] + nsyls_ref[...] * scal_ref[1] + scal_ref[2]
    # Note: a lane-dense (1, TB) output slab would avoid masked 1-lane stores for
    # very large batches; kept (TB, 1) here (store cost is negligible at this size).
    out_ref[...] = y


def prepare_kernel_params(params, seq_len):
    """Torch-style f32 params -> kernel-resident layout.

    Folds 1/seq_len into the embedding table (f32), stores the three big Linear
    weights in bf16 (f32 accumulation happens in-kernel), keeps biases f32, and
    splits the cls Linear into a (1, D3) row for x plus [w_wlen, w_nsyl, bias].
    """
    return dict(
        emb=params["emb"].astype(jnp.float32) * (1.0 / seq_len),
        w1=params["w1"].astype(jnp.bfloat16), b1=params["b1"].astype(jnp.float32),
        w2=params["w2"].astype(jnp.bfloat16), b2=params["b2"].astype(jnp.float32),
        w3=params["w3"].astype(jnp.bfloat16), b3=params["b3"].astype(jnp.float32),
        wc_row=params["wc"].reshape(1, -1).astype(jnp.float32),
        cls_scal=jnp.concatenate(
            [params["wextra"].reshape(-1), params["bc"].reshape(-1)]
        ).astype(jnp.float32),
    )


def chr_plus_word_emb_reg(chrs, wlens, nsyls, kparams, *, tb=256,
                          vmem_limit_bytes=32 * 1024 * 1024):
    """Batched forward: pads B to a multiple of tb and runs a 1-D grid over batch
    tiles with all weights held VMEM-resident (constant index_map)."""
    B, L = chrs.shape
    assert tb % 8 == 0, "batch tile must be a multiple of 8 (sublane tiling)"
    nb = pl.cdiv(B, tb)
    Bp = nb * tb
    if Bp != B:
        pad = Bp - B
        chrs = jnp.pad(chrs, ((0, pad), (0, 0)))   # pad id 0 -> zero emb row, harmless
        wlens = jnp.pad(wlens, ((0, pad), (0, 0)))
        nsyls = jnp.pad(nsyls, ((0, pad), (0, 0)))
    chrs = chrs.astype(jnp.int32)
    wlens = wlens.astype(jnp.float32)
    nsyls = nsyls.astype(jnp.float32)

    emb, w1, b1 = kparams["emb"], kparams["w1"], kparams["b1"]
    w2, b2 = kparams["w2"], kparams["b2"]
    w3, b3 = kparams["w3"], kparams["b3"]
    wc_row, cls_scal = kparams["wc_row"], kparams["cls_scal"]

    nc, emb_dim = emb.shape
    d1, d2, d3 = w1.shape[1], w2.shape[1], w3.shape[1]

    def _row_spec(shape):
        return pl.BlockSpec(shape, lambda i: (i, 0))

    def _resident_spec(arr):
        return pl.BlockSpec(arr.shape, lambda i: (0, 0))

    weight_bytes = sum(int(a.size) * a.dtype.itemsize
                       for a in (emb, w1, b1, w2, b2, w3, b3, wc_row, cls_scal))
    cost = pl.CostEstimate(
        flops=2 * Bp * (nc * emb_dim + emb_dim * d1 + d1 * d2 + d2 * d3 + d3),
        transcendentals=0,
        bytes_accessed=weight_bytes + Bp * (L * 4 + 3 * 4),
    )

    out = pl.pallas_call(
        _chr_word_kernel,
        out_shape=jax.ShapeDtypeStruct((Bp, 1), jnp.float32),
        grid_spec=pltpu.PrefetchScalarGridSpec(
            num_scalar_prefetch=0,
            grid=(nb,),
            in_specs=[
                _row_spec((tb, L)),       # chrs
                _row_spec((tb, 1)),       # wlens
                _row_spec((tb, 1)),       # nsyls
                _resident_spec(emb),
                _resident_spec(w1), _resident_spec(b1),
                _resident_spec(w2), _resident_spec(b2),
                _resident_spec(w3), _resident_spec(b3),
                _resident_spec(wc_row),
                pl.BlockSpec(memory_space=pltpu.MemorySpace.SMEM),   # cls_scal
            ],
            out_specs=_row_spec((tb, 1)),
        ),
        compiler_params=pltpu.CompilerParams(
            dimension_semantics=("parallel",),
            vmem_limit_bytes=vmem_limit_bytes,
        ),
        cost_estimate=cost,
    )(chrs, wlens, nsyls, emb, w1, b1, w2, b2, w3, b3, wc_row, cls_scal)
    return out[:B]


def reference(chrs, wlens, nsyls, params):
    """Pure-JAX f32 reference matching the PyTorch forward (eval mode)."""
    x = params["emb"][chrs].mean(axis=-2)
    x = jnp.maximum(x @ params["w1"] + params["b1"], 0.0)
    x = jnp.maximum(x @ params["w2"] + params["b2"], 0.0)
    x = jnp.maximum(x @ params["w3"] + params["b3"], 0.0)
    x = jnp.concatenate([x, wlens, nsyls], axis=-1)
    wc_full = jnp.concatenate([params["wc"], params["wextra"][:, None]], axis=0)
    return x @ wc_full + params["bc"][0]


if __name__ == "__main__":
    NUM_CHR, PAD_IDX, EMB_DIM = 32, 0, 128
    DIMS = [1024, 512, 256]                      # emb_linear_dims
    B, L = 384, 12                               # batch of words, L chars each
    TB = 256                                     # batch tile (multiple of 256 for v6e MXU)

    key = jax.random.PRNGKey(0)
    keys = jax.random.split(key, 12)

    def lin(k, i, o, scale=0.02):
        return jax.random.normal(k, (i, o), jnp.float32) * scale

    emb = jax.random.normal(keys[0], (NUM_CHR, EMB_DIM), jnp.float32) * 0.1
    emb = emb.at[PAD_IDX].set(0.0)               # nn.Embedding(padding_idx=...) row

    params = dict(
        emb=emb,
        w1=lin(keys[1], EMB_DIM, DIMS[0]),
        b1=jax.random.normal(keys[2], (1, DIMS[0]), jnp.float32) * 0.01,
        w2=lin(keys[3], DIMS[0], DIMS[1]),
        b2=jax.random.normal(keys[4], (1, DIMS[1]), jnp.float32) * 0.01,
        w3=lin(keys[5], DIMS[1], DIMS[2]),
        b3=jax.random.normal(keys[6], (1, DIMS[2]), jnp.float32) * 0.01,
        wc=lin(keys[7], DIMS[2], 1),
        wextra=jax.random.normal(keys[8], (2,), jnp.float32) * 0.02,
        bc=jax.random.normal(keys[9], (1,), jnp.float32) * 0.01,
    )

    chrs = jax.random.randint(keys[10], (B, L), 0, NUM_CHR, dtype=jnp.int32)
    wlens = jax.random.uniform(keys[11], (B, 1), jnp.float32, 1.0, 10.0)
    nsyls = jnp.round(wlens / 3.0)

    kparams = prepare_kernel_params(params, seq_len=L)
    out = chr_plus_word_emb_reg(chrs, wlens, nsyls, kparams, tb=TB)
    out = jax.block_until_ready(out)

    ref = reference(chrs, wlens, nsyls, params)
    assert out.shape == (B, 1), out.shape
    # bf16 weights/activations (f32 accumulate) vs pure-f32 reference -> loose tol.
    assert jnp.allclose(out, ref, atol=5e-3, rtol=1e-2), (
        "max abs diff", float(jnp.max(jnp.abs(out - ref))))

    # TODO(synk): training-mode locked_dropout (Bernoulli mask shared across batch)
    # not implemented; kernel reproduces eval-mode forward only.
    print("KERNEL_OK")
</pallas_src>

<mosaic_0001>
module attributes {stable_mosaic.version = 11 : i64} {
  func.func @_chr_word_kernel(%arg0: i32, %arg1: memref<256x12xi32, #tpu.memory_space<vmem>>, %arg2: memref<256x1xf32, #tpu.memory_space<vmem>>, %arg3: memref<256x1xf32, #tpu.memory_space<vmem>>, %arg4: memref<32x128xf32, #tpu.memory_space<vmem>>, %arg5: memref<128x1024xbf16, #tpu.memory_space<vmem>>, %arg6: memref<1x1024xf32, #tpu.memory_space<vmem>>, %arg7: memref<1024x512xbf16, #tpu.memory_space<vmem>>, %arg8: memref<1x512xf32, #tpu.memory_space<vmem>>, %arg9: memref<512x256xbf16, #tpu.memory_space<vmem>>, %arg10: memref<1x256xf32, #tpu.memory_space<vmem>>, %arg11: memref<1x256xf32, #tpu.memory_space<vmem>>, %arg12: memref<3xf32, #tpu.memory_space<smem>>, %arg13: memref<256x1xf32, #tpu.memory_space<vmem>>) attributes {dimension_semantics = [#tpu.dimension_semantics<parallel>], iteration_bounds = array<i64: 2>, scalar_prefetch = 0 : i64, scratch_operands = 0 : i64, tpu.core_type = #tpu.core_type<tc>, window_params = [{transform_indices = @transform_0, window_bounds = array<i64: 256, 12>}, {transform_indices = @transform_1, window_bounds = array<i64: 256, 1>}, {transform_indices = @transform_2, window_bounds = array<i64: 256, 1>}, {pipeline_mode = #tpu.pipeline_mode<synchronous>, transform_indices = @transform_3, window_bounds = array<i64: 32, 128>}, {pipeline_mode = #tpu.pipeline_mode<synchronous>, transform_indices = @transform_4, window_bounds = array<i64: 128, 1024>}, {pipeline_mode = #tpu.pipeline_mode<synchronous>, transform_indices = @transform_5, window_bounds = array<i64: 1, 1024>}, {pipeline_mode = #tpu.pipeline_mode<synchronous>, transform_indices = @transform_6, window_bounds = array<i64: 1024, 512>}, {pipeline_mode = #tpu.pipeline_mode<synchronous>, transform_indices = @transform_7, window_bounds = array<i64: 1, 512>}, {pipeline_mode = #tpu.pipeline_mode<synchronous>, transform_indices = @transform_8, window_bounds = array<i64: 512, 256>}, {pipeline_mode = #tpu.pipeline_mode<synchronous>, transform_indices = @transform_9, window_bounds = array<i64: 1, 256>}, {pipeline_mode = #tpu.pipeline_mode<synchronous>, transform_indices = @transform_10, window_bounds = array<i64: 1, 256>}, {transform_indices = @transform_11, window_bounds = array<i64: 3>}, {transform_indices = @transform_12, window_bounds = array<i64: 256, 1>}]} {
    %c0 = arith.constant 0 : index
    %c0_0 = arith.constant 0 : index
    %0 = vector.load %arg1[%c0, %c0_0] : memref<256x12xi32, #tpu.memory_space<vmem>>, vector<256x12xi32>
    %1 = tpu.iota {dimensions = array<i32: 1>} : vector<256x32xi32>
    %cst = arith.constant 0.000000e+00 : f32
    %2 = vector.broadcast %cst : f32 to vector<256x32xf32>
    %3 = vector.extract_strided_slice %0 {offsets = [0, 0], sizes = [256, 1], strides = [1, 1]} : vector<256x12xi32> to vector<256x1xi32>
    %4 = vector.broadcast %3 : vector<256x1xi32> to vector<256x32xi32>
    %5 = arith.cmpi eq, %4, %1 : vector<256x32xi32>
    %6 = arith.extui %5 : vector<256x32xi1> to vector<256x32xi32>
    %7 = arith.sitofp %6 : vector<256x32xi32> to vector<256x32xf32>
    %8 = arith.addf %2, %7 : vector<256x32xf32>
    %9 = vector.extract_strided_slice %0 {offsets = [0, 1], sizes = [256, 1], strides = [1, 1]} : vector<256x12xi32> to vector<256x1xi32>
    %10 = vector.broadcast %9 : vector<256x1xi32> to vector<256x32xi32>
    %11 = arith.cmpi eq, %10, %1 : vector<256x32xi32>
    %12 = arith.extui %11 : vector<256x32xi1> to vector<256x32xi32>
    %13 = arith.sitofp %12 : vector<256x32xi32> to vector<256x32xf32>
    %14 = arith.addf %8, %13 : vector<256x32xf32>
    %15 = vector.extract_strided_slice %0 {offsets = [0, 2], sizes = [256, 1], strides = [1, 1]} : vector<256x12xi32> to vector<256x1xi32>
    %16 = vector.broadcast %15 : vector<256x1xi32> to vector<256x32xi32>
    %17 = arith.cmpi eq, %16, %1 : vector<256x32xi32>
    %18 = arith.extui %17 : vector<256x32xi1> to vector<256x32xi32>
    %19 = arith.sitofp %18 : vector<256x32xi32> to vector<256x32xf32>
    %20 = arith.addf %14, %19 : vector<256x32xf32>
    %21 = vector.extract_strided_slice %0 {offsets = [0, 3], sizes = [256, 1], strides = [1, 1]} : vector<256x12xi32> to vector<256x1xi32>
    %22 = vector.broadcast %21 : vector<256x1xi32> to vector<256x32xi32>
    %23 = arith.cmpi eq, %22, %1 : vector<256x32xi32>
    %24 = arith.extui %23 : vector<256x32xi1> to vector<256x32xi32>
    %25 = arith.sitofp %24 : vector<256x32xi32> to vector<256x32xf32>
    %26 = arith.addf %20, %25 : vector<256x32xf32>
    %27 = vector.extract_strided_slice %0 {offsets = [0, 4], sizes = [256, 1], strides = [1, 1]} : vector<256x12xi32> to vector<256x1xi32>
    %28 = vector.broadcast %27 : vector<256x1xi32> to vector<256x32xi32>
    %29 = arith.cmpi eq, %28, %1 : vector<256x32xi32>
    %30 = arith.extui %29 : vector<256x32xi1> to vector<256x32xi32>
    %31 = arith.sitofp %30 : vector<256x32xi32> to vector<256x32xf32>
    %32 = arith.addf %26, %31 : vector<256x32xf32>
    %33 = vector.extract_strided_slice %0 {offsets = [0, 5], sizes = [256, 1], strides = [1, 1]} : vector<256x12xi32> to vector<256x1xi32>
    %34 = vector.broadcast %33 : vector<256x1xi32> to vector<256x32xi32>
    %35 = arith.cmpi eq, %34, %1 : vector<256x32xi32>
    %36 = arith.extui %35 : vector<256x32xi1> to vector<256x32xi32>
    %37 = arith.sitofp %36 : vector<256x32xi32> to vector<256x32xf32>
    %38 = arith.addf %32, %37 : vector<256x32xf32>
    %39 = vector.extract_strided_slice %0 {offsets = [0, 6], sizes = [256, 1], strides = [1, 1]} : vector<256x12xi32> to vector<256x1xi32>
    %40 = vector.broadcast %39 : vector<256x1xi32> to vector<256x32xi32>
    %41 = arith.cmpi eq, %40, %1 : vector<256x32xi32>
    %42 = arith.extui %41 : vector<256x32xi1> to vector<256x32xi32>
    %43 = arith.sitofp %42 : vector<256x32xi32> to vector<256x32xf32>
    %44 = arith.addf %38, %43 : vector<256x32xf32>
    %45 = vector.extract_strided_slice %0 {offsets = [0, 7], sizes = [256, 1], strides = [1, 1]} : vector<256x12xi32> to vector<256x1xi32>
    %46 = vector.broadcast %45 : vector<256x1xi32> to vector<256x32xi32>
    %47 = arith.cmpi eq, %46, %1 : vector<256x32xi32>
    %48 = arith.extui %47 : vector<256x32xi1> to vector<256x32xi32>
    %49 = arith.sitofp %48 : vector<256x32xi32> to vector<256x32xf32>
    %50 = arith.addf %44, %49 : vector<256x32xf32>
    %51 = vector.extract_strided_slice %0 {offsets = [0, 8], sizes = [256, 1], strides = [1, 1]} : vector<256x12xi32> to vector<256x1xi32>
    %52 = vector.broadcast %51 : vector<256x1xi32> to vector<256x32xi32>
    %53 = arith.cmpi eq, %52, %1 : vector<256x32xi32>
    %54 = arith.extui %53 : vector<256x32xi1> to vector<256x32xi32>
    %55 = arith.sitofp %54 : vector<256x32xi32> to vector<256x32xf32>
    %56 = arith.addf %50, %55 : vector<256x32xf32>
    %57 = vector.extract_strided_slice %0 {offsets = [0, 9], sizes = [256, 1], strides = [1, 1]} : vector<256x12xi32> to vector<256x1xi32>
    %58 = vector.broadcast %57 : vector<256x1xi32> to vector<256x32xi32>
    %59 = arith.cmpi eq, %58, %1 : vector<256x32xi32>
    %60 = arith.extui %59 : vector<256x32xi1> to vector<256x32xi32>
    %61 = arith.sitofp %60 : vector<256x32xi32> to vector<256x32xf32>
    %62 = arith.addf %56, %61 : vector<256x32xf32>
    %63 = vector.extract_strided_slice %0 {offsets = [0, 10], sizes = [256, 1], strides = [1, 1]} : vector<256x12xi32> to vector<256x1xi32>
    %64 = vector.broadcast %63 : vector<256x1xi32> to vector<256x32xi32>
    %65 = arith.cmpi eq, %64, %1 : vector<256x32xi32>
    %66 = arith.extui %65 : vector<256x32xi1> to vector<256x32xi32>
    %67 = arith.sitofp %66 : vector<256x32xi32> to vector<256x32xf32>
    %68 = arith.addf %62, %67 : vector<256x32xf32>
    %69 = vector.extract_strided_slice %0 {offsets = [0, 11], sizes = [256, 1], strides = [1, 1]} : vector<256x12xi32> to vector<256x1xi32>
    %70 = vector.broadcast %69 : vector<256x1xi32> to vector<256x32xi32>
    %71 = arith.cmpi eq, %70, %1 : vector<256x32xi32>
    %72 = arith.extui %71 : vector<256x32xi1> to vector<256x32xi32>
    %73 = arith.sitofp %72 : vector<256x32xi32> to vector<256x32xf32>
    %74 = arith.addf %68, %73 : vector<256x32xf32>
    %c0_1 = arith.constant 0 : index
    %c0_2 = arith.constant 0 : index
    %75 = vector.load %arg4[%c0_1, %c0_2] : memref<32x128xf32, #tpu.memory_space<vmem>>, vector<32x128xf32>
    %cst_3 = arith.constant dense<0.000000e+00> : vector<256x128xf32>
    %76 = tpu.matmul %74, %75, %cst_3 {dimension_numbers = #tpu.dot_dimension_numbers<[1], [0], [0], [1], [0, 0, 1, 1], [], []>} : vector<256x32xf32>, vector<32x128xf32>, vector<256x128xf32> -> vector<256x128xf32>
    %77 = arith.truncf %76 : vector<256x128xf32> to vector<256x128xbf16>
    %c0_4 = arith.constant 0 : index
    %c0_5 = arith.constant 0 : index
    %78 = vector.load %arg5[%c0_4, %c0_5] : memref<128x1024xbf16, #tpu.memory_space<vmem>>, vector<128x1024xbf16>
    %cst_6 = arith.constant dense<0.000000e+00> : vector<256x1024xf32>
    %79 = tpu.matmul %77, %78, %cst_6 {dimension_numbers = #tpu.dot_dimension_numbers<[1], [0], [0], [1], [0, 0, 1, 1], [], []>} : vector<256x128xbf16>, vector<128x1024xbf16>, vector<256x1024xf32> -> vector<256x1024xf32>
    %c0_7 = arith.constant 0 : index
    %c0_8 = arith.constant 0 : index
    %80 = vector.load %arg6[%c0_7, %c0_8] : memref<1x1024xf32, #tpu.memory_space<vmem>>, vector<1x1024xf32>
    %81 = vector.broadcast %80 : vector<1x1024xf32> to vector<256x1024xf32>
    %82 = arith.addf %79, %81 : vector<256x1024xf32>
    %cst_9 = arith.constant 0.000000e+00 : f32
    %83 = vector.broadcast %cst_9 : f32 to vector<256x1024xf32>
    %84 = arith.maximumf %82, %83 : vector<256x1024xf32>
    %85 = arith.truncf %84 : vector<256x1024xf32> to vector<256x1024xbf16>
    %c0_10 = arith.constant 0 : index
    %c0_11 = arith.constant 0 : index
    %86 = vector.load %arg7[%c0_10, %c0_11] : memref<1024x512xbf16, #tpu.memory_space<vmem>>, vector<1024x512xbf16>
    %cst_12 = arith.constant dense<0.000000e+00> : vector<256x512xf32>
    %87 = tpu.matmul %85, %86, %cst_12 {dimension_numbers = #tpu.dot_dimension_numbers<[1], [0], [0], [1], [0, 0, 1, 1], [], []>} : vector<256x1024xbf16>, vector<1024x512xbf16>, vector<256x512xf32> -> vector<256x512xf32>
    %c0_13 = arith.constant 0 : index
    %c0_14 = arith.constant 0 : index
    %88 = vector.load %arg8[%c0_13, %c0_14] : memref<1x512xf32, #tpu.memory_space<vmem>>, vector<1x512xf32>
    %89 = vector.broadcast %88 : vector<1x512xf32> to vector<256x512xf32>
    %90 = arith.addf %87, %89 : vector<256x512xf32>
    %cst_15 = arith.constant 0.000000e+00 : f32
    %91 = vector.broadcast %cst_15 : f32 to vector<256x512xf32>
    %92 = arith.maximumf %90, %91 : vector<256x512xf32>
    %93 = arith.truncf %92 : vector<256x512xf32> to vector<256x512xbf16>
    %c0_16 = arith.constant 0 : index
    %c0_17 = arith.constant 0 : index
    %94 = vector.load %arg9[%c0_16, %c0_17] : memref<512x256xbf16, #tpu.memory_space<vmem>>, vector<512x256xbf16>
    %cst_18 = arith.constant dense<0.000000e+00> : vector<256x256xf32>
    %95 = tpu.matmul %93, %94, %cst_18 {dimension_numbers = #tpu.dot_dimension_numbers<[1], [0], [0], [1], [0, 0, 1, 1], [], []>} : vector<256x512xbf16>, vector<512x256xbf16>, vector<256x256xf32> -> vector<256x256xf32>
    %c0_19 = arith.constant 0 : index
    %c0_20 = arith.constant 0 : index
    %96 = vector.load %arg10[%c0_19, %c0_20] : memref<1x256xf32, #tpu.memory_space<vmem>>, vector<1x256xf32>
    %97 = vector.broadcast %96 : vector<1x256xf32> to vector<256x256xf32>
    %98 = arith.addf %95, %97 : vector<256x256xf32>
    %cst_21 = arith.constant 0.000000e+00 : f32
    %99 = vector.broadcast %cst_21 : f32 to vector<256x256xf32>
    %100 = arith.maximumf %98, %99 : vector<256x256xf32>
    %c0_22 = arith.constant 0 : index
    %c0_23 = arith.constant 0 : index
    %101 = vector.load %arg11[%c0_22, %c0_23] : memref<1x256xf32, #tpu.memory_space<vmem>>, vector<1x256xf32>
    %102 = vector.broadcast %101 : vector<1x256xf32> to vector<256x256xf32>
    %103 = arith.mulf %100, %102 : vector<256x256xf32>
    %cst_24 = arith.constant dense<0.000000e+00> : vector<256xf32>
    %104 = vector.multi_reduction <add>, %103, %cst_24 [1] : vector<256x256xf32> to vector<256xf32>
    %105 = vector.shape_cast %104 : vector<256xf32> to vector<256x1xf32>
    %c0_25 = arith.constant 0 : index
    %c0_26 = arith.constant 0 : index
    %106 = vector.load %arg2[%c0_25, %c0_26] : memref<256x1xf32, #tpu.memory_space<vmem>>, vector<256x1xf32>
    %c0_27 = arith.constant 0 : index
    %107 = memref.load %arg12[%c0_27] : memref<3xf32, #tpu.memory_space<smem>>
    %108 = vector.broadcast %107 : f32 to vector<256x1xf32>
    %109 = arith.mulf %106, %108 : vector<256x1xf32>
    %110 = arith.addf %105, %109 : vector<256x1xf32>
    %c0_28 = arith.constant 0 : index
    %c0_29 = arith.constant 0 : index
    %111 = vector.load %arg3[%c0_28, %c0_29] : memref<256x1xf32, #tpu.memory_space<vmem>>, vector<256x1xf32>
    %c1 = arith.constant 1 : index
    %112 = memref.load %arg12[%c1] : memref<3xf32, #tpu.memory_space<smem>>
    %113 = vector.broadcast %112 : f32 to vector<256x1xf32>
    %114 = arith.mulf %111, %113 : vector<256x1xf32>
    %115 = arith.addf %110, %114 : vector<256x1xf32>
    %c2 = arith.constant 2 : index
    %116 = memref.load %arg12[%c2] : memref<3xf32, #tpu.memory_space<smem>>
    %117 = vector.broadcast %116 : f32 to vector<256x1xf32>
    %118 = arith.addf %115, %117 : vector<256x1xf32>
    %c0_30 = arith.constant 0 : index
    %c0_31 = arith.constant 0 : index
    %119 = vector.load %arg13[%c0_30, %c0_31] : memref<256x1xf32, #tpu.memory_space<vmem>>, vector<256x1xf32>
    tpu.vector_store %arg13[%c0_30, %c0_31], %118 {strides = array<i32>} : memref<256x1xf32, #tpu.memory_space<vmem>>, vector<256x1xf32>,
    return
  }
  func.func @transform_0(%arg0: i32) -> (i32, i32) {
    %c0_i32 = arith.constant 0 : i32
    %c0_i32_0 = arith.constant 0 : i32
    return %arg0, %c0_i32 : i32, i32
  }
  func.func @transform_1(%arg0: i32) -> (i32, i32) {
    %c0_i32 = arith.constant 0 : i32
    %c0_i32_0 = arith.constant 0 : i32
    return %arg0, %c0_i32 : i32, i32
  }
  func.func @transform_2(%arg0: i32) -> (i32, i32) {
    %c0_i32 = arith.constant 0 : i32
    %c0_i32_0 = arith.constant 0 : i32
    return %arg0, %c0_i32 : i32, i32
  }
  func.func @transform_3(%arg0: i32) -> (i32, i32) {
    %c0_i32 = arith.constant 0 : i32
    %c0_i32_0 = arith.constant 0 : i32
    %c0_i32_1 = arith.constant 0 : i32
    return %c0_i32, %c0_i32_0 : i32, i32
  }
  func.func @transform_4(%arg0: i32) -> (i32, i32) {
    %c0_i32 = arith.constant 0 : i32
    %c0_i32_0 = arith.constant 0 : i32
    %c0_i32_1 = arith.constant 0 : i32
    return %c0_i32, %c0_i32_0 : i32, i32
  }
  func.func @transform_5(%arg0: i32) -> (i32, i32) {
    %c0_i32 = arith.constant 0 : i32
    %c0_i32_0 = arith.constant 0 : i32
    %c0_i32_1 = arith.constant 0 : i32
    return %c0_i32, %c0_i32_0 : i32, i32
  }
  func.func @transform_6(%arg0: i32) -> (i32, i32) {
    %c0_i32 = arith.constant 0 : i32
    %c0_i32_0 = arith.constant 0 : i32
    %c0_i32_1 = arith.constant 0 : i32
    return %c0_i32, %c0_i32_0 : i32, i32
  }
  func.func @transform_7(%arg0: i32) -> (i32, i32) {
    %c0_i32 = arith.constant 0 : i32
    %c0_i32_0 = arith.constant 0 : i32
    %c0_i32_1 = arith.constant 0 : i32
    return %c0_i32, %c0_i32_0 : i32, i32
  }
  func.func @transform_8(%arg0: i32) -> (i32, i32) {
    %c0_i32 = arith.constant 0 : i32
    %c0_i32_0 = arith.constant 0 : i32
    %c0_i32_1 = arith.constant 0 : i32
    return %c0_i32, %c0_i32_0 : i32, i32
  }
  func.func @transform_9(%arg0: i32) -> (i32, i32) {
    %c0_i32 = arith.constant 0 : i32
    %c0_i32_0 = arith.constant 0 : i32
    %c0_i32_1 = arith.constant 0 : i32
    return %c0_i32, %c0_i32_0 : i32, i32
  }
  func.func @transform_10(%arg0: i32) -> (i32, i32) {
    %c0_i32 = arith.constant 0 : i32
    %c0_i32_0 = arith.constant 0 : i32
    %c0_i32_1 = arith.constant 0 : i32
    return %c0_i32, %c0_i32_0 : i32, i32
  }
  func.func @transform_11(%arg0: i32) -> i32 {
    %c0_i32 = arith.constant 0 : i32
    %c0_i32_0 = arith.constant 0 : i32
    return %c0_i32 : i32
  }
  func.func @transform_12(%arg0: i32) -> (i32, i32) {
    %c0_i32 = arith.constant 0 : i32
    %c0_i32_0 = arith.constant 0 : i32
    return %arg0, %c0_i32 : i32, i32
  }
}

</mosaic_0001>

<llo_original>
// kernel: tpu_custom_call.1
$region0: #{tpu_custom_call.1}
  #allocation0 [shape = 'u32[]', space=smem, size = 0x4, offset = 0x4, fixed_abs, tag = 'smem constant byte address 0x4 - core index']
  #allocation1 [shape = 'u32[144,128]{1,0:T(1,128)}', space=vmem, size = 0x12000, scoped, tag = 'internal scratch']
  %s0 = inlined_call_operand.vmem [shape: s32[512,12], index: 0, kind: input, shape index: {}]
  %s1 = inlined_call_operand.vmem [shape: f32[512,1], index: 1, kind: input, shape index: {}]
  %s2 = inlined_call_operand.vmem [shape: f32[512,1], index: 2, kind: input, shape index: {}]
  %s3 = inlined_call_operand.vmem [shape: f32[32,128], index: 3, kind: input, shape index: {}]
  %s4 = inlined_call_operand.vmem [shape: bf16[128,1024], index: 4, kind: input, shape index: {}]
  %s5 = inlined_call_operand.vmem [shape: f32[1,1024], index: 5, kind: input, shape index: {}]
  %s6 = inlined_call_operand.hbm [shape: bf16[1024,512], index: 6, kind: input, shape index: {}]
  %s7 = inlined_call_operand.vmem [shape: f32[1,512], index: 7, kind: input, shape index: {}]
  %s8 = inlined_call_operand.vmem [shape: bf16[512,256], index: 8, kind: input, shape index: {}]
  %s9 = inlined_call_operand.vmem [shape: f32[1,256], index: 9, kind: input, shape index: {}]
  %s10 = inlined_call_operand.vmem [shape: f32[1,256], index: 10, kind: input, shape index: {}]
  %s11 = inlined_call_operand.vmem [shape: f32[3], index: 11, kind: input, shape index: {}]
  %s12 = inlined_call_operand.vmem [shape: f32[512,1], index: 12, kind: output, shape index: {}]
  %s13 = sld [smem:[#allocation0]]
  $region89: #{tpu_custom_call.1} parent=0
    _
  %s15 = ssub.s32 1, %s13
  %s16 = scalar_select 0, %s15, %s13
  $region1: #{tpu_custom_call.1} parent=0
    #allocation2 [shape = 'u8[1048576]{0}', space=vmem, size = 0x100000, scoped, tag = 'input window, operand 6, single buffered']
    #allocation3 [shape = 's32[2]{0}', space=sflag, size = 0x8, scoped, tag = 'scoped memory for tpu_custom_call.1']
    #allocation4 [shape = 's32[2]{0}', space=sflag, size = 0x8, scoped, tag = 'scoped memory for tpu_custom_call.1']
    #allocation5 [shape = 'u8[512]{0}', space=smem, size = 0x200, scoped, tag = 'input window, operand 11, single buffered']
    %17 = vsyncpa [#allocation3], 0
    %18 = vsyncpa [#allocation4], 0
    loop: start=0, step=1, limit=4
    $region2: #{tpu_custom_call.1} parent=1 // loop_pre_header
      _
    $region3: #{tpu_custom_call.1} parent=1 // loop_header
      %s20 = sphi 0, %s24
      %p21 = scmp.ge.s32.totalorder %s20, 4
      %s30 = sphi 0, %s32
      %s33 = sphi 0, %s30
      %s34 = sphi 0, %s33
      %s50 = sphi 0, %s34
      %s56 = sphi 0, %s58
      %s59 = sphi 0, %s56
      %s60 = sphi 0, %s59
      %s76 = sphi 0, %s60
      %s82 = sphi 0, %s84
      %s85 = sphi 0, %s82
      %s86 = sphi 0, %s85
      %s102 = sphi 0, %s86
      %s106 = sphi 0, %s106
      %s108 = sphi 0, %s106
      %s109 = sphi 0, %s108
      %s123 = sphi 0, %s109
      %s127 = sphi 0, %s127
      %s129 = sphi 0, %s127
      %s130 = sphi 0, %s129
      %s144 = sphi 0, %s130
      %s148 = sphi 0, %s148
      %s150 = sphi 0, %s148
      %s151 = sphi 0, %s150
      %s165 = sphi 0, %s151
      %s169 = sphi 0, %s169
      %s171 = sphi 0, %s169
      %s172 = sphi 0, %s171
      %s186 = sphi 0, %s172
      %s190 = sphi 0, %s190
      %s192 = sphi 0, %s190
      %s193 = sphi 0, %s192
      %s207 = sphi 0, %s193
      %s211 = sphi 0, %s211
      %s213 = sphi 0, %s211
      %s214 = sphi 0, %s213
      %s228 = sphi 0, %s214
      %s232 = sphi 0, %s232
      %s234 = sphi 0, %s232
      %s235 = sphi 0, %s234
      %s249 = sphi 0, %s235
      %s253 = sphi 0, %s253
      %s255 = sphi 0, %s253
      %s256 = sphi 0, %s255
      %s270 = sphi 0, %s256
      %s274 = sphi 0, %s274
      %s276 = sphi 0, %s274
      %s277 = sphi 0, %s276
      %s291 = sphi 0, %s277
      %s297 = sphi 0, %s299
      %s300 = sphi 0, %s297
      %s301 = sphi 0, %s300
      %s317 = sphi 0, %s301
    $region4: #{tpu_custom_call.1} parent=1 // loop_header_branch
      %23 = sbr.rel (%p21) target = $region8
    $region5: #{tpu_custom_call.1} parent=1 // loop_body
      %s25 = ssub.s32 %s20, 1
      %s26 = ssub.s32 %s20, 2
      %s27 = sadd.s32 %s20, 1
      %s28 = ssub.s32 %s20, %s27
      %p29 = scmp.eq.s32.totalorder %s28, 0
      %s31 = sadd.s32 %s30, 1
      %s32 = scalar_select %p29, %s30, %s31
      %p35 = pneg %p29
      %p36 = scmp.eq.s32.totalorder %s20, 1
      %p37 = por %p35, %p36
      %p38 = scmp.ne.s32.totalorder %s30, %s33
      %p39 = scmp.eq.s32.totalorder %s20, 0
      %p40 = por %p38, %p39
      %p41 = scmp.ne.s32.totalorder %s30, %s33
      %p42 = scmp.eq.s32.totalorder %s25, 1
      %p43 = por %p41, %p42
      %p44 = scmp.ne.s32.totalorder %s33, %s34
      %p45 = scmp.eq.s32.totalorder %s25, 0
      %p46 = por %p44, %p45
      %p47 = scmp.ne.s32.totalorder %s33, %s34
      %p48 = scmp.eq.s32.totalorder %s26, 1
      %p49 = por %p47, %p48
      %p51 = scmp.ne.s32.totalorder %s34, %s50
      %p52 = scmp.eq.s32.totalorder %s26, 0
      %p53 = por %p51, %p52
      %s54 = ssub.s32 %s20, %s27
      %p55 = scmp.eq.s32.totalorder %s54, 0
      %s57 = sadd.s32 %s56, 1
      %s58 = scalar_select %p55, %s56, %s57
      %p61 = pneg %p55
      %p62 = scmp.eq.s32.totalorder %s20, 1
      %p63 = por %p61, %p62
      %p64 = scmp.ne.s32.totalorder %s56, %s59
      %p65 = scmp.eq.s32.totalorder %s20, 0
      %p66 = por %p64, %p65
      %p67 = scmp.ne.s32.totalorder %s56, %s59
      %p68 = scmp.eq.s32.totalorder %s25, 1
      %p69 = por %p67, %p68
      %p70 = scmp.ne.s32.totalorder %s59, %s60
      %p71 = scmp.eq.s32.totalorder %s25, 0
      %p72 = por %p70, %p71
      %p73 = scmp.ne.s32.totalorder %s59, %s60
      %p74 = scmp.eq.s32.totalorder %s26, 1
      %p75 = por %p73, %p74
      %p77 = scmp.ne.s32.totalorder %s60, %s76
      %p78 = scmp.eq.s32.totalorder %s26, 0
      %p79 = por %p77, %p78
      %s80 = ssub.s32 %s20, %s27
      %p81 = scmp.eq.s32.totalorder %s80, 0
      %s83 = sadd.s32 %s82, 1
      %s84 = scalar_select %p81, %s82, %s83
      %p87 = pneg %p81
      %p88 = scmp.eq.s32.totalorder %s20, 1
      %p89 = por %p87, %p88
      %p90 = scmp.ne.s32.totalorder %s82, %s85
      %p91 = scmp.eq.s32.totalorder %s20, 0
      %p92 = por %p90, %p91
      %p93 = scmp.ne.s32.totalorder %s82, %s85
      %p94 = scmp.eq.s32.totalorder %s25, 1
      %p95 = por %p93, %p94
      %p96 = scmp.ne.s32.totalorder %s85, %s86
      %p97 = scmp.eq.s32.totalorder %s25, 0
      %p98 = por %p96, %p97
      %p99 = scmp.ne.s32.totalorder %s85, %s86
      %p100 = scmp.eq.s32.totalorder %s26, 1
      %p101 = por %p99, %p100
      %p103 = scmp.ne.s32.totalorder %s86, %s102
      %p104 = scmp.eq.s32.totalorder %s26, 0
      %p105 = por %p103, %p104
      %s107 = sadd.s32 %s106, 1
      %p110 = scmp.eq.s32.totalorder %s20, 1
      %p111 = scmp.ne.s32.totalorder %s106, %s108
      %p112 = scmp.eq.s32.totalorder %s20, 0
      %p113 = por %p111, %p112
      %p114 = scmp.ne.s32.totalorder %s106, %s108
      %p115 = scmp.eq.s32.totalorder %s25, 1
      %p116 = por %p114, %p115
      %p117 = scmp.ne.s32.totalorder %s108, %s109
      %p118 = scmp.eq.s32.totalorder %s25, 0
      %p119 = por %p117, %p118
      %p120 = scmp.ne.s32.totalorder %s108, %s109
      %p121 = scmp.eq.s32.totalorder %s26, 1
      %p122 = por %p120, %p121
      %p124 = scmp.ne.s32.totalorder %s109, %s123
      %p125 = scmp.eq.s32.totalorder %s26, 0
      %p126 = por %p124, %p125
      %s128 = sadd.s32 %s127, 1
      %p131 = scmp.eq.s32.totalorder %s20, 1
      %p132 = scmp.ne.s32.totalorder %s127, %s129
      %p133 = scmp.eq.s32.totalorder %s20, 0
      %p134 = por %p132, %p133
      %p135 = scmp.ne.s32.totalorder %s127, %s129
      %p136 = scmp.eq.s32.totalorder %s25, 1
      %p137 = por %p135, %p136
      %p138 = scmp.ne.s32.totalorder %s129, %s130
      %p139 = scmp.eq.s32.totalorder %s25, 0
      %p140 = por %p138, %p139
      %p141 = scmp.ne.s32.totalorder %s129, %s130
      %p142 = scmp.eq.s32.totalorder %s26, 1
      %p143 = por %p141, %p142
      %p145 = scmp.ne.s32.totalorder %s130, %s144
      %p146 = scmp.eq.s32.totalorder %s26, 0
      %p147 = por %p145, %p146
      %s149 = sadd.s32 %s148, 1
      %p152 = scmp.eq.s32.totalorder %s20, 1
      %p153 = scmp.ne.s32.totalorder %s148, %s150
      %p154 = scmp.eq.s32.totalorder %s20, 0
      %p155 = por %p153, %p154
      %p156 = scmp.ne.s32.totalorder %s148, %s150
      %p157 = scmp.eq.s32.totalorder %s25, 1
      %p158 = por %p156, %p157
      %p159 = scmp.ne.s32.totalorder %s150, %s151
      %p160 = scmp.eq.s32.totalorder %s25, 0
      %p161 = por %p159, %p160
      %p162 = scmp.ne.s32.totalorder %s150, %s151
      %p163 = scmp.eq.s32.totalorder %s26, 1
      %p164 = por %p162, %p163
      %p166 = scmp.ne.s32.totalorder %s151, %s165
      %p167 = scmp.eq.s32.totalorder %s26, 0
      %p168 = por %p166, %p167
      %s170 = sadd.s32 %s169, 1
      %p173 = scmp.eq.s32.totalorder %s20, 1
      %p174 = scmp.ne.s32.totalorder %s169, %s171
      %p175 = scmp.eq.s32.totalorder %s20, 0
      %p176 = por %p174, %p175
      %p177 = scmp.ne.s32.totalorder %s169, %s171
      %p178 = scmp.eq.s32.totalorder %s25, 1
      %p179 = por %p177, %p178
      %p180 = scmp.ne.s32.totalorder %s171, %s172
      %p181 = scmp.eq.s32.totalorder %s25, 0
      %p182 = por %p180, %p181
      %p183 = scmp.ne.s32.totalorder %s171, %s172
      %p184 = scmp.eq.s32.totalorder %s26, 1
      %p185 = por %p183, %p184
      %p187 = scmp.ne.s32.totalorder %s172, %s186
      %p188 = scmp.eq.s32.totalorder %s26, 0
      %p189 = por %p187, %p188
      %s191 = sadd.s32 %s190, 1
      %p194 = scmp.eq.s32.totalorder %s20, 1
      %p195 = scmp.ne.s32.totalorder %s190, %s192
      %p196 = scmp.eq.s32.totalorder %s20, 0
      %p197 = por %p195, %p196
      %p198 = scmp.ne.s32.totalorder %s190, %s192
      %p199 = scmp.eq.s32.totalorder %s25, 1
      %p200 = por %p198, %p199
      %p201 = scmp.ne.s32.totalorder %s192, %s193
      %p202 = scmp.eq.s32.totalorder %s25, 0
      %p203 = por %p201, %p202
      %p204 = scmp.ne.s32.totalorder %s192, %s193
      %p205 = scmp.eq.s32.totalorder %s26, 1
      %p206 = por %p204, %p205
      %p208 = scmp.ne.s32.totalorder %s193, %s207
      %p209 = scmp.eq.s32.totalorder %s26, 0
      %p210 = por %p208, %p209
      %s212 = sadd.s32 %s211, 1
      %p215 = scmp.eq.s32.totalorder %s20, 1
      %p216 = scmp.ne.s32.totalorder %s211, %s213
      %p217 = scmp.eq.s32.totalorder %s20, 0
      %p218 = por %p216, %p217
      %p219 = scmp.ne.s32.totalorder %s211, %s213
      %p220 = scmp.eq.s32.totalorder %s25, 1
      %p221 = por %p219, %p220
      %p222 = scmp.ne.s32.totalorder %s213, %s214
      %p223 = scmp.eq.s32.totalorder %s25, 0
      %p224 = por %p222, %p223
      %p225 = scmp.ne.s32.totalorder %s213, %s214
      %p226 = scmp.eq.s32.totalorder %s26, 1
      %p227 = por %p225, %p226
      %p229 = scmp.ne.s32.totalorder %s214, %s228
      %p230 = scmp.eq.s32.totalorder %s26, 0
      %p231 = por %p229, %p230
      %s233 = sadd.s32 %s232, 1
      %p236 = scmp.eq.s32.totalorder %s20, 1
      %p237 = scmp.ne.s32.totalorder %s232, %s234
      %p238 = scmp.eq.s32.totalorder %s20, 0
      %p239 = por %p237, %p238
      %p240 = scmp.ne.s32.totalorder %s232, %s234
      %p241 = scmp.eq.s32.totalorder %s25, 1
      %p242 = por %p240, %p241
      %p243 = scmp.ne.s32.totalorder %s234, %s235
      %p244 = scmp.eq.s32.totalorder %s25, 0
      %p245 = por %p243, %p244
      %p246 = scmp.ne.s32.totalorder %s234, %s235
      %p247 = scmp.eq.s32.totalorder %s26, 1
      %p248 = por %p246, %p247
      %p250 = scmp.ne.s32.totalorder %s235, %s249
      %p251 = scmp.eq.s32.totalorder %s26, 0
      %p252 = por %p250, %p251
      %s254 = sadd.s32 %s253, 1
      %p257 = scmp.eq.s32.totalorder %s20, 1
      %p258 = scmp.ne.s32.totalorder %s253, %s255
      %p259 = scmp.eq.s32.totalorder %s20, 0
      %p260 = por %p258, %p259
      %p261 = scmp.ne.s32.totalorder %s253, %s255
      %p262 = scmp.eq.s32.totalorder %s25, 1
      %p263 = por %p261, %p262
      %p264 = scmp.ne.s32.totalorder %s255, %s256
      %p265 = scmp.eq.s32.totalorder %s25, 0
      %p266 = por %p264, %p265
      %p267 = scmp.ne.s32.totalorder %s255, %s256
      %p268 = scmp.eq.s32.totalorder %s26, 1
      %p269 = por %p267, %p268
      %p271 = scmp.ne.s32.totalorder %s256, %s270
      %p272 = scmp.eq.s32.totalorder %s26, 0
      %p273 = por %p271, %p272
      %s275 = sadd.s32 %s274, 1
      %p278 = scmp.eq.s32.totalorder %s20, 1
      %p279 = scmp.ne.s32.totalorder %s274, %s276
      %p280 = scmp.eq.s32.totalorder %s20, 0
      %p281 = por %p279, %p280
      %p282 = scmp.ne.s32.totalorder %s274, %s276
      %p283 = scmp.eq.s32.totalorder %s25, 1
      %p284 = por %p282, %p283
      %p285 = scmp.ne.s32.totalorder %s276, %s277
      %p286 = scmp.eq.s32.totalorder %s25, 0
      %p287 = por %p285, %p286
      %p288 = scmp.ne.s32.totalorder %s276, %s277
      %p289 = scmp.eq.s32.totalorder %s26, 1
      %p290 = por %p288, %p289
      %p292 = scmp.ne.s32.totalorder %s277, %s291
      %p293 = scmp.eq.s32.totalorder %s26, 0
      %p294 = por %p292, %p293
      %s295 = ssub.s32 %s20, %s27
      %p296 = scmp.eq.s32.totalorder %s295, 0
      %s298 = sadd.s32 %s297, 1
      %s299 = scalar_select %p296, %s297, %s298
      %p302 = pneg %p296
      %p303 = scmp.eq.s32.totalorder %s20, 1
      %p304 = por %p302, %p303
      %p305 = scmp.ne.s32.totalorder %s297, %s300
      %p306 = scmp.eq.s32.totalorder %s20, 0
      %p307 = por %p305, %p306
      %p308 = scmp.ne.s32.totalorder %s297, %s300
      %p309 = scmp.eq.s32.totalorder %s25, 1
      %p310 = por %p308, %p309
      %p311 = scmp.ne.s32.totalorder %s300, %s301
      %p312 = scmp.eq.s32.totalorder %s25, 0
      %p313 = por %p311, %p312
      %p314 = scmp.ne.s32.totalorder %s300, %s301
      %p315 = scmp.eq.s32.totalorder %s26, 1
      %p316 = por %p314, %p315
      %p318 = scmp.ne.s32.totalorder %s301, %s317
      %p319 = scmp.eq.s32.totalorder %s26, 0
      %p320 = por %p318, %p319
      %p321 = scmp.le.s32.totalorder 1, %s20
      %p322 = scmp.lt.s32.totalorder %s20, 3
      %p323 = pnand %p321, %p322
      %p324 = pneg %p323
      // Predicated region
      $region9: #{tpu_custom_call.1} parent=5 // pred_check
        _
      $region10: #{tpu_custom_call.1} parent=5 // pred_check_branch
        %326 = sbr.rel (%p323) target = $region12
      $region11: #{tpu_custom_call.1} parent=5 // pred_region
        %s327 = ssub.s32 %s20, 1
        // Predicated region
        $region13: #{tpu_custom_call.1} parent=11 // pred_check
          %p328 = pneg %p119
        $region14: #{tpu_custom_call.1} parent=11 // pred_check_branch
          %330 = sbr.rel (%p328) target = $region16
        $region15: #{tpu_custom_call.1} parent=11 // pred_region
          _
        $region16: #{tpu_custom_call.1} parent=11 // pred_fallthru
          _
        // Predicated region
        $region17: #{tpu_custom_call.1} parent=11 // pred_check
          %p331 = pneg %p140
        $region18: #{tpu_custom_call.1} parent=11 // pred_check_branch
          %333 = sbr.rel (%p331) target = $region20
        $region19: #{tpu_custom_call.1} parent=11 // pred_region
          _
        $region20: #{tpu_custom_call.1} parent=11 // pred_fallthru
          _
        // Predicated region
        $region21: #{tpu_custom_call.1} parent=11 // pred_check
          %p334 = pneg %p161
        $region22: #{tpu_custom_call.1} parent=11 // pred_check_branch
          %336 = sbr.rel (%p334) target = $region24
        $region23: #{tpu_custom_call.1} parent=11 // pred_region
          _
        $region24: #{tpu_custom_call.1} parent=11 // pred_fallthru
          _
        // Predicated region
        $region25: #{tpu_custom_call.1} parent=11 // pred_check
          %p337 = pneg %p182
        $region26: #{tpu_custom_call.1} parent=11 // pred_check_branch
          %339 = sbr.rel (%p337) target = $region28
        $region27: #{tpu_custom_call.1} parent=11 // pred_region
          %s341 = ssub.s32 32768, 32768
          %342 = vsyncadd [#allocation3], %s341
          %s343 = sshll.u32 [#allocation2], 4
          %s344 = int_to_ptr.vmem [resolvable:$true] %s343
          %349 = dma.hbm_to_vmem [thread:$0]  %s6, 32768, %s344, [#allocation3], 256, 256, 16
        $region28: #{tpu_custom_call.1} parent=11 // pred_fallthru
          _
        // Predicated region
        $region29: #{tpu_custom_call.1} parent=11 // pred_check
          %p350 = pneg %p203
        $region30: #{tpu_custom_call.1} parent=11 // pred_check_branch
          %352 = sbr.rel (%p350) target = $region32
        $region31: #{tpu_custom_call.1} parent=11 // pred_region
          _
        $region32: #{tpu_custom_call.1} parent=11 // pred_fallthru
          _
        // Predicated region
        $region33: #{tpu_custom_call.1} parent=11 // pred_check
          %p353 = pneg %p224
        $region34: #{tpu_custom_call.1} parent=11 // pred_check_branch
          %355 = sbr.rel (%p353) target = $region36
        $region35: #{tpu_custom_call.1} parent=11 // pred_region
          _
        $region36: #{tpu_custom_call.1} parent=11 // pred_fallthru
          _
        // Predicated region
        $region37: #{tpu_custom_call.1} parent=11 // pred_check
          %p356 = pneg %p245
        $region38: #{tpu_custom_call.1} parent=11 // pred_check_branch
          %358 = sbr.rel (%p356) target = $region40
        $region39: #{tpu_custom_call.1} parent=11 // pred_region
          _
        $region40: #{tpu_custom_call.1} parent=11 // pred_fallthru
          _
        // Predicated region
        $region41: #{tpu_custom_call.1} parent=11 // pred_check
          %p359 = pneg %p266
        $region42: #{tpu_custom_call.1} parent=11 // pred_check_branch
          %361 = sbr.rel (%p359) target = $region44
        $region43: #{tpu_custom_call.1} parent=11 // pred_region
          _
        $region44: #{tpu_custom_call.1} parent=11 // pred_fallthru
          _
        // Predicated region
        $region45: #{tpu_custom_call.1} parent=11 // pred_check
          %p362 = pneg %p287
        $region46: #{tpu_custom_call.1} parent=11 // pred_check_branch
          %364 = sbr.rel (%p362) target = $region48
        $region47: #{tpu_custom_call.1} parent=11 // pred_region
          %s366 = ssub.s32 16, 16
          %367 = vsyncadd [#allocation4], %s366
          %s369 = sshll.u32 %s11, 4
          %s370 = int_to_ptr.vmem [resolvable:$true] %s369
          %372 = dma.vmem_to_smem %s370, 16, [#allocation5], [#allocation4]
        $region48: #{tpu_custom_call.1} parent=11 // pred_fallthru
          _
      $region12: #{tpu_custom_call.1} parent=5 // pred_fallthru
        _
      %p373 = scmp.lt.s32.totalorder %s20, 2
      // Predicated region
      $region49: #{tpu_custom_call.1} parent=5 // pred_check
        %p374 = pneg %p373
      $region50: #{tpu_custom_call.1} parent=5 // pred_check_branch
        %376 = sbr.rel (%p374) target = $region52
      $region51: #{tpu_custom_call.1} parent=5 // pred_region
        // Predicated region
        $region53: #{tpu_custom_call.1} parent=51 // pred_check
          %p377 = pneg %p40
        $region54: #{tpu_custom_call.1} parent=51 // pred_check_branch
          %379 = sbr.rel (%p377) target = $region56
        $region55: #{tpu_custom_call.1} parent=51 // pred_region
          %s380 = smul.u32 32, %s20
          %p381 = scmp.lt.s32.totalorder %s380, 63
          %s382 = scalar_select %p381, %s380, 63
          %s383 = smul.addr %s382, 8
          %s384 = scalar_lea.vmem %s0, %s383
          %s385 = smul.u32 32, %s20
        $region56: #{tpu_custom_call.1} parent=51 // pred_fallthru
          _
        // Predicated region
        $region57: #{tpu_custom_call.1} parent=51 // pred_check
          %p386 = pneg %p66
        $region58: #{tpu_custom_call.1} parent=51 // pred_check_branch
          %388 = sbr.rel (%p386) target = $region60
        $region59: #{tpu_custom_call.1} parent=51 // pred_region
          %s389 = smul.u32 32, %s20
          %p390 = scmp.lt.s32.totalorder %s389, 63
          %s391 = scalar_select %p390, %s389, 63
          %s392 = smul.addr %s391, 8
          %s393 = scalar_lea.vmem %s1, %s392
          %s394 = smul.u32 32, %s20
        $region60: #{tpu_custom_call.1} parent=51 // pred_fallthru
          _
        // Predicated region
        $region61: #{tpu_custom_call.1} parent=51 // pred_check
          %p395 = pneg %p92
        $region62: #{tpu_custom_call.1} parent=51 // pred_check_branch
          %397 = sbr.rel (%p395) target = $region64
        $region63: #{tpu_custom_call.1} parent=51 // pred_region
          %s398 = smul.u32 32, %s20
          %p399 = scmp.lt.s32.totalorder %s398, 63
          %s400 = scalar_select %p399, %s398, 63
          %s401 = smul.addr %s400, 8
          %s402 = scalar_lea.vmem %s2, %s401
          %s403 = smul.u32 32, %s20
        $region64: #{tpu_custom_call.1} parent=51 // pred_fallthru
          _
      $region52: #{tpu_custom_call.1} parent=5 // pred_fallthru
        _
      %p404 = scmp.le.s32.totalorder 1, %s20
      %p405 = scmp.lt.s32.totalorder %s20, 3
      %p406 = pnand %p404, %p405
      %p407 = pneg %p406
      // Predicated region
      $region65: #{tpu_custom_call.1} parent=5 // pred_check
        _
      $region66: #{tpu_custom_call.1} parent=5 // pred_check_branch
        %409 = sbr.rel (%p406) target = $region68
      $region67: #{tpu_custom_call.1} parent=5 // pred_region
        %s410 = ssub.s32 %s20, 1
        // Predicated region
        $region69: #{tpu_custom_call.1} parent=67 // pred_check
          %p411 = pneg %p182
        $region70: #{tpu_custom_call.1} parent=67 // pred_check_branch
          %413 = sbr.rel (%p411) target = $region72
        $region71: #{tpu_custom_call.1} parent=67 // pred_region
          %414 = dma.done [#allocation3], 32768
        $region72: #{tpu_custom_call.1} parent=67 // pred_fallthru
          _
        // Predicated region
        $region73: #{tpu_custom_call.1} parent=67 // pred_check
          %p415 = pneg %p287
        $region74: #{tpu_custom_call.1} parent=67 // pred_check_branch
          %417 = sbr.rel (%p415) target = $region76
        $region75: #{tpu_custom_call.1} parent=67 // pred_region
          %418 = dma.done [#allocation4], 16
        $region76: #{tpu_custom_call.1} parent=67 // pred_fallthru
          _
        %419 = sfence
        %s420 = smul.u32 32, %s25
        %p421 = scmp.lt.s32.totalorder %s420, 63
        %s422 = scalar_select %p421, %s420, 63
        %s423 = smul.addr %s422, 8
        %s424 = scalar_lea.vmem %s0, %s423
        %p425 = pneg %p46
        %p426 = pneg %p43
        %s427 = smul.u32 32, %s25
        %p428 = scmp.lt.s32.totalorder %s427, 63
        %s429 = scalar_select %p428, %s427, 63
        %s430 = smul.addr %s429, 8
        %s431 = scalar_lea.vmem %s1, %s430
        %p432 = pneg %p72
        %p433 = pneg %p69
        %s434 = smul.u32 32, %s25
        %p435 = scmp.lt.s32.totalorder %s434, 63
        %s436 = scalar_select %p435, %s434, 63
        %s437 = smul.addr %s436, 8
        %s438 = scalar_lea.vmem %s2, %s437
        %p439 = pneg %p98
        %p440 = pneg %p95
        %p441 = pneg %p119
        %p442 = pneg %p116
        %p443 = pneg %p140
        %p444 = pneg %p137
        %p445 = pneg %p161
        %p446 = pneg %p158
        %p447 = pneg %p182
        %p448 = pneg %p179
        %p449 = pneg %p203
        %p450 = pneg %p200
        %p451 = pneg %p224
        %p452 = pneg %p221
        %p453 = pneg %p245
        %p454 = pneg %p242
        %p455 = pneg %p266
        %p456 = pneg %p263
        %p457 = pneg %p287
        %p458 = pneg %p284
        %p459 = pneg %p313
        %p460 = pneg %p310
        %s461 = smul.u32 32, %s25
        %p462 = scmp.lt.s32.totalorder %s461, 63
        %s463 = scalar_select %p462, %s461, 63
        %s464 = smul.addr %s463, 8
        %s465 = scalar_lea.vmem %s12, %s464
        %s466 = smul.u32 32, %s25
        %p467 = scmp.lt.s32.totalorder %s466, 63
        %s468 = scalar_select %p467, %s466, 63
        %s469 = smul.addr %s468, 8
        %s470 = scalar_lea.vmem %s0, %s469
        %s471 = smul.u32 32, %s25
        %s472 = smul.u32 32, %s25
        %p473 = scmp.lt.s32.totalorder %s472, 63
        %s474 = scalar_select %p473, %s472, 63
        %s475 = smul.addr %s474, 8
        %s476 = scalar_lea.vmem %s1, %s475
        %s477 = smul.u32 32, %s25
        %s478 = smul.u32 32, %s25
        %p479 = scmp.lt.s32.totalorder %s478, 63
        %s480 = scalar_select %p479, %s478, 63
        %s481 = smul.addr %s480, 8
        %s482 = scalar_lea.vmem %s2, %s481
        %s483 = smul.u32 32, %s25
        %s484 = smul.u32 32, %s25
        %p485 = scmp.lt.s32.totalorder %s484, 63
        %s486 = scalar_select %p485, %s484, 63
        %s487 = smul.addr %s486, 8
        %s488 = scalar_lea.vmem %s12, %s487
        %s489 = smul.u32 32, %s25
        %v491 = vld [vmem:[%s470] sm:$0xff]
        %v492 = vld [vmem:[%s470 + $0x8] sm:$0xff]
        %v493 = vld [vmem:[%s470 + $0x10] sm:$0xff]
        %v494 = vld [vmem:[%s470 + $0x18] sm:$0xff]
        %v495 = vld [vmem:[%s470 + $0x20] sm:$0xff]
        %v496 = vld [vmem:[%s470 + $0x28] sm:$0xff]
        %v497 = vld [vmem:[%s470 + $0x30] sm:$0xff]
        %v498 = vld [vmem:[%s470 + $0x38] sm:$0xff]
        %v499 = vld [vmem:[%s470 + $0x40] sm:$0xff]
        %v500 = vld [vmem:[%s470 + $0x48] sm:$0xff]
        %v501 = vld [vmem:[%s470 + $0x50] sm:$0xff]
        %v502 = vld [vmem:[%s470 + $0x58] sm:$0xff]
        %v503 = vld [vmem:[%s470 + $0x60] sm:$0xff]
        %v504 = vld [vmem:[%s470 + $0x68] sm:$0xff]
        %v505 = vld [vmem:[%s470 + $0x70] sm:$0xff]
        %v506 = vld [vmem:[%s470 + $0x78] sm:$0xff]
        %v507 = vld [vmem:[%s470 + $0x80] sm:$0xff]
        %v508 = vld [vmem:[%s470 + $0x88] sm:$0xff]
        %v509 = vld [vmem:[%s470 + $0x90] sm:$0xff]
        %v510 = vld [vmem:[%s470 + $0x98] sm:$0xff]
        %v511 = vld [vmem:[%s470 + $0xa0] sm:$0xff]
        %v512 = vld [vmem:[%s470 + $0xa8] sm:$0xff]
        %v513 = vld [vmem:[%s470 + $0xb0] sm:$0xff]
        %v514 = vld [vmem:[%s470 + $0xb8] sm:$0xff]
        %v515 = vld [vmem:[%s470 + $0xc0] sm:$0xff]
        %v516 = vld [vmem:[%s470 + $0xc8] sm:$0xff]
        %v517 = vld [vmem:[%s470 + $0xd0] sm:$0xff]
        %v518 = vld [vmem:[%s470 + $0xd8] sm:$0xff]
        %v519 = vld [vmem:[%s470 + $0xe0] sm:$0xff]
        %v520 = vld [vmem:[%s470 + $0xe8] sm:$0xff]
        %v521 = vld [vmem:[%s470 + $0xf0] sm:$0xff]
        %v522 = vld [vmem:[%s470 + $0xf8] sm:$0xff]
        %v523 = vlaneseq
        %v524 = vand.u32 %v523, 127
        %525 = vset.pattern.permute.xlu0 0
        %526 = vperm.xlu0 %525, %v491
        %v527 = vpop.permute.xlu0 %526
        %528 = vset.pattern.permute.xlu0 0
        %529 = vperm.xlu0 %528, %v492
        %v530 = vpop.permute.xlu0 %529
        %531 = vset.pattern.permute.xlu0 0
        %532 = vperm.xlu0 %531, %v493
        %v533 = vpop.permute.xlu0 %532
        %534 = vset.pattern.permute.xlu0 0
        %535 = vperm.xlu0 %534, %v494
        %v536 = vpop.permute.xlu0 %535
        %537 = vset.pattern.permute.xlu0 0
        %538 = vperm.xlu0 %537, %v495
        %v539 = vpop.permute.xlu0 %538
        %540 = vset.pattern.permute.xlu0 0
        %541 = vperm.xlu0 %540, %v496
        %v542 = vpop.permute.xlu0 %541
        %543 = vset.pattern.permute.xlu0 0
        %544 = vperm.xlu0 %543, %v497
        %v545 = vpop.permute.xlu0 %544
        %546 = vset.pattern.permute.xlu0 0
        %547 = vperm.xlu0 %546, %v498
        %v548 = vpop.permute.xlu0 %547
        %549 = vset.pattern.permute.xlu0 0
        %550 = vperm.xlu0 %549, %v499
        %v551 = vpop.permute.xlu0 %550
        %552 = vset.pattern.permute.xlu0 0
        %553 = vperm.xlu0 %552, %v500
        %v554 = vpop.permute.xlu0 %553
        %555 = vset.pattern.permute.xlu0 0
        %556 = vperm.xlu0 %555, %v501
        %v557 = vpop.permute.xlu0 %556
        %558 = vset.pattern.permute.xlu0 0
        %559 = vperm.xlu0 %558, %v502
        %v560 = vpop.permute.xlu0 %559
        %561 = vset.pattern.permute.xlu0 0
        %562 = vperm.xlu0 %561, %v503
        %v563 = vpop.permute.xlu0 %562
        %564 = vset.pattern.permute.xlu0 0
        %565 = vperm.xlu0 %564, %v504
        %v566 = vpop.permute.xlu0 %565
        %567 = vset.pattern.permute.xlu0 0
        %568 = vperm.xlu0 %567, %v505
        %v569 = vpop.permute.xlu0 %568
        %570 = vset.pattern.permute.xlu0 0
        %571 = vperm.xlu0 %570, %v506
        %v572 = vpop.permute.xlu0 %571
        %573 = vset.pattern.permute.xlu0 0
        %574 = vperm.xlu0 %573, %v507
        %v575 = vpop.permute.xlu0 %574
        %576 = vset.pattern.permute.xlu0 0
        %577 = vperm.xlu0 %576, %v508
        %v578 = vpop.permute.xlu0 %577
        %579 = vset.pattern.permute.xlu0 0
        %580 = vperm.xlu0 %579, %v509
        %v581 = vpop.permute.xlu0 %580
        %582 = vset.pattern.permute.xlu0 0
        %583 = vperm.xlu0 %582, %v510
        %v584 = vpop.permute.xlu0 %583
        %585 = vset.pattern.permute.xlu0 0
        %586 = vperm.xlu0 %585, %v511
        %v587 = vpop.permute.xlu0 %586
        %588 = vset.pattern.permute.xlu0 0
        %589 = vperm.xlu0 %588, %v512
        %v590 = vpop.permute.xlu0 %589
        %591 = vset.pattern.permute.xlu0 0
        %592 = vperm.xlu0 %591, %v513
        %v593 = vpop.permute.xlu0 %592
        %594 = vset.pattern.permute.xlu0 0
        %595 = vperm.xlu0 %594, %v514
        %v596 = vpop.permute.xlu0 %595
        %597 = vset.pattern.permute.xlu0 0
        %598 = vperm.xlu0 %597, %v515
        %v599 = vpop.permute.xlu0 %598
        %600 = vset.pattern.permute.xlu0 0
        %601 = vperm.xlu0 %600, %v516
        %v602 = vpop.permute.xlu0 %601
        %603 = vset.pattern.permute.xlu0 0
        %604 = vperm.xlu0 %603, %v517
        %v605 = vpop.permute.xlu0 %604
        %606 = vset.pattern.permute.xlu0 0
        %607 = vperm.xlu0 %606, %v518
        %v608 = vpop.permute.xlu0 %607
        %609 = vset.pattern.permute.xlu0 0
        %610 = vperm.xlu0 %609, %v519
        %v611 = vpop.permute.xlu0 %610
        %612 = vset.pattern.permute.xlu0 0
        %613 = vperm.xlu0 %612, %v520
        %v614 = vpop.permute.xlu0 %613
        %615 = vset.pattern.permute.xlu0 0
        %616 = vperm.xlu0 %615, %v521
        %v617 = vpop.permute.xlu0 %616
        %618 = vset.pattern.permute.xlu0 0
        %619 = vperm.xlu0 %618, %v522
        %v620 = vpop.permute.xlu0 %619
        %vm621 = vcmp.eq.s32.totalorder %v527, %v524
        %vm622 = vcmp.eq.s32.totalorder %v530, %v524
        %vm623 = vcmp.eq.s32.totalorder %v533, %v524
        %vm624 = vcmp.eq.s32.totalorder %v536, %v524
        %vm625 = vcmp.eq.s32.totalorder %v539, %v524
        %vm626 = vcmp.eq.s32.totalorder %v542, %v524
        %vm627 = vcmp.eq.s32.totalorder %v545, %v524
        %vm628 = vcmp.eq.s32.totalorder %v548, %v524
        %vm629 = vcmp.eq.s32.totalorder %v551, %v524
        %vm630 = vcmp.eq.s32.totalorder %v554, %v524
        %vm631 = vcmp.eq.s32.totalorder %v557, %v524
        %vm632 = vcmp.eq.s32.totalorder %v560, %v524
        %vm633 = vcmp.eq.s32.totalorder %v563, %v524
        %vm634 = vcmp.eq.s32.totalorder %v566, %v524
        %vm635 = vcmp.eq.s32.totalorder %v569, %v524
        %vm636 = vcmp.eq.s32.totalorder %v572, %v524
        %vm637 = vcmp.eq.s32.totalorder %v575, %v524
        %vm638 = vcmp.eq.s32.totalorder %v578, %v524
        %vm639 = vcmp.eq.s32.totalorder %v581, %v524
        %vm640 = vcmp.eq.s32.totalorder %v584, %v524
        %vm641 = vcmp.eq.s32.totalorder %v587, %v524
        %vm642 = vcmp.eq.s32.totalorder %v590, %v524
        %vm643 = vcmp.eq.s32.totalorder %v593, %v524
        %vm644 = vcmp.eq.s32.totalorder %v596, %v524
        %vm645 = vcmp.eq.s32.totalorder %v599, %v524
        %vm646 = vcmp.eq.s32.totalorder %v602, %v524
        %vm647 = vcmp.eq.s32.totalorder %v605, %v524
        %vm648 = vcmp.eq.s32.totalorder %v608, %v524
        %vm649 = vcmp.eq.s32.totalorder %v611, %v524
        %vm650 = vcmp.eq.s32.totalorder %v614, %v524
        %vm651 = vcmp.eq.s32.totalorder %v617, %v524
        %vm652 = vcmp.eq.s32.totalorder %v620, %v524
        %v653 = vsel %vm621, 1, 0
        %v654 = vsel %vm622, 1, 0
        %v655 = vsel %vm623, 1, 0
        %v656 = vsel %vm624, 1, 0
        %v657 = vsel %vm625, 1, 0
        %v658 = vsel %vm626, 1, 0
        %v659 = vsel %vm627, 1, 0
        %v660 = vsel %vm628, 1, 0
        %v661 = vsel %vm629, 1, 0
        %v662 = vsel %vm630, 1, 0
        %v663 = vsel %vm631, 1, 0
        %v664 = vsel %vm632, 1, 0
        %v665 = vsel %vm633, 1, 0
        %v666 = vsel %vm634, 1, 0
        %v667 = vsel %vm635, 1, 0
        %v668 = vsel %vm636, 1, 0
        %v669 = vsel %vm637, 1, 0
        %v670 = vsel %vm638, 1, 0
        %v671 = vsel %vm639, 1, 0
        %v672 = vsel %vm640, 1, 0
        %v673 = vsel %vm641, 1, 0
        %v674 = vsel %vm642, 1, 0
        %v675 = vsel %vm643, 1, 0
        %v676 = vsel %vm644, 1, 0
        %v677 = vsel %vm645, 1, 0
        %v678 = vsel %vm646, 1, 0
        %v679 = vsel %vm647, 1, 0
        %v680 = vsel %vm648, 1, 0
        %v681 = vsel %vm649, 1, 0
        %v682 = vsel %vm650, 1, 0
        %v683 = vsel %vm651, 1, 0
        %v684 = vsel %vm652, 1, 0
        %v685 = vcvt.s32.f32 %v653
        %v686 = vcvt.s32.f32 %v654
        %v687 = vcvt.s32.f32 %v655
        %v688 = vcvt.s32.f32 %v656
        %v689 = vcvt.s32.f32 %v657
        %v690 = vcvt.s32.f32 %v658
        %v691 = vcvt.s32.f32 %v659
        %v692 = vcvt.s32.f32 %v660
        %v693 = vcvt.s32.f32 %v661
        %v694 = vcvt.s32.f32 %v662
        %v695 = vcvt.s32.f32 %v663
        %v696 = vcvt.s32.f32 %v664
        %v697 = vcvt.s32.f32 %v665
        %v698 = vcvt.s32.f32 %v666
        %v699 = vcvt.s32.f32 %v667
        %v700 = vcvt.s32.f32 %v668
        %v701 = vcvt.s32.f32 %v669
        %v702 = vcvt.s32.f32 %v670
        %v703 = vcvt.s32.f32 %v671
        %v704 = vcvt.s32.f32 %v672
        %v705 = vcvt.s32.f32 %v673
        %v706 = vcvt.s32.f32 %v674
        %v707 = vcvt.s32.f32 %v675
        %v708 = vcvt.s32.f32 %v676
        %v709 = vcvt.s32.f32 %v677
        %v710 = vcvt.s32.f32 %v678
        %v711 = vcvt.s32.f32 %v679
        %v712 = vcvt.s32.f32 %v680
        %v713 = vcvt.s32.f32 %v681
        %v714 = vcvt.s32.f32 %v682
        %v715 = vcvt.s32.f32 %v683
        %v716 = vcvt.s32.f32 %v684
        %v717 = vadd.f32 %v685, 0.0
        %v718 = vadd.f32 %v686, 0.0
        %v719 = vadd.f32 %v687, 0.0
        %v720 = vadd.f32 %v688, 0.0
        %v721 = vadd.f32 %v689, 0.0
        %v722 = vadd.f32 %v690, 0.0
        %v723 = vadd.f32 %v691, 0.0
        %v724 = vadd.f32 %v692, 0.0
        %v725 = vadd.f32 %v693, 0.0
        %v726 = vadd.f32 %v694, 0.0
        %v727 = vadd.f32 %v695, 0.0
        %v728 = vadd.f32 %v696, 0.0
        %v729 = vadd.f32 %v697, 0.0
        %v730 = vadd.f32 %v698, 0.0
        %v731 = vadd.f32 %v699, 0.0
        %v732 = vadd.f32 %v700, 0.0
        %v733 = vadd.f32 %v701, 0.0
        %v734 = vadd.f32 %v702, 0.0
        %v735 = vadd.f32 %v703, 0.0
        %v736 = vadd.f32 %v704, 0.0
        %v737 = vadd.f32 %v705, 0.0
        %v738 = vadd.f32 %v706, 0.0
        %v739 = vadd.f32 %v707, 0.0
        %v740 = vadd.f32 %v708, 0.0
        %v741 = vadd.f32 %v709, 0.0
        %v742 = vadd.f32 %v710, 0.0
        %v743 = vadd.f32 %v711, 0.0
        %v744 = vadd.f32 %v712, 0.0
        %v745 = vadd.f32 %v713, 0.0
        %v746 = vadd.f32 %v714, 0.0
        %v747 = vadd.f32 %v715, 0.0
        %v748 = vadd.f32 %v716, 0.0
        %749 = vset.pattern.permute.xlu0 1
        %750 = vperm.xlu0 %749, %v491
        %v751 = vpop.permute.xlu0 %750
        %752 = vset.pattern.permute.xlu0 1
        %753 = vperm.xlu0 %752, %v492
        %v754 = vpop.permute.xlu0 %753
        %755 = vset.pattern.permute.xlu0 1
        %756 = vperm.xlu0 %755, %v493
        %v757 = vpop.permute.xlu0 %756
        %758 = vset.pattern.permute.xlu0 1
        %759 = vperm.xlu0 %758, %v494
        %v760 = vpop.permute.xlu0 %759
        %761 = vset.pattern.permute.xlu0 1
        %762 = vperm.xlu0 %761, %v495
        %v763 = vpop.permute.xlu0 %762
        %764 = vset.pattern.permute.xlu0 1
        %765 = vperm.xlu0 %764, %v496
        %v766 = vpop.permute.xlu0 %765
        %767 = vset.pattern.permute.xlu0 1
        %768 = vperm.xlu0 %767, %v497
        %v769 = vpop.permute.xlu0 %768
        %770 = vset.pattern.permute.xlu0 1
        %771 = vperm.xlu0 %770, %v498
        %v772 = vpop.permute.xlu0 %771
        %773 = vset.pattern.permute.xlu0 1
        %774 = vperm.xlu0 %773, %v499
        %v775 = vpop.permute.xlu0 %774
        %776 = vset.pattern.permute.xlu0 1
        %777 = vperm.xlu0 %776, %v500
        %v778 = vpop.permute.xlu0 %777
        %779 = vset.pattern.permute.xlu0 1
        %780 = vperm.xlu0 %779, %v501
        %v781 = vpop.permute.xlu0 %780
        %782 = vset.pattern.permute.xlu0 1
        %783 = vperm.xlu0 %782, %v502
        %v784 = vpop.permute.xlu0 %783
        %785 = vset.pattern.permute.xlu0 1
        %786 = vperm.xlu0 %785, %v503
        %v787 = vpop.permute.xlu0 %786
        %788 = vset.pattern.permute.xlu0 1
        %789 = vperm.xlu0 %788, %v504
        %v790 = vpop.permute.xlu0 %789
        %791 = vset.pattern.permute.xlu0 1
        %792 = vperm.xlu0 %791, %v505
        %v793 = vpop.permute.xlu0 %792
        %794 = vset.pattern.permute.xlu0 1
        %795 = vperm.xlu0 %794, %v506
        %v796 = vpop.permute.xlu0 %795
        %797 = vset.pattern.permute.xlu0 1
        %798 = vperm.xlu0 %797, %v507
        %v799 = vpop.permute.xlu0 %798
        %800 = vset.pattern.permute.xlu0 1
        %801 = vperm.xlu0 %800, %v508
        %v802 = vpop.permute.xlu0 %801
        %803 = vset.pattern.permute.xlu0 1
        %804 = vperm.xlu0 %803, %v509
        %v805 = vpop.permute.xlu0 %804
        %806 = vset.pattern.permute.xlu0 1
        %807 = vperm.xlu0 %806, %v510
        %v808 = vpop.permute.xlu0 %807
        %809 = vset.pattern.permute.xlu0 1
        %810 = vperm.xlu0 %809, %v511
        %v811 = vpop.permute.xlu0 %810
        %812 = vset.pattern.permute.xlu0 1
        %813 = vperm.xlu0 %812, %v512
        %v814 = vpop.permute.xlu0 %813
        %815 = vset.pattern.permute.xlu0 1
        %816 = vperm.xlu0 %815, %v513
        %v817 = vpop.permute.xlu0 %816
        %818 = vset.pattern.permute.xlu0 1
        %819 = vperm.xlu0 %818, %v514
        %v820 = vpop.permute.xlu0 %819
        %821 = vset.pattern.permute.xlu0 1
        %822 = vperm.xlu0 %821, %v515
        %v823 = vpop.permute.xlu0 %822
        %824 = vset.pattern.permute.xlu0 1
        %825 = vperm.xlu0 %824, %v516
        %v826 = vpop.permute.xlu0 %825
        %827 = vset.pattern.permute.xlu0 1
        %828 = vperm.xlu0 %827, %v517
        %v829 = vpop.permute.xlu0 %828
        %830 = vset.pattern.permute.xlu0 1
        %831 = vperm.xlu0 %830, %v518
        %v832 = vpop.permute.xlu0 %831
        %833 = vset.pattern.permute.xlu0 1
        %834 = vperm.xlu0 %833, %v519
        %v835 = vpop.permute.xlu0 %834
        %836 = vset.pattern.permute.xlu0 1
        %837 = vperm.xlu0 %836, %v520
        %v838 = vpop.permute.xlu0 %837
        %839 = vset.pattern.permute.xlu0 1
        %840 = vperm.xlu0 %839, %v521
        %v841 = vpop.permute.xlu0 %840
        %842 = vset.pattern.permute.xlu0 1
        %843 = vperm.xlu0 %842, %v522
        %v844 = vpop.permute.xlu0 %843
        %vm845 = vcmp.eq.s32.totalorder %v751, %v524
        %vm846 = vcmp.eq.s32.totalorder %v754, %v524
        %vm847 = vcmp.eq.s32.totalorder %v757, %v524
        %vm848 = vcmp.eq.s32.totalorder %v760, %v524
        %vm849 = vcmp.eq.s32.totalorder %v763, %v524
        %vm850 = vcmp.eq.s32.totalorder %v766, %v524
        %vm851 = vcmp.eq.s32.totalorder %v769, %v524
        %vm852 = vcmp.eq.s32.totalorder %v772, %v524
        %vm853 = vcmp.eq.s32.totalorder %v775, %v524
        %vm854 = vcmp.eq.s32.totalorder %v778, %v524
        %vm855 = vcmp.eq.s32.totalorder %v781, %v524
        %vm856 = vcmp.eq.s32.totalorder %v784, %v524
        %vm857 = vcmp.eq.s32.totalorder %v787, %v524
        %vm858 = vcmp.eq.s32.totalorder %v790, %v524
        %vm859 = vcmp.eq.s32.totalorder %v793, %v524
        %vm860 = vcmp.eq.s32.totalorder %v796, %v524
        %vm861 = vcmp.eq.s32.totalorder %v799, %v524
        %vm862 = vcmp.eq.s32.totalorder %v802, %v524
        %vm863 = vcmp.eq.s32.totalorder %v805, %v524
        %vm864 = vcmp.eq.s32.totalorder %v808, %v524
        %vm865 = vcmp.eq.s32.totalorder %v811, %v524
        %vm866 = vcmp.eq.s32.totalorder %v814, %v524
        %vm867 = vcmp.eq.s32.totalorder %v817, %v524
        %vm868 = vcmp.eq.s32.totalorder %v820, %v524
        %vm869 = vcmp.eq.s32.totalorder %v823, %v524
        %vm870 = vcmp.eq.s32.totalorder %v826, %v524
        %vm871 = vcmp.eq.s32.totalorder %v829, %v524
        %vm872 = vcmp.eq.s32.totalorder %v832, %v524
        %vm873 = vcmp.eq.s32.totalorder %v835, %v524
        %vm874 = vcmp.eq.s32.totalorder %v838, %v524
        %vm875 = vcmp.eq.s32.totalorder %v841, %v524
        %vm876 = vcmp.eq.s32.totalorder %v844, %v524
        %v877 = vsel %vm845, 1, 0
        %v878 = vsel %vm846, 1, 0
        %v879 = vsel %vm847, 1, 0
        %v880 = vsel %vm848, 1, 0
        %v881 = vsel %vm849, 1, 0
        %v882 = vsel %vm850, 1, 0
        %v883 = vsel %vm851, 1, 0
        %v884 = vsel %vm852, 1, 0
        %v885 = vsel %vm853, 1, 0
        %v886 = vsel %vm854, 1, 0
        %v887 = vsel %vm855, 1, 0
        %v888 = vsel %vm856, 1, 0
        %v889 = vsel %vm857, 1, 0
        %v890 = vsel %vm858, 1, 0
        %v891 = vsel %vm859, 1, 0
        %v892 = vsel %vm860, 1, 0
        %v893 = vsel %vm861, 1, 0
        %v894 = vsel %vm862, 1, 0
        %v895 = vsel %vm863, 1, 0
        %v896 = vsel %vm864, 1, 0
        %v897 = vsel %vm865, 1, 0
        %v898 = vsel %vm866, 1, 0
        %v899 = vsel %vm867, 1, 0
        %v900 = vsel %vm868, 1, 0
        %v901 = vsel %vm869, 1, 0
        %v902 = vsel %vm870, 1, 0
        %v903 = vsel %vm871, 1, 0
        %v904 = vsel %vm872, 1, 0
        %v905 = vsel %vm873, 1, 0
        %v906 = vsel %vm874, 1, 0
        %v907 = vsel %vm875, 1, 0
        %v908 = vsel %vm876, 1, 0
        %v909 = vcvt.s32.f32 %v877
        %v910 = vcvt.s32.f32 %v878
        %v911 = vcvt.s32.f32 %v879
        %v912 = vcvt.s32.f32 %v880
        %v913 = vcvt.s32.f32 %v881
        %v914 = vcvt.s32.f32 %v882
        %v915 = vcvt.s32.f32 %v883
        %v916 = vcvt.s32.f32 %v884
        %v917 = vcvt.s32.f32 %v885
        %v918 = vcvt.s32.f32 %v886
        %v919 = vcvt.s32.f32 %v887
        %v920 = vcvt.s32.f32 %v888
        %v921 = vcvt.s32.f32 %v889
        %v922 = vcvt.s32.f32 %v890
        %v923 = vcvt.s32.f32 %v891
        %v924 = vcvt.s32.f32 %v892
        %v925 = vcvt.s32.f32 %v893
        %v926 = vcvt.s32.f32 %v894
        %v927 = vcvt.s32.f32 %v895
        %v928 = vcvt.s32.f32 %v896
        %v929 = vcvt.s32.f32 %v897
        %v930 = vcvt.s32.f32 %v898
        %v931 = vcvt.s32.f32 %v899
        %v932 = vcvt.s32.f32 %v900
        %v933 = vcvt.s32.f32 %v901
        %v934 = vcvt.s32.f32 %v902
        %v935 = vcvt.s32.f32 %v903
        %v936 = vcvt.s32.f32 %v904
        %v937 = vcvt.s32.f32 %v905
        %v938 = vcvt.s32.f32 %v906
        %v939 = vcvt.s32.f32 %v907
        %v940 = vcvt.s32.f32 %v908
        %v941 = vadd.f32 %v717, %v909
        %v942 = vadd.f32 %v718, %v910
        %v943 = vadd.f32 %v719, %v911
        %v944 = vadd.f32 %v720, %v912
        %v945 = vadd.f32 %v721, %v913
        %v946 = vadd.f32 %v722, %v914
        %v947 = vadd.f32 %v723, %v915
        %v948 = vadd.f32 %v724, %v916
        %v949 = vadd.f32 %v725, %v917
        %v950 = vadd.f32 %v726, %v918
        %v951 = vadd.f32 %v727, %v919
        %v952 = vadd.f32 %v728, %v920
        %v953 = vadd.f32 %v729, %v921
        %v954 = vadd.f32 %v730, %v922
        %v955 = vadd.f32 %v731, %v923
        %v956 = vadd.f32 %v732, %v924
        %v957 = vadd.f32 %v733, %v925
        %v958 = vadd.f32 %v734, %v926
        %v959 = vadd.f32 %v735, %v927
        %v960 = vadd.f32 %v736, %v928
        %v961 = vadd.f32 %v737, %v929
        %v962 = vadd.f32 %v738, %v930
        %v963 = vadd.f32 %v739, %v931
        %v964 = vadd.f32 %v740, %v932
        %v965 = vadd.f32 %v741, %v933
        %v966 = vadd.f32 %v742, %v934
        %v967 = vadd.f32 %v743, %v935
        %v968 = vadd.f32 %v744, %v936
        %v969 = vadd.f32 %v745, %v937
        %v970 = vadd.f32 %v746, %v938
        %v971 = vadd.f32 %v747, %v939
        %v972 = vadd.f32 %v748, %v940
        %973 = vset.pattern.permute.xlu0 2
        %974 = vperm.xlu0 %973, %v491
        %v975 = vpop.permute.xlu0 %974
        %976 = vset.pattern.permute.xlu0 2
        %977 = vperm.xlu0 %976, %v492
        %v978 = vpop.permute.xlu0 %977
        %979 = vset.pattern.permute.xlu0 2
        %980 = vperm.xlu0 %979, %v493
        %v981 = vpop.permute.xlu0 %980
        %982 = vset.pattern.permute.xlu0 2
        %983 = vperm.xlu0 %982, %v494
        %v984 = vpop.permute.xlu0 %983
        %985 = vset.pattern.permute.xlu0 2
        %986 = vperm.xlu0 %985, %v495
        %v987 = vpop.permute.xlu0 %986
        %988 = vset.pattern.permute.xlu0 2
        %989 = vperm.xlu0 %988, %v496
        %v990 = vpop.permute.xlu0 %989
        %991 = vset.pattern.permute.xlu0 2
        %992 = vperm.xlu0 %991, %v497
        %v993 = vpop.permute.xlu0 %992
        %994 = vset.pattern.permute.xlu0 2
        %995 = vperm.xlu0 %994, %v498
        %v996 = vpop.permute.xlu0 %995
        %997 = vset.pattern.permute.xlu0 2
        %998 = vperm.xlu0 %997, %v499
        %v999 = vpop.permute.xlu0 %998
        %1000 = vset.pattern.permute.xlu0 2
        %1001 = vperm.xlu0 %1000, %v500
        %v1002 = vpop.permute.xlu0 %1001
        %1003 = vset.pattern.permute.xlu0 2
        %1004 = vperm.xlu0 %1003, %v501
        %v1005 = vpop.permute.xlu0 %1004
        %1006 = vset.pattern.permute.xlu0 2
        %1007 = vperm.xlu0 %1006, %v502
        %v1008 = vpop.permute.xlu0 %1007
        %1009 = vset.pattern.permute.xlu0 2
        %1010 = vperm.xlu0 %1009, %v503
        %v1011 = vpop.permute.xlu0 %1010
        %1012 = vset.pattern.permute.xlu0 2
        %1013 = vperm.xlu0 %1012, %v504
        %v1014 = vpop.permute.xlu0 %1013
        %1015 = vset.pattern.permute.xlu0 2
        %1016 = vperm.xlu0 %1015, %v505
        %v1017 = vpop.permute.xlu0 %1016
        %1018 = vset.pattern.permute.xlu0 2
        %1019 = vperm.xlu0 %1018, %v506
        %v1020 = vpop.permute.xlu0 %1019
        %1021 = vset.pattern.permute.xlu0 2
        %1022 = vperm.xlu0 %1021, %v507
        %v1023 = vpop.permute.xlu0 %1022
        %1024 = vset.pattern.permute.xlu0 2
        %1025 = vperm.xlu0 %1024, %v508
        %v1026 = vpop.permute.xlu0 %1025
        %1027 = vset.pattern.permute.xlu0 2
        %1028 = vperm.xlu0 %1027, %v509
        %v1029 = vpop.permute.xlu0 %1028
        %1030 = vset.pattern.permute.xlu0 2
        %1031 = vperm.xlu0 %1030, %v510
        %v1032 = vpop.permute.xlu0 %1031
        %1033 = vset.pattern.permute.xlu0 2
        %1034 = vperm.xlu0 %1033, %v511
        %v1035 = vpop.permute.xlu0 %1034
        %1036 = vset.pattern.permute.xlu0 2
        %1037 = vperm.xlu0 %1036, %v512
        %v1038 = vpop.permute.xlu0 %1037
        %1039 = vset.pattern.permute.xlu0 2
        %1040 = vperm.xlu0 %1039, %v513
        %v1041 = vpop.permute.xlu0 %1040
        %1042 = vset.pattern.permute.xlu0 2
        %1043 = vperm.xlu0 %1042, %v514
        %v1044 = vpop.permute.xlu0 %1043
        %1045 = vset.pattern.permute.xlu0 2
        %1046 = vperm.xlu0 %1045, %v515
        %v1047 = vpop.permute.xlu0 %1046
        %1048 = vset.pattern.permute.xlu0 2
        %1049 = vperm.xlu0 %1048, %v516
        %v1050 = vpop.permute.xlu0 %1049
        %1051 = vset.pattern.permute.xlu0 2
        %1052 = vperm.xlu0 %1051, %v517
        %v1053 = vpop.permute.xlu0 %1052
        %1054 = vset.pattern.permute.xlu0 2
        %1055 = vperm.xlu0 %1054, %v518
        %v1056 = vpop.permute.xlu0 %1055
        %1057 = vset.pattern.permute.xlu0 2
        %1058 = vperm.xlu0 %1057, %v519
        %v1059 = vpop.permute.xlu0 %1058
        %1060 = vset.pattern.permute.xlu0 2
        %1061 = vperm.xlu0 %1060, %v520
        %v1062 = vpop.permute.xlu0 %1061
        %1063 = vset.pattern.permute.xlu0 2
        %1064 = vperm.xlu0 %1063, %v521
        %v1065 = vpop.permute.xlu0 %1064
        %1066 = vset.pattern.permute.xlu0 2
        %1067 = vperm.xlu0 %1066, %v522
        %v1068 = vpop.permute.xlu0 %1067
        %vm1069 = vcmp.eq.s32.totalorder %v975, %v524
        %vm1070 = vcmp.eq.s32.totalorder %v978, %v524
        %vm1071 = vcmp.eq.s32.totalorder %v981, %v524
        %vm1072 = vcmp.eq.s32.totalorder %v984, %v524
        %vm1073 = vcmp.eq.s32.totalorder %v987, %v524
        %vm1074 = vcmp.eq.s32.totalorder %v990, %v524
        %vm1075 = vcmp.eq.s32.totalorder %v993, %v524
        %vm1076 = vcmp.eq.s32.totalorder %v996, %v524
        %vm1077 = vcmp.eq.s32.totalorder %v999, %v524
        %vm1078 = vcmp.eq.s32.totalorder %v1002, %v524
        %vm1079 = vcmp.eq.s32.totalorder %v1005, %v524
        %vm1080 = vcmp.eq.s32.totalorder %v1008, %v524
        %vm1081 = vcmp.eq.s32.totalorder %v1011, %v524
        %vm1082 = vcmp.eq.s32.totalorder %v1014, %v524
        %vm1083 = vcmp.eq.s32.totalorder %v1017, %v524
        %vm1084 = vcmp.eq.s32.totalorder %v1020, %v524
        %vm1085 = vcmp.eq.s32.totalorder %v1023, %v524
        %vm1086 = vcmp.eq.s32.totalorder %v1026, %v524
        %vm1087 = vcmp.eq.s32.totalorder %v1029, %v524
        %vm1088 = vcmp.eq.s32.totalorder %v1032, %v524
        %vm1089 = vcmp.eq.s32.totalorder %v1035, %v524
        %vm1090 = vcmp.eq.s32.totalorder %v1038, %v524
        %vm1091 = vcmp.eq.s32.totalorder %v1041, %v524
        %vm1092 = vcmp.eq.s32.totalorder %v1044, %v524
        %vm1093 = vcmp.eq.s32.totalorder %v1047, %v524
        %vm1094 = vcmp.eq.s32.totalorder %v1050, %v524
        %vm1095 = vcmp.eq.s32.totalorder %v1053, %v524
        %vm1096 = vcmp.eq.s32.totalorder %v1056, %v524
        %vm1097 = vcmp.eq.s32.totalorder %v1059, %v524
        %vm1098 = vcmp.eq.s32.totalorder %v1062, %v524
        %vm1099 = vcmp.eq.s32.totalorder %v1065, %v524
        %vm1100 = vcmp.eq.s32.totalorder %v1068, %v524
        %v1101 = vsel %vm1069, 1, 0
        %v1102 = vsel %vm1070, 1, 0
        %v1103 = vsel %vm1071, 1, 0
        %v1104 = vsel %vm1072, 1, 0
        %v1105 = vsel %vm1073, 1, 0
        %v1106 = vsel %vm1074, 1, 0
        %v1107 = vsel %vm1075, 1, 0
        %v1108 = vsel %vm1076, 1, 0
        %v1109 = vsel %vm1077, 1, 0
        %v1110 = vsel %vm1078, 1, 0
        %v1111 = vsel %vm1079, 1, 0
        %v1112 = vsel %vm1080, 1, 0
        %v1113 = vsel %vm1081, 1, 0
        %v1114 = vsel %vm1082, 1, 0
        %v1115 = vsel %vm1083, 1, 0
        %v1116 = vsel %vm1084, 1, 0
        %v1117 = vsel %vm1085, 1, 0
        %v1118 = vsel %vm1086, 1, 0
        %v1119 = vsel %vm1087, 1, 0
        %v1120 = vsel %vm1088, 1, 0
        %v1121 = vsel %vm1089, 1, 0
        %v1122 = vsel %vm1090, 1, 0
        %v1123 = vsel %vm1091, 1, 0
        %v1124 = vsel %vm1092, 1, 0
        %v1125 = vsel %vm1093, 1, 0
        %v1126 = vsel %vm1094, 1, 0
        %v1127 = vsel %vm1095, 1, 0
        %v1128 = vsel %vm1096, 1, 0
        %v1129 = vsel %vm1097, 1, 0
        %v1130 = vsel %vm1098, 1, 0
        %v1131 = vsel %vm1099, 1, 0
        %v1132 = vsel %vm1100, 1, 0
        %v1133 = vcvt.s32.f32 %v1101
        %v1134 = vcvt.s32.f32 %v1102
        %v1135 = vcvt.s32.f32 %v1103
        %v1136 = vcvt.s32.f32 %v1104
        %v1137 = vcvt.s32.f32 %v1105
        %v1138 = vcvt.s32.f32 %v1106
        %v1139 = vcvt.s32.f32 %v1107
        %v1140 = vcvt.s32.f32 %v1108
        %v1141 = vcvt.s32.f32 %v1109
        %v1142 = vcvt.s32.f32 %v1110
        %v1143 = vcvt.s32.f32 %v1111
        %v1144 = vcvt.s32.f32 %v1112
        %v1145 = vcvt.s32.f32 %v1113
        %v1146 = vcvt.s32.f32 %v1114
        %v1147 = vcvt.s32.f32 %v1115
        %v1148 = vcvt.s32.f32 %v1116
        %v1149 = vcvt.s32.f32 %v1117
        %v1150 = vcvt.s32.f32 %v1118
        %v1151 = vcvt.s32.f32 %v1119
        %v1152 = vcvt.s32.f32 %v1120
        %v1153 = vcvt.s32.f32 %v1121
        %v1154 = vcvt.s32.f32 %v1122
        %v1155 = vcvt.s32.f32 %v1123
        %v1156 = vcvt.s32.f32 %v1124
        %v1157 = vcvt.s32.f32 %v1125
        %v1158 = vcvt.s32.f32 %v1126
        %v1159 = vcvt.s32.f32 %v1127
        %v1160 = vcvt.s32.f32 %v1128
        %v1161 = vcvt.s32.f32 %v1129
        %v1162 = vcvt.s32.f32 %v1130
        %v1163 = vcvt.s32.f32 %v1131
        %v1164 = vcvt.s32.f32 %v1132
        %v1165 = vadd.f32 %v941, %v1133
        %v1166 = vadd.f32 %v942, %v1134
        %v1167 = vadd.f32 %v943, %v1135
        %v1168 = vadd.f32 %v944, %v1136
        %v1169 = vadd.f32 %v945, %v1137
        %v1170 = vadd.f32 %v946, %v1138
        %v1171 = vadd.f32 %v947, %v1139
        %v1172 = vadd.f32 %v948, %v1140
        %v1173 = vadd.f32 %v949, %v1141
        %v1174 = vadd.f32 %v950, %v1142
        %v1175 = vadd.f32 %v951, %v1143
        %v1176 = vadd.f32 %v952, %v1144
        %v1177 = vadd.f32 %v953, %v1145
        %v1178 = vadd.f32 %v954, %v1146
        %v1179 = vadd.f32 %v955, %v1147
        %v1180 = vadd.f32 %v956, %v1148
        %v1181 = vadd.f32 %v957, %v1149
        %v1182 = vadd.f32 %v958, %v1150
        %v1183 = vadd.f32 %v959, %v1151
        %v1184 = vadd.f32 %v960, %v1152
        %v1185 = vadd.f32 %v961, %v1153
        %v1186 = vadd.f32 %v962, %v1154
        %v1187 = vadd.f32 %v963, %v1155
        %v1188 = vadd.f32 %v964, %v1156
        %v1189 = vadd.f32 %v965, %v1157
        %v1190 = vadd.f32 %v966, %v1158
        %v1191 = vadd.f32 %v967, %v1159
        %v1192 = vadd.f32 %v968, %v1160
        %v1193 = vadd.f32 %v969, %v1161
        %v1194 = vadd.f32 %v970, %v1162
        %v1195 = vadd.f32 %v971, %v1163
        %v1196 = vadd.f32 %v972, %v1164
        %1197 = vset.pattern.permute.xlu0 3
        %1198 = vperm.xlu0 %1197, %v491
        %v1199 = vpop.permute.xlu0 %1198
        %1200 = vset.pattern.permute.xlu0 3
        %1201 = vperm.xlu0 %1200, %v492
        %v1202 = vpop.permute.xlu0 %1201
        %1203 = vset.pattern.permute.xlu0 3
        %1204 = vperm.xlu0 %1203, %v493
        %v1205 = vpop.permute.xlu0 %1204
        %1206 = vset.pattern.permute.xlu0 3
        %1207 = vperm.xlu0 %1206, %v494
        %v1208 = vpop.permute.xlu0 %1207
        %1209 = vset.pattern.permute.xlu0 3
        %1210 = vperm.xlu0 %1209, %v495
        %v1211 = vpop.permute.xlu0 %1210
        %1212 = vset.pattern.permute.xlu0 3
        %1213 = vperm.xlu0 %1212, %v496
        %v1214 = vpop.permute.xlu0 %1213
        %1215 = vset.pattern.permute.xlu0 3
        %1216 = vperm.xlu0 %1215, %v497
        %v1217 = vpop.permute.xlu0 %1216
        %1218 = vset.pattern.permute.xlu0 3
        %1219 = vperm.xlu0 %1218, %v498
        %v1220 = vpop.permute.xlu0 %1219
        %1221 = vset.pattern.permute.xlu0 3
        %1222 = vperm.xlu0 %1221, %v499
        %v1223 = vpop.permute.xlu0 %1222
        %1224 = vset.pattern.permute.xlu0 3
        %1225 = vperm.xlu0 %1224, %v500
        %v1226 = vpop.permute.xlu0 %1225
        %1227 = vset.pattern.permute.xlu0 3
        %1228 = vperm.xlu0 %1227, %v501
        %v1229 = vpop.permute.xlu0 %1228
        %1230 = vset.pattern.permute.xlu0 3
        %1231 = vperm.xlu0 %1230, %v502
        %v1232 = vpop.permute.xlu0 %1231
        %1233 = vset.pattern.permute.xlu0 3
        %1234 = vperm.xlu0 %1233, %v503
        %v1235 = vpop.permute.xlu0 %1234
        %1236 = vset.pattern.permute.xlu0 3
        %1237 = vperm.xlu0 %1236, %v504
        %v1238 = vpop.permute.xlu0 %1237
        %1239 = vset.pattern.permute.xlu0 3
        %1240 = vperm.xlu0 %1239, %v505
        %v1241 = vpop.permute.xlu0 %1240
        %1242 = vset.pattern.permute.xlu0 3
        %1243 = vperm.xlu0 %1242, %v506
        %v1244 = vpop.permute.xlu0 %1243
        %1245 = vset.pattern.permute.xlu0 3
        %1246 = vperm.xlu0 %1245, %v507
        %v1247 = vpop.permute.xlu0 %1246
        %1248 = vset.pattern.permute.xlu0 3
        %1249 = vperm.xlu0 %1248, %v508
        %v1250 = vpop.permute.xlu0 %1249
        %1251 = vset.pattern.permute.xlu0 3
        %1252 = vperm.xlu0 %1251, %v509
        %v1253 = vpop.permute.xlu0 %1252
        %1254 = vset.pattern.permute.xlu0 3
        %1255 = vperm.xlu0 %1254, %v510
        %v1256 = vpop.permute.xlu0 %1255
        %1257 = vset.pattern.permute.xlu0 3
        %1258 = vperm.xlu0 %1257, %v511
        %v1259 = vpop.permute.xlu0 %1258
        %1260 = vset.pattern.permute.xlu0 3
        %1261 = vperm.xlu0 %1260, %v512
        %v1262 = vpop.permute.xlu0 %1261
        %1263 = vset.pattern.permute.xlu0 3
        %1264 = vperm.xlu0 %1263, %v513
        %v1265 = vpop.permute.xlu0 %1264
        %1266 = vset.pattern.permute.xlu0 3
        %1267 = vperm.xlu0 %1266, %v514
        %v1268 = vpop.permute.xlu0 %1267
        %1269 = vset.pattern.permute.xlu0 3
        %1270 = vperm.xlu0 %1269, %v515
        %v1271 = vpop.permute.xlu0 %1270
        %1272 = vset.pattern.permute.xlu0 3
        %1273 = vperm.xlu0 %1272, %v516
        %v1274 = vpop.permute.xlu0 %1273
        %1275 = vset.pattern.permute.xlu0 3
        %1276 = vperm.xlu0 %1275, %v517
        %v1277 = vpop.permute.xlu0 %1276
        %1278 = vset.pattern.permute.xlu0 3
        %1279 = vperm.xlu0 %1278, %v518
        %v1280 = vpop.permute.xlu0 %1279
        %1281 = vset.pattern.permute.xlu0 3
        %1282 = vperm.xlu0 %1281, %v519
        %v1283 = vpop.permute.xlu0 %1282
        %1284 = vset.pattern.permute.xlu0 3
        %1285 = vperm.xlu0 %1284, %v520
        %v1286 = vpop.permute.xlu0 %1285
        %1287 = vset.pattern.permute.xlu0 3
        %1288 = vperm.xlu0 %1287, %v521
        %v1289 = vpop.permute.xlu0 %1288
        %1290 = vset.pattern.permute.xlu0 3
        %1291 = vperm.xlu0 %1290, %v522
        %v1292 = vpop.permute.xlu0 %1291
        %vm1293 = vcmp.eq.s32.totalorder %v1199, %v524
        %vm1294 = vcmp.eq.s32.totalorder %v1202, %v524
        %vm1295 = vcmp.eq.s32.totalorder %v1205, %v524
        %vm1296 = vcmp.eq.s32.totalorder %v1208, %v524
        %vm1297 = vcmp.eq.s32.totalorder %v1211, %v524
        %vm1298 = vcmp.eq.s32.totalorder %v1214, %v524
        %vm1299 = vcmp.eq.s32.totalorder %v1217, %v524
        %vm1300 = vcmp.eq.s32.totalorder %v1220, %v524
        %vm1301 = vcmp.eq.s32.totalorder %v1223, %v524
        %vm1302 = vcmp.eq.s32.totalorder %v1226, %v524
        %vm1303 = vcmp.eq.s32.totalorder %v1229, %v524
        %vm1304 = vcmp.eq.s32.totalorder %v1232, %v524
        %vm1305 = vcmp.eq.s32.totalorder %v1235, %v524
        %vm1306 = vcmp.eq.s32.totalorder %v1238, %v524
        %vm1307 = vcmp.eq.s32.totalorder %v1241, %v524
        %vm1308 = vcmp.eq.s32.totalorder %v1244, %v524
        %vm1309 = vcmp.eq.s32.totalorder %v1247, %v524
        %vm1310 = vcmp.eq.s32.totalorder %v1250, %v524
        %vm1311 = vcmp.eq.s32.totalorder %v1253, %v524
        %vm1312 = vcmp.eq.s32.totalorder %v1256, %v524
        %vm1313 = vcmp.eq.s32.totalorder %v1259, %v524
        %vm1314 = vcmp.eq.s32.totalorder %v1262, %v524
        %vm1315 = vcmp.eq.s32.totalorder %v1265, %v524
        %vm1316 = vcmp.eq.s32.totalorder %v1268, %v524
        %vm1317 = vcmp.eq.s32.totalorder %v1271, %v524
        %vm1318 = vcmp.eq.s32.totalorder %v1274, %v524
        %vm1319 = vcmp.eq.s32.totalorder %v1277, %v524
        %vm1320 = vcmp.eq.s32.totalorder %v1280, %v524
        %vm1321 = vcmp.eq.s32.totalorder %v1283, %v524
        %vm1322 = vcmp.eq.s32.totalorder %v1286, %v524
        %vm1323 = vcmp.eq.s32.totalorder %v1289, %v524
        %vm1324 = vcmp.eq.s32.totalorder %v1292, %v524
        %v1325 = vsel %vm1293, 1, 0
        %v1326 = vsel %vm1294, 1, 0
        %v1327 = vsel %vm1295, 1, 0
        %v1328 = vsel %vm1296, 1, 0
        %v1329 = vsel %vm1297, 1, 0
        %v1330 = vsel %vm1298, 1, 0
        %v1331 = vsel %vm1299, 1, 0
        %v1332 = vsel %vm1300, 1, 0
        %v1333 = vsel %vm1301, 1, 0
        %v1334 = vsel %vm1302, 1, 0
        %v1335 = vsel %vm1303, 1, 0
        %v1336 = vsel %vm1304, 1, 0
        %v1337 = vsel %vm1305, 1, 0
        %v1338 = vsel %vm1306, 1, 0
        %v1339 = vsel %vm1307, 1, 0
        %v1340 = vsel %vm1308, 1, 0
        %v1341 = vsel %vm1309, 1, 0
        %v1342 = vsel %vm1310, 1, 0
        %v1343 = vsel %vm1311, 1, 0
        %v1344 = vsel %vm1312, 1, 0
        %v1345 = vsel %vm1313, 1, 0
        %v1346 = vsel %vm1314, 1, 0
        %v1347 = vsel %vm1315, 1, 0
        %v1348 = vsel %vm1316, 1, 0
        %v1349 = vsel %vm1317, 1, 0
        %v1350 = vsel %vm1318, 1, 0
        %v1351 = vsel %vm1319, 1, 0
        %v1352 = vsel %vm1320, 1, 0
        %v1353 = vsel %vm1321, 1, 0
        %v1354 = vsel %vm1322, 1, 0
        %v1355 = vsel %vm1323, 1, 0
        %v1356 = vsel %vm1324, 1, 0
        %v1357 = vcvt.s32.f32 %v1325
        %v1358 = vcvt.s32.f32 %v1326
        %v1359 = vcvt.s32.f32 %v1327
        %v1360 = vcvt.s32.f32 %v1328
        %v1361 = vcvt.s32.f32 %v1329
        %v1362 = vcvt.s32.f32 %v1330
        %v1363 = vcvt.s32.f32 %v1331
        %v1364 = vcvt.s32.f32 %v1332
        %v1365 = vcvt.s32.f32 %v1333
        %v1366 = vcvt.s32.f32 %v1334
        %v1367 = vcvt.s32.f32 %v1335
        %v1368 = vcvt.s32.f32 %v1336
        %v1369 = vcvt.s32.f32 %v1337
        %v1370 = vcvt.s32.f32 %v1338
        %v1371 = vcvt.s32.f32 %v1339
        %v1372 = vcvt.s32.f32 %v1340
        %v1373 = vcvt.s32.f32 %v1341
        %v1374 = vcvt.s32.f32 %v1342
        %v1375 = vcvt.s32.f32 %v1343
        %v1376 = vcvt.s32.f32 %v1344
        %v1377 = vcvt.s32.f32 %v1345
        %v1378 = vcvt.s32.f32 %v1346
        %v1379 = vcvt.s32.f32 %v1347
        %v1380 = vcvt.s32.f32 %v1348
        %v1381 = vcvt.s32.f32 %v1349
        %v1382 = vcvt.s32.f32 %v1350
        %v1383 = vcvt.s32.f32 %v1351
        %v1384 = vcvt.s32.f32 %v1352
        %v1385 = vcvt.s32.f32 %v1353
        %v1386 = vcvt.s32.f32 %v1354
        %v1387 = vcvt.s32.f32 %v1355
        %v1388 = vcvt.s32.f32 %v1356
        %v1389 = vadd.f32 %v1165, %v1357
        %v1390 = vadd.f32 %v1166, %v1358
        %v1391 = vadd.f32 %v1167, %v1359
        %v1392 = vadd.f32 %v1168, %v1360
        %v1393 = vadd.f32 %v1169, %v1361
        %v1394 = vadd.f32 %v1170, %v1362
        %v1395 = vadd.f32 %v1171, %v1363
        %v1396 = vadd.f32 %v1172, %v1364
        %v1397 = vadd.f32 %v1173, %v1365
        %v1398 = vadd.f32 %v1174, %v1366
        %v1399 = vadd.f32 %v1175, %v1367
        %v1400 = vadd.f32 %v1176, %v1368
        %v1401 = vadd.f32 %v1177, %v1369
        %v1402 = vadd.f32 %v1178, %v1370
        %v1403 = vadd.f32 %v1179, %v1371
        %v1404 = vadd.f32 %v1180, %v1372
        %v1405 = vadd.f32 %v1181, %v1373
        %v1406 = vadd.f32 %v1182, %v1374
        %v1407 = vadd.f32 %v1183, %v1375
        %v1408 = vadd.f32 %v1184, %v1376
        %v1409 = vadd.f32 %v1185, %v1377
        %v1410 = vadd.f32 %v1186, %v1378
        %v1411 = vadd.f32 %v1187, %v1379
        %v1412 = vadd.f32 %v1188, %v1380
        %v1413 = vadd.f32 %v1189, %v1381
        %v1414 = vadd.f32 %v1190, %v1382
        %v1415 = vadd.f32 %v1191, %v1383
        %v1416 = vadd.f32 %v1192, %v1384
        %v1417 = vadd.f32 %v1193, %v1385
        %v1418 = vadd.f32 %v1194, %v1386
        %v1419 = vadd.f32 %v1195, %v1387
        %v1420 = vadd.f32 %v1196, %v1388
        %1421 = vset.pattern.permute.xlu0 4
        %1422 = vperm.xlu0 %1421, %v491
        %v1423 = vpop.permute.xlu0 %1422
        %1424 = vset.pattern.permute.xlu0 4
        %1425 = vperm.xlu0 %1424, %v492
        %v1426 = vpop.permute.xlu0 %1425
        %1427 = vset.pattern.permute.xlu0 4
        %1428 = vperm.xlu0 %1427, %v493
        %v1429 = vpop.permute.xlu0 %1428
        %1430 = vset.pattern.permute.xlu0 4
        %1431 = vperm.xlu0 %1430, %v494
        %v1432 = vpop.permute.xlu0 %1431
        %1433 = vset.pattern.permute.xlu0 4
        %1434 = vperm.xlu0 %1433, %v495
        %v1435 = vpop.permute.xlu0 %1434
        %1436 = vset.pattern.permute.xlu0 4
        %1437 = vperm.xlu0 %1436, %v496
        %v1438 = vpop.permute.xlu0 %1437
        %1439 = vset.pattern.permute.xlu0 4
        %1440 = vperm.xlu0 %1439, %v497
        %v1441 = vpop.permute.xlu0 %1440
        %1442 = vset.pattern.permute.xlu0 4
        %1443 = vperm.xlu0 %1442, %v498
        %v1444 = vpop.permute.xlu0 %1443
        %1445 = vset.pattern.permute.xlu0 4
        %1446 = vperm.xlu0 %1445, %v499
        %v1447 = vpop.permute.xlu0 %1446
        %1448 = vset.pattern.permute.xlu0 4
        %1449 = vperm.xlu0 %1448, %v500
        %v1450 = vpop.permute.xlu0 %1449
        %1451 = vset.pattern.permute.xlu0 4
        %1452 = vperm.xlu0 %1451, %v501
        %v1453 = vpop.permute.xlu0 %1452
        %1454 = vset.pattern.permute.xlu0 4
        %1455 = vperm.xlu0 %1454, %v502
        %v1456 = vpop.permute.xlu0 %1455
        %1457 = vset.pattern.permute.xlu0 4
        %1458 = vperm.xlu0 %1457, %v503
        %v1459 = vpop.permute.xlu0 %1458
        %1460 = vset.pattern.permute.xlu0 4
        %1461 = vperm.xlu0 %1460, %v504
        %v1462 = vpop.permute.xlu0 %1461
        %1463 = vset.pattern.permute.xlu0 4
        %1464 = vperm.xlu0 %1463, %v505
        %v1465 = vpop.permute.xlu0 %1464
        %1466 = vset.pattern.permute.xlu0 4
        %1467 = vperm.xlu0 %1466, %v506
        %v1468 = vpop.permute.xlu0 %1467
        %1469 = vset.pattern.permute.xlu0 4
        %1470 = vperm.xlu0 %1469, %v507
        %v1471 = vpop.permute.xlu0 %1470
        %1472 = vset.pattern.permute.xlu0 4
        %1473 = vperm.xlu0 %1472, %v508
        %v1474 = vpop.permute.xlu0 %1473
        %1475 = vset.pattern.permute.xlu0 4
        %1476 = vperm.xlu0 %1475, %v509
        %v1477 = vpop.permute.xlu0 %1476
        %1478 = vset.pattern.permute.xlu0 4
        %1479 = vperm.xlu0 %1478, %v510
        %v1480 = vpop.permute.xlu0 %1479
        %1481 = vset.pattern.permute.xlu0 4
        %1482 = vperm.xlu0 %1481, %v511
        %v1483 = vpop.permute.xlu0 %1482
        %1484 = vset.pattern.permute.xlu0 4
        %1485 = vperm.xlu0 %1484, %v512
        %v1486 = vpop.permute.xlu0 %1485
        %1487 = vset.pattern.permute.xlu0 4
        %1488 = vperm.xlu0 %1487, %v513
        %v1489 = vpop.permute.xlu0 %1488
        %1490 = vset.pattern.permute.xlu0 4
        %1491 = vperm.xlu0 %1490, %v514
        %v1492 = vpop.permute.xlu0 %1491
        %1493 = vset.pattern.permute.xlu0 4
        %1494 = vperm.xlu0 %1493, %v515
        %v1495 = vpop.permute.xlu0 %1494
        %1496 = vset.pattern.permute.xlu0 4
        %1497 = vperm.xlu0 %1496, %v516
        %v1498 = vpop.permute.xlu0 %1497
        %1499 = vset.pattern.permute.xlu0 4
        %1500 = vperm.xlu0 %1499, %v517
        %v1501 = vpop.permute.xlu0 %1500
        %1502 = vset.pattern.permute.xlu0 4
        %1503 = vperm.xlu0 %1502, %v518
        %v1504 = vpop.permute.xlu0 %1503
        %1505 = vset.pattern.permute.xlu0 4
        %1506 = vperm.xlu0 %1505, %v519
        %v1507 = vpop.permute.xlu0 %1506
        %1508 = vset.pattern.permute.xlu0 4
        %1509 = vperm.xlu0 %1508, %v520
        %v1510 = vpop.permute.xlu0 %1509
        %1511 = vset.pattern.permute.xlu0 4
        %1512 = vperm.xlu0 %1511, %v521
        %v1513 = vpop.permute.xlu0 %1512
        %1514 = vset.pattern.permute.xlu0 4
        %1515 = vperm.xlu0 %1514, %v522
        %v1516 = vpop.permute.xlu0 %1515
        %vm1517 = vcmp.eq.s32.totalorder %v1423, %v524
        %vm1518 = vcmp.eq.s32.totalorder %v1426, %v524
        %vm1519 = vcmp.eq.s32.totalorder %v1429, %v524
        %vm1520 = vcmp.eq.s32.totalorder %v1432, %v524
        %vm1521 = vcmp.eq.s32.totalorder %v1435, %v524
        %vm1522 = vcmp.eq.s32.totalorder %v1438, %v524
        %vm1523 = vcmp.eq.s32.totalorder %v1441, %v524
        %vm1524 = vcmp.eq.s32.totalorder %v1444, %v524
        %vm1525 = vcmp.eq.s32.totalorder %v1447, %v524
        %vm1526 = vcmp.eq.s32.totalorder %v1450, %v524
        %vm1527 = vcmp.eq.s32.totalorder %v1453, %v524
        %vm1528 = vcmp.eq.s32.totalorder %v1456, %v524
        %vm1529 = vcmp.eq.s32.totalorder %v1459, %v524
        %vm1530 = vcmp.eq.s32.totalorder %v1462, %v524
        %vm1531 = vcmp.eq.s32.totalorder %v1465, %v524
        %vm1532 = vcmp.eq.s32.totalorder %v1468, %v524
        %vm1533 = vcmp.eq.s32.totalorder %v1471, %v524
        %vm1534 = vcmp.eq.s32.totalorder %v1474, %v524
        %vm1535 = vcmp.eq.s32.totalorder %v1477, %v524
        %vm1536 = vcmp.eq.s32.totalorder %v1480, %v524
        %vm1537 = vcmp.eq.s32.totalorder %v1483, %v524
        %vm1538 = vcmp.eq.s32.totalorder %v1486, %v524
        %vm1539 = vcmp.eq.s32.totalorder %v1489, %v524
        %vm1540 = vcmp.eq.s32.totalorder %v1492, %v524
        %vm1541 = vcmp.eq.s32.totalorder %v1495, %v524
        %vm1542 = vcmp.eq.s32.totalorder %v1498, %v524
        %vm1543 = vcmp.eq.s32.totalorder %v1501, %v524
        %vm1544 = vcmp.eq.s32.totalorder %v1504, %v524
        %vm1545 = vcmp.eq.s32.totalorder %v1507, %v524
        %vm1546 = vcmp.eq.s32.totalorder %v1510, %v524
        %vm1547 = vcmp.eq.s32.totalorder %v1513, %v524
        %vm1548 = vcmp.eq.s32.totalorder %v1516, %v524
        %v1549 = vsel %vm1517, 1, 0
        %v1550 = vsel %vm1518, 1, 0
        %v1551 = vsel %vm1519, 1, 0
        %v1552 = vsel %vm1520, 1, 0
        %v1553 = vsel %vm1521, 1, 0
        %v1554 = vsel %vm1522, 1, 0
        %v1555 = vsel %vm1523, 1, 0
        %v1556 = vsel %vm1524, 1, 0
        %v1557 = vsel %vm1525, 1, 0
        %v1558 = vsel %vm1526, 1, 0
        %v1559 = vsel %vm1527, 1, 0
        %v1560 = vsel %vm1528, 1, 0
        %v1561 = vsel %vm1529, 1, 0
        %v1562 = vsel %vm1530, 1, 0
        %v1563 = vsel %vm1531, 1, 0
        %v1564 = vsel %vm1532, 1, 0
        %v1565 = vsel %vm1533, 1, 0
        %v1566 = vsel %vm1534, 1, 0
        %v1567 = vsel %vm1535, 1, 0
        %v1568 = vsel %vm1536, 1, 0
        %v1569 = vsel %vm1537, 1, 0
        %v1570 = vsel %vm1538, 1, 0
        %v1571 = vsel %vm1539, 1, 0
        %v1572 = vsel %vm1540, 1, 0
        %v1573 = vsel %vm1541, 1, 0
        %v1574 = vsel %vm1542, 1, 0
        %v1575 = vsel %vm1543, 1, 0
        %v1576 = vsel %vm1544, 1, 0
        %v1577 = vsel %vm1545, 1, 0
        %v1578 = vsel %vm1546, 1, 0
        %v1579 = vsel %vm1547, 1, 0
        %v1580 = vsel %vm1548, 1, 0
        %v1581 = vcvt.s32.f32 %v1549
        %v1582 = vcvt.s32.f32 %v1550
        %v1583 = vcvt.s32.f32 %v1551
        %v1584 = vcvt.s32.f32 %v1552
        %v1585 = vcvt.s32.f32 %v1553
        %v1586 = vcvt.s32.f32 %v1554
        %v1587 = vcvt.s32.f32 %v1555
        %v1588 = vcvt.s32.f32 %v1556
        %v1589 = vcvt.s32.f32 %v1557
        %v1590 = vcvt.s32.f32 %v1558
        %v1591 = vcvt.s32.f32 %v1559
        %v1592 = vcvt.s32.f32 %v1560
        %v1593 = vcvt.s32.f32 %v1561
        %v1594 = vcvt.s32.f32 %v1562
        %v1595 = vcvt.s32.f32 %v1563
        %v1596 = vcvt.s32.f32 %v1564
        %v1597 = vcvt.s32.f32 %v1565
        %v1598 = vcvt.s32.f32 %v1566
        %v1599 = vcvt.s32.f32 %v1567
        %v1600 = vcvt.s32.f32 %v1568
        %v1601 = vcvt.s32.f32 %v1569
        %v1602 = vcvt.s32.f32 %v1570
        %v1603 = vcvt.s32.f32 %v1571
        %v1604 = vcvt.s32.f32 %v1572
        %v1605 = vcvt.s32.f32 %v1573
        %v1606 = vcvt.s32.f32 %v1574
        %v1607 = vcvt.s32.f32 %v1575
        %v1608 = vcvt.s32.f32 %v1576
        %v1609 = vcvt.s32.f32 %v1577
        %v1610 = vcvt.s32.f32 %v1578
        %v1611 = vcvt.s32.f32 %v1579
        %v1612 = vcvt.s32.f32 %v1580
        %v1613 = vadd.f32 %v1389, %v1581
        %v1614 = vadd.f32 %v1390, %v1582
        %v1615 = vadd.f32 %v1391, %v1583
        %v1616 = vadd.f32 %v1392, %v1584
        %v1617 = vadd.f32 %v1393, %v1585
        %v1618 = vadd.f32 %v1394, %v1586
        %v1619 = vadd.f32 %v1395, %v1587
        %v1620 = vadd.f32 %v1396, %v1588
        %v1621 = vadd.f32 %v1397, %v1589
        %v1622 = vadd.f32 %v1398, %v1590
        %v1623 = vadd.f32 %v1399, %v1591
        %v1624 = vadd.f32 %v1400, %v1592
        %v1625 = vadd.f32 %v1401, %v1593
        %v1626 = vadd.f32 %v1402, %v1594
        %v1627 = vadd.f32 %v1403, %v1595
        %v1628 = vadd.f32 %v1404, %v1596
        %v1629 = vadd.f32 %v1405, %v1597
        %v1630 = vadd.f32 %v1406, %v1598
        %v1631 = vadd.f32 %v1407, %v1599
        %v1632 = vadd.f32 %v1408, %v1600
        %v1633 = vadd.f32 %v1409, %v1601
        %v1634 = vadd.f32 %v1410, %v1602
        %v1635 = vadd.f32 %v1411, %v1603
        %v1636 = vadd.f32 %v1412, %v1604
        %v1637 = vadd.f32 %v1413, %v1605
        %v1638 = vadd.f32 %v1414, %v1606
        %v1639 = vadd.f32 %v1415, %v1607
        %v1640 = vadd.f32 %v1416, %v1608
        %v1641 = vadd.f32 %v1417, %v1609
        %v1642 = vadd.f32 %v1418, %v1610
        %v1643 = vadd.f32 %v1419, %v1611
        %v1644 = vadd.f32 %v1420, %v1612
        %1645 = vset.pattern.permute.xlu0 5
        %1646 = vperm.xlu0 %1645, %v491
        %v1647 = vpop.permute.xlu0 %1646
        %1648 = vset.pattern.permute.xlu0 5
        %1649 = vperm.xlu0 %1648, %v492
        %v1650 = vpop.permute.xlu0 %1649
        %1651 = vset.pattern.permute.xlu0 5
        %1652 = vperm.xlu0 %1651, %v493
        %v1653 = vpop.permute.xlu0 %1652
        %1654 = vset.pattern.permute.xlu0 5
        %1655 = vperm.xlu0 %1654, %v494
        %v1656 = vpop.permute.xlu0 %1655
        %1657 = vset.pattern.permute.xlu0 5
        %1658 = vperm.xlu0 %1657, %v495
        %v1659 = vpop.permute.xlu0 %1658
        %1660 = vset.pattern.permute.xlu0 5
        %1661 = vperm.xlu0 %1660, %v496
        %v1662 = vpop.permute.xlu0 %1661
        %1663 = vset.pattern.permute.xlu0 5
        %1664 = vperm.xlu0 %1663, %v497
        %v1665 = vpop.permute.xlu0 %1664
        %1666 = vset.pattern.permute.xlu0 5
        %1667 = vperm.xlu0 %1666, %v498
        %v1668 = vpop.permute.xlu0 %1667
        %1669 = vset.pattern.permute.xlu0 5
        %1670 = vperm.xlu0 %1669, %v499
        %v1671 = vpop.permute.xlu0 %1670
        %1672 = vset.pattern.permute.xlu0 5
        %1673 = vperm.xlu0 %1672, %v500
        %v1674 = vpop.permute.xlu0 %1673
        %1675 = vset.pattern.permute.xlu0 5
        %1676 = vperm.xlu0 %1675, %v501
        %v1677 = vpop.permute.xlu0 %1676
        %1678 = vset.pattern.permute.xlu0 5
        %1679 = vperm.xlu0 %1678, %v502
        %v1680 = vpop.permute.xlu0 %1679
        %1681 = vset.pattern.permute.xlu0 5
        %1682 = vperm.xlu0 %1681, %v503
        %v1683 = vpop.permute.xlu0 %1682
        %1684 = vset.pattern.permute.xlu0 5
        %1685 = vperm.xlu0 %1684, %v504
        %v1686 = vpop.permute.xlu0 %1685
        %1687 = vset.pattern.permute.xlu0 5
        %1688 = vperm.xlu0 %1687, %v505
        %v1689 = vpop.permute.xlu0 %1688
        %1690 = vset.pattern.permute.xlu0 5
        %1691 = vperm.xlu0 %1690, %v506
        %v1692 = vpop.permute.xlu0 %1691
        %1693 = vset.pattern.permute.xlu0 5
        %1694 = vperm.xlu0 %1693, %v507
        %v1695 = vpop.permute.xlu0 %1694
        %1696 = vset.pattern.permute.xlu0 5
        %1697 = vperm.xlu0 %1696, %v508
        %v1698 = vpop.permute.xlu0 %1697
        %1699 = vset.pattern.permute.xlu0 5
        %1700 = vperm.xlu0 %1699, %v509
        %v1701 = vpop.permute.xlu0 %1700
        %1702 = vset.pattern.permute.xlu0 5
        %1703 = vperm.xlu0 %1702, %v510
        %v1704 = vpop.permute.xlu0 %1703
        %1705 = vset.pattern.permute.xlu0 5
        %1706 = vperm.xlu0 %1705, %v511
        %v1707 = vpop.permute.xlu0 %1706
        %1708 = vset.pattern.permute.xlu0 5
        %1709 = vperm.xlu0 %1708, %v512
        %v1710 = vpop.permute.xlu0 %1709
        %1711 = vset.pattern.permute.xlu0 5
        %1712 = vperm.xlu0 %1711, %v513
        %v1713 = vpop.permute.xlu0 %1712
        %1714 = vset.pattern.permute.xlu0 5
        %1715 = vperm.xlu0 %1714, %v514
        %v1716 = vpop.permute.xlu0 %1715
        %1717 = vset.pattern.permute.xlu0 5
        %1718 = vperm.xlu0 %1717, %v515
        %v1719 = vpop.permute.xlu0 %1718
        %1720 = vset.pattern.permute.xlu0 5
        %1721 = vperm.xlu0 %1720, %v516
        %v1722 = vpop.permute.xlu0 %1721
        %1723 = vset.pattern.permute.xlu0 5
        %1724 = vperm.xlu0 %1723, %v517
        %v1725 = vpop.permute.xlu0 %1724
        %1726 = vset.pattern.permute.xlu0 5
        %1727 = vperm.xlu0 %1726, %v518
        %v1728 = vpop.permute.xlu0 %1727
        %1729 = vset.pattern.permute.xlu0 5
        %1730 = vperm.xlu0 %1729, %v519
        %v1731 = vpop.permute.xlu0 %1730
        %1732 = vset.pattern.permute.xlu0 5
        %1733 = vperm.xlu0 %1732, %v520
        %v1734 = vpop.permute.xlu0 %1733
        %1735 = vset.pattern.permute.xlu0 5
        %1736 = vperm.xlu0 %1735, %v521
        %v1737 = vpop.permute.xlu0 %1736
        %1738 = vset.pattern.permute.xlu0 5
        %1739 = vperm.xlu0 %1738, %v522
        %v1740 = vpop.permute.xlu0 %1739
        %vm1741 = vcmp.eq.s32.totalorder %v1647, %v524
        %vm1742 = vcmp.eq.s32.totalorder %v1650, %v524
        %vm1743 = vcmp.eq.s32.totalorder %v1653, %v524
        %vm1744 = vcmp.eq.s32.totalorder %v1656, %v524
        %vm1745 = vcmp.eq.s32.totalorder %v1659, %v524
        %vm1746 = vcmp.eq.s32.totalorder %v1662, %v524
        %vm1747 = vcmp.eq.s32.totalorder %v1665, %v524
        %vm1748 = vcmp.eq.s32.totalorder %v1668, %v524
        %vm1749 = vcmp.eq.s32.totalorder %v1671, %v524
        %vm1750 = vcmp.eq.s32.totalorder %v1674, %v524
        %vm1751 = vcmp.eq.s32.totalorder %v1677, %v524
        %vm1752 = vcmp.eq.s32.totalorder %v1680, %v524
        %vm1753 = vcmp.eq.s32.totalorder %v1683, %v524
        %vm1754 = vcmp.eq.s32.totalorder %v1686, %v524
        %vm1755 = vcmp.eq.s32.totalorder %v1689, %v524
        %vm1756 = vcmp.eq.s32.totalorder %v1692, %v524
        %vm1757 = vcmp.eq.s32.totalorder %v1695, %v524
        %vm1758 = vcmp.eq.s32.totalorder %v1698, %v524
        %vm1759 = vcmp.eq.s32.totalorder %v1701, %v524
        %vm1760 = vcmp.eq.s32.totalorder %v1704, %v524
        %vm1761 = vcmp.eq.s32.totalorder %v1707, %v524
        %vm1762 = vcmp.eq.s32.totalorder %v1710, %v524
        %vm1763 = vcmp.eq.s32.totalorder %v1713, %v524
        %vm1764 = vcmp.eq.s32.totalorder %v1716, %v524
        %vm1765 = vcmp.eq.s32.totalorder %v1719, %v524
        %vm1766 = vcmp.eq.s32.totalorder %v1722, %v524
        %vm1767 = vcmp.eq.s32.totalorder %v1725, %v524
        %vm1768 = vcmp.eq.s32.totalorder %v1728, %v524
        %vm1769 = vcmp.eq.s32.totalorder %v1731, %v524
        %vm1770 = vcmp.eq.s32.totalorder %v1734, %v524
        %vm1771 = vcmp.eq.s32.totalorder %v1737, %v524
        %vm1772 = vcmp.eq.s32.totalorder %v1740, %v524
        %v1773 = vsel %vm1741, 1, 0
        %v1774 = vsel %vm1742, 1, 0
        %v1775 = vsel %vm1743, 1, 0
        %v1776 = vsel %vm1744, 1, 0
        %v1777 = vsel %vm1745, 1, 0
        %v1778 = vsel %vm1746, 1, 0
        %v1779 = vsel %vm1747, 1, 0
        %v1780 = vsel %vm1748, 1, 0
        %v1781 = vsel %vm1749, 1, 0
        %v1782 = vsel %vm1750, 1, 0
        %v1783 = vsel %vm1751, 1, 0
        %v1784 = vsel %vm1752, 1, 0
        %v1785 = vsel %vm1753, 1, 0
        %v1786 = vsel %vm1754, 1, 0
        %v1787 = vsel %vm1755, 1, 0
        %v1788 = vsel %vm1756, 1, 0
        %v1789 = vsel %vm1757, 1, 0
        %v1790 = vsel %vm1758, 1, 0
        %v1791 = vsel %vm1759, 1, 0
        %v1792 = vsel %vm1760, 1, 0
        %v1793 = vsel %vm1761, 1, 0
        %v1794 = vsel %vm1762, 1, 0
        %v1795 = vsel %vm1763, 1, 0
        %v1796 = vsel %vm1764, 1, 0
        %v1797 = vsel %vm1765, 1, 0
        %v1798 = vsel %vm1766, 1, 0
        %v1799 = vsel %vm1767, 1, 0
        %v1800 = vsel %vm1768, 1, 0
        %v1801 = vsel %vm1769, 1, 0
        %v1802 = vsel %vm1770, 1, 0
        %v1803 = vsel %vm1771, 1, 0
        %v1804 = vsel %vm1772, 1, 0
        %v1805 = vcvt.s32.f32 %v1773
        %v1806 = vcvt.s32.f32 %v1774
        %v1807 = vcvt.s32.f32 %v1775
        %v1808 = vcvt.s32.f32 %v1776
        %v1809 = vcvt.s32.f32 %v1777
        %v1810 = vcvt.s32.f32 %v1778
        %v1811 = vcvt.s32.f32 %v1779
        %v1812 = vcvt.s32.f32 %v1780
        %v1813 = vcvt.s32.f32 %v1781
        %v1814 = vcvt.s32.f32 %v1782
        %v1815 = vcvt.s32.f32 %v1783
        %v1816 = vcvt.s32.f32 %v1784
        %v1817 = vcvt.s32.f32 %v1785
        %v1818 = vcvt.s32.f32 %v1786
        %v1819 = vcvt.s32.f32 %v1787
        %v1820 = vcvt.s32.f32 %v1788
        %v1821 = vcvt.s32.f32 %v1789
        %v1822 = vcvt.s32.f32 %v1790
        %v1823 = vcvt.s32.f32 %v1791
        %v1824 = vcvt.s32.f32 %v1792
        %v1825 = vcvt.s32.f32 %v1793
        %v1826 = vcvt.s32.f32 %v1794
        %v1827 = vcvt.s32.f32 %v1795
        %v1828 = vcvt.s32.f32 %v1796
        %v1829 = vcvt.s32.f32 %v1797
        %v1830 = vcvt.s32.f32 %v1798
        %v1831 = vcvt.s32.f32 %v1799
        %v1832 = vcvt.s32.f32 %v1800
        %v1833 = vcvt.s32.f32 %v1801
        %v1834 = vcvt.s32.f32 %v1802
        %v1835 = vcvt.s32.f32 %v1803
        %v1836 = vcvt.s32.f32 %v1804
        %v1837 = vadd.f32 %v1613, %v1805
        %v1838 = vadd.f32 %v1614, %v1806
        %v1839 = vadd.f32 %v1615, %v1807
        %v1840 = vadd.f32 %v1616, %v1808
        %v1841 = vadd.f32 %v1617, %v1809
        %v1842 = vadd.f32 %v1618, %v1810
        %v1843 = vadd.f32 %v1619, %v1811
        %v1844 = vadd.f32 %v1620, %v1812
        %v1845 = vadd.f32 %v1621, %v1813
        %v1846 = vadd.f32 %v1622, %v1814
        %v1847 = vadd.f32 %v1623, %v1815
        %v1848 = vadd.f32 %v1624, %v1816
        %v1849 = vadd.f32 %v1625, %v1817
        %v1850 = vadd.f32 %v1626, %v1818
        %v1851 = vadd.f32 %v1627, %v1819
        %v1852 = vadd.f32 %v1628, %v1820
        %v1853 = vadd.f32 %v1629, %v1821
        %v1854 = vadd.f32 %v1630, %v1822
        %v1855 = vadd.f32 %v1631, %v1823
        %v1856 = vadd.f32 %v1632, %v1824
        %v1857 = vadd.f32 %v1633, %v1825
        %v1858 = vadd.f32 %v1634, %v1826
        %v1859 = vadd.f32 %v1635, %v1827
        %v1860 = vadd.f32 %v1636, %v1828
        %v1861 = vadd.f32 %v1637, %v1829
        %v1862 = vadd.f32 %v1638, %v1830
        %v1863 = vadd.f32 %v1639, %v1831
        %v1864 = vadd.f32 %v1640, %v1832
        %v1865 = vadd.f32 %v1641, %v1833
        %v1866 = vadd.f32 %v1642, %v1834
        %v1867 = vadd.f32 %v1643, %v1835
        %v1868 = vadd.f32 %v1644, %v1836
        %1869 = vset.pattern.permute.xlu0 6
        %1870 = vperm.xlu0 %1869, %v491
        %v1871 = vpop.permute.xlu0 %1870
        %1872 = vset.pattern.permute.xlu0 6
        %1873 = vperm.xlu0 %1872, %v492
        %v1874 = vpop.permute.xlu0 %1873
        %1875 = vset.pattern.permute.xlu0 6
        %1876 = vperm.xlu0 %1875, %v493
        %v1877 = vpop.permute.xlu0 %1876
        %1878 = vset.pattern.permute.xlu0 6
        %1879 = vperm.xlu0 %1878, %v494
        %v1880 = vpop.permute.xlu0 %1879
        %1881 = vset.pattern.permute.xlu0 6
        %1882 = vperm.xlu0 %1881, %v495
        %v1883 = vpop.permute.xlu0 %1882
        %1884 = vset.pattern.permute.xlu0 6
        %1885 = vperm.xlu0 %1884, %v496
        %v1886 = vpop.permute.xlu0 %1885
        %1887 = vset.pattern.permute.xlu0 6
        %1888 = vperm.xlu0 %1887, %v497
        %v1889 = vpop.permute.xlu0 %1888
        %1890 = vset.pattern.permute.xlu0 6
        %1891 = vperm.xlu0 %1890, %v498
        %v1892 = vpop.permute.xlu0 %1891
        %1893 = vset.pattern.permute.xlu0 6
        %1894 = vperm.xlu0 %1893, %v499
        %v1895 = vpop.permute.xlu0 %1894
        %1896 = vset.pattern.permute.xlu0 6
        %1897 = vperm.xlu0 %1896, %v500
        %v1898 = vpop.permute.xlu0 %1897
        %1899 = vset.pattern.permute.xlu0 6
        %1900 = vperm.xlu0 %1899, %v501
        %v1901 = vpop.permute.xlu0 %1900
        %1902 = vset.pattern.permute.xlu0 6
        %1903 = vperm.xlu0 %1902, %v502
        %v1904 = vpop.permute.xlu0 %1903
        %1905 = vset.pattern.permute.xlu0 6
        %1906 = vperm.xlu0 %1905, %v503
        %v1907 = vpop.permute.xlu0 %1906
        %1908 = vset.pattern.permute.xlu0 6
        %1909 = vperm.xlu0 %1908, %v504
        %v1910 = vpop.permute.xlu0 %1909
        %1911 = vset.pattern.permute.xlu0 6
        %1912 = vperm.xlu0 %1911, %v505
        %v1913 = vpop.permute.xlu0 %1912
        %1914 = vset.pattern.permute.xlu0 6
        %1915 = vperm.xlu0 %1914, %v506
        %v1916 = vpop.permute.xlu0 %1915
        %1917 = vset.pattern.permute.xlu0 6
        %1918 = vperm.xlu0 %1917, %v507
        %v1919 = vpop.permute.xlu0 %1918
        %1920 = vset.pattern.permute.xlu0 6
        %1921 = vperm.xlu0 %1920, %v508
        %v1922 = vpop.permute.xlu0 %1921
        %1923 = vset.pattern.permute.xlu0 6
        %1924 = vperm.xlu0 %1923, %v509
        %v1925 = vpop.permute.xlu0 %1924
        %1926 = vset.pattern.permute.xlu0 6
        %1927 = vperm.xlu0 %1926, %v510
        %v1928 = vpop.permute.xlu0 %1927
        %1929 = vset.pattern.permute.xlu0 6
        %1930 = vperm.xlu0 %1929, %v511
        %v1931 = vpop.permute.xlu0 %1930
        %1932 = vset.pattern.permute.xlu0 6
        %1933 = vperm.xlu0 %1932, %v512
        %v1934 = vpop.permute.xlu0 %1933
        %1935 = vset.pattern.permute.xlu0 6
        %1936 = vperm.xlu0 %1935, %v513
        %v1937 = vpop.permute.xlu0 %1936
        %1938 = vset.pattern.permute.xlu0 6
        %1939 = vperm.xlu0 %1938, %v514
        %v1940 = vpop.permute.xlu0 %1939
        %1941 = vset.pattern.permute.xlu0 6
        %1942 = vperm.xlu0 %1941, %v515
        %v1943 = vpop.permute.xlu0 %1942
        %1944 = vset.pattern.permute.xlu0 6
        %1945 = vperm.xlu0 %1944, %v516
        %v1946 = vpop.permute.xlu0 %1945
        %1947 = vset.pattern.permute.xlu0 6
        %1948 = vperm.xlu0 %1947, %v517
        %v1949 = vpop.permute.xlu0 %1948
        %1950 = vset.pattern.permute.xlu0 6
        %1951 = vperm.xlu0 %1950, %v518
        %v1952 = vpop.permute.xlu0 %1951
        %1953 = vset.pattern.permute.xlu0 6
        %1954 = vperm.xlu0 %1953, %v519
        %v1955 = vpop.permute.xlu0 %1954
        %1956 = vset.pattern.permute.xlu0 6
        %1957 = vperm.xlu0 %1956, %v520
        %v1958 = vpop.permute.xlu0 %1957
        %1959 = vset.pattern.permute.xlu0 6
        %1960 = vperm.xlu0 %1959, %v521
        %v1961 = vpop.permute.xlu0 %1960
        %1962 = vset.pattern.permute.xlu0 6
        %1963 = vperm.xlu0 %1962, %v522
        %v1964 = vpop.permute.xlu0 %1963
        %vm1965 = vcmp.eq.s32.totalorder %v1871, %v524
        %vm1966 = vcmp.eq.s32.totalorder %v1874, %v524
        %vm1967 = vcmp.eq.s32.totalorder %v1877, %v524
        %vm1968 = vcmp.eq.s32.totalorder %v1880, %v524
        %vm1969 = vcmp.eq.s32.totalorder %v1883, %v524
        %vm1970 = vcmp.eq.s32.totalorder %v1886, %v524
        %vm1971 = vcmp.eq.s32.totalorder %v1889, %v524
        %vm1972 = vcmp.eq.s32.totalorder %v1892, %v524
        %vm1973 = vcmp.eq.s32.totalorder %v1895, %v524
        %vm1974 = vcmp.eq.s32.totalorder %v1898, %v524
        %vm1975 = vcmp.eq.s32.totalorder %v1901, %v524
        %vm1976 = vcmp.eq.s32.totalorder %v1904, %v524
        %vm1977 = vcmp.eq.s32.totalorder %v1907, %v524
        %vm1978 = vcmp.eq.s32.totalorder %v1910, %v524
        %vm1979 = vcmp.eq.s32.totalorder %v1913, %v524
        %vm1980 = vcmp.eq.s32.totalorder %v1916, %v524
        %vm1981 = vcmp.eq.s32.totalorder %v1919, %v524
        %vm1982 = vcmp.eq.s32.totalorder %v1922, %v524
        %vm1983 = vcmp.eq.s32.totalorder %v1925, %v524
        %vm1984 = vcmp.eq.s32.totalorder %v1928, %v524
        %vm1985 = vcmp.eq.s32.totalorder %v1931, %v524
        %vm1986 = vcmp.eq.s32.totalorder %v1934, %v524
        %vm1987 = vcmp.eq.s32.totalorder %v1937, %v524
        %vm1988 = vcmp.eq.s32.totalorder %v1940, %v524
        %vm1989 = vcmp.eq.s32.totalorder %v1943, %v524
        %vm1990 = vcmp.eq.s32.totalorder %v1946, %v524
        %vm1991 = vcmp.eq.s32.totalorder %v1949, %v524
        %vm1992 = vcmp.eq.s32.totalorder %v1952, %v524
        %vm1993 = vcmp.eq.s32.totalorder %v1955, %v524
        %vm1994 = vcmp.eq.s32.totalorder %v1958, %v524
        %vm1995 = vcmp.eq.s32.totalorder %v1961, %v524
        %vm1996 = vcmp.eq.s32.totalorder %v1964, %v524
        %v1997 = vsel %vm1965, 1, 0
        %v1998 = vsel %vm1966, 1, 0
        %v1999 = vsel %vm1967, 1, 0
        %v2000 = vsel %vm1968, 1, 0
        %v2001 = vsel %vm1969, 1, 0
        %v2002 = vsel %vm1970, 1, 0
        %v2003 = vsel %vm1971, 1, 0
        %v2004 = vsel %vm1972, 1, 0
        %v2005 = vsel %vm1973, 1, 0
        %v2006 = vsel %vm1974, 1, 0
        %v2007 = vsel %vm1975, 1, 0
        %v2008 = vsel %vm1976, 1, 0
        %v2009 = vsel %vm1977, 1, 0
        %v2010 = vsel %vm1978, 1, 0
        %v2011 = vsel %vm1979, 1, 0
        %v2012 = vsel %vm1980, 1, 0
        %v2013 = vsel %vm1981, 1, 0
        %v2014 = vsel %vm1982, 1, 0
        %v2015 = vsel %vm1983, 1, 0
        %v2016 = vsel %vm1984, 1, 0
        %v2017 = vsel %vm1985, 1, 0
        %v2018 = vsel %vm1986, 1, 0
        %v2019 = vsel %vm1987, 1, 0
        %v2020 = vsel %vm1988, 1, 0
        %v2021 = vsel %vm1989, 1, 0
        %v2022 = vsel %vm1990, 1, 0
        %v2023 = vsel %vm1991, 1, 0
        %v2024 = vsel %vm1992, 1, 0
        %v2025 = vsel %vm1993, 1, 0
        %v2026 = vsel %vm1994, 1, 0
        %v2027 = vsel %vm1995, 1, 0
        %v2028 = vsel %vm1996, 1, 0
        %v2029 = vcvt.s32.f32 %v1997
        %v2030 = vcvt.s32.f32 %v1998
        %v2031 = vcvt.s32.f32 %v1999
        %v2032 = vcvt.s32.f32 %v2000
        %v2033 = vcvt.s32.f32 %v2001
        %v2034 = vcvt.s32.f32 %v2002
        %v2035 = vcvt.s32.f32 %v2003
        %v2036 = vcvt.s32.f32 %v2004
        %v2037 = vcvt.s32.f32 %v2005
        %v2038 = vcvt.s32.f32 %v2006
        %v2039 = vcvt.s32.f32 %v2007
        %v2040 = vcvt.s32.f32 %v2008
        %v2041 = vcvt.s32.f32 %v2009
        %v2042 = vcvt.s32.f32 %v2010
        %v2043 = vcvt.s32.f32 %v2011
        %v2044 = vcvt.s32.f32 %v2012
        %v2045 = vcvt.s32.f32 %v2013
        %v2046 = vcvt.s32.f32 %v2014
        %v2047 = vcvt.s32.f32 %v2015
        %v2048 = vcvt.s32.f32 %v2016
        %v2049 = vcvt.s32.f32 %v2017
        %v2050 = vcvt.s32.f32 %v2018
        %v2051 = vcvt.s32.f32 %v2019
        %v2052 = vcvt.s32.f32 %v2020
        %v2053 = vcvt.s32.f32 %v2021
        %v2054 = vcvt.s32.f32 %v2022
        %v2055 = vcvt.s32.f32 %v2023
        %v2056 = vcvt.s32.f32 %v2024
        %v2057 = vcvt.s32.f32 %v2025
        %v2058 = vcvt.s32.f32 %v2026
        %v2059 = vcvt.s32.f32 %v2027
        %v2060 = vcvt.s32.f32 %v2028
        %v2061 = vadd.f32 %v1837, %v2029
        %v2062 = vadd.f32 %v1838, %v2030
        %v2063 = vadd.f32 %v1839, %v2031
        %v2064 = vadd.f32 %v1840, %v2032
        %v2065 = vadd.f32 %v1841, %v2033
        %v2066 = vadd.f32 %v1842, %v2034
        %v2067 = vadd.f32 %v1843, %v2035
        %v2068 = vadd.f32 %v1844, %v2036
        %v2069 = vadd.f32 %v1845, %v2037
        %v2070 = vadd.f32 %v1846, %v2038
        %v2071 = vadd.f32 %v1847, %v2039
        %v2072 = vadd.f32 %v1848, %v2040
        %v2073 = vadd.f32 %v1849, %v2041
        %v2074 = vadd.f32 %v1850, %v2042
        %v2075 = vadd.f32 %v1851, %v2043
        %v2076 = vadd.f32 %v1852, %v2044
        %v2077 = vadd.f32 %v1853, %v2045
        %v2078 = vadd.f32 %v1854, %v2046
        %v2079 = vadd.f32 %v1855, %v2047
        %v2080 = vadd.f32 %v1856, %v2048
        %v2081 = vadd.f32 %v1857, %v2049
        %v2082 = vadd.f32 %v1858, %v2050
        %v2083 = vadd.f32 %v1859, %v2051
        %v2084 = vadd.f32 %v1860, %v2052
        %v2085 = vadd.f32 %v1861, %v2053
        %v2086 = vadd.f32 %v1862, %v2054
        %v2087 = vadd.f32 %v1863, %v2055
        %v2088 = vadd.f32 %v1864, %v2056
        %v2089 = vadd.f32 %v1865, %v2057
        %v2090 = vadd.f32 %v1866, %v2058
        %v2091 = vadd.f32 %v1867, %v2059
        %v2092 = vadd.f32 %v1868, %v2060
        %2093 = vset.pattern.permute.xlu0 7
        %2094 = vperm.xlu0 %2093, %v491
        %v2095 = vpop.permute.xlu0 %2094
        %2096 = vset.pattern.permute.xlu0 7
        %2097 = vperm.xlu0 %2096, %v492
        %v2098 = vpop.permute.xlu0 %2097
        %2099 = vset.pattern.permute.xlu0 7
        %2100 = vperm.xlu0 %2099, %v493
        %v2101 = vpop.permute.xlu0 %2100
        %2102 = vset.pattern.permute.xlu0 7
        %2103 = vperm.xlu0 %2102, %v494
        %v2104 = vpop.permute.xlu0 %2103
        %2105 = vset.pattern.permute.xlu0 7
        %2106 = vperm.xlu0 %2105, %v495
        %v2107 = vpop.permute.xlu0 %2106
        %2108 = vset.pattern.permute.xlu0 7
        %2109 = vperm.xlu0 %2108, %v496
        %v2110 = vpop.permute.xlu0 %2109
        %2111 = vset.pattern.permute.xlu0 7
        %2112 = vperm.xlu0 %2111, %v497
        %v2113 = vpop.permute.xlu0 %2112
        %2114 = vset.pattern.permute.xlu0 7
        %2115 = vperm.xlu0 %2114, %v498
        %v2116 = vpop.permute.xlu0 %2115
        %2117 = vset.pattern.permute.xlu0 7
        %2118 = vperm.xlu0 %2117, %v499
        %v2119 = vpop.permute.xlu0 %2118
        %2120 = vset.pattern.permute.xlu0 7
        %2121 = vperm.xlu0 %2120, %v500
        %v2122 = vpop.permute.xlu0 %2121
        %2123 = vset.pattern.permute.xlu0 7
        %2124 = vperm.xlu0 %2123, %v501
        %v2125 = vpop.permute.xlu0 %2124
        %2126 = vset.pattern.permute.xlu0 7
        %2127 = vperm.xlu0 %2126, %v502
        %v2128 = vpop.permute.xlu0 %2127
        %2129 = vset.pattern.permute.xlu0 7
        %2130 = vperm.xlu0 %2129, %v503
        %v2131 = vpop.permute.xlu0 %2130
        %2132 = vset.pattern.permute.xlu0 7
        %2133 = vperm.xlu0 %2132, %v504
        %v2134 = vpop.permute.xlu0 %2133
        %2135 = vset.pattern.permute.xlu0 7
        %2136 = vperm.xlu0 %2135, %v505
        %v2137 = vpop.permute.xlu0 %2136
        %2138 = vset.pattern.permute.xlu0 7
        %2139 = vperm.xlu0 %2138, %v506
        %v2140 = vpop.permute.xlu0 %2139
        %2141 = vset.pattern.permute.xlu0 7
        %2142 = vperm.xlu0 %2141, %v507
        %v2143 = vpop.permute.xlu0 %2142
        %2144 = vset.pattern.permute.xlu0 7
        %2145 = vperm.xlu0 %2144, %v508
        %v2146 = vpop.permute.xlu0 %2145
        %2147 = vset.pattern.permute.xlu0 7
        %2148 = vperm.xlu0 %2147, %v509
        %v2149 = vpop.permute.xlu0 %2148
        %2150 = vset.pattern.permute.xlu0 7
        %2151 = vperm.xlu0 %2150, %v510
        %v2152 = vpop.permute.xlu0 %2151
        %2153 = vset.pattern.permute.xlu0 7
        %2154 = vperm.xlu0 %2153, %v511
        %v2155 = vpop.permute.xlu0 %2154
        %2156 = vset.pattern.permute.xlu0 7
        %2157 = vperm.xlu0 %2156, %v512
        %v2158 = vpop.permute.xlu0 %2157
        %2159 = vset.pattern.permute.xlu0 7
        %2160 = vperm.xlu0 %2159, %v513
        %v2161 = vpop.permute.xlu0 %2160
        %2162 = vset.pattern.permute.xlu0 7
        %2163 = vperm.xlu0 %2162, %v514
        %v2164 = vpop.permute.xlu0 %2163
        %2165 = vset.pattern.permute.xlu0 7
        %2166 = vperm.xlu0 %2165, %v515
        %v2167 = vpop.permute.xlu0 %2166
        %2168 = vset.pattern.permute.xlu0 7
        %2169 = vperm.xlu0 %2168, %v516
        %v2170 = vpop.permute.xlu0 %2169
        %2171 = vset.pattern.permute.xlu0 7
        %2172 = vperm.xlu0 %2171, %v517
        %v2173 = vpop.permute.xlu0 %2172
        %2174 = vset.pattern.permute.xlu0 7
        %2175 = vperm.xlu0 %2174, %v518
        %v2176 = vpop.permute.xlu0 %2175
        %2177 = vset.pattern.permute.xlu0 7
        %2178 = vperm.xlu0 %2177, %v519
        %v2179 = vpop.permute.xlu0 %2178
        %2180 = vset.pattern.permute.xlu0 7
        %2181 = vperm.xlu0 %2180, %v520
        %v2182 = vpop.permute.xlu0 %2181
        %2183 = vset.pattern.permute.xlu0 7
        %2184 = vperm.xlu0 %2183, %v521
        %v2185 = vpop.permute.xlu0 %2184
        %2186 = vset.pattern.permute.xlu0 7
        %2187 = vperm.xlu0 %2186, %v522
        %v2188 = vpop.permute.xlu0 %2187
        %vm2189 = vcmp.eq.s32.totalorder %v2095, %v524
        %vm2190 = vcmp.eq.s32.totalorder %v2098, %v524
        %vm2191 = vcmp.eq.s32.totalorder %v2101, %v524
        %vm2192 = vcmp.eq.s32.totalorder %v2104, %v524
        %vm2193 = vcmp.eq.s32.totalorder %v2107, %v524
        %vm2194 = vcmp.eq.s32.totalorder %v2110, %v524
        %vm2195 = vcmp.eq.s32.totalorder %v2113, %v524
        %vm2196 = vcmp.eq.s32.totalorder %v2116, %v524
        %vm2197 = vcmp.eq.s32.totalorder %v2119, %v524
        %vm2198 = vcmp.eq.s32.totalorder %v2122, %v524
        %vm2199 = vcmp.eq.s32.totalorder %v2125, %v524
        %vm2200 = vcmp.eq.s32.totalorder %v2128, %v524
        %vm2201 = vcmp.eq.s32.totalorder %v2131, %v524
        %vm2202 = vcmp.eq.s32.totalorder %v2134, %v524
        %vm2203 = vcmp.eq.s32.totalorder %v2137, %v524
        %vm2204 = vcmp.eq.s32.totalorder %v2140, %v524
        %vm2205 = vcmp.eq.s32.totalorder %v2143, %v524
        %vm2206 = vcmp.eq.s32.totalorder %v2146, %v524
        %vm2207 = vcmp.eq.s32.totalorder %v2149, %v524
        %vm2208 = vcmp.eq.s32.totalorder %v2152, %v524
        %vm2209 = vcmp.eq.s32.totalorder %v2155, %v524
        %vm2210 = vcmp.eq.s32.totalorder %v2158, %v524
        %vm2211 = vcmp.eq.s32.totalorder %v2161, %v524
        %vm2212 = vcmp.eq.s32.totalorder %v2164, %v524
        %vm2213 = vcmp.eq.s32.totalorder %v2167, %v524
        %vm2214 = vcmp.eq.s32.totalorder %v2170, %v524
        %vm2215 = vcmp.eq.s32.totalorder %v2173, %v524
        %vm2216 = vcmp.eq.s32.totalorder %v2176, %v524
        %vm2217 = vcmp.eq.s32.totalorder %v2179, %v524
        %vm2218 = vcmp.eq.s32.totalorder %v2182, %v524
        %vm2219 = vcmp.eq.s32.totalorder %v2185, %v524
        %vm2220 = vcmp.eq.s32.totalorder %v2188, %v524
        %v2221 = vsel %vm2189, 1, 0
        %v2222 = vsel %vm2190, 1, 0
        %v2223 = vsel %vm2191, 1, 0
        %v2224 = vsel %vm2192, 1, 0
        %v2225 = vsel %vm2193, 1, 0
        %v2226 = vsel %vm2194, 1, 0
        %v2227 = vsel %vm2195, 1, 0
        %v2228 = vsel %vm2196, 1, 0
        %v2229 = vsel %vm2197, 1, 0
        %v2230 = vsel %vm2198, 1, 0
        %v2231 = vsel %vm2199, 1, 0
        %v2232 = vsel %vm2200, 1, 0
        %v2233 = vsel %vm2201, 1, 0
        %v2234 = vsel %vm2202, 1, 0
        %v2235 = vsel %vm2203, 1, 0
        %v2236 = vsel %vm2204, 1, 0
        %v2237 = vsel %vm2205, 1, 0
        %v2238 = vsel %vm2206, 1, 0
        %v2239 = vsel %vm2207, 1, 0
        %v2240 = vsel %vm2208, 1, 0
        %v2241 = vsel %vm2209, 1, 0
        %v2242 = vsel %vm2210, 1, 0
        %v2243 = vsel %vm2211, 1, 0
        %v2244 = vsel %vm2212, 1, 0
        %v2245 = vsel %vm2213, 1, 0
        %v2246 = vsel %vm2214, 1, 0
        %v2247 = vsel %vm2215, 1, 0
        %v2248 = vsel %vm2216, 1, 0
        %v2249 = vsel %vm2217, 1, 0
        %v2250 = vsel %vm2218, 1, 0
        %v2251 = vsel %vm2219, 1, 0
        %v2252 = vsel %vm2220, 1, 0
        %v2253 = vcvt.s32.f32 %v2221
        %v2254 = vcvt.s32.f32 %v2222
        %v2255 = vcvt.s32.f32 %v2223
        %v2256 = vcvt.s32.f32 %v2224
        %v2257 = vcvt.s32.f32 %v2225
        %v2258 = vcvt.s32.f32 %v2226
        %v2259 = vcvt.s32.f32 %v2227
        %v2260 = vcvt.s32.f32 %v2228
        %v2261 = vcvt.s32.f32 %v2229
        %v2262 = vcvt.s32.f32 %v2230
        %v2263 = vcvt.s32.f32 %v2231
        %v2264 = vcvt.s32.f32 %v2232
        %v2265 = vcvt.s32.f32 %v2233
        %v2266 = vcvt.s32.f32 %v2234
        %v2267 = vcvt.s32.f32 %v2235
        %v2268 = vcvt.s32.f32 %v2236
        %v2269 = vcvt.s32.f32 %v2237
        %v2270 = vcvt.s32.f32 %v2238
        %v2271 = vcvt.s32.f32 %v2239
        %v2272 = vcvt.s32.f32 %v2240
        %v2273 = vcvt.s32.f32 %v2241
        %v2274 = vcvt.s32.f32 %v2242
        %v2275 = vcvt.s32.f32 %v2243
        %v2276 = vcvt.s32.f32 %v2244
        %v2277 = vcvt.s32.f32 %v2245
        %v2278 = vcvt.s32.f32 %v2246
        %v2279 = vcvt.s32.f32 %v2247
        %v2280 = vcvt.s32.f32 %v2248
        %v2281 = vcvt.s32.f32 %v2249
        %v2282 = vcvt.s32.f32 %v2250
        %v2283 = vcvt.s32.f32 %v2251
        %v2284 = vcvt.s32.f32 %v2252
        %v2285 = vadd.f32 %v2061, %v2253
        %v2286 = vadd.f32 %v2062, %v2254
        %v2287 = vadd.f32 %v2063, %v2255
        %v2288 = vadd.f32 %v2064, %v2256
        %v2289 = vadd.f32 %v2065, %v2257
        %v2290 = vadd.f32 %v2066, %v2258
        %v2291 = vadd.f32 %v2067, %v2259
        %v2292 = vadd.f32 %v2068, %v2260
        %v2293 = vadd.f32 %v2069, %v2261
        %v2294 = vadd.f32 %v2070, %v2262
        %v2295 = vadd.f32 %v2071, %v2263
        %v2296 = vadd.f32 %v2072, %v2264
        %v2297 = vadd.f32 %v2073, %v2265
        %v2298 = vadd.f32 %v2074, %v2266
        %v2299 = vadd.f32 %v2075, %v2267
        %v2300 = vadd.f32 %v2076, %v2268
        %v2301 = vadd.f32 %v2077, %v2269
        %v2302 = vadd.f32 %v2078, %v2270
        %v2303 = vadd.f32 %v2079, %v2271
        %v2304 = vadd.f32 %v2080, %v2272
        %v2305 = vadd.f32 %v2081, %v2273
        %v2306 = vadd.f32 %v2082, %v2274
        %v2307 = vadd.f32 %v2083, %v2275
        %v2308 = vadd.f32 %v2084, %v2276
        %v2309 = vadd.f32 %v2085, %v2277
        %v2310 = vadd.f32 %v2086, %v2278
        %v2311 = vadd.f32 %v2087, %v2279
        %v2312 = vadd.f32 %v2088, %v2280
        %v2313 = vadd.f32 %v2089, %v2281
        %v2314 = vadd.f32 %v2090, %v2282
        %v2315 = vadd.f32 %v2091, %v2283
        %v2316 = vadd.f32 %v2092, %v2284
        %2317 = vset.pattern.permute.xlu0 8
        %2318 = vperm.xlu0 %2317, %v491
        %v2319 = vpop.permute.xlu0 %2318
        %2320 = vset.pattern.permute.xlu0 8
        %2321 = vperm.xlu0 %2320, %v492
        %v2322 = vpop.permute.xlu0 %2321
        %2323 = vset.pattern.permute.xlu0 8
        %2324 = vperm.xlu0 %2323, %v493
        %v2325 = vpop.permute.xlu0 %2324
        %2326 = vset.pattern.permute.xlu0 8
        %2327 = vperm.xlu0 %2326, %v494
        %v2328 = vpop.permute.xlu0 %2327
        %2329 = vset.pattern.permute.xlu0 8
        %2330 = vperm.xlu0 %2329, %v495
        %v2331 = vpop.permute.xlu0 %2330
        %2332 = vset.pattern.permute.xlu0 8
        %2333 = vperm.xlu0 %2332, %v496
        %v2334 = vpop.permute.xlu0 %2333
        %2335 = vset.pattern.permute.xlu0 8
        %2336 = vperm.xlu0 %2335, %v497
        %v2337 = vpop.permute.xlu0 %2336
        %2338 = vset.pattern.permute.xlu0 8
        %2339 = vperm.xlu0 %2338, %v498
        %v2340 = vpop.permute.xlu0 %2339
        %2341 = vset.pattern.permute.xlu0 8
        %2342 = vperm.xlu0 %2341, %v499
        %v2343 = vpop.permute.xlu0 %2342
        %2344 = vset.pattern.permute.xlu0 8
        %2345 = vperm.xlu0 %2344, %v500
        %v2346 = vpop.permute.xlu0 %2345
        %2347 = vset.pattern.permute.xlu0 8
        %2348 = vperm.xlu0 %2347, %v501
        %v2349 = vpop.permute.xlu0 %2348
        %2350 = vset.pattern.permute.xlu0 8
        %2351 = vperm.xlu0 %2350, %v502
        %v2352 = vpop.permute.xlu0 %2351
        %2353 = vset.pattern.permute.xlu0 8
        %2354 = vperm.xlu0 %2353, %v503
        %v2355 = vpop.permute.xlu0 %2354
        %2356 = vset.pattern.permute.xlu0 8
        %2357 = vperm.xlu0 %2356, %v504
        %v2358 = vpop.permute.xlu0 %2357
        %2359 = vset.pattern.permute.xlu0 8
        %2360 = vperm.xlu0 %2359, %v505
        %v2361 = vpop.permute.xlu0 %2360
        %2362 = vset.pattern.permute.xlu0 8
        %2363 = vperm.xlu0 %2362, %v506
        %v2364 = vpop.permute.xlu0 %2363
        %2365 = vset.pattern.permute.xlu0 8
        %2366 = vperm.xlu0 %2365, %v507
        %v2367 = vpop.permute.xlu0 %2366
        %2368 = vset.pattern.permute.xlu0 8
        %2369 = vperm.xlu0 %2368, %v508
        %v2370 = vpop.permute.xlu0 %2369
        %2371 = vset.pattern.permute.xlu0 8
        %2372 = vperm.xlu0 %2371, %v509
        %v2373 = vpop.permute.xlu0 %2372
        %2374 = vset.pattern.permute.xlu0 8
        %2375 = vperm.xlu0 %2374, %v510
        %v2376 = vpop.permute.xlu0 %2375
        %2377 = vset.pattern.permute.xlu0 8
        %2378 = vperm.xlu0 %2377, %v511
        %v2379 = vpop.permute.xlu0 %2378
        %2380 = vset.pattern.permute.xlu0 8
        %2381 = vperm.xlu0 %2380, %v512
        %v2382 = vpop.permute.xlu0 %2381
        %2383 = vset.pattern.permute.xlu0 8
        %2384 = vperm.xlu0 %2383, %v513
        %v2385 = vpop.permute.xlu0 %2384
        %2386 = vset.pattern.permute.xlu0 8
        %2387 = vperm.xlu0 %2386, %v514
        %v2388 = vpop.permute.xlu0 %2387
        %2389 = vset.pattern.permute.xlu0 8
        %2390 = vperm.xlu0 %2389, %v515
        %v2391 = vpop.permute.xlu0 %2390
        %2392 = vset.pattern.permute.xlu0 8
        %2393 = vperm.xlu0 %2392, %v516
        %v2394 = vpop.permute.xlu0 %2393
        %2395 = vset.pattern.permute.xlu0 8
        %2396 = vperm.xlu0 %2395, %v517
        %v2397 = vpop.permute.xlu0 %2396
        %2398 = vset.pattern.permute.xlu0 8
        %2399 = vperm.xlu0 %2398, %v518
        %v2400 = vpop.permute.xlu0 %2399
        %2401 = vset.pattern.permute.xlu0 8
        %2402 = vperm.xlu0 %2401, %v519
        %v2403 = vpop.permute.xlu0 %2402
        %2404 = vset.pattern.permute.xlu0 8
        %2405 = vperm.xlu0 %2404, %v520
        %v2406 = vpop.permute.xlu0 %2405
        %2407 = vset.pattern.permute.xlu0 8
        %2408 = vperm.xlu0 %2407, %v521
        %v2409 = vpop.permute.xlu0 %2408
        %2410 = vset.pattern.permute.xlu0 8
        %2411 = vperm.xlu0 %2410, %v522
        %v2412 = vpop.permute.xlu0 %2411
        %vm2413 = vcmp.eq.s32.totalorder %v2319, %v524
        %vm2414 = vcmp.eq.s32.totalorder %v2322, %v524
        %vm2415 = vcmp.eq.s32.totalorder %v2325, %v524
        %vm2416 = vcmp.eq.s32.totalorder %v2328, %v524
        %vm2417 = vcmp.eq.s32.totalorder %v2331, %v524
        %vm2418 = vcmp.eq.s32.totalorder %v2334, %v524
        %vm2419 = vcmp.eq.s32.totalorder %v2337, %v524
        %vm2420 = vcmp.eq.s32.totalorder %v2340, %v524
        %vm2421 = vcmp.eq.s32.totalorder %v2343, %v524
        %vm2422 = vcmp.eq.s32.totalorder %v2346, %v524
        %vm2423 = vcmp.eq.s32.totalorder %v2349, %v524
        %vm2424 = vcmp.eq.s32.totalorder %v2352, %v524
        %vm2425 = vcmp.eq.s32.totalorder %v2355, %v524
        %vm2426 = vcmp.eq.s32.totalorder %v2358, %v524
        %vm2427 = vcmp.eq.s32.totalorder %v2361, %v524
        %vm2428 = vcmp.eq.s32.totalorder %v2364, %v524
        %vm2429 = vcmp.eq.s32.totalorder %v2367, %v524
        %vm2430 = vcmp.eq.s32.totalorder %v2370, %v524
        %vm2431 = vcmp.eq.s32.totalorder %v2373, %v524
        %vm2432 = vcmp.eq.s32.totalorder %v2376, %v524
        %vm2433 = vcmp.eq.s32.totalorder %v2379, %v524
        %vm2434 = vcmp.eq.s32.totalorder %v2382, %v524
        %vm2435 = vcmp.eq.s32.totalorder %v2385, %v524
        %vm2436 = vcmp.eq.s32.totalorder %v2388, %v524
        %vm2437 = vcmp.eq.s32.totalorder %v2391, %v524
        %vm2438 = vcmp.eq.s32.totalorder %v2394, %v524
        %vm2439 = vcmp.eq.s32.totalorder %v2397, %v524
        %vm2440 = vcmp.eq.s32.totalorder %v2400, %v524
        %vm2441 = vcmp.eq.s32.totalorder %v2403, %v524
        %vm2442 = vcmp.eq.s32.totalorder %v2406, %v524
        %vm2443 = vcmp.eq.s32.totalorder %v2409, %v524
        %vm2444 = vcmp.eq.s32.totalorder %v2412, %v524
        %v2445 = vsel %vm2413, 1, 0
        %v2446 = vsel %vm2414, 1, 0
        %v2447 = vsel %vm2415, 1, 0
        %v2448 = vsel %vm2416, 1, 0
        %v2449 = vsel %vm2417, 1, 0
        %v2450 = vsel %vm2418, 1, 0
        %v2451 = vsel %vm2419, 1, 0
        %v2452 = vsel %vm2420, 1, 0
        %v2453 = vsel %vm2421, 1, 0
        %v2454 = vsel %vm2422, 1, 0
        %v2455 = vsel %vm2423, 1, 0
        %v2456 = vsel %vm2424, 1, 0
        %v2457 = vsel %vm2425, 1, 0
        %v2458 = vsel %vm2426, 1, 0
        %v2459 = vsel %vm2427, 1, 0
        %v2460 = vsel %vm2428, 1, 0
        %v2461 = vsel %vm2429, 1, 0
        %v2462 = vsel %vm2430, 1, 0
        %v2463 = vsel %vm2431, 1, 0
        %v2464 = vsel %vm2432, 1, 0
        %v2465 = vsel %vm2433, 1, 0
        %v2466 = vsel %vm2434, 1, 0
        %v2467 = vsel %vm2435, 1, 0
        %v2468 = vsel %vm2436, 1, 0
        %v2469 = vsel %vm2437, 1, 0
        %v2470 = vsel %vm2438, 1, 0
        %v2471 = vsel %vm2439, 1, 0
        %v2472 = vsel %vm2440, 1, 0
        %v2473 = vsel %vm2441, 1, 0
        %v2474 = vsel %vm2442, 1, 0
        %v2475 = vsel %vm2443, 1, 0
        %v2476 = vsel %vm2444, 1, 0
        %v2477 = vcvt.s32.f32 %v2445
        %v2478 = vcvt.s32.f32 %v2446
        %v2479 = vcvt.s32.f32 %v2447
        %v2480 = vcvt.s32.f32 %v2448
        %v2481 = vcvt.s32.f32 %v2449
        %v2482 = vcvt.s32.f32 %v2450
        %v2483 = vcvt.s32.f32 %v2451
        %v2484 = vcvt.s32.f32 %v2452
        %v2485 = vcvt.s32.f32 %v2453
        %v2486 = vcvt.s32.f32 %v2454
        %v2487 = vcvt.s32.f32 %v2455
        %v2488 = vcvt.s32.f32 %v2456
        %v2489 = vcvt.s32.f32 %v2457
        %v2490 = vcvt.s32.f32 %v2458
        %v2491 = vcvt.s32.f32 %v2459
        %v2492 = vcvt.s32.f32 %v2460
        %v2493 = vcvt.s32.f32 %v2461
        %v2494 = vcvt.s32.f32 %v2462
        %v2495 = vcvt.s32.f32 %v2463
        %v2496 = vcvt.s32.f32 %v2464
        %v2497 = vcvt.s32.f32 %v2465
        %v2498 = vcvt.s32.f32 %v2466
        %v2499 = vcvt.s32.f32 %v2467
        %v2500 = vcvt.s32.f32 %v2468
        %v2501 = vcvt.s32.f32 %v2469
        %v2502 = vcvt.s32.f32 %v2470
        %v2503 = vcvt.s32.f32 %v2471
        %v2504 = vcvt.s32.f32 %v2472
        %v2505 = vcvt.s32.f32 %v2473
        %v2506 = vcvt.s32.f32 %v2474
        %v2507 = vcvt.s32.f32 %v2475
        %v2508 = vcvt.s32.f32 %v2476
        %v2509 = vadd.f32 %v2285, %v2477
        %v2510 = vadd.f32 %v2286, %v2478
        %v2511 = vadd.f32 %v2287, %v2479
        %v2512 = vadd.f32 %v2288, %v2480
        %v2513 = vadd.f32 %v2289, %v2481
        %v2514 = vadd.f32 %v2290, %v2482
        %v2515 = vadd.f32 %v2291, %v2483
        %v2516 = vadd.f32 %v2292, %v2484
        %v2517 = vadd.f32 %v2293, %v2485
        %v2518 = vadd.f32 %v2294, %v2486
        %v2519 = vadd.f32 %v2295, %v2487
        %v2520 = vadd.f32 %v2296, %v2488
        %v2521 = vadd.f32 %v2297, %v2489
        %v2522 = vadd.f32 %v2298, %v2490
        %v2523 = vadd.f32 %v2299, %v2491
        %v2524 = vadd.f32 %v2300, %v2492
        %v2525 = vadd.f32 %v2301, %v2493
        %v2526 = vadd.f32 %v2302, %v2494
        %v2527 = vadd.f32 %v2303, %v2495
        %v2528 = vadd.f32 %v2304, %v2496
        %v2529 = vadd.f32 %v2305, %v2497
        %v2530 = vadd.f32 %v2306, %v2498
        %v2531 = vadd.f32 %v2307, %v2499
        %v2532 = vadd.f32 %v2308, %v2500
        %v2533 = vadd.f32 %v2309, %v2501
        %v2534 = vadd.f32 %v2310, %v2502
        %v2535 = vadd.f32 %v2311, %v2503
        %v2536 = vadd.f32 %v2312, %v2504
        %v2537 = vadd.f32 %v2313, %v2505
        %v2538 = vadd.f32 %v2314, %v2506
        %v2539 = vadd.f32 %v2315, %v2507
        %v2540 = vadd.f32 %v2316, %v2508
        %2541 = vset.pattern.permute.xlu0 9
        %2542 = vperm.xlu0 %2541, %v491
        %v2543 = vpop.permute.xlu0 %2542
        %2544 = vset.pattern.permute.xlu0 9
        %2545 = vperm.xlu0 %2544, %v492
        %v2546 = vpop.permute.xlu0 %2545
        %2547 = vset.pattern.permute.xlu0 9
        %2548 = vperm.xlu0 %2547, %v493
        %v2549 = vpop.permute.xlu0 %2548
        %2550 = vset.pattern.permute.xlu0 9
        %2551 = vperm.xlu0 %2550, %v494
        %v2552 = vpop.permute.xlu0 %2551
        %2553 = vset.pattern.permute.xlu0 9
        %2554 = vperm.xlu0 %2553, %v495
        %v2555 = vpop.permute.xlu0 %2554
        %2556 = vset.pattern.permute.xlu0 9
        %2557 = vperm.xlu0 %2556, %v496
        %v2558 = vpop.permute.xlu0 %2557
        %2559 = vset.pattern.permute.xlu0 9
        %2560 = vperm.xlu0 %2559, %v497
        %v2561 = vpop.permute.xlu0 %2560
        %2562 = vset.pattern.permute.xlu0 9
        %2563 = vperm.xlu0 %2562, %v498
        %v2564 = vpop.permute.xlu0 %2563
        %2565 = vset.pattern.permute.xlu0 9
        %2566 = vperm.xlu0 %2565, %v499
        %v2567 = vpop.permute.xlu0 %2566
        %2568 = vset.pattern.permute.xlu0 9
        %2569 = vperm.xlu0 %2568, %v500
        %v2570 = vpop.permute.xlu0 %2569
        %2571 = vset.pattern.permute.xlu0 9
        %2572 = vperm.xlu0 %2571, %v501
        %v2573 = vpop.permute.xlu0 %2572
        %2574 = vset.pattern.permute.xlu0 9
        %2575 = vperm.xlu0 %2574, %v502
        %v2576 = vpop.permute.xlu0 %2575
        %2577 = vset.pattern.permute.xlu0 9
        %2578 = vperm.xlu0 %2577, %v503
        %v2579 = vpop.permute.xlu0 %2578
        %2580 = vset.pattern.permute.xlu0 9
        %2581 = vperm.xlu0 %2580, %v504
        %v2582 = vpop.permute.xlu0 %2581
        %2583 = vset.pattern.permute.xlu0 9
        %2584 = vperm.xlu0 %2583, %v505
        %v2585 = vpop.permute.xlu0 %2584
        %2586 = vset.pattern.permute.xlu0 9
        %2587 = vperm.xlu0 %2586, %v506
        %v2588 = vpop.permute.xlu0 %2587
        %2589 = vset.pattern.permute.xlu0 9
        %2590 = vperm.xlu0 %2589, %v507
        %v2591 = vpop.permute.xlu0 %2590
        %2592 = vset.pattern.permute.xlu0 9
        %2593 = vperm.xlu0 %2592, %v508
        %v2594 = vpop.permute.xlu0 %2593
        %2595 = vset.pattern.permute.xlu0 9
        %2596 = vperm.xlu0 %2595, %v509
        %v2597 = vpop.permute.xlu0 %2596
        %2598 = vset.pattern.permute.xlu0 9
        %2599 = vperm.xlu0 %2598, %v510
        %v2600 = vpop.permute.xlu0 %2599
        %2601 = vset.pattern.permute.xlu0 9
        %2602 = vperm.xlu0 %2601, %v511
        %v2603 = vpop.permute.xlu0 %2602
        %2604 = vset.pattern.permute.xlu0 9
        %2605 = vperm.xlu0 %2604, %v512
        %v2606 = vpop.permute.xlu0 %2605
        %2607 = vset.pattern.permute.xlu0 9
        %2608 = vperm.xlu0 %2607, %v513
        %v2609 = vpop.permute.xlu0 %2608
        %2610 = vset.pattern.permute.xlu0 9
        %2611 = vperm.xlu0 %2610, %v514
        %v2612 = vpop.permute.xlu0 %2611
        %2613 = vset.pattern.permute.xlu0 9
        %2614 = vperm.xlu0 %2613, %v515
        %v2615 = vpop.permute.xlu0 %2614
        %2616 = vset.pattern.permute.xlu0 9
        %2617 = vperm.xlu0 %2616, %v516
        %v2618 = vpop.permute.xlu0 %2617
        %2619 = vset.pattern.permute.xlu0 9
        %2620 = vperm.xlu0 %2619, %v517
        %v2621 = vpop.permute.xlu0 %2620
        %2622 = vset.pattern.permute.xlu0 9
        %2623 = vperm.xlu0 %2622, %v518
        %v2624 = vpop.permute.xlu0 %2623
        %2625 = vset.pattern.permute.xlu0 9
        %2626 = vperm.xlu0 %2625, %v519
        %v2627 = vpop.permute.xlu0 %2626
        %2628 = vset.pattern.permute.xlu0 9
        %2629 = vperm.xlu0 %2628, %v520
        %v2630 = vpop.permute.xlu0 %2629
        %2631 = vset.pattern.permute.xlu0 9
        %2632 = vperm.xlu0 %2631, %v521
        %v2633 = vpop.permute.xlu0 %2632
        %2634 = vset.pattern.permute.xlu0 9
        %2635 = vperm.xlu0 %2634, %v522
        %v2636 = vpop.permute.xlu0 %2635
        %vm2637 = vcmp.eq.s32.totalorder %v2543, %v524
        %vm2638 = vcmp.eq.s32.totalorder %v2546, %v524
        %vm2639 = vcmp.eq.s32.totalorder %v2549, %v524
        %vm2640 = vcmp.eq.s32.totalorder %v2552, %v524
        %vm2641 = vcmp.eq.s32.totalorder %v2555, %v524
        %vm2642 = vcmp.eq.s32.totalorder %v2558, %v524
        %vm2643 = vcmp.eq.s32.totalorder %v2561, %v524
        %vm2644 = vcmp.eq.s32.totalorder %v2564, %v524
        %vm2645 = vcmp.eq.s32.totalorder %v2567, %v524
        %vm2646 = vcmp.eq.s32.totalorder %v2570, %v524
        %vm2647 = vcmp.eq.s32.totalorder %v2573, %v524
        %vm2648 = vcmp.eq.s32.totalorder %v2576, %v524
        %vm2649 = vcmp.eq.s32.totalorder %v2579, %v524
        %vm2650 = vcmp.eq.s32.totalorder %v2582, %v524
        %vm2651 = vcmp.eq.s32.totalorder %v2585, %v524
        %vm2652 = vcmp.eq.s32.totalorder %v2588, %v524
        %vm2653 = vcmp.eq.s32.totalorder %v2591, %v524
        %vm2654 = vcmp.eq.s32.totalorder %v2594, %v524
        %vm2655 = vcmp.eq.s32.totalorder %v2597, %v524
        %vm2656 = vcmp.eq.s32.totalorder %v2600, %v524
        %vm2657 = vcmp.eq.s32.totalorder %v2603, %v524
        %vm2658 = vcmp.eq.s32.totalorder %v2606, %v524
        %vm2659 = vcmp.eq.s32.totalorder %v2609, %v524
        %vm2660 = vcmp.eq.s32.totalorder %v2612, %v524
        %vm2661 = vcmp.eq.s32.totalorder %v2615, %v524
        %vm2662 = vcmp.eq.s32.totalorder %v2618, %v524
        %vm2663 = vcmp.eq.s32.totalorder %v2621, %v524
        %vm2664 = vcmp.eq.s32.totalorder %v2624, %v524
        %vm2665 = vcmp.eq.s32.totalorder %v2627, %v524
        %vm2666 = vcmp.eq.s32.totalorder %v2630, %v524
        %vm2667 = vcmp.eq.s32.totalorder %v2633, %v524
        %vm2668 = vcmp.eq.s32.totalorder %v2636, %v524
        %v2669 = vsel %vm2637, 1, 0
        %v2670 = vsel %vm2638, 1, 0
        %v2671 = vsel %vm2639, 1, 0
        %v2672 = vsel %vm2640, 1, 0
        %v2673 = vsel %vm2641, 1, 0
        %v2674 = vsel %vm2642, 1, 0
        %v2675 = vsel %vm2643, 1, 0
        %v2676 = vsel %vm2644, 1, 0
        %v2677 = vsel %vm2645, 1, 0
        %v2678 = vsel %vm2646, 1, 0
        %v2679 = vsel %vm2647, 1, 0
        %v2680 = vsel %vm2648, 1, 0
        %v2681 = vsel %vm2649, 1, 0
        %v2682 = vsel %vm2650, 1, 0
        %v2683 = vsel %vm2651, 1, 0
        %v2684 = vsel %vm2652, 1, 0
        %v2685 = vsel %vm2653, 1, 0
        %v2686 = vsel %vm2654, 1, 0
        %v2687 = vsel %vm2655, 1, 0
        %v2688 = vsel %vm2656, 1, 0
        %v2689 = vsel %vm2657, 1, 0
        %v2690 = vsel %vm2658, 1, 0
        %v2691 = vsel %vm2659, 1, 0
        %v2692 = vsel %vm2660, 1, 0
        %v2693 = vsel %vm2661, 1, 0
        %v2694 = vsel %vm2662, 1, 0
        %v2695 = vsel %vm2663, 1, 0
        %v2696 = vsel %vm2664, 1, 0
        %v2697 = vsel %vm2665, 1, 0
        %v2698 = vsel %vm2666, 1, 0
        %v2699 = vsel %vm2667, 1, 0
        %v2700 = vsel %vm2668, 1, 0
        %v2701 = vcvt.s32.f32 %v2669
        %v2702 = vcvt.s32.f32 %v2670
        %v2703 = vcvt.s32.f32 %v2671
        %v2704 = vcvt.s32.f32 %v2672
        %v2705 = vcvt.s32.f32 %v2673
        %v2706 = vcvt.s32.f32 %v2674
        %v2707 = vcvt.s32.f32 %v2675
        %v2708 = vcvt.s32.f32 %v2676
        %v2709 = vcvt.s32.f32 %v2677
        %v2710 = vcvt.s32.f32 %v2678
        %v2711 = vcvt.s32.f32 %v2679
        %v2712 = vcvt.s32.f32 %v2680
        %v2713 = vcvt.s32.f32 %v2681
        %v2714 = vcvt.s32.f32 %v2682
        %v2715 = vcvt.s32.f32 %v2683
        %v2716 = vcvt.s32.f32 %v2684
        %v2717 = vcvt.s32.f32 %v2685
        %v2718 = vcvt.s32.f32 %v2686
        %v2719 = vcvt.s32.f32 %v2687
        %v2720 = vcvt.s32.f32 %v2688
        %v2721 = vcvt.s32.f32 %v2689
        %v2722 = vcvt.s32.f32 %v2690
        %v2723 = vcvt.s32.f32 %v2691
        %v2724 = vcvt.s32.f32 %v2692
        %v2725 = vcvt.s32.f32 %v2693
        %v2726 = vcvt.s32.f32 %v2694
        %v2727 = vcvt.s32.f32 %v2695
        %v2728 = vcvt.s32.f32 %v2696
        %v2729 = vcvt.s32.f32 %v2697
        %v2730 = vcvt.s32.f32 %v2698
        %v2731 = vcvt.s32.f32 %v2699
        %v2732 = vcvt.s32.f32 %v2700
        %v2733 = vadd.f32 %v2509, %v2701
        %v2734 = vadd.f32 %v2510, %v2702
        %v2735 = vadd.f32 %v2511, %v2703
        %v2736 = vadd.f32 %v2512, %v2704
        %v2737 = vadd.f32 %v2513, %v2705
        %v2738 = vadd.f32 %v2514, %v2706
        %v2739 = vadd.f32 %v2515, %v2707
        %v2740 = vadd.f32 %v2516, %v2708
        %v2741 = vadd.f32 %v2517, %v2709
        %v2742 = vadd.f32 %v2518, %v2710
        %v2743 = vadd.f32 %v2519, %v2711
        %v2744 = vadd.f32 %v2520, %v2712
        %v2745 = vadd.f32 %v2521, %v2713
        %v2746 = vadd.f32 %v2522, %v2714
        %v2747 = vadd.f32 %v2523, %v2715
        %v2748 = vadd.f32 %v2524, %v2716
        %v2749 = vadd.f32 %v2525, %v2717
        %v2750 = vadd.f32 %v2526, %v2718
        %v2751 = vadd.f32 %v2527, %v2719
        %v2752 = vadd.f32 %v2528, %v2720
        %v2753 = vadd.f32 %v2529, %v2721
        %v2754 = vadd.f32 %v2530, %v2722
        %v2755 = vadd.f32 %v2531, %v2723
        %v2756 = vadd.f32 %v2532, %v2724
        %v2757 = vadd.f32 %v2533, %v2725
        %v2758 = vadd.f32 %v2534, %v2726
        %v2759 = vadd.f32 %v2535, %v2727
        %v2760 = vadd.f32 %v2536, %v2728
        %v2761 = vadd.f32 %v2537, %v2729
        %v2762 = vadd.f32 %v2538, %v2730
        %v2763 = vadd.f32 %v2539, %v2731
        %v2764 = vadd.f32 %v2540, %v2732
        %2765 = vset.pattern.permute.xlu0 10
        %2766 = vperm.xlu0 %2765, %v491
        %v2767 = vpop.permute.xlu0 %2766
        %2768 = vset.pattern.permute.xlu0 10
        %2769 = vperm.xlu0 %2768, %v492
        %v2770 = vpop.permute.xlu0 %2769
        %2771 = vset.pattern.permute.xlu0 10
        %2772 = vperm.xlu0 %2771, %v493
        %v2773 = vpop.permute.xlu0 %2772
        %2774 = vset.pattern.permute.xlu0 10
        %2775 = vperm.xlu0 %2774, %v494
        %v2776 = vpop.permute.xlu0 %2775
        %2777 = vset.pattern.permute.xlu0 10
        %2778 = vperm.xlu0 %2777, %v495
        %v2779 = vpop.permute.xlu0 %2778
        %2780 = vset.pattern.permute.xlu0 10
        %2781 = vperm.xlu0 %2780, %v496
        %v2782 = vpop.permute.xlu0 %2781
        %2783 = vset.pattern.permute.xlu0 10
        %2784 = vperm.xlu0 %2783, %v497
        %v2785 = vpop.permute.xlu0 %2784
        %2786 = vset.pattern.permute.xlu0 10
        %2787 = vperm.xlu0 %2786, %v498
        %v2788 = vpop.permute.xlu0 %2787
        %2789 = vset.pattern.permute.xlu0 10
        %2790 = vperm.xlu0 %2789, %v499
        %v2791 = vpop.permute.xlu0 %2790
        %2792 = vset.pattern.permute.xlu0 10
        %2793 = vperm.xlu0 %2792, %v500
        %v2794 = vpop.permute.xlu0 %2793
        %2795 = vset.pattern.permute.xlu0 10
        %2796 = vperm.xlu0 %2795, %v501
        %v2797 = vpop.permute.xlu0 %2796
        %2798 = vset.pattern.permute.xlu0 10
        %2799 = vperm.xlu0 %2798, %v502
        %v2800 = vpop.permute.xlu0 %2799
        %2801 = vset.pattern.permute.xlu0 10
        %2802 = vperm.xlu0 %2801, %v503
        %v2803 = vpop.permute.xlu0 %2802
        %2804 = vset.pattern.permute.xlu0 10
        %2805 = vperm.xlu0 %2804, %v504
        %v2806 = vpop.permute.xlu0 %2805
        %2807 = vset.pattern.permute.xlu0 10
        %2808 = vperm.xlu0 %2807, %v505
        %v2809 = vpop.permute.xlu0 %2808
        %2810 = vset.pattern.permute.xlu0 10
        %2811 = vperm.xlu0 %2810, %v506
        %v2812 = vpop.permute.xlu0 %2811
        %2813 = vset.pattern.permute.xlu0 10
        %2814 = vperm.xlu0 %2813, %v507
        %v2815 = vpop.permute.xlu0 %2814
        %2816 = vset.pattern.permute.xlu0 10
        %2817 = vperm.xlu0 %2816, %v508
        %v2818 = vpop.permute.xlu0 %2817
        %2819 = vset.pattern.permute.xlu0 10
        %2820 = vperm.xlu0 %2819, %v509
        %v2821 = vpop.permute.xlu0 %2820
        %2822 = vset.pattern.permute.xlu0 10
        %2823 = vperm.xlu0 %2822, %v510
        %v2824 = vpop.permute.xlu0 %2823
        %2825 = vset.pattern.permute.xlu0 10
        %2826 = vperm.xlu0 %2825, %v511
        %v2827 = vpop.permute.xlu0 %2826
        %2828 = vset.pattern.permute.xlu0 10
        %2829 = vperm.xlu0 %2828, %v512
        %v2830 = vpop.permute.xlu0 %2829
        %2831 = vset.pattern.permute.xlu0 10
        %2832 = vperm.xlu0 %2831, %v513
        %v2833 = vpop.permute.xlu0 %2832
        %2834 = vset.pattern.permute.xlu0 10
        %2835 = vperm.xlu0 %2834, %v514
        %v2836 = vpop.permute.xlu0 %2835
        %2837 = vset.pattern.permute.xlu0 10
        %2838 = vperm.xlu0 %2837, %v515
        %v2839 = vpop.permute.xlu0 %2838
        %2840 = vset.pattern.permute.xlu0 10
        %2841 = vperm.xlu0 %2840, %v516
        %v2842 = vpop.permute.xlu0 %2841
        %2843 = vset.pattern.permute.xlu0 10
        %2844 = vperm.xlu0 %2843, %v517
        %v2845 = vpop.permute.xlu0 %2844
        %2846 = vset.pattern.permute.xlu0 10
        %2847 = vperm.xlu0 %2846, %v518
        %v2848 = vpop.permute.xlu0 %2847
        %2849 = vset.pattern.permute.xlu0 10
        %2850 = vperm.xlu0 %2849, %v519
        %v2851 = vpop.permute.xlu0 %2850
        %2852 = vset.pattern.permute.xlu0 10
        %2853 = vperm.xlu0 %2852, %v520
        %v2854 = vpop.permute.xlu0 %2853
        %2855 = vset.pattern.permute.xlu0 10
        %2856 = vperm.xlu0 %2855, %v521
        %v2857 = vpop.permute.xlu0 %2856
        %2858 = vset.pattern.permute.xlu0 10
        %2859 = vperm.xlu0 %2858, %v522
        %v2860 = vpop.permute.xlu0 %2859
        %vm2861 = vcmp.eq.s32.totalorder %v2767, %v524
        %vm2862 = vcmp.eq.s32.totalorder %v2770, %v524
        %vm2863 = vcmp.eq.s32.totalorder %v2773, %v524
        %vm2864 = vcmp.eq.s32.totalorder %v2776, %v524
        %vm2865 = vcmp.eq.s32.totalorder %v2779, %v524
        %vm2866 = vcmp.eq.s32.totalorder %v2782, %v524
        %vm2867 = vcmp.eq.s32.totalorder %v2785, %v524
        %vm2868 = vcmp.eq.s32.totalorder %v2788, %v524
        %vm2869 = vcmp.eq.s32.totalorder %v2791, %v524
        %vm2870 = vcmp.eq.s32.totalorder %v2794, %v524
        %vm2871 = vcmp.eq.s32.totalorder %v2797, %v524
        %vm2872 = vcmp.eq.s32.totalorder %v2800, %v524
        %vm2873 = vcmp.eq.s32.totalorder %v2803, %v524
        %vm2874 = vcmp.eq.s32.totalorder %v2806, %v524
        %vm2875 = vcmp.eq.s32.totalorder %v2809, %v524
        %vm2876 = vcmp.eq.s32.totalorder %v2812, %v524
        %vm2877 = vcmp.eq.s32.totalorder %v2815, %v524
        %vm2878 = vcmp.eq.s32.totalorder %v2818, %v524
        %vm2879 = vcmp.eq.s32.totalorder %v2821, %v524
        %vm2880 = vcmp.eq.s32.totalorder %v2824, %v524
        %vm2881 = vcmp.eq.s32.totalorder %v2827, %v524
        %vm2882 = vcmp.eq.s32.totalorder %v2830, %v524
        %vm2883 = vcmp.eq.s32.totalorder %v2833, %v524
        %vm2884 = vcmp.eq.s32.totalorder %v2836, %v524
        %vm2885 = vcmp.eq.s32.totalorder %v2839, %v524
        %vm2886 = vcmp.eq.s32.totalorder %v2842, %v524
        %vm2887 = vcmp.eq.s32.totalorder %v2845, %v524
        %vm2888 = vcmp.eq.s32.totalorder %v2848, %v524
        %vm2889 = vcmp.eq.s32.totalorder %v2851, %v524
        %vm2890 = vcmp.eq.s32.totalorder %v2854, %v524
        %vm2891 = vcmp.eq.s32.totalorder %v2857, %v524
        %vm2892 = vcmp.eq.s32.totalorder %v2860, %v524
        %v2893 = vsel %vm2861, 1, 0
        %v2894 = vsel %vm2862, 1, 0
        %v2895 = vsel %vm2863, 1, 0
        %v2896 = vsel %vm2864, 1, 0
        %v2897 = vsel %vm2865, 1, 0
        %v2898 = vsel %vm2866, 1, 0
        %v2899 = vsel %vm2867, 1, 0
        %v2900 = vsel %vm2868, 1, 0
        %v2901 = vsel %vm2869, 1, 0
        %v2902 = vsel %vm2870, 1, 0
        %v2903 = vsel %vm2871, 1, 0
        %v2904 = vsel %vm2872, 1, 0
        %v2905 = vsel %vm2873, 1, 0
        %v2906 = vsel %vm2874, 1, 0
        %v2907 = vsel %vm2875, 1, 0
        %v2908 = vsel %vm2876, 1, 0
        %v2909 = vsel %vm2877, 1, 0
        %v2910 = vsel %vm2878, 1, 0
        %v2911 = vsel %vm2879, 1, 0
        %v2912 = vsel %vm2880, 1, 0
        %v2913 = vsel %vm2881, 1, 0
        %v2914 = vsel %vm2882, 1, 0
        %v2915 = vsel %vm2883, 1, 0
        %v2916 = vsel %vm2884, 1, 0
        %v2917 = vsel %vm2885, 1, 0
        %v2918 = vsel %vm2886, 1, 0
        %v2919 = vsel %vm2887, 1, 0
        %v2920 = vsel %vm2888, 1, 0
        %v2921 = vsel %vm2889, 1, 0
        %v2922 = vsel %vm2890, 1, 0
        %v2923 = vsel %vm2891, 1, 0
        %v2924 = vsel %vm2892, 1, 0
        %v2925 = vcvt.s32.f32 %v2893
        %v2926 = vcvt.s32.f32 %v2894
        %v2927 = vcvt.s32.f32 %v2895
        %v2928 = vcvt.s32.f32 %v2896
        %v2929 = vcvt.s32.f32 %v2897
        %v2930 = vcvt.s32.f32 %v2898
        %v2931 = vcvt.s32.f32 %v2899
        %v2932 = vcvt.s32.f32 %v2900
        %v2933 = vcvt.s32.f32 %v2901
        %v2934 = vcvt.s32.f32 %v2902
        %v2935 = vcvt.s32.f32 %v2903
        %v2936 = vcvt.s32.f32 %v2904
        %v2937 = vcvt.s32.f32 %v2905
        %v2938 = vcvt.s32.f32 %v2906
        %v2939 = vcvt.s32.f32 %v2907
        %v2940 = vcvt.s32.f32 %v2908
        %v2941 = vcvt.s32.f32 %v2909
        %v2942 = vcvt.s32.f32 %v2910
        %v2943 = vcvt.s32.f32 %v2911
        %v2944 = vcvt.s32.f32 %v2912
        %v2945 = vcvt.s32.f32 %v2913
        %v2946 = vcvt.s32.f32 %v2914
        %v2947 = vcvt.s32.f32 %v2915
        %v2948 = vcvt.s32.f32 %v2916
        %v2949 = vcvt.s32.f32 %v2917
        %v2950 = vcvt.s32.f32 %v2918
        %v2951 = vcvt.s32.f32 %v2919
        %v2952 = vcvt.s32.f32 %v2920
        %v2953 = vcvt.s32.f32 %v2921
        %v2954 = vcvt.s32.f32 %v2922
        %v2955 = vcvt.s32.f32 %v2923
        %v2956 = vcvt.s32.f32 %v2924
        %v2957 = vadd.f32 %v2733, %v2925
        %v2958 = vadd.f32 %v2734, %v2926
        %v2959 = vadd.f32 %v2735, %v2927
        %v2960 = vadd.f32 %v2736, %v2928
        %v2961 = vadd.f32 %v2737, %v2929
        %v2962 = vadd.f32 %v2738, %v2930
        %v2963 = vadd.f32 %v2739, %v2931
        %v2964 = vadd.f32 %v2740, %v2932
        %v2965 = vadd.f32 %v2741, %v2933
        %v2966 = vadd.f32 %v2742, %v2934
        %v2967 = vadd.f32 %v2743, %v2935
        %v2968 = vadd.f32 %v2744, %v2936
        %v2969 = vadd.f32 %v2745, %v2937
        %v2970 = vadd.f32 %v2746, %v2938
        %v2971 = vadd.f32 %v2747, %v2939
        %v2972 = vadd.f32 %v2748, %v2940
        %v2973 = vadd.f32 %v2749, %v2941
        %v2974 = vadd.f32 %v2750, %v2942
        %v2975 = vadd.f32 %v2751, %v2943
        %v2976 = vadd.f32 %v2752, %v2944
        %v2977 = vadd.f32 %v2753, %v2945
        %v2978 = vadd.f32 %v2754, %v2946
        %v2979 = vadd.f32 %v2755, %v2947
        %v2980 = vadd.f32 %v2756, %v2948
        %v2981 = vadd.f32 %v2757, %v2949
        %v2982 = vadd.f32 %v2758, %v2950
        %v2983 = vadd.f32 %v2759, %v2951
        %v2984 = vadd.f32 %v2760, %v2952
        %v2985 = vadd.f32 %v2761, %v2953
        %v2986 = vadd.f32 %v2762, %v2954
        %v2987 = vadd.f32 %v2763, %v2955
        %v2988 = vadd.f32 %v2764, %v2956
        %2989 = vset.pattern.permute.xlu0 11
        %2990 = vperm.xlu0 %2989, %v491
        %v2991 = vpop.permute.xlu0 %2990
        %2992 = vset.pattern.permute.xlu0 11
        %2993 = vperm.xlu0 %2992, %v492
        %v2994 = vpop.permute.xlu0 %2993
        %2995 = vset.pattern.permute.xlu0 11
        %2996 = vperm.xlu0 %2995, %v493
        %v2997 = vpop.permute.xlu0 %2996
        %2998 = vset.pattern.permute.xlu0 11
        %2999 = vperm.xlu0 %2998, %v494
        %v3000 = vpop.permute.xlu0 %2999
        %3001 = vset.pattern.permute.xlu0 11
        %3002 = vperm.xlu0 %3001, %v495
        %v3003 = vpop.permute.xlu0 %3002
        %3004 = vset.pattern.permute.xlu0 11
        %3005 = vperm.xlu0 %3004, %v496
        %v3006 = vpop.permute.xlu0 %3005
        %3007 = vset.pattern.permute.xlu0 11
        %3008 = vperm.xlu0 %3007, %v497
        %v3009 = vpop.permute.xlu0 %3008
        %3010 = vset.pattern.permute.xlu0 11
        %3011 = vperm.xlu0 %3010, %v498
        %v3012 = vpop.permute.xlu0 %3011
        %3013 = vset.pattern.permute.xlu0 11
        %3014 = vperm.xlu0 %3013, %v499
        %v3015 = vpop.permute.xlu0 %3014
        %3016 = vset.pattern.permute.xlu0 11
        %3017 = vperm.xlu0 %3016, %v500
        %v3018 = vpop.permute.xlu0 %3017
        %3019 = vset.pattern.permute.xlu0 11
        %3020 = vperm.xlu0 %3019, %v501
        %v3021 = vpop.permute.xlu0 %3020
        %3022 = vset.pattern.permute.xlu0 11
        %3023 = vperm.xlu0 %3022, %v502
        %v3024 = vpop.permute.xlu0 %3023
        %3025 = vset.pattern.permute.xlu0 11
        %3026 = vperm.xlu0 %3025, %v503
        %v3027 = vpop.permute.xlu0 %3026
        %3028 = vset.pattern.permute.xlu0 11
        %3029 = vperm.xlu0 %3028, %v504
        %v3030 = vpop.permute.xlu0 %3029
        %3031 = vset.pattern.permute.xlu0 11
        %3032 = vperm.xlu0 %3031, %v505
        %v3033 = vpop.permute.xlu0 %3032
        %3034 = vset.pattern.permute.xlu0 11
        %3035 = vperm.xlu0 %3034, %v506
        %v3036 = vpop.permute.xlu0 %3035
        %3037 = vset.pattern.permute.xlu0 11
        %3038 = vperm.xlu0 %3037, %v507
        %v3039 = vpop.permute.xlu0 %3038
        %3040 = vset.pattern.permute.xlu0 11
        %3041 = vperm.xlu0 %3040, %v508
        %v3042 = vpop.permute.xlu0 %3041
        %3043 = vset.pattern.permute.xlu0 11
        %3044 = vperm.xlu0 %3043, %v509
        %v3045 = vpop.permute.xlu0 %3044
        %3046 = vset.pattern.permute.xlu0 11
        %3047 = vperm.xlu0 %3046, %v510
        %v3048 = vpop.permute.xlu0 %3047
        %3049 = vset.pattern.permute.xlu0 11
        %3050 = vperm.xlu0 %3049, %v511
        %v3051 = vpop.permute.xlu0 %3050
        %3052 = vset.pattern.permute.xlu0 11
        %3053 = vperm.xlu0 %3052, %v512
        %v3054 = vpop.permute.xlu0 %3053
        %3055 = vset.pattern.permute.xlu0 11
        %3056 = vperm.xlu0 %3055, %v513
        %v3057 = vpop.permute.xlu0 %3056
        %3058 = vset.pattern.permute.xlu0 11
        %3059 = vperm.xlu0 %3058, %v514
        %v3060 = vpop.permute.xlu0 %3059
        %3061 = vset.pattern.permute.xlu0 11
        %3062 = vperm.xlu0 %3061, %v515
        %v3063 = vpop.permute.xlu0 %3062
        %3064 = vset.pattern.permute.xlu0 11
        %3065 = vperm.xlu0 %3064, %v516
        %v3066 = vpop.permute.xlu0 %3065
        %3067 = vset.pattern.permute.xlu0 11
        %3068 = vperm.xlu0 %3067, %v517
        %v3069 = vpop.permute.xlu0 %3068
        %3070 = vset.pattern.permute.xlu0 11
        %3071 = vperm.xlu0 %3070, %v518
        %v3072 = vpop.permute.xlu0 %3071
        %3073 = vset.pattern.permute.xlu0 11
        %3074 = vperm.xlu0 %3073, %v519
        %v3075 = vpop.permute.xlu0 %3074
        %3076 = vset.pattern.permute.xlu0 11
        %3077 = vperm.xlu0 %3076, %v520
        %v3078 = vpop.permute.xlu0 %3077
        %3079 = vset.pattern.permute.xlu0 11
        %3080 = vperm.xlu0 %3079, %v521
        %v3081 = vpop.permute.xlu0 %3080
        %3082 = vset.pattern.permute.xlu0 11
        %3083 = vperm.xlu0 %3082, %v522
        %v3084 = vpop.permute.xlu0 %3083
        %vm3085 = vcmp.eq.s32.totalorder %v2991, %v524
        %vm3086 = vcmp.eq.s32.totalorder %v2994, %v524
        %vm3087 = vcmp.eq.s32.totalorder %v2997, %v524
        %vm3088 = vcmp.eq.s32.totalorder %v3000, %v524
        %vm3089 = vcmp.eq.s32.totalorder %v3003, %v524
        %vm3090 = vcmp.eq.s32.totalorder %v3006, %v524
        %vm3091 = vcmp.eq.s32.totalorder %v3009, %v524
        %vm3092 = vcmp.eq.s32.totalorder %v3012, %v524
        %vm3093 = vcmp.eq.s32.totalorder %v3015, %v524
        %vm3094 = vcmp.eq.s32.totalorder %v3018, %v524
        %vm3095 = vcmp.eq.s32.totalorder %v3021, %v524
        %vm3096 = vcmp.eq.s32.totalorder %v3024, %v524
        %vm3097 = vcmp.eq.s32.totalorder %v3027, %v524
        %vm3098 = vcmp.eq.s32.totalorder %v3030, %v524
        %vm3099 = vcmp.eq.s32.totalorder %v3033, %v524
        %vm3100 = vcmp.eq.s32.totalorder %v3036, %v524
        %vm3101 = vcmp.eq.s32.totalorder %v3039, %v524
        %vm3102 = vcmp.eq.s32.totalorder %v3042, %v524
        %vm3103 = vcmp.eq.s32.totalorder %v3045, %v524
        %vm3104 = vcmp.eq.s32.totalorder %v3048, %v524
        %vm3105 = vcmp.eq.s32.totalorder %v3051, %v524
        %vm3106 = vcmp.eq.s32.totalorder %v3054, %v524
        %vm3107 = vcmp.eq.s32.totalorder %v3057, %v524
        %vm3108 = vcmp.eq.s32.totalorder %v3060, %v524
        %vm3109 = vcmp.eq.s32.totalorder %v3063, %v524
        %vm3110 = vcmp.eq.s32.totalorder %v3066, %v524
        %vm3111 = vcmp.eq.s32.totalorder %v3069, %v524
        %vm3112 = vcmp.eq.s32.totalorder %v3072, %v524
        %vm3113 = vcmp.eq.s32.totalorder %v3075, %v524
        %vm3114 = vcmp.eq.s32.totalorder %v3078, %v524
        %vm3115 = vcmp.eq.s32.totalorder %v3081, %v524
        %vm3116 = vcmp.eq.s32.totalorder %v3084, %v524
        %v3117 = vsel %vm3085, 1, 0
        %v3118 = vsel %vm3086, 1, 0
        %v3119 = vsel %vm3087, 1, 0
        %v3120 = vsel %vm3088, 1, 0
        %v3121 = vsel %vm3089, 1, 0
        %v3122 = vsel %vm3090, 1, 0
        %v3123 = vsel %vm3091, 1, 0
        %v3124 = vsel %vm3092, 1, 0
        %v3125 = vsel %vm3093, 1, 0
        %v3126 = vsel %vm3094, 1, 0
        %v3127 = vsel %vm3095, 1, 0
        %v3128 = vsel %vm3096, 1, 0
        %v3129 = vsel %vm3097, 1, 0
        %v3130 = vsel %vm3098, 1, 0
        %v3131 = vsel %vm3099, 1, 0
        %v3132 = vsel %vm3100, 1, 0
        %v3133 = vsel %vm3101, 1, 0
        %v3134 = vsel %vm3102, 1, 0
        %v3135 = vsel %vm3103, 1, 0
        %v3136 = vsel %vm3104, 1, 0
        %v3137 = vsel %vm3105, 1, 0
        %v3138 = vsel %vm3106, 1, 0
        %v3139 = vsel %vm3107, 1, 0
        %v3140 = vsel %vm3108, 1, 0
        %v3141 = vsel %vm3109, 1, 0
        %v3142 = vsel %vm3110, 1, 0
        %v3143 = vsel %vm3111, 1, 0
        %v3144 = vsel %vm3112, 1, 0
        %v3145 = vsel %vm3113, 1, 0
        %v3146 = vsel %vm3114, 1, 0
        %v3147 = vsel %vm3115, 1, 0
        %v3148 = vsel %vm3116, 1, 0
        %v3149 = vcvt.s32.f32 %v3117
        %v3150 = vcvt.s32.f32 %v3118
        %v3151 = vcvt.s32.f32 %v3119
        %v3152 = vcvt.s32.f32 %v3120
        %v3153 = vcvt.s32.f32 %v3121
        %v3154 = vcvt.s32.f32 %v3122
        %v3155 = vcvt.s32.f32 %v3123
        %v3156 = vcvt.s32.f32 %v3124
        %v3157 = vcvt.s32.f32 %v3125
        %v3158 = vcvt.s32.f32 %v3126
        %v3159 = vcvt.s32.f32 %v3127
        %v3160 = vcvt.s32.f32 %v3128
        %v3161 = vcvt.s32.f32 %v3129
        %v3162 = vcvt.s32.f32 %v3130
        %v3163 = vcvt.s32.f32 %v3131
        %v3164 = vcvt.s32.f32 %v3132
        %v3165 = vcvt.s32.f32 %v3133
        %v3166 = vcvt.s32.f32 %v3134
        %v3167 = vcvt.s32.f32 %v3135
        %v3168 = vcvt.s32.f32 %v3136
        %v3169 = vcvt.s32.f32 %v3137
        %v3170 = vcvt.s32.f32 %v3138
        %v3171 = vcvt.s32.f32 %v3139
        %v3172 = vcvt.s32.f32 %v3140
        %v3173 = vcvt.s32.f32 %v3141
        %v3174 = vcvt.s32.f32 %v3142
        %v3175 = vcvt.s32.f32 %v3143
        %v3176 = vcvt.s32.f32 %v3144
        %v3177 = vcvt.s32.f32 %v3145
        %v3178 = vcvt.s32.f32 %v3146
        %v3179 = vcvt.s32.f32 %v3147
        %v3180 = vcvt.s32.f32 %v3148
        %v3181 = vadd.f32 %v2957, %v3149
        %v3182 = vadd.f32 %v2958, %v3150
        %v3183 = vadd.f32 %v2959, %v3151
        %v3184 = vadd.f32 %v2960, %v3152
        %v3185 = vadd.f32 %v2961, %v3153
        %v3186 = vadd.f32 %v2962, %v3154
        %v3187 = vadd.f32 %v2963, %v3155
        %v3188 = vadd.f32 %v2964, %v3156
        %v3189 = vadd.f32 %v2965, %v3157
        %v3190 = vadd.f32 %v2966, %v3158
        %v3191 = vadd.f32 %v2967, %v3159
        %v3192 = vadd.f32 %v2968, %v3160
        %v3193 = vadd.f32 %v2969, %v3161
        %v3194 = vadd.f32 %v2970, %v3162
        %v3195 = vadd.f32 %v2971, %v3163
        %v3196 = vadd.f32 %v2972, %v3164
        %v3197 = vadd.f32 %v2973, %v3165
        %v3198 = vadd.f32 %v2974, %v3166
        %v3199 = vadd.f32 %v2975, %v3167
        %v3200 = vadd.f32 %v2976, %v3168
        %v3201 = vadd.f32 %v2977, %v3169
        %v3202 = vadd.f32 %v2978, %v3170
        %v3203 = vadd.f32 %v2979, %v3171
        %v3204 = vadd.f32 %v2980, %v3172
        %v3205 = vadd.f32 %v2981, %v3173
        %v3206 = vadd.f32 %v2982, %v3174
        %v3207 = vadd.f32 %v2983, %v3175
        %v3208 = vadd.f32 %v2984, %v3176
        %v3209 = vadd.f32 %v2985, %v3177
        %v3210 = vadd.f32 %v2986, %v3178
        %v3211 = vadd.f32 %v2987, %v3179
        %v3212 = vadd.f32 %v2988, %v3180
        %v3213 = vld [vmem:[%s3] sm:$0xff]
        %v3214 = vld [vmem:[%s3 + $0x8] sm:$0xff]
        %v3215 = vld [vmem:[%s3 + $0x10] sm:$0xff]
        %v3216 = vld [vmem:[%s3 + $0x18] sm:$0xff]
        %vm3217 = vcmask 261120
        %v3219 = vsel %vm3217, %v3181, 0
        %v3222 = vsel %vm3217, %v3182, 0
        %v3225 = vsel %vm3217, %v3183, 0
        %v3228 = vsel %vm3217, %v3184, 0
        %v3231 = vsel %vm3217, %v3185, 0
        %v3234 = vsel %vm3217, %v3186, 0
        %v3237 = vsel %vm3217, %v3187, 0
        %v3240 = vsel %vm3217, %v3188, 0
        %v3243 = vsel %vm3217, %v3189, 0
        %v3246 = vsel %vm3217, %v3190, 0
        %v3249 = vsel %vm3217, %v3191, 0
        %v3252 = vsel %vm3217, %v3192, 0
        %v3255 = vsel %vm3217, %v3193, 0
        %v3258 = vsel %vm3217, %v3194, 0
        %v3261 = vsel %vm3217, %v3195, 0
        %v3264 = vsel %vm3217, %v3196, 0
        %v3267 = vsel %vm3217, %v3197, 0
        %v3270 = vsel %vm3217, %v3198, 0
        %v3273 = vsel %vm3217, %v3199, 0
        %v3276 = vsel %vm3217, %v3200, 0
        %v3279 = vsel %vm3217, %v3201, 0
        %v3282 = vsel %vm3217, %v3202, 0
        %v3285 = vsel %vm3217, %v3203, 0
        %v3288 = vsel %vm3217, %v3204, 0
        %v3291 = vsel %vm3217, %v3205, 0
        %v3294 = vsel %vm3217, %v3206, 0
        %v3297 = vsel %vm3217, %v3207, 0
        %v3300 = vsel %vm3217, %v3208, 0
        %v3303 = vsel %vm3217, %v3209, 0
        %v3306 = vsel %vm3217, %v3210, 0
        %v3309 = vsel %vm3217, %v3211, 0
        %v3312 = vsel %vm3217, %v3212, 0
        %3314 = vmatprep.subr.mxu0 0.0
        %3315 = vmatpush1.msra.mxu0 %v3213
        %3316 = vmatprep.subr.mxu0 0.0
        %3317 = vmatpush1.msra.mxu0 %v3214
        %3318 = vmatprep.subr.mxu0 0.0
        %3319 = vmatpush1.msra.mxu0 %v3215
        %3320 = vmatprep.subr.mxu0 0.0
        %3321 = vmatpush1.msra.mxu0 %v3216
        %3322 = vmatprep.subr.mxu0 0.0
        %3323 = vmatpush1.msra.mxu0 0.0
        %3324 = vmatprep.subr.mxu0 0.0
        %3325 = vmatpush1.msra.mxu0 0.0
        %3326 = vmatprep.subr.mxu0 0.0
        %3327 = vmatpush1.msra.mxu0 0.0
        %3328 = vmatprep.subr.mxu0 0.0
        %3329 = vmatpush1.msra.mxu0 0.0
        %3330 = vmatprep.subr.mxu0 0.0
        %3331 = vmatpush1.msra.mxu0 0.0
        %3332 = vmatprep.subr.mxu0 0.0
        %3333 = vmatpush1.msra.mxu0 0.0
        %3334 = vmatprep.subr.mxu0 0.0
        %3335 = vmatpush1.msra.mxu0 0.0
        %3336 = vmatprep.subr.mxu0 0.0
        %3337 = vmatpush1.msra.mxu0 0.0
        %3338 = vmatprep.subr.mxu0 0.0
        %3339 = vmatpush1.msra.mxu0 0.0
        %3340 = vmatprep.subr.mxu0 0.0
        %3341 = vmatpush1.msra.mxu0 0.0
        %3342 = vmatprep.subr.mxu0 0.0
        %3343 = vmatpush1.msra.mxu0 0.0
        %3344 = vmatprep.subr.mxu0 0.0
        %3345 = vmatpush1.msra.mxu0 0.0
        %3346 = vmatprep.subr.mxu0 0.0
        %3347 = vmatpush1.msra.mxu0 0.0
        %3348 = vmatprep.subr.mxu0 0.0
        %3349 = vmatpush1.msra.mxu0 0.0
        %3350 = vmatprep.subr.mxu0 0.0
        %3351 = vmatpush1.msra.mxu0 0.0
        %3352 = vmatprep.subr.mxu0 0.0
        %3353 = vmatpush1.msra.mxu0 0.0
        %3354 = vmatprep.subr.mxu0 0.0
        %3355 = vmatpush1.msra.mxu0 0.0
        %3356 = vmatprep.subr.mxu0 0.0
        %3357 = vmatpush1.msra.mxu0 0.0
        %3358 = vmatprep.subr.mxu0 0.0
        %3359 = vmatpush1.msra.mxu0 0.0
        %3360 = vmatprep.subr.mxu0 0.0
        %3361 = vmatpush1.msra.mxu0 0.0
        %3362 = vmatprep.subr.mxu0 0.0
        %3363 = vmatpush1.msra.mxu0 0.0
        %3364 = vmatprep.subr.mxu0 0.0
        %3365 = vmatpush1.msra.mxu0 0.0
        %3366 = vmatprep.subr.mxu0 0.0
        %3367 = vmatpush1.msra.mxu0 0.0
        %3368 = vmatprep.subr.mxu0 0.0
        %3369 = vmatpush1.msra.mxu0 0.0
        %3370 = vmatprep.subr.mxu0 0.0
        %3371 = vmatpush1.msra.mxu0 0.0
        %3372 = vmatprep.subr.mxu0 0.0
        %3373 = vmatpush1.msra.mxu0 0.0
        %3374 = vmatprep.subr.mxu0 0.0
        %3375 = vmatpush1.msra.mxu0 0.0
        %3376 = vmatprep.subr.mxu0 0.0
        %3377 = vmatpush1.msra.mxu0 0.0
        %3378 = vmatprep.mubr.f32.mxu0 0.0
        %3379 = vmatmul.mubr.f32.gmra.mrb[0].mxu0 %v3219
        %v3380 = vpop.f32.mrb[0].mxu0
        %v3381 = vadd.f32 0.0, %v3380
        %v3382 = vpop.f32.mrb[0].mxu0
        %3383 = vmatprep.mubr.f32.mxu0 0.0
        %3384 = vmatmul.mubr.f32.gmra.mrb[0].mxu0 %v3222
        %v3385 = vpop.f32.mrb[0].mxu0
        %v3386 = vadd.f32 0.0, %v3385
        %v3387 = vpop.f32.mrb[0].mxu0
        %3388 = vmatprep.mubr.f32.mxu0 0.0
        %3389 = vmatmul.mubr.f32.gmra.mrb[0].mxu0 %v3225
        %v3390 = vpop.f32.mrb[0].mxu0
        %v3391 = vadd.f32 0.0, %v3390
        %v3392 = vpop.f32.mrb[0].mxu0
        %3393 = vmatprep.mubr.f32.mxu0 0.0
        %3394 = vmatmul.mubr.f32.gmra.mrb[0].mxu0 %v3228
        %v3395 = vpop.f32.mrb[0].mxu0
        %v3396 = vadd.f32 0.0, %v3395
        %v3397 = vpop.f32.mrb[0].mxu0
        %3398 = vmatprep.mubr.f32.mxu0 0.0
        %3399 = vmatmul.mubr.f32.gmra.mrb[0].mxu0 %v3231
        %v3400 = vpop.f32.mrb[0].mxu0
        %v3401 = vadd.f32 0.0, %v3400
        %v3402 = vpop.f32.mrb[0].mxu0
        %3403 = vmatprep.mubr.f32.mxu0 0.0
        %3404 = vmatmul.mubr.f32.gmra.mrb[0].mxu0 %v3234
        %v3405 = vpop.f32.mrb[0].mxu0
        %v3406 = vadd.f32 0.0, %v3405
        %v3407 = vpop.f32.mrb[0].mxu0
        %3408 = vmatprep.mubr.f32.mxu0 0.0
        %3409 = vmatmul.mubr.f32.gmra.mrb[0].mxu0 %v3237
        %v3410 = vpop.f32.mrb[0].mxu0
        %v3411 = vadd.f32 0.0, %v3410
        %v3412 = vpop.f32.mrb[0].mxu0
        %3413 = vmatprep.mubr.f32.mxu0 0.0
        %3414 = vmatmul.mubr.f32.gmra.mrb[0].mxu0 %v3240
        %v3415 = vpop.f32.mrb[0].mxu0
        %v3416 = vadd.f32 0.0, %v3415
        %v3417 = vpop.f32.mrb[0].mxu0
        %3418 = vmatprep.mubr.f32.mxu0 0.0
        %3419 = vmatmul.mubr.f32.gmra.mrb[0].mxu0 %v3243
        %v3420 = vpop.f32.mrb[0].mxu0
        %v3421 = vadd.f32 0.0, %v3420
        %v3422 = vpop.f32.mrb[0].mxu0
        %3423 = vmatprep.mubr.f32.mxu0 0.0
        %3424 = vmatmul.mubr.f32.gmra.mrb[0].mxu0 %v3246
        %v3425 = vpop.f32.mrb[0].mxu0
        %v3426 = vadd.f32 0.0, %v3425
        %v3427 = vpop.f32.mrb[0].mxu0
        %3428 = vmatprep.mubr.f32.mxu0 0.0
        %3429 = vmatmul.mubr.f32.gmra.mrb[0].mxu0 %v3249
        %v3430 = vpop.f32.mrb[0].mxu0
        %v3431 = vadd.f32 0.0, %v3430
        %v3432 = vpop.f32.mrb[0].mxu0
        %3433 = vmatprep.mubr.f32.mxu0 0.0
        %3434 = vmatmul.mubr.f32.gmra.mrb[0].mxu0 %v3252
        %v3435 = vpop.f32.mrb[0].mxu0
        %v3436 = vadd.f32 0.0, %v3435
        %v3437 = vpop.f32.mrb[0].mxu0
        %3438 = vmatprep.mubr.f32.mxu0 0.0
        %3439 = vmatmul.mubr.f32.gmra.mrb[0].mxu0 %v3255
        %v3440 = vpop.f32.mrb[0].mxu0
        %v3441 = vadd.f32 0.0, %v3440
        %v3442 = vpop.f32.mrb[0].mxu0
        %3443 = vmatprep.mubr.f32.mxu0 0.0
        %3444 = vmatmul.mubr.f32.gmra.mrb[0].mxu0 %v3258
        %v3445 = vpop.f32.mrb[0].mxu0
        %v3446 = vadd.f32 0.0, %v3445
        %v3447 = vpop.f32.mrb[0].mxu0
        %3448 = vmatprep.mubr.f32.mxu0 0.0
        %3449 = vmatmul.mubr.f32.gmra.mrb[0].mxu0 %v3261
        %v3450 = vpop.f32.mrb[0].mxu0
        %v3451 = vadd.f32 0.0, %v3450
        %v3452 = vpop.f32.mrb[0].mxu0
        %3453 = vmatprep.mubr.f32.mxu0 0.0
        %3454 = vmatmul.mubr.f32.gmra.mrb[0].mxu0 %v3264
        %v3455 = vpop.f32.mrb[0].mxu0
        %v3456 = vadd.f32 0.0, %v3455
        %v3457 = vpop.f32.mrb[0].mxu0
        %3458 = vmatprep.mubr.f32.mxu0 0.0
        %3459 = vmatmul.mubr.f32.gmra.mrb[0].mxu0 %v3267
        %v3460 = vpop.f32.mrb[0].mxu0
        %v3461 = vadd.f32 0.0, %v3460
        %v3462 = vpop.f32.mrb[0].mxu0
        %3463 = vmatprep.mubr.f32.mxu0 0.0
        %3464 = vmatmul.mubr.f32.gmra.mrb[0].mxu0 %v3270
        %v3465 = vpop.f32.mrb[0].mxu0
        %v3466 = vadd.f32 0.0, %v3465
        %v3467 = vpop.f32.mrb[0].mxu0
        %3468 = vmatprep.mubr.f32.mxu0 0.0
        %3469 = vmatmul.mubr.f32.gmra.mrb[0].mxu0 %v3273
        %v3470 = vpop.f32.mrb[0].mxu0
        %v3471 = vadd.f32 0.0, %v3470
        %v3472 = vpop.f32.mrb[0].mxu0
        %3473 = vmatprep.mubr.f32.mxu0 0.0
        %3474 = vmatmul.mubr.f32.gmra.mrb[0].mxu0 %v3276
        %v3475 = vpop.f32.mrb[0].mxu0
        %v3476 = vadd.f32 0.0, %v3475
        %v3477 = vpop.f32.mrb[0].mxu0
        %3478 = vmatprep.mubr.f32.mxu0 0.0
        %3479 = vmatmul.mubr.f32.gmra.mrb[0].mxu0 %v3279
        %v3480 = vpop.f32.mrb[0].mxu0
        %v3481 = vadd.f32 0.0, %v3480
        %v3482 = vpop.f32.mrb[0].mxu0
        %3483 = vmatprep.mubr.f32.mxu0 0.0
        %3484 = vmatmul.mubr.f32.gmra.mrb[0].mxu0 %v3282
        %v3485 = vpop.f32.mrb[0].mxu0
        %v3486 = vadd.f32 0.0, %v3485
        %v3487 = vpop.f32.mrb[0].mxu0
        %3488 = vmatprep.mubr.f32.mxu0 0.0
        %3489 = vmatmul.mubr.f32.gmra.mrb[0].mxu0 %v3285
        %v3490 = vpop.f32.mrb[0].mxu0
        %v3491 = vadd.f32 0.0, %v3490
        %v3492 = vpop.f32.mrb[0].mxu0
        %3493 = vmatprep.mubr.f32.mxu0 0.0
        %3494 = vmatmul.mubr.f32.gmra.mrb[0].mxu0 %v3288
        %v3495 = vpop.f32.mrb[0].mxu0
        %v3496 = vadd.f32 0.0, %v3495
        %v3497 = vpop.f32.mrb[0].mxu0
        %3498 = vmatprep.mubr.f32.mxu0 0.0
        %3499 = vmatmul.mubr.f32.gmra.mrb[0].mxu0 %v3291
        %v3500 = vpop.f32.mrb[0].mxu0
        %v3501 = vadd.f32 0.0, %v3500
        %v3502 = vpop.f32.mrb[0].mxu0
        %3503 = vmatprep.mubr.f32.mxu0 0.0
        %3504 = vmatmul.mubr.f32.gmra.mrb[0].mxu0 %v3294
        %v3505 = vpop.f32.mrb[0].mxu0
        %v3506 = vadd.f32 0.0, %v3505
        %v3507 = vpop.f32.mrb[0].mxu0
        %3508 = vmatprep.mubr.f32.mxu0 0.0
        %3509 = vmatmul.mubr.f32.gmra.mrb[0].mxu0 %v3297
        %v3510 = vpop.f32.mrb[0].mxu0
        %v3511 = vadd.f32 0.0, %v3510
        %v3512 = vpop.f32.mrb[0].mxu0
        %3513 = vmatprep.mubr.f32.mxu0 0.0
        %3514 = vmatmul.mubr.f32.gmra.mrb[0].mxu0 %v3300
        %v3515 = vpop.f32.mrb[0].mxu0
        %v3516 = vadd.f32 0.0, %v3515
        %v3517 = vpop.f32.mrb[0].mxu0
        %3518 = vmatprep.mubr.f32.mxu0 0.0
        %3519 = vmatmul.mubr.f32.gmra.mrb[0].mxu0 %v3303
        %v3520 = vpop.f32.mrb[0].mxu0
        %v3521 = vadd.f32 0.0, %v3520
        %v3522 = vpop.f32.mrb[0].mxu0
        %3523 = vmatprep.mubr.f32.mxu0 0.0
        %3524 = vmatmul.mubr.f32.gmra.mrb[0].mxu0 %v3306
        %v3525 = vpop.f32.mrb[0].mxu0
        %v3526 = vadd.f32 0.0, %v3525
        %v3527 = vpop.f32.mrb[0].mxu0
        %3528 = vmatprep.mubr.f32.mxu0 0.0
        %3529 = vmatmul.mubr.f32.gmra.mrb[0].mxu0 %v3309
        %v3530 = vpop.f32.mrb[0].mxu0
        %v3531 = vadd.f32 0.0, %v3530
        %v3532 = vpop.f32.mrb[0].mxu0
        %3533 = vmatprep.mubr.f32.mxu0 0.0
        %3534 = vmatmul.mubr.f32.gmra.mrb[0].mxu0 %v3312
        %v3535 = vpop.f32.mrb[0].mxu0
        %v3536 = vadd.f32 0.0, %v3535
        %v3537 = vpop.f32.mrb[0].mxu0
        %3538 = vdwg.mxu0
        %v3539 = vpack.c.bf16 %v3386, %v3381
        %v3540 = vpack.c.bf16 %v3396, %v3391
        %v3541 = vpack.c.bf16 %v3406, %v3401
        %v3542 = vpack.c.bf16 %v3416, %v3411
        %v3543 = vpack.c.bf16 %v3426, %v3421
        %v3544 = vpack.c.bf16 %v3436, %v3431
        %v3545 = vpack.c.bf16 %v3446, %v3441
        %v3546 = vpack.c.bf16 %v3456, %v3451
        %v3547 = vpack.c.bf16 %v3466, %v3461
        %v3548 = vpack.c.bf16 %v3476, %v3471
        %v3549 = vpack.c.bf16 %v3486, %v3481
        %v3550 = vpack.c.bf16 %v3496, %v3491
        %v3551 = vpack.c.bf16 %v3506, %v3501
        %v3552 = vpack.c.bf16 %v3516, %v3511
        %v3553 = vpack.c.bf16 %v3526, %v3521
        %v3554 = vpack.c.bf16 %v3536, %v3531
        %v3555 = vld [vmem:[%s4] sm:$0xff]
        %v3556 = vld [vmem:[%s4 + $0x8] sm:$0xff]
        %v3557 = vld [vmem:[%s4 + $0x10] sm:$0xff]
        %v3558 = vld [vmem:[%s4 + $0x18] sm:$0xff]
        %v3559 = vld [vmem:[%s4 + $0x20] sm:$0xff]
        %v3560 = vld [vmem:[%s4 + $0x28] sm:$0xff]
        %v3561 = vld [vmem:[%s4 + $0x30] sm:$0xff]
        %v3562 = vld [vmem:[%s4 + $0x38] sm:$0xff]
        %v3563 = vld [vmem:[%s4 + $0x40] sm:$0xff]
        %v3564 = vld [vmem:[%s4 + $0x48] sm:$0xff]
        %v3565 = vld [vmem:[%s4 + $0x50] sm:$0xff]
        %v3566 = vld [vmem:[%s4 + $0x58] sm:$0xff]
        %v3567 = vld [vmem:[%s4 + $0x60] sm:$0xff]
        %v3568 = vld [vmem:[%s4 + $0x68] sm:$0xff]
        %v3569 = vld [vmem:[%s4 + $0x70] sm:$0xff]
        %v3570 = vld [vmem:[%s4 + $0x78] sm:$0xff]
        %v3571 = vld [vmem:[%s4 + $0x80] sm:$0xff]
        %v3572 = vld [vmem:[%s4 + $0x88] sm:$0xff]
        %v3573 = vld [vmem:[%s4 + $0x90] sm:$0xff]
        %v3574 = vld [vmem:[%s4 + $0x98] sm:$0xff]
        %v3575 = vld [vmem:[%s4 + $0xa0] sm:$0xff]
        %v3576 = vld [vmem:[%s4 + $0xa8] sm:$0xff]
        %v3577 = vld [vmem:[%s4 + $0xb0] sm:$0xff]
        %v3578 = vld [vmem:[%s4 + $0xb8] sm:$0xff]
        %v3579 = vld [vmem:[%s4 + $0xc0] sm:$0xff]
        %v3580 = vld [vmem:[%s4 + $0xc8] sm:$0xff]
        %v3581 = vld [vmem:[%s4 + $0xd0] sm:$0xff]
        %v3582 = vld [vmem:[%s4 + $0xd8] sm:$0xff]
        %v3583 = vld [vmem:[%s4 + $0xe0] sm:$0xff]
        %v3584 = vld [vmem:[%s4 + $0xe8] sm:$0xff]
        %v3585 = vld [vmem:[%s4 + $0xf0] sm:$0xff]
        %v3586 = vld [vmem:[%s4 + $0xf8] sm:$0xff]
        %v3587 = vld [vmem:[%s4 + $0x100] sm:$0xff]
        %v3588 = vld [vmem:[%s4 + $0x108] sm:$0xff]
        %v3589 = vld [vmem:[%s4 + $0x110] sm:$0xff]
        %v3590 = vld [vmem:[%s4 + $0x118] sm:$0xff]
        %v3591 = vld [vmem:[%s4 + $0x120] sm:$0xff]
        %v3592 = vld [vmem:[%s4 + $0x128] sm:$0xff]
        %v3593 = vld [vmem:[%s4 + $0x130] sm:$0xff]
        %v3594 = vld [vmem:[%s4 + $0x138] sm:$0xff]
        %v3595 = vld [vmem:[%s4 + $0x140] sm:$0xff]
        %v3596 = vld [vmem:[%s4 + $0x148] sm:$0xff]
        %v3597 = vld [vmem:[%s4 + $0x150] sm:$0xff]
        %v3598 = vld [vmem:[%s4 + $0x158] sm:$0xff]
        %v3599 = vld [vmem:[%s4 + $0x160] sm:$0xff]
        %v3600 = vld [vmem:[%s4 + $0x168] sm:$0xff]
        %v3601 = vld [vmem:[%s4 + $0x170] sm:$0xff]
        %v3602 = vld [vmem:[%s4 + $0x178] sm:$0xff]
        %v3603 = vld [vmem:[%s4 + $0x180] sm:$0xff]
        %v3604 = vld [vmem:[%s4 + $0x188] sm:$0xff]
        %v3605 = vld [vmem:[%s4 + $0x190] sm:$0xff]
        %v3606 = vld [vmem:[%s4 + $0x198] sm:$0xff]
        %v3607 = vld [vmem:[%s4 + $0x1a0] sm:$0xff]
        %v3608 = vld [vmem:[%s4 + $0x1a8] sm:$0xff]
        %v3609 = vld [vmem:[%s4 + $0x1b0] sm:$0xff]
        %v3610 = vld [vmem:[%s4 + $0x1b8] sm:$0xff]
        %v3611 = vld [vmem:[%s4 + $0x1c0] sm:$0xff]
        %v3612 = vld [vmem:[%s4 + $0x1c8] sm:$0xff]
        %v3613 = vld [vmem:[%s4 + $0x1d0] sm:$0xff]
        %v3614 = vld [vmem:[%s4 + $0x1d8] sm:$0xff]
        %v3615 = vld [vmem:[%s4 + $0x1e0] sm:$0xff]
        %v3616 = vld [vmem:[%s4 + $0x1e8] sm:$0xff]
        %v3617 = vld [vmem:[%s4 + $0x1f0] sm:$0xff]
        %v3618 = vld [vmem:[%s4 + $0x1f8] sm:$0xff]
        %v3619 = vld [vmem:[%s5] sm:$0xff]
        %v3621 = vlaneseq
        %v3622 = vshrl.u32 %v3621, 7
        %v3623 = vsub.s32 0, %v3622
        %v3624 = vrot.slane %v3619, %v3623
        %v3625 = vlaneseq
        %v3626 = vshrl.u32 %v3625, 7
        %v3627 = vsub.s32 1, %v3626
        %v3628 = vrot.slane %v3619, %v3627
        %v3629 = vlaneseq
        %v3630 = vshrl.u32 %v3629, 7
        %v3631 = vsub.s32 2, %v3630
        %v3632 = vrot.slane %v3619, %v3631
        %v3633 = vlaneseq
        %v3634 = vshrl.u32 %v3633, 7
        %v3635 = vsub.s32 3, %v3634
        %v3636 = vrot.slane %v3619, %v3635
        %v3637 = vlaneseq
        %v3638 = vshrl.u32 %v3637, 7
        %v3639 = vsub.s32 4, %v3638
        %v3640 = vrot.slane %v3619, %v3639
        %v3641 = vlaneseq
        %v3642 = vshrl.u32 %v3641, 7
        %v3643 = vsub.s32 5, %v3642
        %v3644 = vrot.slane %v3619, %v3643
        %v3645 = vlaneseq
        %v3646 = vshrl.u32 %v3645, 7
        %v3647 = vsub.s32 6, %v3646
        %v3648 = vrot.slane %v3619, %v3647
        %v3649 = vlaneseq
        %v3650 = vshrl.u32 %v3649, 7
        %v3651 = vsub.s32 7, %v3650
        %v3652 = vrot.slane %v3619, %v3651
        %v3725 = vunpack.c.l.b16 %v3555
        %v3726 = vunpack.c.h.b16 %v3555
        %v3727 = vunpack.c.l.b16 %v3556
        %v3728 = vunpack.c.h.b16 %v3556
        %v3729 = vunpack.c.l.b16 %v3557
        %v3730 = vunpack.c.h.b16 %v3557
        %v3731 = vunpack.c.l.b16 %v3558
        %v3732 = vunpack.c.h.b16 %v3558
        %v3733 = vunpack.c.l.b16 %v3559
        %v3734 = vunpack.c.h.b16 %v3559
        %v3735 = vunpack.c.l.b16 %v3560
        %v3736 = vunpack.c.h.b16 %v3560
        %v3737 = vunpack.c.l.b16 %v3561
        %v3738 = vunpack.c.h.b16 %v3561
        %v3739 = vunpack.c.l.b16 %v3562
        %v3740 = vunpack.c.h.b16 %v3562
        %v3741 = vunpack.c.l.b16 %v3563
        %v3742 = vunpack.c.h.b16 %v3563
        %v3743 = vunpack.c.l.b16 %v3564
        %v3744 = vunpack.c.h.b16 %v3564
        %v3745 = vunpack.c.l.b16 %v3565
        %v3746 = vunpack.c.h.b16 %v3565
        %v3747 = vunpack.c.l.b16 %v3566
        %v3748 = vunpack.c.h.b16 %v3566
        %v3749 = vunpack.c.l.b16 %v3567
        %v3750 = vunpack.c.h.b16 %v3567
        %v3751 = vunpack.c.l.b16 %v3568
        %v3752 = vunpack.c.h.b16 %v3568
        %v3753 = vunpack.c.l.b16 %v3569
        %v3754 = vunpack.c.h.b16 %v3569
        %v3755 = vunpack.c.l.b16 %v3570
        %v3756 = vunpack.c.h.b16 %v3570
        %v3757 = vunpack.c.l.b16 %v3571
        %v3758 = vunpack.c.h.b16 %v3571
        %v3759 = vunpack.c.l.b16 %v3572
        %v3760 = vunpack.c.h.b16 %v3572
        %v3761 = vunpack.c.l.b16 %v3573
        %v3762 = vunpack.c.h.b16 %v3573
        %v3763 = vunpack.c.l.b16 %v3574
        %v3764 = vunpack.c.h.b16 %v3574
        %v3765 = vunpack.c.l.b16 %v3575
        %v3766 = vunpack.c.h.b16 %v3575
        %v3767 = vunpack.c.l.b16 %v3576
        %v3768 = vunpack.c.h.b16 %v3576
        %v3769 = vunpack.c.l.b16 %v3577
        %v3770 = vunpack.c.h.b16 %v3577
        %v3771 = vunpack.c.l.b16 %v3578
        %v3772 = vunpack.c.h.b16 %v3578
        %v3773 = vunpack.c.l.b16 %v3579
        %v3774 = vunpack.c.h.b16 %v3579
        %v3775 = vunpack.c.l.b16 %v3580
        %v3776 = vunpack.c.h.b16 %v3580
        %v3777 = vunpack.c.l.b16 %v3581
        %v3778 = vunpack.c.h.b16 %v3581
        %v3779 = vunpack.c.l.b16 %v3582
        %v3780 = vunpack.c.h.b16 %v3582
        %v3781 = vunpack.c.l.b16 %v3583
        %v3782 = vunpack.c.h.b16 %v3583
        %v3783 = vunpack.c.l.b16 %v3584
        %v3784 = vunpack.c.h.b16 %v3584
        %v3785 = vunpack.c.l.b16 %v3585
        %v3786 = vunpack.c.h.b16 %v3585
        %v3787 = vunpack.c.l.b16 %v3586
        %v3788 = vunpack.c.h.b16 %v3586
        %v3789 = vunpack.c.l.b16 %v3587
        %v3790 = vunpack.c.h.b16 %v3587
        %v3791 = vunpack.c.l.b16 %v3588
        %v3792 = vunpack.c.h.b16 %v3588
        %v3793 = vunpack.c.l.b16 %v3589
        %v3794 = vunpack.c.h.b16 %v3589
        %v3795 = vunpack.c.l.b16 %v3590
        %v3796 = vunpack.c.h.b16 %v3590
        %v3797 = vunpack.c.l.b16 %v3591
        %v3798 = vunpack.c.h.b16 %v3591
        %v3799 = vunpack.c.l.b16 %v3592
        %v3800 = vunpack.c.h.b16 %v3592
        %v3801 = vunpack.c.l.b16 %v3593
        %v3802 = vunpack.c.h.b16 %v3593
        %v3803 = vunpack.c.l.b16 %v3594
        %v3804 = vunpack.c.h.b16 %v3594
        %v3805 = vunpack.c.l.b16 %v3595
        %v3806 = vunpack.c.h.b16 %v3595
        %v3807 = vunpack.c.l.b16 %v3596
        %v3808 = vunpack.c.h.b16 %v3596
        %v3809 = vunpack.c.l.b16 %v3597
        %v3810 = vunpack.c.h.b16 %v3597
        %v3811 = vunpack.c.l.b16 %v3598
        %v3812 = vunpack.c.h.b16 %v3598
        %v3813 = vunpack.c.l.b16 %v3599
        %v3814 = vunpack.c.h.b16 %v3599
        %v3815 = vunpack.c.l.b16 %v3600
        %v3816 = vunpack.c.h.b16 %v3600
        %v3817 = vunpack.c.l.b16 %v3601
        %v3818 = vunpack.c.h.b16 %v3601
        %v3819 = vunpack.c.l.b16 %v3602
        %v3820 = vunpack.c.h.b16 %v3602
        %v3821 = vunpack.c.l.b16 %v3603
        %v3822 = vunpack.c.h.b16 %v3603
        %v3823 = vunpack.c.l.b16 %v3604
        %v3824 = vunpack.c.h.b16 %v3604
        %v3825 = vunpack.c.l.b16 %v3605
        %v3826 = vunpack.c.h.b16 %v3605
        %v3827 = vunpack.c.l.b16 %v3606
        %v3828 = vunpack.c.h.b16 %v3606
        %v3829 = vunpack.c.l.b16 %v3607
        %v3830 = vunpack.c.h.b16 %v3607
        %v3831 = vunpack.c.l.b16 %v3608
        %v3832 = vunpack.c.h.b16 %v3608
        %v3833 = vunpack.c.l.b16 %v3609
        %v3834 = vunpack.c.h.b16 %v3609
        %v3835 = vunpack.c.l.b16 %v3610
        %v3836 = vunpack.c.h.b16 %v3610
        %v3837 = vunpack.c.l.b16 %v3611
        %v3838 = vunpack.c.h.b16 %v3611
        %v3839 = vunpack.c.l.b16 %v3612
        %v3840 = vunpack.c.h.b16 %v3612
        %v3841 = vunpack.c.l.b16 %v3613
        %v3842 = vunpack.c.h.b16 %v3613
        %v3843 = vunpack.c.l.b16 %v3614
        %v3844 = vunpack.c.h.b16 %v3614
        %v3845 = vunpack.c.l.b16 %v3615
        %v3846 = vunpack.c.h.b16 %v3615
        %v3847 = vunpack.c.l.b16 %v3616
        %v3848 = vunpack.c.h.b16 %v3616
        %v3849 = vunpack.c.l.b16 %v3617
        %v3850 = vunpack.c.h.b16 %v3617
        %v3851 = vunpack.c.l.b16 %v3618
        %v3852 = vunpack.c.h.b16 %v3618
        %v3853 = vpack.c.b16 %v3733, %v3725
        %v3854 = vpack.c.b16 %v3734, %v3726
        %v3855 = vpack.c.b16 %v3735, %v3727
        %v3856 = vpack.c.b16 %v3736, %v3728
        %v3857 = vpack.c.b16 %v3737, %v3729
        %v3858 = vpack.c.b16 %v3738, %v3730
        %v3859 = vpack.c.b16 %v3739, %v3731
        %v3860 = vpack.c.b16 %v3740, %v3732
        %v3861 = vpack.c.b16 %v3749, %v3741
        %v3862 = vpack.c.b16 %v3750, %v3742
        %v3863 = vpack.c.b16 %v3751, %v3743
        %v3864 = vpack.c.b16 %v3752, %v3744
        %v3865 = vpack.c.b16 %v3753, %v3745
        %v3866 = vpack.c.b16 %v3754, %v3746
        %v3867 = vpack.c.b16 %v3755, %v3747
        %v3868 = vpack.c.b16 %v3756, %v3748
        %v3869 = vpack.c.b16 %v3765, %v3757
        %v3870 = vpack.c.b16 %v3766, %v3758
        %v3871 = vpack.c.b16 %v3767, %v3759
        %v3872 = vpack.c.b16 %v3768, %v3760
        %v3873 = vpack.c.b16 %v3769, %v3761
        %v3874 = vpack.c.b16 %v3770, %v3762
        %v3875 = vpack.c.b16 %v3771, %v3763
        %v3876 = vpack.c.b16 %v3772, %v3764
        %v3877 = vpack.c.b16 %v3781, %v3773
        %v3878 = vpack.c.b16 %v3782, %v3774
        %v3879 = vpack.c.b16 %v3783, %v3775
        %v3880 = vpack.c.b16 %v3784, %v3776
        %v3881 = vpack.c.b16 %v3785, %v3777
        %v3882 = vpack.c.b16 %v3786, %v3778
        %v3883 = vpack.c.b16 %v3787, %v3779
        %v3884 = vpack.c.b16 %v3788, %v3780
        %v3885 = vpack.c.b16 %v3797, %v3789
        %v3886 = vpack.c.b16 %v3798, %v3790
        %v3887 = vpack.c.b16 %v3799, %v3791
        %v3888 = vpack.c.b16 %v3800, %v3792
        %v3889 = vpack.c.b16 %v3801, %v3793
        %v3890 = vpack.c.b16 %v3802, %v3794
        %v3891 = vpack.c.b16 %v3803, %v3795
        %v3892 = vpack.c.b16 %v3804, %v3796
        %v3893 = vpack.c.b16 %v3813, %v3805
        %v3894 = vpack.c.b16 %v3814, %v3806
        %v3895 = vpack.c.b16 %v3815, %v3807
        %v3896 = vpack.c.b16 %v3816, %v3808
        %v3897 = vpack.c.b16 %v3817, %v3809
        %v3898 = vpack.c.b16 %v3818, %v3810
        %v3899 = vpack.c.b16 %v3819, %v3811
        %v3900 = vpack.c.b16 %v3820, %v3812
        %v3901 = vpack.c.b16 %v3829, %v3821
        %v3902 = vpack.c.b16 %v3830, %v3822
        %v3903 = vpack.c.b16 %v3831, %v3823
        %v3904 = vpack.c.b16 %v3832, %v3824
        %v3905 = vpack.c.b16 %v3833, %v3825
        %v3906 = vpack.c.b16 %v3834, %v3826
        %v3907 = vpack.c.b16 %v3835, %v3827
        %v3908 = vpack.c.b16 %v3836, %v3828
        %v3909 = vpack.c.b16 %v3845, %v3837
        %v3910 = vpack.c.b16 %v3846, %v3838
        %v3911 = vpack.c.b16 %v3847, %v3839
        %v3912 = vpack.c.b16 %v3848, %v3840
        %v3913 = vpack.c.b16 %v3849, %v3841
        %v3914 = vpack.c.b16 %v3850, %v3842
        %v3915 = vpack.c.b16 %v3851, %v3843
        %v3916 = vpack.c.b16 %v3852, %v3844
        %3981 = vmatprep.subr.bf16.mxu0 %v3854
        %3982 = vmatpush1.bf16.msra.mxu0 %v3853
        %3983 = vmatprep.subr.bf16.mxu0 %v3862
        %3984 = vmatpush1.bf16.msra.mxu0 %v3861
        %3985 = vmatprep.subr.bf16.mxu0 %v3870
        %3986 = vmatpush1.bf16.msra.mxu0 %v3869
        %3987 = vmatprep.subr.bf16.mxu0 %v3878
        %3988 = vmatpush1.bf16.msra.mxu0 %v3877
        %3989 = vmatprep.subr.bf16.mxu0 %v3886
        %3990 = vmatpush1.bf16.msra.mxu0 %v3885
        %3991 = vmatprep.subr.bf16.mxu0 %v3894
        %3992 = vmatpush1.bf16.msra.mxu0 %v3893
        %3993 = vmatprep.subr.bf16.mxu0 %v3902
        %3994 = vmatpush1.bf16.msra.mxu0 %v3901
        %3995 = vmatprep.subr.bf16.mxu0 %v3910
        %3996 = vmatpush1.bf16.msra.mxu0 %v3909
        %3997 = vmatprep.subr.bf16.mxu0 0
        %3998 = vmatpush1.bf16.msra.mxu0 0
        %3999 = vmatprep.subr.bf16.mxu0 0
        %4000 = vmatpush1.bf16.msra.mxu0 0
        %4001 = vmatprep.subr.bf16.mxu0 0
        %4002 = vmatpush1.bf16.msra.mxu0 0
        %4003 = vmatprep.subr.bf16.mxu0 0
        %4004 = vmatpush1.bf16.msra.mxu0 0
        %4005 = vmatprep.subr.bf16.mxu0 0
        %4006 = vmatpush1.bf16.msra.mxu0 0
        %4007 = vmatprep.subr.bf16.mxu0 0
        %4008 = vmatpush1.bf16.msra.mxu0 0
        %4009 = vmatprep.subr.bf16.mxu0 0
        %4010 = vmatpush1.bf16.msra.mxu0 0
        %4011 = vmatprep.subr.bf16.mxu0 0
        %4012 = vmatpush1.bf16.msra.mxu0 0
        %4013 = vmatprep.mubr.bf16.mxu0 0
        %4014 = vmatmul.mubr.bf16.gmra.mrb[0].mxu0 %v3539
        %v4015 = vpop.f32.mrb[0].mxu0
        %v4016 = vadd.f32 %v3624, %v4015
        %v4017 = vpop.f32.mrb[0].mxu0
        %v4018 = vadd.f32 %v3628, %v4017
        %v4019 = vpop.f32.mrb[0].mxu0
        %v4020 = vadd.f32 %v3624, %v4019
        %v4021 = vpop.f32.mrb[0].mxu0
        %v4022 = vadd.f32 %v3628, %v4021
        %4023 = vmatprep.mubr.bf16.mxu0 0
        %4024 = vmatmul.mubr.bf16.gmra.mrb[0].mxu0 %v3540
        %v4025 = vpop.f32.mrb[0].mxu0
        %v4026 = vadd.f32 %v3624, %v4025
        %v4027 = vpop.f32.mrb[0].mxu0
        %v4028 = vadd.f32 %v3628, %v4027
        %v4029 = vpop.f32.mrb[0].mxu0
        %v4030 = vadd.f32 %v3624, %v4029
        %v4031 = vpop.f32.mrb[0].mxu0
        %v4032 = vadd.f32 %v3628, %v4031
        %4033 = vmatprep.mubr.bf16.mxu0 0
        %4034 = vmatmul.mubr.bf16.gmra.mrb[0].mxu0 %v3541
        %v4035 = vpop.f32.mrb[0].mxu0
        %v4036 = vadd.f32 %v3624, %v4035
        %v4037 = vpop.f32.mrb[0].mxu0
        %v4038 = vadd.f32 %v3628, %v4037
        %v4039 = vpop.f32.mrb[0].mxu0
        %v4040 = vadd.f32 %v3624, %v4039
        %v4041 = vpop.f32.mrb[0].mxu0
        %v4042 = vadd.f32 %v3628, %v4041
        %4043 = vmatprep.mubr.bf16.mxu0 0
        %4044 = vmatmul.mubr.bf16.gmra.mrb[0].mxu0 %v3542
        %v4045 = vpop.f32.mrb[0].mxu0
        %v4046 = vadd.f32 %v3624, %v4045
        %v4047 = vpop.f32.mrb[0].mxu0
        %v4048 = vadd.f32 %v3628, %v4047
        %v4049 = vpop.f32.mrb[0].mxu0
        %v4050 = vadd.f32 %v3624, %v4049
        %v4051 = vpop.f32.mrb[0].mxu0
        %v4052 = vadd.f32 %v3628, %v4051
        %4053 = vmatprep.mubr.bf16.mxu0 0
        %4054 = vmatmul.mubr.bf16.gmra.mrb[0].mxu0 %v3543
        %v4055 = vpop.f32.mrb[0].mxu0
        %v4056 = vadd.f32 %v3624, %v4055
        %v4057 = vpop.f32.mrb[0].mxu0
        %v4058 = vadd.f32 %v3628, %v4057
        %v4059 = vpop.f32.mrb[0].mxu0
        %v4060 = vadd.f32 %v3624, %v4059
        %v4061 = vpop.f32.mrb[0].mxu0
        %v4062 = vadd.f32 %v3628, %v4061
        %4063 = vmatprep.mubr.bf16.mxu0 0
        %4064 = vmatmul.mubr.bf16.gmra.mrb[0].mxu0 %v3544
        %v4065 = vpop.f32.mrb[0].mxu0
        %v4066 = vadd.f32 %v3624, %v4065
        %v4067 = vpop.f32.mrb[0].mxu0
        %v4068 = vadd.f32 %v3628, %v4067
        %v4069 = vpop.f32.mrb[0].mxu0
        %v4070 = vadd.f32 %v3624, %v4069
        %v4071 = vpop.f32.mrb[0].mxu0
        %v4072 = vadd.f32 %v3628, %v4071
        %4073 = vmatprep.mubr.bf16.mxu0 0
        %4074 = vmatmul.mubr.bf16.gmra.mrb[0].mxu0 %v3545
        %v4075 = vpop.f32.mrb[0].mxu0
        %v4076 = vadd.f32 %v3624, %v4075
        %v4077 = vpop.f32.mrb[0].mxu0
        %v4078 = vadd.f32 %v3628, %v4077
        %v4079 = vpop.f32.mrb[0].mxu0
        %v4080 = vadd.f32 %v3624, %v4079
        %v4081 = vpop.f32.mrb[0].mxu0
        %v4082 = vadd.f32 %v3628, %v4081
        %4083 = vmatprep.mubr.bf16.mxu0 0
        %4084 = vmatmul.mubr.bf16.gmra.mrb[0].mxu0 %v3546
        %v4085 = vpop.f32.mrb[0].mxu0
        %v4086 = vadd.f32 %v3624, %v4085
        %v4087 = vpop.f32.mrb[0].mxu0
        %v4088 = vadd.f32 %v3628, %v4087
        %v4089 = vpop.f32.mrb[0].mxu0
        %v4090 = vadd.f32 %v3624, %v4089
        %v4091 = vpop.f32.mrb[0].mxu0
        %v4092 = vadd.f32 %v3628, %v4091
        %4093 = vmatprep.mubr.bf16.mxu0 0
        %4094 = vmatmul.mubr.bf16.gmra.mrb[0].mxu0 %v3547
        %v4095 = vpop.f32.mrb[0].mxu0
        %v4096 = vadd.f32 %v3624, %v4095
        %v4097 = vpop.f32.mrb[0].mxu0
        %v4098 = vadd.f32 %v3628, %v4097
        %v4099 = vpop.f32.mrb[0].mxu0
        %v4100 = vadd.f32 %v3624, %v4099
        %v4101 = vpop.f32.mrb[0].mxu0
        %v4102 = vadd.f32 %v3628, %v4101
        %4103 = vmatprep.mubr.bf16.mxu0 0
        %4104 = vmatmul.mubr.bf16.gmra.mrb[0].mxu0 %v3548
        %v4105 = vpop.f32.mrb[0].mxu0
        %v4106 = vadd.f32 %v3624, %v4105
        %v4107 = vpop.f32.mrb[0].mxu0
        %v4108 = vadd.f32 %v3628, %v4107
        %v4109 = vpop.f32.mrb[0].mxu0
        %v4110 = vadd.f32 %v3624, %v4109
        %v4111 = vpop.f32.mrb[0].mxu0
        %v4112 = vadd.f32 %v3628, %v4111
        %4113 = vmatprep.mubr.bf16.mxu0 0
        %4114 = vmatmul.mubr.bf16.gmra.mrb[0].mxu0 %v3549
        %v4115 = vpop.f32.mrb[0].mxu0
        %v4116 = vadd.f32 %v3624, %v4115
        %v4117 = vpop.f32.mrb[0].mxu0
        %v4118 = vadd.f32 %v3628, %v4117
        %v4119 = vpop.f32.mrb[0].mxu0
        %v4120 = vadd.f32 %v3624, %v4119
        %v4121 = vpop.f32.mrb[0].mxu0
        %v4122 = vadd.f32 %v3628, %v4121
        %4123 = vmatprep.mubr.bf16.mxu0 0
        %4124 = vmatmul.mubr.bf16.gmra.mrb[0].mxu0 %v3550
        %v4125 = vpop.f32.mrb[0].mxu0
        %v4126 = vadd.f32 %v3624, %v4125
        %v4127 = vpop.f32.mrb[0].mxu0
        %v4128 = vadd.f32 %v3628, %v4127
        %v4129 = vpop.f32.mrb[0].mxu0
        %v4130 = vadd.f32 %v3624, %v4129
        %v4131 = vpop.f32.mrb[0].mxu0
        %v4132 = vadd.f32 %v3628, %v4131
        %4133 = vmatprep.mubr.bf16.mxu0 0
        %4134 = vmatmul.mubr.bf16.gmra.mrb[0].mxu0 %v3551
        %v4135 = vpop.f32.mrb[0].mxu0
        %v4136 = vadd.f32 %v3624, %v4135
        %v4137 = vpop.f32.mrb[0].mxu0
        %v4138 = vadd.f32 %v3628, %v4137
        %v4139 = vpop.f32.mrb[0].mxu0
        %v4140 = vadd.f32 %v3624, %v4139
        %v4141 = vpop.f32.mrb[0].mxu0
        %v4142 = vadd.f32 %v3628, %v4141
        %4143 = vmatprep.mubr.bf16.mxu0 0
        %4144 = vmatmul.mubr.bf16.gmra.mrb[0].mxu0 %v3552
        %v4145 = vpop.f32.mrb[0].mxu0
        %v4146 = vadd.f32 %v3624, %v4145
        %v4147 = vpop.f32.mrb[0].mxu0
        %v4148 = vadd.f32 %v3628, %v4147
        %v4149 = vpop.f32.mrb[0].mxu0
        %v4150 = vadd.f32 %v3624, %v4149
        %v4151 = vpop.f32.mrb[0].mxu0
        %v4152 = vadd.f32 %v3628, %v4151
        %4153 = vmatprep.mubr.bf16.mxu0 0
        %4154 = vmatmul.mubr.bf16.gmra.mrb[0].mxu0 %v3553
        %v4155 = vpop.f32.mrb[0].mxu0
        %v4156 = vadd.f32 %v3624, %v4155
        %v4157 = vpop.f32.mrb[0].mxu0
        %v4158 = vadd.f32 %v3628, %v4157
        %v4159 = vpop.f32.mrb[0].mxu0
        %v4160 = vadd.f32 %v3624, %v4159
        %v4161 = vpop.f32.mrb[0].mxu0
        %v4162 = vadd.f32 %v3628, %v4161
        %4163 = vmatprep.mubr.bf16.mxu0 0
        %4164 = vmatmul.mubr.bf16.gmra.mrb[0].mxu0 %v3554
        %v4165 = vpop.f32.mrb[0].mxu0
        %v4166 = vadd.f32 %v3624, %v4165
        %v4167 = vpop.f32.mrb[0].mxu0
        %v4168 = vadd.f32 %v3628, %v4167
        %v4169 = vpop.f32.mrb[0].mxu0
        %v4170 = vadd.f32 %v3624, %v4169
        %v4171 = vpop.f32.mrb[0].mxu0
        %v4172 = vadd.f32 %v3628, %v4171
        %4173 = vdwg.mxu0
        %4174 = vmatprep.subr.bf16.mxu0 %v3856
        %4175 = vmatpush1.bf16.msra.mxu0 %v3855
        %4176 = vmatprep.subr.bf16.mxu0 %v3864
        %4177 = vmatpush1.bf16.msra.mxu0 %v3863
        %4178 = vmatprep.subr.bf16.mxu0 %v3872
        %4179 = vmatpush1.bf16.msra.mxu0 %v3871
        %4180 = vmatprep.subr.bf16.mxu0 %v3880
        %4181 = vmatpush1.bf16.msra.mxu0 %v3879
        %4182 = vmatprep.subr.bf16.mxu0 %v3888
        %4183 = vmatpush1.bf16.msra.mxu0 %v3887
        %4184 = vmatprep.subr.bf16.mxu0 %v3896
        %4185 = vmatpush1.bf16.msra.mxu0 %v3895
        %4186 = vmatprep.subr.bf16.mxu0 %v3904
        %4187 = vmatpush1.bf16.msra.mxu0 %v3903
        %4188 = vmatprep.subr.bf16.mxu0 %v3912
        %4189 = vmatpush1.bf16.msra.mxu0 %v3911
        %4190 = vmatprep.subr.bf16.mxu0 0
        %4191 = vmatpush1.bf16.msra.mxu0 0
        %4192 = vmatprep.subr.bf16.mxu0 0
        %4193 = vmatpush1.bf16.msra.mxu0 0
        %4194 = vmatprep.subr.bf16.mxu0 0
        %4195 = vmatpush1.bf16.msra.mxu0 0
        %4196 = vmatprep.subr.bf16.mxu0 0
        %4197 = vmatpush1.bf16.msra.mxu0 0
        %4198 = vmatprep.subr.bf16.mxu0 0
        %4199 = vmatpush1.bf16.msra.mxu0 0
        %4200 = vmatprep.subr.bf16.mxu0 0
        %4201 = vmatpush1.bf16.msra.mxu0 0
        %4202 = vmatprep.subr.bf16.mxu0 0
        %4203 = vmatpush1.bf16.msra.mxu0 0
        %4204 = vmatprep.subr.bf16.mxu0 0
        %4205 = vmatpush1.bf16.msra.mxu0 0
        %4206 = vmatprep.mubr.bf16.mxu0 0
        %4207 = vmatmul.mubr.bf16.gmra.mrb[0].mxu0 %v3539
        %v4208 = vpop.f32.mrb[0].mxu0
        %v4209 = vadd.f32 %v3632, %v4208
        %v4210 = vpop.f32.mrb[0].mxu0
        %v4211 = vadd.f32 %v3636, %v4210
        %v4212 = vpop.f32.mrb[0].mxu0
        %v4213 = vadd.f32 %v3632, %v4212
        %v4214 = vpop.f32.mrb[0].mxu0
        %v4215 = vadd.f32 %v3636, %v4214
        %4216 = vmatprep.mubr.bf16.mxu0 0
        %4217 = vmatmul.mubr.bf16.gmra.mrb[0].mxu0 %v3540
        %v4218 = vpop.f32.mrb[0].mxu0
        %v4219 = vadd.f32 %v3632, %v4218
        %v4220 = vpop.f32.mrb[0].mxu0
        %v4221 = vadd.f32 %v3636, %v4220
        %v4222 = vpop.f32.mrb[0].mxu0
        %v4223 = vadd.f32 %v3632, %v4222
        %v4224 = vpop.f32.mrb[0].mxu0
        %v4225 = vadd.f32 %v3636, %v4224
        %4226 = vmatprep.mubr.bf16.mxu0 0
        %4227 = vmatmul.mubr.bf16.gmra.mrb[0].mxu0 %v3541
        %v4228 = vpop.f32.mrb[0].mxu0
        %v4229 = vadd.f32 %v3632, %v4228
        %v4230 = vpop.f32.mrb[0].mxu0
        %v4231 = vadd.f32 %v3636, %v4230
        %v4232 = vpop.f32.mrb[0].mxu0
        %v4233 = vadd.f32 %v3632, %v4232
        %v4234 = vpop.f32.mrb[0].mxu0
        %v4235 = vadd.f32 %v3636, %v4234
        %4236 = vmatprep.mubr.bf16.mxu0 0
        %4237 = vmatmul.mubr.bf16.gmra.mrb[0].mxu0 %v3542
        %v4238 = vpop.f32.mrb[0].mxu0
        %v4239 = vadd.f32 %v3632, %v4238
        %v4240 = vpop.f32.mrb[0].mxu0
        %v4241 = vadd.f32 %v3636, %v4240
        %v4242 = vpop.f32.mrb[0].mxu0
        %v4243 = vadd.f32 %v3632, %v4242
        %v4244 = vpop.f32.mrb[0].mxu0
        %v4245 = vadd.f32 %v3636, %v4244
        %4246 = vmatprep.mubr.bf16.mxu0 0
        %4247 = vmatmul.mubr.bf16.gmra.mrb[0].mxu0 %v3543
        %v4248 = vpop.f32.mrb[0].mxu0
        %v4249 = vadd.f32 %v3632, %v4248
        %v4250 = vpop.f32.mrb[0].mxu0
        %v4251 = vadd.f32 %v3636, %v4250
        %v4252 = vpop.f32.mrb[0].mxu0
        %v4253 = vadd.f32 %v3632, %v4252
        %v4254 = vpop.f32.mrb[0].mxu0
        %v4255 = vadd.f32 %v3636, %v4254
        %4256 = vmatprep.mubr.bf16.mxu0 0
        %4257 = vmatmul.mubr.bf16.gmra.mrb[0].mxu0 %v3544
        %v4258 = vpop.f32.mrb[0].mxu0
        %v4259 = vadd.f32 %v3632, %v4258
        %v4260 = vpop.f32.mrb[0].mxu0
        %v4261 = vadd.f32 %v3636, %v4260
        %v4262 = vpop.f32.mrb[0].mxu0
        %v4263 = vadd.f32 %v3632, %v4262
        %v4264 = vpop.f32.mrb[0].mxu0
        %v4265 = vadd.f32 %v3636, %v4264
        %4266 = vmatprep.mubr.bf16.mxu0 0
        %4267 = vmatmul.mubr.bf16.gmra.mrb[0].mxu0 %v3545
        %v4268 = vpop.f32.mrb[0].mxu0
        %v4269 = vadd.f32 %v3632, %v4268
        %v4270 = vpop.f32.mrb[0].mxu0
        %v4271 = vadd.f32 %v3636, %v4270
        %v4272 = vpop.f32.mrb[0].mxu0
        %v4273 = vadd.f32 %v3632, %v4272
        %v4274 = vpop.f32.mrb[0].mxu0
        %v4275 = vadd.f32 %v3636, %v4274
        %4276 = vmatprep.mubr.bf16.mxu0 0
        %4277 = vmatmul.mubr.bf16.gmra.mrb[0].mxu0 %v3546
        %v4278 = vpop.f32.mrb[0].mxu0
        %v4279 = vadd.f32 %v3632, %v4278
        %v4280 = vpop.f32.mrb[0].mxu0
        %v4281 = vadd.f32 %v3636, %v4280
        %v4282 = vpop.f32.mrb[0].mxu0
        %v4283 = vadd.f32 %v3632, %v4282
        %v4284 = vpop.f32.mrb[0].mxu0
        %v4285 = vadd.f32 %v3636, %v4284
        %4286 = vmatprep.mubr.bf16.mxu0 0
        %4287 = vmatmul.mubr.bf16.gmra.mrb[0].mxu0 %v3547
        %v4288 = vpop.f32.mrb[0].mxu0
        %v4289 = vadd.f32 %v3632, %v4288
        %v4290 = vpop.f32.mrb[0].mxu0
        %v4291 = vadd.f32 %v3636, %v4290
        %v4292 = vpop.f32.mrb[0].mxu0
        %v4293 = vadd.f32 %v3632, %v4292
        %v4294 = vpop.f32.mrb[0].mxu0
        %v4295 = vadd.f32 %v3636, %v4294
        %4296 = vmatprep.mubr.bf16.mxu0 0
        %4297 = vmatmul.mubr.bf16.gmra.mrb[0].mxu0 %v3548
        %v4298 = vpop.f32.mrb[0].mxu0
        %v4299 = vadd.f32 %v3632, %v4298
        %v4300 = vpop.f32.mrb[0].mxu0
        %v4301 = vadd.f32 %v3636, %v4300
        %v4302 = vpop.f32.mrb[0].mxu0
        %v4303 = vadd.f32 %v3632, %v4302
        %v4304 = vpop.f32.mrb[0].mxu0
        %v4305 = vadd.f32 %v3636, %v4304
        %4306 = vmatprep.mubr.bf16.mxu0 0
        %4307 = vmatmul.mubr.bf16.gmra.mrb[0].mxu0 %v3549
        %v4308 = vpop.f32.mrb[0].mxu0
        %v4309 = vadd.f32 %v3632, %v4308
        %v4310 = vpop.f32.mrb[0].mxu0
        %v4311 = vadd.f32 %v3636, %v4310
        %v4312 = vpop.f32.mrb[0].mxu0
        %v4313 = vadd.f32 %v3632, %v4312
        %v4314 = vpop.f32.mrb[0].mxu0
        %v4315 = vadd.f32 %v3636, %v4314
        %4316 = vmatprep.mubr.bf16.mxu0 0
        %4317 = vmatmul.mubr.bf16.gmra.mrb[0].mxu0 %v3550
        %v4318 = vpop.f32.mrb[0].mxu0
        %v4319 = vadd.f32 %v3632, %v4318
        %v4320 = vpop.f32.mrb[0].mxu0
        %v4321 = vadd.f32 %v3636, %v4320
        %v4322 = vpop.f32.mrb[0].mxu0
        %v4323 = vadd.f32 %v3632, %v4322
        %v4324 = vpop.f32.mrb[0].mxu0
        %v4325 = vadd.f32 %v3636, %v4324
        %4326 = vmatprep.mubr.bf16.mxu0 0
        %4327 = vmatmul.mubr.bf16.gmra.mrb[0].mxu0 %v3551
        %v4328 = vpop.f32.mrb[0].mxu0
        %v4329 = vadd.f32 %v3632, %v4328
        %v4330 = vpop.f32.mrb[0].mxu0
        %v4331 = vadd.f32 %v3636, %v4330
        %v4332 = vpop.f32.mrb[0].mxu0
        %v4333 = vadd.f32 %v3632, %v4332
        %v4334 = vpop.f32.mrb[0].mxu0
        %v4335 = vadd.f32 %v3636, %v4334
        %4336 = vmatprep.mubr.bf16.mxu0 0
        %4337 = vmatmul.mubr.bf16.gmra.mrb[0].mxu0 %v3552
        %v4338 = vpop.f32.mrb[0].mxu0
        %v4339 = vadd.f32 %v3632, %v4338
        %v4340 = vpop.f32.mrb[0].mxu0
        %v4341 = vadd.f32 %v3636, %v4340
        %v4342 = vpop.f32.mrb[0].mxu0
        %v4343 = vadd.f32 %v3632, %v4342
        %v4344 = vpop.f32.mrb[0].mxu0
        %v4345 = vadd.f32 %v3636, %v4344
        %4346 = vmatprep.mubr.bf16.mxu0 0
        %4347 = vmatmul.mubr.bf16.gmra.mrb[0].mxu0 %v3553
        %v4348 = vpop.f32.mrb[0].mxu0
        %v4349 = vadd.f32 %v3632, %v4348
        %v4350 = vpop.f32.mrb[0].mxu0
        %v4351 = vadd.f32 %v3636, %v4350
        %v4352 = vpop.f32.mrb[0].mxu0
        %v4353 = vadd.f32 %v3632, %v4352
        %v4354 = vpop.f32.mrb[0].mxu0
        %v4355 = vadd.f32 %v3636, %v4354
        %4356 = vmatprep.mubr.bf16.mxu0 0
        %4357 = vmatmul.mubr.bf16.gmra.mrb[0].mxu0 %v3554
        %v4358 = vpop.f32.mrb[0].mxu0
        %v4359 = vadd.f32 %v3632, %v4358
        %v4360 = vpop.f32.mrb[0].mxu0
        %v4361 = vadd.f32 %v3636, %v4360
        %v4362 = vpop.f32.mrb[0].mxu0
        %v4363 = vadd.f32 %v3632, %v4362
        %v4364 = vpop.f32.mrb[0].mxu0
        %v4365 = vadd.f32 %v3636, %v4364
        %4366 = vdwg.mxu0
        %4367 = vmatprep.subr.bf16.mxu0 %v3858
        %4368 = vmatpush1.bf16.msra.mxu0 %v3857
        %4369 = vmatprep.subr.bf16.mxu0 %v3866
        %4370 = vmatpush1.bf16.msra.mxu0 %v3865
        %4371 = vmatprep.subr.bf16.mxu0 %v3874
        %4372 = vmatpush1.bf16.msra.mxu0 %v3873
        %4373 = vmatprep.subr.bf16.mxu0 %v3882
        %4374 = vmatpush1.bf16.msra.mxu0 %v3881
        %4375 = vmatprep.subr.bf16.mxu0 %v3890
        %4376 = vmatpush1.bf16.msra.mxu0 %v3889
        %4377 = vmatprep.subr.bf16.mxu0 %v3898
        %4378 = vmatpush1.bf16.msra.mxu0 %v3897
        %4379 = vmatprep.subr.bf16.mxu0 %v3906
        %4380 = vmatpush1.bf16.msra.mxu0 %v3905
        %4381 = vmatprep.subr.bf16.mxu0 %v3914
        %4382 = vmatpush1.bf16.msra.mxu0 %v3913
        %4383 = vmatprep.subr.bf16.mxu0 0
        %4384 = vmatpush1.bf16.msra.mxu0 0
        %4385 = vmatprep.subr.bf16.mxu0 0
        %4386 = vmatpush1.bf16.msra.mxu0 0
        %4387 = vmatprep.subr.bf16.mxu0 0
        %4388 = vmatpush1.bf16.msra.mxu0 0
        %4389 = vmatprep.subr.bf16.mxu0 0
        %4390 = vmatpush1.bf16.msra.mxu0 0
        %4391 = vmatprep.subr.bf16.mxu0 0
        %4392 = vmatpush1.bf16.msra.mxu0 0
        %4393 = vmatprep.subr.bf16.mxu0 0
        %4394 = vmatpush1.bf16.msra.mxu0 0
        %4395 = vmatprep.subr.bf16.mxu0 0
        %4396 = vmatpush1.bf16.msra.mxu0 0
        %4397 = vmatprep.subr.bf16.mxu0 0
        %4398 = vmatpush1.bf16.msra.mxu0 0
        %4399 = vmatprep.mubr.bf16.mxu0 0
        %4400 = vmatmul.mubr.bf16.gmra.mrb[0].mxu0 %v3539
        %v4401 = vpop.f32.mrb[0].mxu0
        %v4402 = vadd.f32 %v3640, %v4401
        %v4403 = vpop.f32.mrb[0].mxu0
        %v4404 = vadd.f32 %v3644, %v4403
        %v4405 = vpop.f32.mrb[0].mxu0
        %v4406 = vadd.f32 %v3640, %v4405
        %v4407 = vpop.f32.mrb[0].mxu0
        %v4408 = vadd.f32 %v3644, %v4407
        %4409 = vmatprep.mubr.bf16.mxu0 0
        %4410 = vmatmul.mubr.bf16.gmra.mrb[0].mxu0 %v3540
        %v4411 = vpop.f32.mrb[0].mxu0
        %v4412 = vadd.f32 %v3640, %v4411
        %v4413 = vpop.f32.mrb[0].mxu0
        %v4414 = vadd.f32 %v3644, %v4413
        %v4415 = vpop.f32.mrb[0].mxu0
        %v4416 = vadd.f32 %v3640, %v4415
        %v4417 = vpop.f32.mrb[0].mxu0
        %v4418 = vadd.f32 %v3644, %v4417
        %4419 = vmatprep.mubr.bf16.mxu0 0
        %4420 = vmatmul.mubr.bf16.gmra.mrb[0].mxu0 %v3541
        %v4421 = vpop.f32.mrb[0].mxu0
        %v4422 = vadd.f32 %v3640, %v4421
        %v4423 = vpop.f32.mrb[0].mxu0
        %v4424 = vadd.f32 %v3644, %v4423
        %v4425 = vpop.f32.mrb[0].mxu0
        %v4426 = vadd.f32 %v3640, %v4425
        %v4427 = vpop.f32.mrb[0].mxu0
        %v4428 = vadd.f32 %v3644, %v4427
        %4429 = vmatprep.mubr.bf16.mxu0 0
        %4430 = vmatmul.mubr.bf16.gmra.mrb[0].mxu0 %v3542
        %v4431 = vpop.f32.mrb[0].mxu0
        %v4432 = vadd.f32 %v3640, %v4431
        %v4433 = vpop.f32.mrb[0].mxu0
        %v4434 = vadd.f32 %v3644, %v4433
        %v4435 = vpop.f32.mrb[0].mxu0
        %v4436 = vadd.f32 %v3640, %v4435
        %v4437 = vpop.f32.mrb[0].mxu0
        %v4438 = vadd.f32 %v3644, %v4437
        %4439 = vmatprep.mubr.bf16.mxu0 0
        %4440 = vmatmul.mubr.bf16.gmra.mrb[0].mxu0 %v3543
        %v4441 = vpop.f32.mrb[0].mxu0
        %v4442 = vadd.f32 %v3640, %v4441
        %v4443 = vpop.f32.mrb[0].mxu0
        %v4444 = vadd.f32 %v3644, %v4443
        %v4445 = vpop.f32.mrb[0].mxu0
        %v4446 = vadd.f32 %v3640, %v4445
        %v4447 = vpop.f32.mrb[0].mxu0
        %v4448 = vadd.f32 %v3644, %v4447
        %4449 = vmatprep.mubr.bf16.mxu0 0
        %4450 = vmatmul.mubr.bf16.gmra.mrb[0].mxu0 %v3544
        %v4451 = vpop.f32.mrb[0].mxu0
        %v4452 = vadd.f32 %v3640, %v4451
        %v4453 = vpop.f32.mrb[0].mxu0
        %v4454 = vadd.f32 %v3644, %v4453
        %v4455 = vpop.f32.mrb[0].mxu0
        %v4456 = vadd.f32 %v3640, %v4455
        %v4457 = vpop.f32.mrb[0].mxu0
        %v4458 = vadd.f32 %v3644, %v4457
        %4459 = vmatprep.mubr.bf16.mxu0 0
        %4460 = vmatmul.mubr.bf16.gmra.mrb[0].mxu0 %v3545
        %v4461 = vpop.f32.mrb[0].mxu0
        %v4462 = vadd.f32 %v3640, %v4461
        %v4463 = vpop.f32.mrb[0].mxu0
        %v4464 = vadd.f32 %v3644, %v4463
        %v4465 = vpop.f32.mrb[0].mxu0
        %v4466 = vadd.f32 %v3640, %v4465
        %v4467 = vpop.f32.mrb[0].mxu0
        %v4468 = vadd.f32 %v3644, %v4467
        %4469 = vmatprep.mubr.bf16.mxu0 0
        %4470 = vmatmul.mubr.bf16.gmra.mrb[0].mxu0 %v3546
        %v4471 = vpop.f32.mrb[0].mxu0
        %v4472 = vadd.f32 %v3640, %v4471
        %v4473 = vpop.f32.mrb[0].mxu0
        %v4474 = vadd.f32 %v3644, %v4473
        %v4475 = vpop.f32.mrb[0].mxu0
        %v4476 = vadd.f32 %v3640, %v4475
        %v4477 = vpop.f32.mrb[0].mxu0
        %v4478 = vadd.f32 %v3644, %v4477
        %4479 = vmatprep.mubr.bf16.mxu0 0
        %4480 = vmatmul.mubr.bf16.gmra.mrb[0].mxu0 %v3547
        %v4481 = vpop.f32.mrb[0].mxu0
        %v4482 = vadd.f32 %v3640, %v4481
        %v4483 = vpop.f32.mrb[0].mxu0
        %v4484 = vadd.f32 %v3644, %v4483
        %v4485 = vpop.f32.mrb[0].mxu0
        %v4486 = vadd.f32 %v3640, %v4485
        %v4487 = vpop.f32.mrb[0].mxu0
        %v4488 = vadd.f32 %v3644, %v4487
        %4489 = vmatprep.mubr.bf16.mxu0 0
        %4490 = vmatmul.mubr.bf16.gmra.mrb[0].mxu0 %v3548
        %v4491 = vpop.f32.mrb[0].mxu0
        %v4492 = vadd.f32 %v3640, %v4491
        %v4493 = vpop.f32.mrb[0].mxu0
        %v4494 = vadd.f32 %v3644, %v4493
        %v4495 = vpop.f32.mrb[0].mxu0
        %v4496 = vadd.f32 %v3640, %v4495
        %v4497 = vpop.f32.mrb[0].mxu0
        %v4498 = vadd.f32 %v3644, %v4497
        %4499 = vmatprep.mubr.bf16.mxu0 0
        %4500 = vmatmul.mubr.bf16.gmra.mrb[0].mxu0 %v3549
        %v4501 = vpop.f32.mrb[0].mxu0
        %v4502 = vadd.f32 %v3640, %v4501
        %v4503 = vpop.f32.mrb[0].mxu0
        %v4504 = vadd.f32 %v3644, %v4503
        %v4505 = vpop.f32.mrb[0].mxu0
        %v4506 = vadd.f32 %v3640, %v4505
        %v4507 = vpop.f32.mrb[0].mxu0
        %v4508 = vadd.f32 %v3644, %v4507
        %4509 = vmatprep.mubr.bf16.mxu0 0
        %4510 = vmatmul.mubr.bf16.gmra.mrb[0].mxu0 %v3550
        %v4511 = vpop.f32.mrb[0].mxu0
        %v4512 = vadd.f32 %v3640, %v4511
        %v4513 = vpop.f32.mrb[0].mxu0
        %v4514 = vadd.f32 %v3644, %v4513
        %v4515 = vpop.f32.mrb[0].mxu0
        %v4516 = vadd.f32 %v3640, %v4515
        %v4517 = vpop.f32.mrb[0].mxu0
        %v4518 = vadd.f32 %v3644, %v4517
        %4519 = vmatprep.mubr.bf16.mxu0 0
        %4520 = vmatmul.mubr.bf16.gmra.mrb[0].mxu0 %v3551
        %v4521 = vpop.f32.mrb[0].mxu0
        %v4522 = vadd.f32 %v3640, %v4521
        %v4523 = vpop.f32.mrb[0].mxu0
        %v4524 = vadd.f32 %v3644, %v4523
        %v4525 = vpop.f32.mrb[0].mxu0
        %v4526 = vadd.f32 %v3640, %v4525
        %v4527 = vpop.f32.mrb[0].mxu0
        %v4528 = vadd.f32 %v3644, %v4527
        %4529 = vmatprep.mubr.bf16.mxu0 0
        %4530 = vmatmul.mubr.bf16.gmra.mrb[0].mxu0 %v3552
        %v4531 = vpop.f32.mrb[0].mxu0
        %v4532 = vadd.f32 %v3640, %v4531
        %v4533 = vpop.f32.mrb[0].mxu0
        %v4534 = vadd.f32 %v3644, %v4533
        %v4535 = vpop.f32.mrb[0].mxu0
        %v4536 = vadd.f32 %v3640, %v4535
        %v4537 = vpop.f32.mrb[0].mxu0
        %v4538 = vadd.f32 %v3644, %v4537
        %4539 = vmatprep.mubr.bf16.mxu0 0
        %4540 = vmatmul.mubr.bf16.gmra.mrb[0].mxu0 %v3553
        %v4541 = vpop.f32.mrb[0].mxu0
        %v4542 = vadd.f32 %v3640, %v4541
        %v4543 = vpop.f32.mrb[0].mxu0
        %v4544 = vadd.f32 %v3644, %v4543
        %v4545 = vpop.f32.mrb[0].mxu0
        %v4546 = vadd.f32 %v3640, %v4545
        %v4547 = vpop.f32.mrb[0].mxu0
        %v4548 = vadd.f32 %v3644, %v4547
        %4549 = vmatprep.mubr.bf16.mxu0 0
        %4550 = vmatmul.mubr.bf16.gmra.mrb[0].mxu0 %v3554
        %v4551 = vpop.f32.mrb[0].mxu0
        %v4552 = vadd.f32 %v3640, %v4551
        %v4553 = vpop.f32.mrb[0].mxu0
        %v4554 = vadd.f32 %v3644, %v4553
        %v4555 = vpop.f32.mrb[0].mxu0
        %v4556 = vadd.f32 %v3640, %v4555
        %v4557 = vpop.f32.mrb[0].mxu0
        %v4558 = vadd.f32 %v3644, %v4557
        %4559 = vdwg.mxu0
        %4560 = vmatprep.subr.bf16.mxu0 %v3860
        %4561 = vmatpush1.bf16.msra.mxu0 %v3859
        %4562 = vmatprep.subr.bf16.mxu0 %v3868
        %4563 = vmatpush1.bf16.msra.mxu0 %v3867
        %4564 = vmatprep.subr.bf16.mxu0 %v3876
        %4565 = vmatpush1.bf16.msra.mxu0 %v3875
        %4566 = vmatprep.subr.bf16.mxu0 %v3884
        %4567 = vmatpush1.bf16.msra.mxu0 %v3883
        %4568 = vmatprep.subr.bf16.mxu0 %v3892
        %4569 = vmatpush1.bf16.msra.mxu0 %v3891
        %4570 = vmatprep.subr.bf16.mxu0 %v3900
        %4571 = vmatpush1.bf16.msra.mxu0 %v3899
        %4572 = vmatprep.subr.bf16.mxu0 %v3908
        %4573 = vmatpush1.bf16.msra.mxu0 %v3907
        %4574 = vmatprep.subr.bf16.mxu0 %v3916
        %4575 = vmatpush1.bf16.msra.mxu0 %v3915
        %4576 = vmatprep.subr.bf16.mxu0 0
        %4577 = vmatpush1.bf16.msra.mxu0 0
        %4578 = vmatprep.subr.bf16.mxu0 0
        %4579 = vmatpush1.bf16.msra.mxu0 0
        %4580 = vmatprep.subr.bf16.mxu0 0
        %4581 = vmatpush1.bf16.msra.mxu0 0
        %4582 = vmatprep.subr.bf16.mxu0 0
        %4583 = vmatpush1.bf16.msra.mxu0 0
        %4584 = vmatprep.subr.bf16.mxu0 0
        %4585 = vmatpush1.bf16.msra.mxu0 0
        %4586 = vmatprep.subr.bf16.mxu0 0
        %4587 = vmatpush1.bf16.msra.mxu0 0
        %4588 = vmatprep.subr.bf16.mxu0 0
        %4589 = vmatpush1.bf16.msra.mxu0 0
        %4590 = vmatprep.subr.bf16.mxu0 0
        %4591 = vmatpush1.bf16.msra.mxu0 0
        %4592 = vmatprep.mubr.bf16.mxu0 0
        %4593 = vmatmul.mubr.bf16.gmra.mrb[0].mxu0 %v3539
        %v4594 = vpop.f32.mrb[0].mxu0
        %v4595 = vadd.f32 %v3648, %v4594
        %v4596 = vpop.f32.mrb[0].mxu0
        %v4597 = vadd.f32 %v3652, %v4596
        %v4598 = vpop.f32.mrb[0].mxu0
        %v4599 = vadd.f32 %v3648, %v4598
        %v4600 = vpop.f32.mrb[0].mxu0
        %v4601 = vadd.f32 %v3652, %v4600
        %4602 = vmatprep.mubr.bf16.mxu0 0
        %4603 = vmatmul.mubr.bf16.gmra.mrb[0].mxu0 %v3540
        %v4604 = vpop.f32.mrb[0].mxu0
        %v4605 = vadd.f32 %v3648, %v4604
        %v4606 = vpop.f32.mrb[0].mxu0
        %v4607 = vadd.f32 %v3652, %v4606
        %v4608 = vpop.f32.mrb[0].mxu0
        %v4609 = vadd.f32 %v3648, %v4608
        %v4610 = vpop.f32.mrb[0].mxu0
        %v4611 = vadd.f32 %v3652, %v4610
        %4612 = vmatprep.mubr.bf16.mxu0 0
        %4613 = vmatmul.mubr.bf16.gmra.mrb[0].mxu0 %v3541
        %v4614 = vpop.f32.mrb[0].mxu0
        %v4615 = vadd.f32 %v3648, %v4614
        %v4616 = vpop.f32.mrb[0].mxu0
        %v4617 = vadd.f32 %v3652, %v4616
        %v4618 = vpop.f32.mrb[0].mxu0
        %v4619 = vadd.f32 %v3648, %v4618
        %v4620 = vpop.f32.mrb[0].mxu0
        %v4621 = vadd.f32 %v3652, %v4620
        %4622 = vmatprep.mubr.bf16.mxu0 0
        %4623 = vmatmul.mubr.bf16.gmra.mrb[0].mxu0 %v3542
        %v4624 = vpop.f32.mrb[0].mxu0
        %v4625 = vadd.f32 %v3648, %v4624
        %v4626 = vpop.f32.mrb[0].mxu0
        %v4627 = vadd.f32 %v3652, %v4626
        %v4628 = vpop.f32.mrb[0].mxu0
        %v4629 = vadd.f32 %v3648, %v4628
        %v4630 = vpop.f32.mrb[0].mxu0
        %v4631 = vadd.f32 %v3652, %v4630
        %4632 = vmatprep.mubr.bf16.mxu0 0
        %4633 = vmatmul.mubr.bf16.gmra.mrb[0].mxu0 %v3543
        %v4634 = vpop.f32.mrb[0].mxu0
        %v4635 = vadd.f32 %v3648, %v4634
        %v4636 = vpop.f32.mrb[0].mxu0
        %v4637 = vadd.f32 %v3652, %v4636
        %v4638 = vpop.f32.mrb[0].mxu0
        %v4639 = vadd.f32 %v3648, %v4638
        %v4640 = vpop.f32.mrb[0].mxu0
        %v4641 = vadd.f32 %v3652, %v4640
        %4642 = vmatprep.mubr.bf16.mxu0 0
        %4643 = vmatmul.mubr.bf16.gmra.mrb[0].mxu0 %v3544
        %v4644 = vpop.f32.mrb[0].mxu0
        %v4645 = vadd.f32 %v3648, %v4644
        %v4646 = vpop.f32.mrb[0].mxu0
        %v4647 = vadd.f32 %v3652, %v4646
        %v4648 = vpop.f32.mrb[0].mxu0
        %v4649 = vadd.f32 %v3648, %v4648
        %v4650 = vpop.f32.mrb[0].mxu0
        %v4651 = vadd.f32 %v3652, %v4650
        %4652 = vmatprep.mubr.bf16.mxu0 0
        %4653 = vmatmul.mubr.bf16.gmra.mrb[0].mxu0 %v3545
        %v4654 = vpop.f32.mrb[0].mxu0
        %v4655 = vadd.f32 %v3648, %v4654
        %v4656 = vpop.f32.mrb[0].mxu0
        %v4657 = vadd.f32 %v3652, %v4656
        %v4658 = vpop.f32.mrb[0].mxu0
        %v4659 = vadd.f32 %v3648, %v4658
        %v4660 = vpop.f32.mrb[0].mxu0
        %v4661 = vadd.f32 %v3652, %v4660
        %4662 = vmatprep.mubr.bf16.mxu0 0
        %4663 = vmatmul.mubr.bf16.gmra.mrb[0].mxu0 %v3546
        %v4664 = vpop.f32.mrb[0].mxu0
        %v4665 = vadd.f32 %v3648, %v4664
        %v4666 = vpop.f32.mrb[0].mxu0
        %v4667 = vadd.f32 %v3652, %v4666
        %v4668 = vpop.f32.mrb[0].mxu0
        %v4669 = vadd.f32 %v3648, %v4668
        %v4670 = vpop.f32.mrb[0].mxu0
        %v4671 = vadd.f32 %v3652, %v4670
        %4672 = vmatprep.mubr.bf16.mxu0 0
        %4673 = vmatmul.mubr.bf16.gmra.mrb[0].mxu0 %v3547
        %v4674 = vpop.f32.mrb[0].mxu0
        %v4675 = vadd.f32 %v3648, %v4674
        %v4676 = vpop.f32.mrb[0].mxu0
        %v4677 = vadd.f32 %v3652, %v4676
        %v4678 = vpop.f32.mrb[0].mxu0
        %v4679 = vadd.f32 %v3648, %v4678
        %v4680 = vpop.f32.mrb[0].mxu0
        %v4681 = vadd.f32 %v3652, %v4680
        %4682 = vmatprep.mubr.bf16.mxu0 0
        %4683 = vmatmul.mubr.bf16.gmra.mrb[0].mxu0 %v3548
        %v4684 = vpop.f32.mrb[0].mxu0
        %v4685 = vadd.f32 %v3648, %v4684
        %v4686 = vpop.f32.mrb[0].mxu0
        %v4687 = vadd.f32 %v3652, %v4686
        %v4688 = vpop.f32.mrb[0].mxu0
        %v4689 = vadd.f32 %v3648, %v4688
        %v4690 = vpop.f32.mrb[0].mxu0
        %v4691 = vadd.f32 %v3652, %v4690
        %4692 = vmatprep.mubr.bf16.mxu0 0
        %4693 = vmatmul.mubr.bf16.gmra.mrb[0].mxu0 %v3549
        %v4694 = vpop.f32.mrb[0].mxu0
        %v4695 = vadd.f32 %v3648, %v4694
        %v4696 = vpop.f32.mrb[0].mxu0
        %v4697 = vadd.f32 %v3652, %v4696
        %v4698 = vpop.f32.mrb[0].mxu0
        %v4699 = vadd.f32 %v3648, %v4698
        %v4700 = vpop.f32.mrb[0].mxu0
        %v4701 = vadd.f32 %v3652, %v4700
        %4702 = vmatprep.mubr.bf16.mxu0 0
        %4703 = vmatmul.mubr.bf16.gmra.mrb[0].mxu0 %v3550
        %v4704 = vpop.f32.mrb[0].mxu0
        %v4705 = vadd.f32 %v3648, %v4704
        %v4706 = vpop.f32.mrb[0].mxu0
        %v4707 = vadd.f32 %v3652, %v4706
        %v4708 = vpop.f32.mrb[0].mxu0
        %v4709 = vadd.f32 %v3648, %v4708
        %v4710 = vpop.f32.mrb[0].mxu0
        %v4711 = vadd.f32 %v3652, %v4710
        %4712 = vmatprep.mubr.bf16.mxu0 0
        %4713 = vmatmul.mubr.bf16.gmra.mrb[0].mxu0 %v3551
        %v4714 = vpop.f32.mrb[0].mxu0
        %v4715 = vadd.f32 %v3648, %v4714
        %v4716 = vpop.f32.mrb[0].mxu0
        %v4717 = vadd.f32 %v3652, %v4716
        %v4718 = vpop.f32.mrb[0].mxu0
        %v4719 = vadd.f32 %v3648, %v4718
        %v4720 = vpop.f32.mrb[0].mxu0
        %v4721 = vadd.f32 %v3652, %v4720
        %4722 = vmatprep.mubr.bf16.mxu0 0
        %4723 = vmatmul.mubr.bf16.gmra.mrb[0].mxu0 %v3552
        %v4724 = vpop.f32.mrb[0].mxu0
        %v4725 = vadd.f32 %v3648, %v4724
        %v4726 = vpop.f32.mrb[0].mxu0
        %v4727 = vadd.f32 %v3652, %v4726
        %v4728 = vpop.f32.mrb[0].mxu0
        %v4729 = vadd.f32 %v3648, %v4728
        %v4730 = vpop.f32.mrb[0].mxu0
        %v4731 = vadd.f32 %v3652, %v4730
        %4732 = vmatprep.mubr.bf16.mxu0 0
        %4733 = vmatmul.mubr.bf16.gmra.mrb[0].mxu0 %v3553
        %v4734 = vpop.f32.mrb[0].mxu0
        %v4735 = vadd.f32 %v3648, %v4734
        %v4736 = vpop.f32.mrb[0].mxu0
        %v4737 = vadd.f32 %v3652, %v4736
        %v4738 = vpop.f32.mrb[0].mxu0
        %v4739 = vadd.f32 %v3648, %v4738
        %v4740 = vpop.f32.mrb[0].mxu0
        %v4741 = vadd.f32 %v3652, %v4740
        %4742 = vmatprep.mubr.bf16.mxu0 0
        %4743 = vmatmul.mubr.bf16.gmra.mrb[0].mxu0 %v3554
        %v4744 = vpop.f32.mrb[0].mxu0
        %v4745 = vadd.f32 %v3648, %v4744
        %v4746 = vpop.f32.mrb[0].mxu0
        %v4747 = vadd.f32 %v3652, %v4746
        %v4748 = vpop.f32.mrb[0].mxu0
        %v4749 = vadd.f32 %v3648, %v4748
        %v4750 = vpop.f32.mrb[0].mxu0
        %v4751 = vadd.f32 %v3652, %v4750
        %4752 = vdwg.mxu0
        %v4753 = vmax.f32 %v4016, 0.0
        %v4754 = vmax.f32 %v4018, 0.0
        %v4755 = vmax.f32 %v4209, 0.0
        %v4756 = vmax.f32 %v4211, 0.0
        %v4757 = vmax.f32 %v4402, 0.0
        %v4758 = vmax.f32 %v4404, 0.0
        %v4759 = vmax.f32 %v4595, 0.0
        %v4760 = vmax.f32 %v4597, 0.0
        %v4761 = vmax.f32 %v4020, 0.0
        %v4762 = vmax.f32 %v4022, 0.0
        %v4763 = vmax.f32 %v4213, 0.0
        %v4764 = vmax.f32 %v4215, 0.0
        %v4765 = vmax.f32 %v4406, 0.0
        %v4766 = vmax.f32 %v4408, 0.0
        %v4767 = vmax.f32 %v4599, 0.0
        %v4768 = vmax.f32 %v4601, 0.0
        %v4769 = vmax.f32 %v4026, 0.0
        %v4770 = vmax.f32 %v4028, 0.0
        %v4771 = vmax.f32 %v4219, 0.0
        %v4772 = vmax.f32 %v4221, 0.0
        %v4773 = vmax.f32 %v4412, 0.0
        %v4774 = vmax.f32 %v4414, 0.0
        %v4775 = vmax.f32 %v4605, 0.0
        %v4776 = vmax.f32 %v4607, 0.0
        %v4777 = vmax.f32 %v4030, 0.0
        %v4778 = vmax.f32 %v4032, 0.0
        %v4779 = vmax.f32 %v4223, 0.0
        %v4780 = vmax.f32 %v4225, 0.0
        %v4781 = vmax.f32 %v4416, 0.0
        %v4782 = vmax.f32 %v4418, 0.0
        %v4783 = vmax.f32 %v4609, 0.0
        %v4784 = vmax.f32 %v4611, 0.0
        %v4785 = vmax.f32 %v4036, 0.0
        %v4786 = vmax.f32 %v4038, 0.0
        %v4787 = vmax.f32 %v4229, 0.0
        %v4788 = vmax.f32 %v4231, 0.0
        %v4789 = vmax.f32 %v4422, 0.0
        %v4790 = vmax.f32 %v4424, 0.0
        %v4791 = vmax.f32 %v4615, 0.0
        %v4792 = vmax.f32 %v4617, 0.0
        %v4793 = vmax.f32 %v4040, 0.0
        %v4794 = vmax.f32 %v4042, 0.0
        %v4795 = vmax.f32 %v4233, 0.0
        %v4796 = vmax.f32 %v4235, 0.0
        %v4797 = vmax.f32 %v4426, 0.0
        %v4798 = vmax.f32 %v4428, 0.0
        %v4799 = vmax.f32 %v4619, 0.0
        %v4800 = vmax.f32 %v4621, 0.0
        %v4801 = vmax.f32 %v4046, 0.0
        %v4802 = vmax.f32 %v4048, 0.0
        %v4803 = vmax.f32 %v4239, 0.0
        %v4804 = vmax.f32 %v4241, 0.0
        %v4805 = vmax.f32 %v4432, 0.0
        %v4806 = vmax.f32 %v4434, 0.0
        %v4807 = vmax.f32 %v4625, 0.0
        %v4808 = vmax.f32 %v4627, 0.0
        %v4809 = vmax.f32 %v4050, 0.0
        %v4810 = vmax.f32 %v4052, 0.0
        %v4811 = vmax.f32 %v4243, 0.0
        %v4812 = vmax.f32 %v4245, 0.0
        %v4813 = vmax.f32 %v4436, 0.0
        %v4814 = vmax.f32 %v4438, 0.0
        %v4815 = vmax.f32 %v4629, 0.0
        %v4816 = vmax.f32 %v4631, 0.0
        %v4817 = vmax.f32 %v4056, 0.0
        %v4818 = vmax.f32 %v4058, 0.0
        %v4819 = vmax.f32 %v4249, 0.0
        %v4820 = vmax.f32 %v4251, 0.0
        %v4821 = vmax.f32 %v4442, 0.0
        %v4822 = vmax.f32 %v4444, 0.0
        %v4823 = vmax.f32 %v4635, 0.0
        %v4824 = vmax.f32 %v4637, 0.0
        %v4825 = vmax.f32 %v4060, 0.0
        %v4826 = vmax.f32 %v4062, 0.0
        %v4827 = vmax.f32 %v4253, 0.0
        %v4828 = vmax.f32 %v4255, 0.0
        %v4829 = vmax.f32 %v4446, 0.0
        %v4830 = vmax.f32 %v4448, 0.0
        %v4831 = vmax.f32 %v4639, 0.0
        %v4832 = vmax.f32 %v4641, 0.0
        %v4833 = vmax.f32 %v4066, 0.0
        %v4834 = vmax.f32 %v4068, 0.0
        %v4835 = vmax.f32 %v4259, 0.0
        %v4836 = vmax.f32 %v4261, 0.0
        %v4837 = vmax.f32 %v4452, 0.0
        %v4838 = vmax.f32 %v4454, 0.0
        %v4839 = vmax.f32 %v4645, 0.0
        %v4840 = vmax.f32 %v4647, 0.0
        %v4841 = vmax.f32 %v4070, 0.0
        %v4842 = vmax.f32 %v4072, 0.0
        %v4843 = vmax.f32 %v4263, 0.0
        %v4844 = vmax.f32 %v4265, 0.0
        %v4845 = vmax.f32 %v4456, 0.0
        %v4846 = vmax.f32 %v4458, 0.0
        %v4847 = vmax.f32 %v4649, 0.0
        %v4848 = vmax.f32 %v4651, 0.0
        %v4849 = vmax.f32 %v4076, 0.0
        %v4850 = vmax.f32 %v4078, 0.0
        %v4851 = vmax.f32 %v4269, 0.0
        %v4852 = vmax.f32 %v4271, 0.0
        %v4853 = vmax.f32 %v4462, 0.0
        %v4854 = vmax.f32 %v4464, 0.0
        %v4855 = vmax.f32 %v4655, 0.0
        %v4856 = vmax.f32 %v4657, 0.0
        %v4857 = vmax.f32 %v4080, 0.0
        %v4858 = vmax.f32 %v4082, 0.0
        %v4859 = vmax.f32 %v4273, 0.0
        %v4860 = vmax.f32 %v4275, 0.0
        %v4861 = vmax.f32 %v4466, 0.0
        %v4862 = vmax.f32 %v4468, 0.0
        %v4863 = vmax.f32 %v4659, 0.0
        %v4864 = vmax.f32 %v4661, 0.0
        %v4865 = vmax.f32 %v4086, 0.0
        %v4866 = vmax.f32 %v4088, 0.0
        %v4867 = vmax.f32 %v4279, 0.0
        %v4868 = vmax.f32 %v4281, 0.0
        %v4869 = vmax.f32 %v4472, 0.0
        %v4870 = vmax.f32 %v4474, 0.0
        %v4871 = vmax.f32 %v4665, 0.0
        %v4872 = vmax.f32 %v4667, 0.0
        %v4873 = vmax.f32 %v4090, 0.0
        %v4874 = vmax.f32 %v4092, 0.0
        %v4875 = vmax.f32 %v4283, 0.0
        %v4876 = vmax.f32 %v4285, 0.0
        %v4877 = vmax.f32 %v4476, 0.0
        %v4878 = vmax.f32 %v4478, 0.0
        %v4879 = vmax.f32 %v4669, 0.0
        %v4880 = vmax.f32 %v4671, 0.0
        %v4881 = vmax.f32 %v4096, 0.0
        %v4882 = vmax.f32 %v4098, 0.0
        %v4883 = vmax.f32 %v4289, 0.0
        %v4884 = vmax.f32 %v4291, 0.0
        %v4885 = vmax.f32 %v4482, 0.0
        %v4886 = vmax.f32 %v4484, 0.0
        %v4887 = vmax.f32 %v4675, 0.0
        %v4888 = vmax.f32 %v4677, 0.0
        %v4889 = vmax.f32 %v4100, 0.0
        %v4890 = vmax.f32 %v4102, 0.0
        %v4891 = vmax.f32 %v4293, 0.0
        %v4892 = vmax.f32 %v4295, 0.0
        %v4893 = vmax.f32 %v4486, 0.0
        %v4894 = vmax.f32 %v4488, 0.0
        %v4895 = vmax.f32 %v4679, 0.0
        %v4896 = vmax.f32 %v4681, 0.0
        %v4897 = vmax.f32 %v4106, 0.0
        %v4898 = vmax.f32 %v4108, 0.0
        %v4899 = vmax.f32 %v4299, 0.0
        %v4900 = vmax.f32 %v4301, 0.0
        %v4901 = vmax.f32 %v4492, 0.0
        %v4902 = vmax.f32 %v4494, 0.0
        %v4903 = vmax.f32 %v4685, 0.0
        %v4904 = vmax.f32 %v4687, 0.0
        %v4905 = vmax.f32 %v4110, 0.0
        %v4906 = vmax.f32 %v4112, 0.0
        %v4907 = vmax.f32 %v4303, 0.0
        %v4908 = vmax.f32 %v4305, 0.0
        %v4909 = vmax.f32 %v4496, 0.0
        %v4910 = vmax.f32 %v4498, 0.0
        %v4911 = vmax.f32 %v4689, 0.0
        %v4912 = vmax.f32 %v4691, 0.0
        %v4913 = vmax.f32 %v4116, 0.0
        %v4914 = vmax.f32 %v4118, 0.0
        %v4915 = vmax.f32 %v4309, 0.0
        %v4916 = vmax.f32 %v4311, 0.0
        %v4917 = vmax.f32 %v4502, 0.0
        %v4918 = vmax.f32 %v4504, 0.0
        %v4919 = vmax.f32 %v4695, 0.0
        %v4920 = vmax.f32 %v4697, 0.0
        %v4921 = vmax.f32 %v4120, 0.0
        %v4922 = vmax.f32 %v4122, 0.0
        %v4923 = vmax.f32 %v4313, 0.0
        %v4924 = vmax.f32 %v4315, 0.0
        %v4925 = vmax.f32 %v4506, 0.0
        %v4926 = vmax.f32 %v4508, 0.0
        %v4927 = vmax.f32 %v4699, 0.0
        %v4928 = vmax.f32 %v4701, 0.0
        %v4929 = vmax.f32 %v4126, 0.0
        %v4930 = vmax.f32 %v4128, 0.0
        %v4931 = vmax.f32 %v4319, 0.0
        %v4932 = vmax.f32 %v4321, 0.0
        %v4933 = vmax.f32 %v4512, 0.0
        %v4934 = vmax.f32 %v4514, 0.0
        %v4935 = vmax.f32 %v4705, 0.0
        %v4936 = vmax.f32 %v4707, 0.0
        %v4937 = vmax.f32 %v4130, 0.0
        %v4938 = vmax.f32 %v4132, 0.0
        %v4939 = vmax.f32 %v4323, 0.0
        %v4940 = vmax.f32 %v4325, 0.0
        %v4941 = vmax.f32 %v4516, 0.0
        %v4942 = vmax.f32 %v4518, 0.0
        %v4943 = vmax.f32 %v4709, 0.0
        %v4944 = vmax.f32 %v4711, 0.0
        %v4945 = vmax.f32 %v4136, 0.0
        %v4946 = vmax.f32 %v4138, 0.0
        %v4947 = vmax.f32 %v4329, 0.0
        %v4948 = vmax.f32 %v4331, 0.0
        %v4949 = vmax.f32 %v4522, 0.0
        %v4950 = vmax.f32 %v4524, 0.0
        %v4951 = vmax.f32 %v4715, 0.0
        %v4952 = vmax.f32 %v4717, 0.0
        %v4953 = vmax.f32 %v4140, 0.0
        %v4954 = vmax.f32 %v4142, 0.0
        %v4955 = vmax.f32 %v4333, 0.0
        %v4956 = vmax.f32 %v4335, 0.0
        %v4957 = vmax.f32 %v4526, 0.0
        %v4958 = vmax.f32 %v4528, 0.0
        %v4959 = vmax.f32 %v4719, 0.0
        %v4960 = vmax.f32 %v4721, 0.0
        %v4961 = vmax.f32 %v4146, 0.0
        %v4962 = vmax.f32 %v4148, 0.0
        %v4963 = vmax.f32 %v4339, 0.0
        %v4964 = vmax.f32 %v4341, 0.0
        %v4965 = vmax.f32 %v4532, 0.0
        %v4966 = vmax.f32 %v4534, 0.0
        %v4967 = vmax.f32 %v4725, 0.0
        %v4968 = vmax.f32 %v4727, 0.0
        %v4969 = vmax.f32 %v4150, 0.0
        %v4970 = vmax.f32 %v4152, 0.0
        %v4971 = vmax.f32 %v4343, 0.0
        %v4972 = vmax.f32 %v4345, 0.0
        %v4973 = vmax.f32 %v4536, 0.0
        %v4974 = vmax.f32 %v4538, 0.0
        %v4975 = vmax.f32 %v4729, 0.0
        %v4976 = vmax.f32 %v4731, 0.0
        %v4977 = vmax.f32 %v4156, 0.0
        %v4978 = vmax.f32 %v4158, 0.0
        %v4979 = vmax.f32 %v4349, 0.0
        %v4980 = vmax.f32 %v4351, 0.0
        %v4981 = vmax.f32 %v4542, 0.0
        %v4982 = vmax.f32 %v4544, 0.0
        %v4983 = vmax.f32 %v4735, 0.0
        %v4984 = vmax.f32 %v4737, 0.0
        %v4985 = vmax.f32 %v4160, 0.0
        %v4986 = vmax.f32 %v4162, 0.0
        %v4987 = vmax.f32 %v4353, 0.0
        %v4988 = vmax.f32 %v4355, 0.0
        %v4989 = vmax.f32 %v4546, 0.0
        %v4990 = vmax.f32 %v4548, 0.0
        %v4991 = vmax.f32 %v4739, 0.0
        %v4992 = vmax.f32 %v4741, 0.0
        %v4993 = vmax.f32 %v4166, 0.0
        %v4994 = vmax.f32 %v4168, 0.0
        %v4995 = vmax.f32 %v4359, 0.0
        %v4996 = vmax.f32 %v4361, 0.0
        %v4997 = vmax.f32 %v4552, 0.0
        %v4998 = vmax.f32 %v4554, 0.0
        %v4999 = vmax.f32 %v4745, 0.0
        %v5000 = vmax.f32 %v4747, 0.0
        %v5001 = vmax.f32 %v4170, 0.0
        %v5002 = vmax.f32 %v4172, 0.0
        %v5003 = vmax.f32 %v4363, 0.0
        %v5004 = vmax.f32 %v4365, 0.0
        %v5005 = vmax.f32 %v4556, 0.0
        %v5006 = vmax.f32 %v4558, 0.0
        %v5007 = vmax.f32 %v4749, 0.0
        %v5008 = vmax.f32 %v4751, 0.0
        %v5009 = vpack.c.bf16 %v4761, %v4753
        %v5010 = vpack.c.bf16 %v4762, %v4754
        %v5011 = vpack.c.bf16 %v4763, %v4755
        %v5012 = vpack.c.bf16 %v4764, %v4756
        %v5013 = vpack.c.bf16 %v4765, %v4757
        %v5014 = vpack.c.bf16 %v4766, %v4758
        %v5015 = vpack.c.bf16 %v4767, %v4759
        %v5016 = vpack.c.bf16 %v4768, %v4760
        %v5017 = vpack.c.bf16 %v4777, %v4769
        %v5018 = vpack.c.bf16 %v4778, %v4770
        %v5019 = vpack.c.bf16 %v4779, %v4771
        %v5020 = vpack.c.bf16 %v4780, %v4772
        %v5021 = vpack.c.bf16 %v4781, %v4773
        %v5022 = vpack.c.bf16 %v4782, %v4774
        %v5023 = vpack.c.bf16 %v4783, %v4775
        %v5024 = vpack.c.bf16 %v4784, %v4776
        %v5025 = vpack.c.bf16 %v4793, %v4785
        %v5026 = vpack.c.bf16 %v4794, %v4786
        %v5027 = vpack.c.bf16 %v4795, %v4787
        %v5028 = vpack.c.bf16 %v4796, %v4788
        %v5029 = vpack.c.bf16 %v4797, %v4789
        %v5030 = vpack.c.bf16 %v4798, %v4790
        %v5031 = vpack.c.bf16 %v4799, %v4791
        %v5032 = vpack.c.bf16 %v4800, %v4792
        %v5033 = vpack.c.bf16 %v4809, %v4801
        %v5034 = vpack.c.bf16 %v4810, %v4802
        %v5035 = vpack.c.bf16 %v4811, %v4803
        %v5036 = vpack.c.bf16 %v4812, %v4804
        %v5037 = vpack.c.bf16 %v4813, %v4805
        %v5038 = vpack.c.bf16 %v4814, %v4806
        %v5039 = vpack.c.bf16 %v4815, %v4807
        %v5040 = vpack.c.bf16 %v4816, %v4808
        %v5041 = vpack.c.bf16 %v4825, %v4817
        %v5042 = vpack.c.bf16 %v4826, %v4818
        %v5043 = vpack.c.bf16 %v4827, %v4819
        %v5044 = vpack.c.bf16 %v4828, %v4820
        %v5045 = vpack.c.bf16 %v4829, %v4821
        %v5046 = vpack.c.bf16 %v4830, %v4822
        %v5047 = vpack.c.bf16 %v4831, %v4823
        %v5048 = vpack.c.bf16 %v4832, %v4824
        %v5049 = vpack.c.bf16 %v4841, %v4833
        %v5050 = vpack.c.bf16 %v4842, %v4834
        %v5051 = vpack.c.bf16 %v4843, %v4835
        %v5052 = vpack.c.bf16 %v4844, %v4836
        %v5053 = vpack.c.bf16 %v4845, %v4837
        %v5054 = vpack.c.bf16 %v4846, %v4838
        %v5055 = vpack.c.bf16 %v4847, %v4839
        %v5056 = vpack.c.bf16 %v4848, %v4840
        %v5057 = vpack.c.bf16 %v4857, %v4849
        %v5058 = vpack.c.bf16 %v4858, %v4850
        %v5059 = vpack.c.bf16 %v4859, %v4851
        %v5060 = vpack.c.bf16 %v4860, %v4852
        %v5061 = vpack.c.bf16 %v4861, %v4853
        %v5062 = vpack.c.bf16 %v4862, %v4854
        %v5063 = vpack.c.bf16 %v4863, %v4855
        %v5064 = vpack.c.bf16 %v4864, %v4856
        %v5065 = vpack.c.bf16 %v4873, %v4865
        %v5066 = vpack.c.bf16 %v4874, %v4866
        %v5067 = vpack.c.bf16 %v4875, %v4867
        %v5068 = vpack.c.bf16 %v4876, %v4868
        %v5069 = vpack.c.bf16 %v4877, %v4869
        %v5070 = vpack.c.bf16 %v4878, %v4870
        %v5071 = vpack.c.bf16 %v4879, %v4871
        %v5072 = vpack.c.bf16 %v4880, %v4872
        %v5073 = vpack.c.bf16 %v4889, %v4881
        %v5074 = vpack.c.bf16 %v4890, %v4882
        %v5075 = vpack.c.bf16 %v4891, %v4883
        %v5076 = vpack.c.bf16 %v4892, %v4884
        %v5077 = vpack.c.bf16 %v4893, %v4885
        %v5078 = vpack.c.bf16 %v4894, %v4886
        %v5079 = vpack.c.bf16 %v4895, %v4887
        %v5080 = vpack.c.bf16 %v4896, %v4888
        %v5081 = vpack.c.bf16 %v4905, %v4897
        %v5082 = vpack.c.bf16 %v4906, %v4898
        %v5083 = vpack.c.bf16 %v4907, %v4899
        %v5084 = vpack.c.bf16 %v4908, %v4900
        %v5085 = vpack.c.bf16 %v4909, %v4901
        %v5086 = vpack.c.bf16 %v4910, %v4902
        %v5087 = vpack.c.bf16 %v4911, %v4903
        %v5088 = vpack.c.bf16 %v4912, %v4904
        %v5089 = vpack.c.bf16 %v4921, %v4913
        %v5090 = vpack.c.bf16 %v4922, %v4914
        %v5091 = vpack.c.bf16 %v4923, %v4915
        %v5092 = vpack.c.bf16 %v4924, %v4916
        %v5093 = vpack.c.bf16 %v4925, %v4917
        %v5094 = vpack.c.bf16 %v4926, %v4918
        %v5095 = vpack.c.bf16 %v4927, %v4919
        %v5096 = vpack.c.bf16 %v4928, %v4920
        %v5097 = vpack.c.bf16 %v4937, %v4929
        %v5098 = vpack.c.bf16 %v4938, %v4930
        %v5099 = vpack.c.bf16 %v4939, %v4931
        %v5100 = vpack.c.bf16 %v4940, %v4932
        %v5101 = vpack.c.bf16 %v4941, %v4933
        %v5102 = vpack.c.bf16 %v4942, %v4934
        %v5103 = vpack.c.bf16 %v4943, %v4935
        %v5104 = vpack.c.bf16 %v4944, %v4936
        %v5105 = vpack.c.bf16 %v4953, %v4945
        %v5106 = vpack.c.bf16 %v4954, %v4946
        %v5107 = vpack.c.bf16 %v4955, %v4947
        %v5108 = vpack.c.bf16 %v4956, %v4948
        %v5109 = vpack.c.bf16 %v4957, %v4949
        %v5110 = vpack.c.bf16 %v4958, %v4950
        %v5111 = vpack.c.bf16 %v4959, %v4951
        %v5112 = vpack.c.bf16 %v4960, %v4952
        %v5113 = vpack.c.bf16 %v4969, %v4961
        %v5114 = vpack.c.bf16 %v4970, %v4962
        %v5115 = vpack.c.bf16 %v4971, %v4963
        %v5116 = vpack.c.bf16 %v4972, %v4964
        %v5117 = vpack.c.bf16 %v4973, %v4965
        %v5118 = vpack.c.bf16 %v4974, %v4966
        %v5119 = vpack.c.bf16 %v4975, %v4967
        %v5120 = vpack.c.bf16 %v4976, %v4968
        %v5121 = vpack.c.bf16 %v4985, %v4977
        %v5122 = vpack.c.bf16 %v4986, %v4978
        %v5123 = vpack.c.bf16 %v4987, %v4979
        %v5124 = vpack.c.bf16 %v4988, %v4980
        %v5125 = vpack.c.bf16 %v4989, %v4981
        %v5126 = vpack.c.bf16 %v4990, %v4982
        %v5127 = vpack.c.bf16 %v4991, %v4983
        %v5128 = vpack.c.bf16 %v4992, %v4984
        %v5129 = vpack.c.bf16 %v5001, %v4993
        %v5130 = vpack.c.bf16 %v5002, %v4994
        %v5131 = vpack.c.bf16 %v5003, %v4995
        %v5132 = vpack.c.bf16 %v5004, %v4996
        %v5133 = vpack.c.bf16 %v5005, %v4997
        %v5134 = vpack.c.bf16 %v5006, %v4998
        %v5135 = vpack.c.bf16 %v5007, %v4999
        %v5136 = vpack.c.bf16 %v5008, %v5000
        %v5137 = vld [vmem:[#allocation2] sm:$0xff]
        %v5138 = vld [vmem:[#allocation2 + $0x8] sm:$0xff]
        %v5139 = vld [vmem:[#allocation2 + $0x10] sm:$0xff]
        %v5140 = vld [vmem:[#allocation2 + $0x18] sm:$0xff]
        %v5141 = vld [vmem:[#allocation2 + $0x20] sm:$0xff]
        %v5142 = vld [vmem:[#allocation2 + $0x28] sm:$0xff]
        %v5143 = vld [vmem:[#allocation2 + $0x30] sm:$0xff]
        %v5144 = vld [vmem:[#allocation2 + $0x38] sm:$0xff]
        %v5145 = vld [vmem:[#allocation2 + $0x40] sm:$0xff]
        %v5146 = vld [vmem:[#allocation2 + $0x48] sm:$0xff]
        %v5147 = vld [vmem:[#allocation2 + $0x50] sm:$0xff]
        %v5148 = vld [vmem:[#allocation2 + $0x58] sm:$0xff]
        %v5149 = vld [vmem:[#allocation2 + $0x60] sm:$0xff]
        %v5150 = vld [vmem:[#allocation2 + $0x68] sm:$0xff]
        %v5151 = vld [vmem:[#allocation2 + $0x70] sm:$0xff]
        %v5152 = vld [vmem:[#allocation2 + $0x78] sm:$0xff]
        %v5153 = vld [vmem:[#allocation2 + $0x80] sm:$0xff]
        %v5154 = vld [vmem:[#allocation2 + $0x88] sm:$0xff]
        %v5155 = vld [vmem:[#allocation2 + $0x90] sm:$0xff]
        %v5156 = vld [vmem:[#allocation2 + $0x98] sm:$0xff]
        %v5157 = vld [vmem:[#allocation2 + $0xa0] sm:$0xff]
        %v5158 = vld [vmem:[#allocation2 + $0xa8] sm:$0xff]
        %v5159 = vld [vmem:[#allocation2 + $0xb0] sm:$0xff]
        %v5160 = vld [vmem:[#allocation2 + $0xb8] sm:$0xff]
        %v5161 = vld [vmem:[#allocation2 + $0xc0] sm:$0xff]
        %v5162 = vld [vmem:[#allocation2 + $0xc8] sm:$0xff]
        %v5163 = vld [vmem:[#allocation2 + $0xd0] sm:$0xff]
        %v5164 = vld [vmem:[#allocation2 + $0xd8] sm:$0xff]
        %v5165 = vld [vmem:[#allocation2 + $0xe0] sm:$0xff]
        %v5166 = vld [vmem:[#allocation2 + $0xe8] sm:$0xff]
        %v5167 = vld [vmem:[#allocation2 + $0xf0] sm:$0xff]
        %v5168 = vld [vmem:[#allocation2 + $0xf8] sm:$0xff]
        %v5169 = vld [vmem:[#allocation2 + $0x100] sm:$0xff]
        %v5170 = vld [vmem:[#allocation2 + $0x108] sm:$0xff]
        %v5171 = vld [vmem:[#allocation2 + $0x110] sm:$0xff]
        %v5172 = vld [vmem:[#allocation2 + $0x118] sm:$0xff]
        %v5173 = vld [vmem:[#allocation2 + $0x120] sm:$0xff]
        %v5174 = vld [vmem:[#allocation2 + $0x128] sm:$0xff]
        %v5175 = vld [vmem:[#allocation2 + $0x130] sm:$0xff]
        %v5176 = vld [vmem:[#allocation2 + $0x138] sm:$0xff]
        %v5177 = vld [vmem:[#allocation2 + $0x140] sm:$0xff]
        %v5178 = vld [vmem:[#allocation2 + $0x148] sm:$0xff]
        %v5179 = vld [vmem:[#allocation2 + $0x150] sm:$0xff]
        %v5180 = vld [vmem:[#allocation2 + $0x158] sm:$0xff]
        %v5181 = vld [vmem:[#allocation2 + $0x160] sm:$0xff]
        %v5182 = vld [vmem:[#allocation2 + $0x168] sm:$0xff]
        %v5183 = vld [vmem:[#allocation2 + $0x170] sm:$0xff]
        %v5184 = vld [vmem:[#allocation2 + $0x178] sm:$0xff]
        %v5185 = vld [vmem:[#allocation2 + $0x180] sm:$0xff]
        %v5186 = vld [vmem:[#allocation2 + $0x188] sm:$0xff]
        %v5187 = vld [vmem:[#allocation2 + $0x190] sm:$0xff]
        %v5188 = vld [vmem:[#allocation2 + $0x198] sm:$0xff]
        %v5189 = vld [vmem:[#allocation2 + $0x1a0] sm:$0xff]
        %v5190 = vld [vmem:[#allocation2 + $0x1a8] sm:$0xff]
        %v5191 = vld [vmem:[#allocation2 + $0x1b0] sm:$0xff]
        %v5192 = vld [vmem:[#allocation2 + $0x1b8] sm:$0xff]
        %v5193 = vld [vmem:[#allocation2 + $0x1c0] sm:$0xff]
        %v5194 = vld [vmem:[#allocation2 + $0x1c8] sm:$0xff]
        %v5195 = vld [vmem:[#allocation2 + $0x1d0] sm:$0xff]
        %v5196 = vld [vmem:[#allocation2 + $0x1d8] sm:$0xff]
        %v5197 = vld [vmem:[#allocation2 + $0x1e0] sm:$0xff]
        %v5198 = vld [vmem:[#allocation2 + $0x1e8] sm:$0xff]
        %v5199 = vld [vmem:[#allocation2 + $0x1f0] sm:$0xff]
        %v5200 = vld [vmem:[#allocation2 + $0x1f8] sm:$0xff]
        %v5201 = vld [vmem:[#allocation2 + $0x200] sm:$0xff]
        %v5202 = vld [vmem:[#allocation2 + $0x208] sm:$0xff]
        %v5203 = vld [vmem:[#allocation2 + $0x210] sm:$0xff]
        %v5204 = vld [vmem:[#allocation2 + $0x218] sm:$0xff]
        %v5205 = vld [vmem:[#allocation2 + $0x220] sm:$0xff]
        %v5206 = vld [vmem:[#allocation2 + $0x228] sm:$0xff]
        %v5207 = vld [vmem:[#allocation2 + $0x230] sm:$0xff]
        %v5208 = vld [vmem:[#allocation2 + $0x238] sm:$0xff]
        %v5209 = vld [vmem:[#allocation2 + $0x240] sm:$0xff]
        %v5210 = vld [vmem:[#allocation2 + $0x248] sm:$0xff]
        %v5211 = vld [vmem:[#allocation2 + $0x250] sm:$0xff]
        %v5212 = vld [vmem:[#allocation2 + $0x258] sm:$0xff]
        %v5213 = vld [vmem:[#allocation2 + $0x260] sm:$0xff]
        %v5214 = vld [vmem:[#allocation2 + $0x268] sm:$0xff]
        %v5215 = vld [vmem:[#allocation2 + $0x270] sm:$0xff]
        %v5216 = vld [vmem:[#allocation2 + $0x278] sm:$0xff]
        %v5217 = vld [vmem:[#allocation2 + $0x280] sm:$0xff]
        %v5218 = vld [vmem:[#allocation2 + $0x288] sm:$0xff]
        %v5219 = vld [vmem:[#allocation2 + $0x290] sm:$0xff]
        %v5220 = vld [vmem:[#allocation2 + $0x298] sm:$0xff]
        %v5221 = vld [vmem:[#allocation2 + $0x2a0] sm:$0xff]
        %v5222 = vld [vmem:[#allocation2 + $0x2a8] sm:$0xff]
        %v5223 = vld [vmem:[#allocation2 + $0x2b0] sm:$0xff]
        %v5224 = vld [vmem:[#allocation2 + $0x2b8] sm:$0xff]
        %v5225 = vld [vmem:[#allocation2 + $0x2c0] sm:$0xff]
        %v5226 = vld [vmem:[#allocation2 + $0x2c8] sm:$0xff]
        %v5227 = vld [vmem:[#allocation2 + $0x2d0] sm:$0xff]
        %v5228 = vld [vmem:[#allocation2 + $0x2d8] sm:$0xff]
        %v5229 = vld [vmem:[#allocation2 + $0x2e0] sm:$0xff]
        %v5230 = vld [vmem:[#allocation2 + $0x2e8] sm:$0xff]
        %v5231 = vld [vmem:[#allocation2 + $0x2f0] sm:$0xff]
        %v5232 = vld [vmem:[#allocation2 + $0x2f8] sm:$0xff]
        %v5233 = vld [vmem:[#allocation2 + $0x300] sm:$0xff]
        %v5234 = vld [vmem:[#allocation2 + $0x308] sm:$0xff]
        %v5235 = vld [vmem:[#allocation2 + $0x310] sm:$0xff]
        %v5236 = vld [vmem:[#allocation2 + $0x318] sm:$0xff]
        %v5237 = vld [vmem:[#allocation2 + $0x320] sm:$0xff]
        %v5238 = vld [vmem:[#allocation2 + $0x328] sm:$0xff]
        %v5239 = vld [vmem:[#allocation2 + $0x330] sm:$0xff]
        %v5240 = vld [vmem:[#allocation2 + $0x338] sm:$0xff]
        %v5241 = vld [vmem:[#allocation2 + $0x340] sm:$0xff]
        %v5242 = vld [vmem:[#allocation2 + $0x348] sm:$0xff]
        %v5243 = vld [vmem:[#allocation2 + $0x350] sm:$0xff]
        %v5244 = vld [vmem:[#allocation2 + $0x358] sm:$0xff]
        %v5245 = vld [vmem:[#allocation2 + $0x360] sm:$0xff]
        %v5246 = vld [vmem:[#allocation2 + $0x368] sm:$0xff]
        %v5247 = vld [vmem:[#allocation2 + $0x370] sm:$0xff]
        %v5248 = vld [vmem:[#allocation2 + $0x378] sm:$0xff]
        %v5249 = vld [vmem:[#allocation2 + $0x380] sm:$0xff]
        %v5250 = vld [vmem:[#allocation2 + $0x388] sm:$0xff]
        %v5251 = vld [vmem:[#allocation2 + $0x390] sm:$0xff]
        %v5252 = vld [vmem:[#allocation2 + $0x398] sm:$0xff]
        %v5253 = vld [vmem:[#allocation2 + $0x3a0] sm:$0xff]
        %v5254 = vld [vmem:[#allocation2 + $0x3a8] sm:$0xff]
        %v5255 = vld [vmem:[#allocation2 + $0x3b0] sm:$0xff]
        %v5256 = vld [vmem:[#allocation2 + $0x3b8] sm:$0xff]
        %v5257 = vld [vmem:[#allocation2 + $0x3c0] sm:$0xff]
        %v5258 = vld [vmem:[#allocation2 + $0x3c8] sm:$0xff]
        %v5259 = vld [vmem:[#allocation2 + $0x3d0] sm:$0xff]
        %v5260 = vld [vmem:[#allocation2 + $0x3d8] sm:$0xff]
        %v5261 = vld [vmem:[#allocation2 + $0x3e0] sm:$0xff]
        %v5262 = vld [vmem:[#allocation2 + $0x3e8] sm:$0xff]
        %v5263 = vld [vmem:[#allocation2 + $0x3f0] sm:$0xff]
        %v5264 = vld [vmem:[#allocation2 + $0x3f8] sm:$0xff]
        %v5265 = vld [vmem:[#allocation2 + $0x400] sm:$0xff]
        %v5266 = vld [vmem:[#allocation2 + $0x408] sm:$0xff]
        %v5267 = vld [vmem:[#allocation2 + $0x410] sm:$0xff]
        %v5268 = vld [vmem:[#allocation2 + $0x418] sm:$0xff]
        %v5269 = vld [vmem:[#allocation2 + $0x420] sm:$0xff]
        %v5270 = vld [vmem:[#allocation2 + $0x428] sm:$0xff]
        %v5271 = vld [vmem:[#allocation2 + $0x430] sm:$0xff]
        %v5272 = vld [vmem:[#allocation2 + $0x438] sm:$0xff]
        %v5273 = vld [vmem:[#allocation2 + $0x440] sm:$0xff]
        %v5274 = vld [vmem:[#allocation2 + $0x448] sm:$0xff]
        %v5275 = vld [vmem:[#allocation2 + $0x450] sm:$0xff]
        %v5276 = vld [vmem:[#allocation2 + $0x458] sm:$0xff]
        %v5277 = vld [vmem:[#allocation2 + $0x460] sm:$0xff]
        %v5278 = vld [vmem:[#allocation2 + $0x468] sm:$0xff]
        %v5279 = vld [vmem:[#allocation2 + $0x470] sm:$0xff]
        %v5280 = vld [vmem:[#allocation2 + $0x478] sm:$0xff]
        %v5281 = vld [vmem:[#allocation2 + $0x480] sm:$0xff]
        %v5282 = vld [vmem:[#allocation2 + $0x488] sm:$0xff]
        %v5283 = vld [vmem:[#allocation2 + $0x490] sm:$0xff]
        %v5284 = vld [vmem:[#allocation2 + $0x498] sm:$0xff]
        %v5285 = vld [vmem:[#allocation2 + $0x4a0] sm:$0xff]
        %v5286 = vld [vmem:[#allocation2 + $0x4a8] sm:$0xff]
        %v5287 = vld [vmem:[#allocation2 + $0x4b0] sm:$0xff]
        %v5288 = vld [vmem:[#allocation2 + $0x4b8] sm:$0xff]
        %v5289 = vld [vmem:[#allocation2 + $0x4c0] sm:$0xff]
        %v5290 = vld [vmem:[#allocation2 + $0x4c8] sm:$0xff]
        %v5291 = vld [vmem:[#allocation2 + $0x4d0] sm:$0xff]
        %v5292 = vld [vmem:[#allocation2 + $0x4d8] sm:$0xff]
        %v5293 = vld [vmem:[#allocation2 + $0x4e0] sm:$0xff]
        %v5294 = vld [vmem:[#allocation2 + $0x4e8] sm:$0xff]
        %v5295 = vld [vmem:[#allocation2 + $0x4f0] sm:$0xff]
        %v5296 = vld [vmem:[#allocation2 + $0x4f8] sm:$0xff]
        %v5297 = vld [vmem:[#allocation2 + $0x500] sm:$0xff]
        %v5298 = vld [vmem:[#allocation2 + $0x508] sm:$0xff]
        %v5299 = vld [vmem:[#allocation2 + $0x510] sm:$0xff]
        %v5300 = vld [vmem:[#allocation2 + $0x518] sm:$0xff]
        %v5301 = vld [vmem:[#allocation2 + $0x520] sm:$0xff]
        %v5302 = vld [vmem:[#allocation2 + $0x528] sm:$0xff]
        %v5303 = vld [vmem:[#allocation2 + $0x530] sm:$0xff]
        %v5304 = vld [vmem:[#allocation2 + $0x538] sm:$0xff]
        %v5305 = vld [vmem:[#allocation2 + $0x540] sm:$0xff]
        %v5306 = vld [vmem:[#allocation2 + $0x548] sm:$0xff]
        %v5307 = vld [vmem:[#allocation2 + $0x550] sm:$0xff]
        %v5308 = vld [vmem:[#allocation2 + $0x558] sm:$0xff]
        %v5309 = vld [vmem:[#allocation2 + $0x560] sm:$0xff]
        %v5310 = vld [vmem:[#allocation2 + $0x568] sm:$0xff]
        %v5311 = vld [vmem:[#allocation2 + $0x570] sm:$0xff]
        %v5312 = vld [vmem:[#allocation2 + $0x578] sm:$0xff]
        %v5313 = vld [vmem:[#allocation2 + $0x580] sm:$0xff]
        %v5314 = vld [vmem:[#allocation2 + $0x588] sm:$0xff]
        %v5315 = vld [vmem:[#allocation2 + $0x590] sm:$0xff]
        %v5316 = vld [vmem:[#allocation2 + $0x598] sm:$0xff]
        %v5317 = vld [vmem:[#allocation2 + $0x5a0] sm:$0xff]
        %v5318 = vld [vmem:[#allocation2 + $0x5a8] sm:$0xff]
        %v5319 = vld [vmem:[#allocation2 + $0x5b0] sm:$0xff]
        %v5320 = vld [vmem:[#allocation2 + $0x5b8] sm:$0xff]
        %v5321 = vld [vmem:[#allocation2 + $0x5c0] sm:$0xff]
        %v5322 = vld [vmem:[#allocation2 + $0x5c8] sm:$0xff]
        %v5323 = vld [vmem:[#allocation2 + $0x5d0] sm:$0xff]
        %v5324 = vld [vmem:[#allocation2 + $0x5d8] sm:$0xff]
        %v5325 = vld [vmem:[#allocation2 + $0x5e0] sm:$0xff]
        %v5326 = vld [vmem:[#allocation2 + $0x5e8] sm:$0xff]
        %v5327 = vld [vmem:[#allocation2 + $0x5f0] sm:$0xff]
        %v5328 = vld [vmem:[#allocation2 + $0x5f8] sm:$0xff]
        %v5329 = vld [vmem:[#allocation2 + $0x600] sm:$0xff]
        %v5330 = vld [vmem:[#allocation2 + $0x608] sm:$0xff]
        %v5331 = vld [vmem:[#allocation2 + $0x610] sm:$0xff]
        %v5332 = vld [vmem:[#allocation2 + $0x618] sm:$0xff]
        %v5333 = vld [vmem:[#allocation2 + $0x620] sm:$0xff]
        %v5334 = vld [vmem:[#allocation2 + $0x628] sm:$0xff]
        %v5335 = vld [vmem:[#allocation2 + $0x630] sm:$0xff]
        %v5336 = vld [vmem:[#allocation2 + $0x638] sm:$0xff]
        %v5337 = vld [vmem:[#allocation2 + $0x640] sm:$0xff]
        %v5338 = vld [vmem:[#allocation2 + $0x648] sm:$0xff]
        %v5339 = vld [vmem:[#allocation2 + $0x650] sm:$0xff]
        %v5340 = vld [vmem:[#allocation2 + $0x658] sm:$0xff]
        %v5341 = vld [vmem:[#allocation2 + $0x660] sm:$0xff]
        %v5342 = vld [vmem:[#allocation2 + $0x668] sm:$0xff]
        %v5343 = vld [vmem:[#allocation2 + $0x670] sm:$0xff]
        %v5344 = vld [vmem:[#allocation2 + $0x678] sm:$0xff]
        %v5345 = vld [vmem:[#allocation2 + $0x680] sm:$0xff]
        %v5346 = vld [vmem:[#allocation2 + $0x688] sm:$0xff]
        %v5347 = vld [vmem:[#allocation2 + $0x690] sm:$0xff]
        %v5348 = vld [vmem:[#allocation2 + $0x698] sm:$0xff]
        %v5349 = vld [vmem:[#allocation2 + $0x6a0] sm:$0xff]
        %v5350 = vld [vmem:[#allocation2 + $0x6a8] sm:$0xff]
        %v5351 = vld [vmem:[#allocation2 + $0x6b0] sm:$0xff]
        %v5352 = vld [vmem:[#allocation2 + $0x6b8] sm:$0xff]
        %v5353 = vld [vmem:[#allocation2 + $0x6c0] sm:$0xff]
        %v5354 = vld [vmem:[#allocation2 + $0x6c8] sm:$0xff]
        %v5355 = vld [vmem:[#allocation2 + $0x6d0] sm:$0xff]
        %v5356 = vld [vmem:[#allocation2 + $0x6d8] sm:$0xff]
        %v5357 = vld [vmem:[#allocation2 + $0x6e0] sm:$0xff]
        %v5358 = vld [vmem:[#allocation2 + $0x6e8] sm:$0xff]
        %v5359 = vld [vmem:[#allocation2 + $0x6f0] sm:$0xff]
        %v5360 = vld [vmem:[#allocation2 + $0x6f8] sm:$0xff]
        %v5361 = vld [vmem:[#allocation2 + $0x700] sm:$0xff]
        %v5362 = vld [vmem:[#allocation2 + $0x708] sm:$0xff]
        %v5363 = vld [vmem:[#allocation2 + $0x710] sm:$0xff]
        %v5364 = vld [vmem:[#allocation2 + $0x718] sm:$0xff]
        %v5365 = vld [vmem:[#allocation2 + $0x720] sm:$0xff]
        %v5366 = vld [vmem:[#allocation2 + $0x728] sm:$0xff]
        %v5367 = vld [vmem:[#allocation2 + $0x730] sm:$0xff]
        %v5368 = vld [vmem:[#allocation2 + $0x738] sm:$0xff]
        %v5369 = vld [vmem:[#allocation2 + $0x740] sm:$0xff]
        %v5370 = vld [vmem:[#allocation2 + $0x748] sm:$0xff]
        %v5371 = vld [vmem:[#allocation2 + $0x750] sm:$0xff]
        %v5372 = vld [vmem:[#allocation2 + $0x758] sm:$0xff]
        %v5373 = vld [vmem:[#allocation2 + $0x760] sm:$0xff]
        %v5374 = vld [vmem:[#allocation2 + $0x768] sm:$0xff]
        %v5375 = vld [vmem:[#allocation2 + $0x770] sm:$0xff]
        %v5376 = vld [vmem:[#allocation2 + $0x778] sm:$0xff]
        %v5377 = vld [vmem:[#allocation2 + $0x780] sm:$0xff]
        %v5378 = vld [vmem:[#allocation2 + $0x788] sm:$0xff]
        %v5379 = vld [vmem:[#allocation2 + $0x790] sm:$0xff]
        %v5380 = vld [vmem:[#allocation2 + $0x798] sm:$0xff]
        %v5381 = vld [vmem:[#allocation2 + $0x7a0] sm:$0xff]
        %v5382 = vld [vmem:[#allocation2 + $0x7a8] sm:$0xff]
        %v5383 = vld [vmem:[#allocation2 + $0x7b0] sm:$0xff]
        %v5384 = vld [vmem:[#allocation2 + $0x7b8] sm:$0xff]
        %v5385 = vld [vmem:[#allocation2 + $0x7c0] sm:$0xff]
        %v5386 = vld [vmem:[#allocation2 + $0x7c8] sm:$0xff]
        %v5387 = vld [vmem:[#allocation2 + $0x7d0] sm:$0xff]
        %v5388 = vld [vmem:[#allocation2 + $0x7d8] sm:$0xff]
        %v5389 = vld [vmem:[#allocation2 + $0x7e0] sm:$0xff]
        %v5390 = vld [vmem:[#allocation2 + $0x7e8] sm:$0xff]
        %v5391 = vld [vmem:[#allocation2 + $0x7f0] sm:$0xff]
        %v5392 = vld [vmem:[#allocation2 + $0x7f8] sm:$0xff]
        %v5393 = vld [vmem:[%s7] sm:$0xf]
        %v5395 = vlaneseq
        %v5396 = vshrl.u32 %v5395, 7
        %v5397 = vsub.s32 0, %v5396
        %v5398 = vrot.slane %v5393, %v5397
        %v5399 = vlaneseq
        %v5400 = vshrl.u32 %v5399, 7
        %v5401 = vsub.s32 1, %v5400
        %v5402 = vrot.slane %v5393, %v5401
        %v5403 = vlaneseq
        %v5404 = vshrl.u32 %v5403, 7
        %v5405 = vsub.s32 2, %v5404
        %v5406 = vrot.slane %v5393, %v5405
        %v5407 = vlaneseq
        %v5408 = vshrl.u32 %v5407, 7
        %v5409 = vsub.s32 3, %v5408
        %v5410 = vrot.slane %v5393, %v5409
        %v5671 = vunpack.c.l.b16 %v5137
        %v5672 = vunpack.c.h.b16 %v5137
        %v5673 = vunpack.c.l.b16 %v5138
        %v5674 = vunpack.c.h.b16 %v5138
        %v5675 = vunpack.c.l.b16 %v5139
        %v5676 = vunpack.c.h.b16 %v5139
        %v5677 = vunpack.c.l.b16 %v5140
        %v5678 = vunpack.c.h.b16 %v5140
        %v5679 = vunpack.c.l.b16 %v5141
        %v5680 = vunpack.c.h.b16 %v5141
        %v5681 = vunpack.c.l.b16 %v5142
        %v5682 = vunpack.c.h.b16 %v5142
        %v5683 = vunpack.c.l.b16 %v5143
        %v5684 = vunpack.c.h.b16 %v5143
        %v5685 = vunpack.c.l.b16 %v5144
        %v5686 = vunpack.c.h.b16 %v5144
        %v5687 = vunpack.c.l.b16 %v5145
        %v5688 = vunpack.c.h.b16 %v5145
        %v5689 = vunpack.c.l.b16 %v5146
        %v5690 = vunpack.c.h.b16 %v5146
        %v5691 = vunpack.c.l.b16 %v5147
        %v5692 = vunpack.c.h.b16 %v5147
        %v5693 = vunpack.c.l.b16 %v5148
        %v5694 = vunpack.c.h.b16 %v5148
        %v5695 = vunpack.c.l.b16 %v5149
        %v5696 = vunpack.c.h.b16 %v5149
        %v5697 = vunpack.c.l.b16 %v5150
        %v5698 = vunpack.c.h.b16 %v5150
        %v5699 = vunpack.c.l.b16 %v5151
        %v5700 = vunpack.c.h.b16 %v5151
        %v5701 = vunpack.c.l.b16 %v5152
        %v5702 = vunpack.c.h.b16 %v5152
        %v5703 = vunpack.c.l.b16 %v5153
        %v5704 = vunpack.c.h.b16 %v5153
        %v5705 = vunpack.c.l.b16 %v5154
        %v5706 = vunpack.c.h.b16 %v5154
        %v5707 = vunpack.c.l.b16 %v5155
        %v5708 = vunpack.c.h.b16 %v5155
        %v5709 = vunpack.c.l.b16 %v5156
        %v5710 = vunpack.c.h.b16 %v5156
        %v5711 = vunpack.c.l.b16 %v5157
        %v5712 = vunpack.c.h.b16 %v5157
        %v5713 = vunpack.c.l.b16 %v5158
        %v5714 = vunpack.c.h.b16 %v5158
        %v5715 = vunpack.c.l.b16 %v5159
        %v5716 = vunpack.c.h.b16 %v5159
        %v5717 = vunpack.c.l.b16 %v5160
        %v5718 = vunpack.c.h.b16 %v5160
        %v5719 = vunpack.c.l.b16 %v5161
        %v5720 = vunpack.c.h.b16 %v5161
        %v5721 = vunpack.c.l.b16 %v5162
        %v5722 = vunpack.c.h.b16 %v5162
        %v5723 = vunpack.c.l.b16 %v5163
        %v5724 = vunpack.c.h.b16 %v5163
        %v5725 = vunpack.c.l.b16 %v5164
        %v5726 = vunpack.c.h.b16 %v5164
        %v5727 = vunpack.c.l.b16 %v5165
        %v5728 = vunpack.c.h.b16 %v5165
        %v5729 = vunpack.c.l.b16 %v5166
        %v5730 = vunpack.c.h.b16 %v5166
        %v5731 = vunpack.c.l.b16 %v5167
        %v5732 = vunpack.c.h.b16 %v5167
        %v5733 = vunpack.c.l.b16 %v5168
        %v5734 = vunpack.c.h.b16 %v5168
        %v5735 = vunpack.c.l.b16 %v5169
        %v5736 = vunpack.c.h.b16 %v5169
        %v5737 = vunpack.c.l.b16 %v5170
        %v5738 = vunpack.c.h.b16 %v5170
        %v5739 = vunpack.c.l.b16 %v5171
        %v5740 = vunpack.c.h.b16 %v5171
        %v5741 = vunpack.c.l.b16 %v5172
        %v5742 = vunpack.c.h.b16 %v5172
        %v5743 = vunpack.c.l.b16 %v5173
        %v5744 = vunpack.c.h.b16 %v5173
        %v5745 = vunpack.c.l.b16 %v5174
        %v5746 = vunpack.c.h.b16 %v5174
        %v5747 = vunpack.c.l.b16 %v5175
        %v5748 = vunpack.c.h.b16 %v5175
        %v5749 = vunpack.c.l.b16 %v5176
        %v5750 = vunpack.c.h.b16 %v5176
        %v5751 = vunpack.c.l.b16 %v5177
        %v5752 = vunpack.c.h.b16 %v5177
        %v5753 = vunpack.c.l.b16 %v5178
        %v5754 = vunpack.c.h.b16 %v5178
        %v5755 = vunpack.c.l.b16 %v5179
        %v5756 = vunpack.c.h.b16 %v5179
        %v5757 = vunpack.c.l.b16 %v5180
        %v5758 = vunpack.c.h.b16 %v5180
        %v5759 = vunpack.c.l.b16 %v5181
        %v5760 = vunpack.c.h.b16 %v5181
        %v5761 = vunpack.c.l.b16 %v5182
        %v5762 = vunpack.c.h.b16 %v5182
        %v5763 = vunpack.c.l.b16 %v5183
        %v5764 = vunpack.c.h.b16 %v5183
        %v5765 = vunpack.c.l.b16 %v5184
        %v5766 = vunpack.c.h.b16 %v5184
        %v5767 = vunpack.c.l.b16 %v5185
        %v5768 = vunpack.c.h.b16 %v5185
        %v5769 = vunpack.c.l.b16 %v5186
        %v5770 = vunpack.c.h.b16 %v5186
        %v5771 = vunpack.c.l.b16 %v5187
        %v5772 = vunpack.c.h.b16 %v5187
        %v5773 = vunpack.c.l.b16 %v5188
        %v5774 = vunpack.c.h.b16 %v5188
        %v5775 = vunpack.c.l.b16 %v5189
        %v5776 = vunpack.c.h.b16 %v5189
        %v5777 = vunpack.c.l.b16 %v5190
        %v5778 = vunpack.c.h.b16 %v5190
        %v5779 = vunpack.c.l.b16 %v5191
        %v5780 = vunpack.c.h.b16 %v5191
        %v5781 = vunpack.c.l.b16 %v5192
        %v5782 = vunpack.c.h.b16 %v5192
        %v5783 = vunpack.c.l.b16 %v5193
        %v5784 = vunpack.c.h.b16 %v5193
        %v5785 = vunpack.c.l.b16 %v5194
        %v5786 = vunpack.c.h.b16 %v5194
        %v5787 = vunpack.c.l.b16 %v5195
        %v5788 = vunpack.c.h.b16 %v5195
        %v5789 = vunpack.c.l.b16 %v5196
        %v5790 = vunpack.c.h.b16 %v5196
        %v5791 = vunpack.c.l.b16 %v5197
        %v5792 = vunpack.c.h.b16 %v5197
        %v5793 = vunpack.c.l.b16 %v5198
        %v5794 = vunpack.c.h.b16 %v5198
        %v5795 = vunpack.c.l.b16 %v5199
        %v5796 = vunpack.c.h.b16 %v5199
        %v5797 = vunpack.c.l.b16 %v5200
        %v5798 = vunpack.c.h.b16 %v5200
        %v5799 = vunpack.c.l.b16 %v5201
        %v5800 = vunpack.c.h.b16 %v5201
        %v5801 = vunpack.c.l.b16 %v5202
        %v5802 = vunpack.c.h.b16 %v5202
        %v5803 = vunpack.c.l.b16 %v5203
        %v5804 = vunpack.c.h.b16 %v5203
        %v5805 = vunpack.c.l.b16 %v5204
        %v5806 = vunpack.c.h.b16 %v5204
        %v5807 = vunpack.c.l.b16 %v5205
        %v5808 = vunpack.c.h.b16 %v5205
        %v5809 = vunpack.c.l.b16 %v5206
        %v5810 = vunpack.c.h.b16 %v5206
        %v5811 = vunpack.c.l.b16 %v5207
        %v5812 = vunpack.c.h.b16 %v5207
        %v5813 = vunpack.c.l.b16 %v5208
        %v5814 = vunpack.c.h.b16 %v5208
        %v5815 = vunpack.c.l.b16 %v5209
        %v5816 = vunpack.c.h.b16 %v5209
        %v5817 = vunpack.c.l.b16 %v5210
        %v5818 = vunpack.c.h.b16 %v5210
        %v5819 = vunpack.c.l.b16 %v5211
        %v5820 = vunpack.c.h.b16 %v5211
        %v5821 = vunpack.c.l.b16 %v5212
        %v5822 = vunpack.c.h.b16 %v5212
        %v5823 = vunpack.c.l.b16 %v5213
        %v5824 = vunpack.c.h.b16 %v5213
        %v5825 = vunpack.c.l.b16 %v5214
        %v5826 = vunpack.c.h.b16 %v5214
        %v5827 = vunpack.c.l.b16 %v5215
        %v5828 = vunpack.c.h.b16 %v5215
        %v5829 = vunpack.c.l.b16 %v5216
        %v5830 = vunpack.c.h.b16 %v5216
        %v5831 = vunpack.c.l.b16 %v5217
        %v5832 = vunpack.c.h.b16 %v5217
        %v5833 = vunpack.c.l.b16 %v5218
        %v5834 = vunpack.c.h.b16 %v5218
        %v5835 = vunpack.c.l.b16 %v5219
        %v5836 = vunpack.c.h.b16 %v5219
        %v5837 = vunpack.c.l.b16 %v5220
        %v5838 = vunpack.c.h.b16 %v5220
        %v5839 = vunpack.c.l.b16 %v5221
        %v5840 = vunpack.c.h.b16 %v5221
        %v5841 = vunpack.c.l.b16 %v5222
        %v5842 = vunpack.c.h.b16 %v5222
        %v5843 = vunpack.c.l.b16 %v5223
        %v5844 = vunpack.c.h.b16 %v5223
        %v5845 = vunpack.c.l.b16 %v5224
        %v5846 = vunpack.c.h.b16 %v5224
        %v5847 = vunpack.c.l.b16 %v5225
        %v5848 = vunpack.c.h.b16 %v5225
        %v5849 = vunpack.c.l.b16 %v5226
        %v5850 = vunpack.c.h.b16 %v5226
        %v5851 = vunpack.c.l.b16 %v5227
        %v5852 = vunpack.c.h.b16 %v5227
        %v5853 = vunpack.c.l.b16 %v5228
        %v5854 = vunpack.c.h.b16 %v5228
        %v5855 = vunpack.c.l.b16 %v5229
        %v5856 = vunpack.c.h.b16 %v5229
        %v5857 = vunpack.c.l.b16 %v5230
        %v5858 = vunpack.c.h.b16 %v5230
        %v5859 = vunpack.c.l.b16 %v5231
        %v5860 = vunpack.c.h.b16 %v5231
        %v5861 = vunpack.c.l.b16 %v5232
        %v5862 = vunpack.c.h.b16 %v5232
        %v5863 = vunpack.c.l.b16 %v5233
        %v5864 = vunpack.c.h.b16 %v5233
        %v5865 = vunpack.c.l.b16 %v5234
        %v5866 = vunpack.c.h.b16 %v5234
        %v5867 = vunpack.c.l.b16 %v5235
        %v5868 = vunpack.c.h.b16 %v5235
        %v5869 = vunpack.c.l.b16 %v5236
        %v5870 = vunpack.c.h.b16 %v5236
        %v5871 = vunpack.c.l.b16 %v5237
        %v5872 = vunpack.c.h.b16 %v5237
        %v5873 = vunpack.c.l.b16 %v5238
        %v5874 = vunpack.c.h.b16 %v5238
        %v5875 = vunpack.c.l.b16 %v5239
        %v5876 = vunpack.c.h.b16 %v5239
        %v5877 = vunpack.c.l.b16 %v5240
        %v5878 = vunpack.c.h.b16 %v5240
        %v5879 = vunpack.c.l.b16 %v5241
        %v5880 = vunpack.c.h.b16 %v5241
        %v5881 = vunpack.c.l.b16 %v5242
        %v5882 = vunpack.c.h.b16 %v5242
        %v5883 = vunpack.c.l.b16 %v5243
        %v5884 = vunpack.c.h.b16 %v5243
        %v5885 = vunpack.c.l.b16 %v5244
        %v5886 = vunpack.c.h.b16 %v5244
        %v5887 = vunpack.c.l.b16 %v5245
        %v5888 = vunpack.c.h.b16 %v5245
        %v5889 = vunpack.c.l.b16 %v5246
        %v5890 = vunpack.c.h.b16 %v5246
        %v5891 = vunpack.c.l.b16 %v5247
        %v5892 = vunpack.c.h.b16 %v5247
        %v5893 = vunpack.c.l.b16 %v5248
        %v5894 = vunpack.c.h.b16 %v5248
        %v5895 = vunpack.c.l.b16 %v5249
        %v5896 = vunpack.c.h.b16 %v5249
        %v5897 = vunpack.c.l.b16 %v5250
        %v5898 = vunpack.c.h.b16 %v5250
        %v5899 = vunpack.c.l.b16 %v5251
        %v5900 = vunpack.c.h.b16 %v5251
        %v5901 = vunpack.c.l.b16 %v5252
        %v5902 = vunpack.c.h.b16 %v5252
        %v5903 = vunpack.c.l.b16 %v5253
        %v5904 = vunpack.c.h.b16 %v5253
        %v5905 = vunpack.c.l.b16 %v5254
        %v5906 = vunpack.c.h.b16 %v5254
        %v5907 = vunpack.c.l.b16 %v5255
        %v5908 = vunpack.c.h.b16 %v5255
        %v5909 = vunpack.c.l.b16 %v5256
        %v5910 = vunpack.c.h.b16 %v5256
        %v5911 = vunpack.c.l.b16 %v5257
        %v5912 = vunpack.c.h.b16 %v5257
        %v5913 = vunpack.c.l.b16 %v5258
        %v5914 = vunpack.c.h.b16 %v5258
        %v5915 = vunpack.c.l.b16 %v5259
        %v5916 = vunpack.c.h.b16 %v5259
        %v5917 = vunpack.c.l.b16 %v5260
        %v5918 = vunpack.c.h.b16 %v5260
        %v5919 = vunpack.c.l.b16 %v5261
        %v5920 = vunpack.c.h.b16 %v5261
        %v5921 = vunpack.c.l.b16 %v5262
        %v5922 = vunpack.c.h.b16 %v5262
        %v5923 = vunpack.c.l.b16 %v5263
        %v5924 = vunpack.c.h.b16 %v5263
        %v5925 = vunpack.c.l.b16 %v5264
        %v5926 = vunpack.c.h.b16 %v5264
        %v5927 = vunpack.c.l.b16 %v5265
        %v5928 = vunpack.c.h.b16 %v5265
        %v5929 = vunpack.c.l.b16 %v5266
        %v5930 = vunpack.c.h.b16 %v5266
        %v5931 = vunpack.c.l.b16 %v5267
        %v5932 = vunpack.c.h.b16 %v5267
        %v5933 = vunpack.c.l.b16 %v5268
        %v5934 = vunpack.c.h.b16 %v5268
        %v5935 = vunpack.c.l.b16 %v5269
        %v5936 = vunpack.c.h.b16 %v5269
        %v5937 = vunpack.c.l.b16 %v5270
        %v5938 = vunpack.c.h.b16 %v5270
        %v5939 = vunpack.c.l.b16 %v5271
        %v5940 = vunpack.c.h.b16 %v5271
        %v5941 = vunpack.c.l.b16 %v5272
        %v5942 = vunpack.c.h.b16 %v5272
        %v5943 = vunpack.c.l.b16 %v5273
        %v5944 = vunpack.c.h.b16 %v5273
        %v5945 = vunpack.c.l.b16 %v5274
        %v5946 = vunpack.c.h.b16 %v5274
        %v5947 = vunpack.c.l.b16 %v5275
        %v5948 = vunpack.c.h.b16 %v5275
        %v5949 = vunpack.c.l.b16 %v5276
        %v5950 = vunpack.c.h.b16 %v5276
        %v5951 = vunpack.c.l.b16 %v5277
        %v5952 = vunpack.c.h.b16 %v5277
        %v5953 = vunpack.c.l.b16 %v5278
        %v5954 = vunpack.c.h.b16 %v5278
        %v5955 = vunpack.c.l.b16 %v5279
        %v5956 = vunpack.c.h.b16 %v5279
        %v5957 = vunpack.c.l.b16 %v5280
        %v5958 = vunpack.c.h.b16 %v5280
        %v5959 = vunpack.c.l.b16 %v5281
        %v5960 = vunpack.c.h.b16 %v5281
        %v5961 = vunpack.c.l.b16 %v5282
        %v5962 = vunpack.c.h.b16 %v5282
        %v5963 = vunpack.c.l.b16 %v5283
        %v5964 = vunpack.c.h.b16 %v5283
        %v5965 = vunpack.c.l.b16 %v5284
        %v5966 = vunpack.c.h.b16 %v5284
        %v5967 = vunpack.c.l.b16 %v5285
        %v5968 = vunpack.c.h.b16 %v5285
        %v5969 = vunpack.c.l.b16 %v5286
        %v5970 = vunpack.c.h.b16 %v5286
        %v5971 = vunpack.c.l.b16 %v5287
        %v5972 = vunpack.c.h.b16 %v5287
        %v5973 = vunpack.c.l.b16 %v5288
        %v5974 = vunpack.c.h.b16 %v5288
        %v5975 = vunpack.c.l.b16 %v5289
        %v5976 = vunpack.c.h.b16 %v5289
        %v5977 = vunpack.c.l.b16 %v5290
        %v5978 = vunpack.c.h.b16 %v5290
        %v5979 = vunpack.c.l.b16 %v5291
        %v5980 = vunpack.c.h.b16 %v5291
        %v5981 = vunpack.c.l.b16 %v5292
        %v5982 = vunpack.c.h.b16 %v5292
        %v5983 = vunpack.c.l.b16 %v5293
        %v5984 = vunpack.c.h.b16 %v5293
        %v5985 = vunpack.c.l.b16 %v5294
        %v5986 = vunpack.c.h.b16 %v5294
        %v5987 = vunpack.c.l.b16 %v5295
        %v5988 = vunpack.c.h.b16 %v5295
        %v5989 = vunpack.c.l.b16 %v5296
        %v5990 = vunpack.c.h.b16 %v5296
        %v5991 = vunpack.c.l.b16 %v5297
        %v5992 = vunpack.c.h.b16 %v5297
        %v5993 = vunpack.c.l.b16 %v5298
        %v5994 = vunpack.c.h.b16 %v5298
        %v5995 = vunpack.c.l.b16 %v5299
        %v5996 = vunpack.c.h.b16 %v5299
        %v5997 = vunpack.c.l.b16 %v5300
        %v5998 = vunpack.c.h.b16 %v5300
        %v5999 = vunpack.c.l.b16 %v5301
        %v6000 = vunpack.c.h.b16 %v5301
        %v6001 = vunpack.c.l.b16 %v5302
        %v6002 = vunpack.c.h.b16 %v5302
        %v6003 = vunpack.c.l.b16 %v5303
        %v6004 = vunpack.c.h.b16 %v5303
        %v6005 = vunpack.c.l.b16 %v5304
        %v6006 = vunpack.c.h.b16 %v5304
        %v6007 = vunpack.c.l.b16 %v5305
        %v6008 = vunpack.c.h.b16 %v5305
        %v6009 = vunpack.c.l.b16 %v5306
        %v6010 = vunpack.c.h.b16 %v5306
        %v6011 = vunpack.c.l.b16 %v5307
        %v6012 = vunpack.c.h.b16 %v5307
        %v6013 = vunpack.c.l.b16 %v5308
        %v6014 = vunpack.c.h.b16 %v5308
        %v6015 = vunpack.c.l.b16 %v5309
        %v6016 = vunpack.c.h.b16 %v5309
        %v6017 = vunpack.c.l.b16 %v5310
        %v6018 = vunpack.c.h.b16 %v5310
        %v6019 = vunpack.c.l.b16 %v5311
        %v6020 = vunpack.c.h.b16 %v5311
        %v6021 = vunpack.c.l.b16 %v5312
        %v6022 = vunpack.c.h.b16 %v5312
        %v6023 = vunpack.c.l.b16 %v5313
        %v6024 = vunpack.c.h.b16 %v5313
        %v6025 = vunpack.c.l.b16 %v5314
        %v6026 = vunpack.c.h.b16 %v5314
        %v6027 = vunpack.c.l.b16 %v5315
        %v6028 = vunpack.c.h.b16 %v5315
        %v6029 = vunpack.c.l.b16 %v5316
        %v6030 = vunpack.c.h.b16 %v5316
        %v6031 = vunpack.c.l.b16 %v5317
        %v6032 = vunpack.c.h.b16 %v5317
        %v6033 = vunpack.c.l.b16 %v5318
        %v6034 = vunpack.c.h.b16 %v5318
        %v6035 = vunpack.c.l.b16 %v5319
        %v6036 = vunpack.c.h.b16 %v5319
        %v6037 = vunpack.c.l.b16 %v5320
        %v6038 = vunpack.c.h.b16 %v5320
        %v6039 = vunpack.c.l.b16 %v5321
        %v6040 = vunpack.c.h.b16 %v5321
        %v6041 = vunpack.c.l.b16 %v5322
        %v6042 = vunpack.c.h.b16 %v5322
        %v6043 = vunpack.c.l.b16 %v5323
        %v6044 = vunpack.c.h.b16 %v5323
        %v6045 = vunpack.c.l.b16 %v5324
        %v6046 = vunpack.c.h.b16 %v5324
        %v6047 = vunpack.c.l.b16 %v5325
        %v6048 = vunpack.c.h.b16 %v5325
        %v6049 = vunpack.c.l.b16 %v5326
        %v6050 = vunpack.c.h.b16 %v5326
        %v6051 = vunpack.c.l.b16 %v5327
        %v6052 = vunpack.c.h.b16 %v5327
        %v6053 = vunpack.c.l.b16 %v5328
        %v6054 = vunpack.c.h.b16 %v5328
        %v6055 = vunpack.c.l.b16 %v5329
        %v6056 = vunpack.c.h.b16 %v5329
        %v6057 = vunpack.c.l.b16 %v5330
        %v6058 = vunpack.c.h.b16 %v5330
        %v6059 = vunpack.c.l.b16 %v5331
        %v6060 = vunpack.c.h.b16 %v5331
        %v6061 = vunpack.c.l.b16 %v5332
        %v6062 = vunpack.c.h.b16 %v5332
        %v6063 = vunpack.c.l.b16 %v5333
        %v6064 = vunpack.c.h.b16 %v5333
        %v6065 = vunpack.c.l.b16 %v5334
        %v6066 = vunpack.c.h.b16 %v5334
        %v6067 = vunpack.c.l.b16 %v5335
        %v6068 = vunpack.c.h.b16 %v5335
        %v6069 = vunpack.c.l.b16 %v5336
        %v6070 = vunpack.c.h.b16 %v5336
        %v6071 = vunpack.c.l.b16 %v5337
        %v6072 = vunpack.c.h.b16 %v5337
        %v6073 = vunpack.c.l.b16 %v5338
        %v6074 = vunpack.c.h.b16 %v5338
        %v6075 = vunpack.c.l.b16 %v5339
        %v6076 = vunpack.c.h.b16 %v5339
        %v6077 = vunpack.c.l.b16 %v5340
        %v6078 = vunpack.c.h.b16 %v5340
        %v6079 = vunpack.c.l.b16 %v5341
        %v6080 = vunpack.c.h.b16 %v5341
        %v6081 = vunpack.c.l.b16 %v5342
        %v6082 = vunpack.c.h.b16 %v5342
        %v6083 = vunpack.c.l.b16 %v5343
        %v6084 = vunpack.c.h.b16 %v5343
        %v6085 = vunpack.c.l.b16 %v5344
        %v6086 = vunpack.c.h.b16 %v5344
        %v6087 = vunpack.c.l.b16 %v5345
        %v6088 = vunpack.c.h.b16 %v5345
        %v6089 = vunpack.c.l.b16 %v5346
        %v6090 = vunpack.c.h.b16 %v5346
        %v6091 = vunpack.c.l.b16 %v5347
        %v6092 = vunpack.c.h.b16 %v5347
        %v6093 = vunpack.c.l.b16 %v5348
        %v6094 = vunpack.c.h.b16 %v5348
        %v6095 = vunpack.c.l.b16 %v5349
        %v6096 = vunpack.c.h.b16 %v5349
        %v6097 = vunpack.c.l.b16 %v5350
        %v6098 = vunpack.c.h.b16 %v5350
        %v6099 = vunpack.c.l.b16 %v5351
        %v6100 = vunpack.c.h.b16 %v5351
        %v6101 = vunpack.c.l.b16 %v5352
        %v6102 = vunpack.c.h.b16 %v5352
        %v6103 = vunpack.c.l.b16 %v5353
        %v6104 = vunpack.c.h.b16 %v5353
        %v6105 = vunpack.c.l.b16 %v5354
        %v6106 = vunpack.c.h.b16 %v5354
        %v6107 = vunpack.c.l.b16 %v5355
        %v6108 = vunpack.c.h.b16 %v5355
        %v6109 = vunpack.c.l.b16 %v5356
        %v6110 = vunpack.c.h.b16 %v5356
        %v6111 = vunpack.c.l.b16 %v5357
        %v6112 = vunpack.c.h.b16 %v5357
        %v6113 = vunpack.c.l.b16 %v5358
        %v6114 = vunpack.c.h.b16 %v5358
        %v6115 = vunpack.c.l.b16 %v5359
        %v6116 = vunpack.c.h.b16 %v5359
        %v6117 = vunpack.c.l.b16 %v5360
        %v6118 = vunpack.c.h.b16 %v5360
        %v6119 = vunpack.c.l.b16 %v5361
        %v6120 = vunpack.c.h.b16 %v5361
        %v6121 = vunpack.c.l.b16 %v5362
        %v6122 = vunpack.c.h.b16 %v5362
        %v6123 = vunpack.c.l.b16 %v5363
        %v6124 = vunpack.c.h.b16 %v5363
        %v6125 = vunpack.c.l.b16 %v5364
        %v6126 = vunpack.c.h.b16 %v5364
        %v6127 = vunpack.c.l.b16 %v5365
        %v6128 = vunpack.c.h.b16 %v5365
        %v6129 = vunpack.c.l.b16 %v5366
        %v6130 = vunpack.c.h.b16 %v5366
        %v6131 = vunpack.c.l.b16 %v5367
        %v6132 = vunpack.c.h.b16 %v5367
        %v6133 = vunpack.c.l.b16 %v5368
        %v6134 = vunpack.c.h.b16 %v5368
        %v6135 = vunpack.c.l.b16 %v5369
        %v6136 = vunpack.c.h.b16 %v5369
        %v6137 = vunpack.c.l.b16 %v5370
        %v6138 = vunpack.c.h.b16 %v5370
        %v6139 = vunpack.c.l.b16 %v5371
        %v6140 = vunpack.c.h.b16 %v5371
        %v6141 = vunpack.c.l.b16 %v5372
        %v6142 = vunpack.c.h.b16 %v5372
        %v6143 = vunpack.c.l.b16 %v5373
        %v6144 = vunpack.c.h.b16 %v5373
        %v6145 = vunpack.c.l.b16 %v5374
        %v6146 = vunpack.c.h.b16 %v5374
        %v6147 = vunpack.c.l.b16 %v5375
        %v6148 = vunpack.c.h.b16 %v5375
        %v6149 = vunpack.c.l.b16 %v5376
        %v6150 = vunpack.c.h.b16 %v5376
        %v6151 = vunpack.c.l.b16 %v5377
        %v6152 = vunpack.c.h.b16 %v5377
        %v6153 = vunpack.c.l.b16 %v5378
        %v6154 = vunpack.c.h.b16 %v5378
        %v6155 = vunpack.c.l.b16 %v5379
        %v6156 = vunpack.c.h.b16 %v5379
        %v6157 = vunpack.c.l.b16 %v5380
        %v6158 = vunpack.c.h.b16 %v5380
        %v6159 = vunpack.c.l.b16 %v5381
        %v6160 = vunpack.c.h.b16 %v5381
        %v6161 = vunpack.c.l.b16 %v5382
        %v6162 = vunpack.c.h.b16 %v5382
        %v6163 = vunpack.c.l.b16 %v5383
        %v6164 = vunpack.c.h.b16 %v5383
        %v6165 = vunpack.c.l.b16 %v5384
        %v6166 = vunpack.c.h.b16 %v5384
        %v6167 = vunpack.c.l.b16 %v5385
        %v6168 = vunpack.c.h.b16 %v5385
        %v6169 = vunpack.c.l.b16 %v5386
        %v6170 = vunpack.c.h.b16 %v5386
        %v6171 = vunpack.c.l.b16 %v5387
        %v6172 = vunpack.c.h.b16 %v5387
        %v6173 = vunpack.c.l.b16 %v5388
        %v6174 = vunpack.c.h.b16 %v5388
        %v6175 = vunpack.c.l.b16 %v5389
        %v6176 = vunpack.c.h.b16 %v5389
        %v6177 = vunpack.c.l.b16 %v5390
        %v6178 = vunpack.c.h.b16 %v5390
        %v6179 = vunpack.c.l.b16 %v5391
        %v6180 = vunpack.c.h.b16 %v5391
        %v6181 = vunpack.c.l.b16 %v5392
        %v6182 = vunpack.c.h.b16 %v5392
        %v6183 = vpack.c.b16 %v5675, %v5671
        %v6184 = vpack.c.b16 %v5676, %v5672
        %v6185 = vpack.c.b16 %v5677, %v5673
        %v6186 = vpack.c.b16 %v5678, %v5674
        %v6187 = vpack.c.b16 %v5683, %v5679
        %v6188 = vpack.c.b16 %v5684, %v5680
        %v6189 = vpack.c.b16 %v5685, %v5681
        %v6190 = vpack.c.b16 %v5686, %v5682
        %v6191 = vpack.c.b16 %v5691, %v5687
        %v6192 = vpack.c.b16 %v5692, %v5688
        %v6193 = vpack.c.b16 %v5693, %v5689
        %v6194 = vpack.c.b16 %v5694, %v5690
        %v6195 = vpack.c.b16 %v5699, %v5695
        %v6196 = vpack.c.b16 %v5700, %v5696
        %v6197 = vpack.c.b16 %v5701, %v5697
        %v6198 = vpack.c.b16 %v5702, %v5698
        %v6199 = vpack.c.b16 %v5707, %v5703
        %v6200 = vpack.c.b16 %v5708, %v5704
        %v6201 = vpack.c.b16 %v5709, %v5705
        %v6202 = vpack.c.b16 %v5710, %v5706
        %v6203 = vpack.c.b16 %v5715, %v5711
        %v6204 = vpack.c.b16 %v5716, %v5712
        %v6205 = vpack.c.b16 %v5717, %v5713
        %v6206 = vpack.c.b16 %v5718, %v5714
        %v6207 = vpack.c.b16 %v5723, %v5719
        %v6208 = vpack.c.b16 %v5724, %v5720
        %v6209 = vpack.c.b16 %v5725, %v5721
        %v6210 = vpack.c.b16 %v5726, %v5722
        %v6211 = vpack.c.b16 %v5731, %v5727
        %v6212 = vpack.c.b16 %v5732, %v5728
        %v6213 = vpack.c.b16 %v5733, %v5729
        %v6214 = vpack.c.b16 %v5734, %v5730
        %v6215 = vpack.c.b16 %v5739, %v5735
        %v6216 = vpack.c.b16 %v5740, %v5736
        %v6217 = vpack.c.b16 %v5741, %v5737
        %v6218 = vpack.c.b16 %v5742, %v5738
        %v6219 = vpack.c.b16 %v5747, %v5743
        %v6220 = vpack.c.b16 %v5748, %v5744
        %v6221 = vpack.c.b16 %v5749, %v5745
        %v6222 = vpack.c.b16 %v5750, %v5746
        %v6223 = vpack.c.b16 %v5755, %v5751
        %v6224 = vpack.c.b16 %v5756, %v5752
        %v6225 = vpack.c.b16 %v5757, %v5753
        %v6226 = vpack.c.b16 %v5758, %v5754
        %v6227 = vpack.c.b16 %v5763, %v5759
        %v6228 = vpack.c.b16 %v5764, %v5760
        %v6229 = vpack.c.b16 %v5765, %v5761
        %v6230 = vpack.c.b16 %v5766, %v5762
        %v6231 = vpack.c.b16 %v5771, %v5767
        %v6232 = vpack.c.b16 %v5772, %v5768
        %v6233 = vpack.c.b16 %v5773, %v5769
        %v6234 = vpack.c.b16 %v5774, %v5770
        %v6235 = vpack.c.b16 %v5779, %v5775
        %v6236 = vpack.c.b16 %v5780, %v5776
        %v6237 = vpack.c.b16 %v5781, %v5777
        %v6238 = vpack.c.b16 %v5782, %v5778
        %v6239 = vpack.c.b16 %v5787, %v5783
        %v6240 = vpack.c.b16 %v5788, %v5784
        %v6241 = vpack.c.b16 %v5789, %v5785
        %v6242 = vpack.c.b16 %v5790, %v5786
        %v6243 = vpack.c.b16 %v5795, %v5791
        %v6244 = vpack.c.b16 %v5796, %v5792
        %v6245 = vpack.c.b16 %v5797, %v5793
        %v6246 = vpack.c.b16 %v5798, %v5794
        %v6247 = vpack.c.b16 %v5803, %v5799
        %v6248 = vpack.c.b16 %v5804, %v5800
        %v6249 = vpack.c.b16 %v5805, %v5801
        %v6250 = vpack.c.b16 %v5806, %v5802
        %v6251 = vpack.c.b16 %v5811, %v5807
        %v6252 = vpack.c.b16 %v5812, %v5808
        %v6253 = vpack.c.b16 %v5813, %v5809
        %v6254 = vpack.c.b16 %v5814, %v5810
        %v6255 = vpack.c.b16 %v5819, %v5815
        %v6256 = vpack.c.b16 %v5820, %v5816
        %v6257 = vpack.c.b16 %v5821, %v5817
        %v6258 = vpack.c.b16 %v5822, %v5818
        %v6259 = vpack.c.b16 %v5827, %v5823
        %v6260 = vpack.c.b16 %v5828, %v5824
        %v6261 = vpack.c.b16 %v5829, %v5825
        %v6262 = vpack.c.b16 %v5830, %v5826
        %v6263 = vpack.c.b16 %v5835, %v5831
        %v6264 = vpack.c.b16 %v5836, %v5832
        %v6265 = vpack.c.b16 %v5837, %v5833
        %v6266 = vpack.c.b16 %v5838, %v5834
        %v6267 = vpack.c.b16 %v5843, %v5839
        %v6268 = vpack.c.b16 %v5844, %v5840
        %v6269 = vpack.c.b16 %v5845, %v5841
        %v6270 = vpack.c.b16 %v5846, %v5842
        %v6271 = vpack.c.b16 %v5851, %v5847
        %v6272 = vpack.c.b16 %v5852, %v5848
        %v6273 = vpack.c.b16 %v5853, %v5849
        %v6274 = vpack.c.b16 %v5854, %v5850
        %v6275 = vpack.c.b16 %v5859, %v5855
        %v6276 = vpack.c.b16 %v5860, %v5856
        %v6277 = vpack.c.b16 %v5861, %v5857
        %v6278 = vpack.c.b16 %v5862, %v5858
        %v6279 = vpack.c.b16 %v5867, %v5863
        %v6280 = vpack.c.b16 %v5868, %v5864
        %v6281 = vpack.c.b16 %v5869, %v5865
        %v6282 = vpack.c.b16 %v5870, %v5866
        %v6283 = vpack.c.b16 %v5875, %v5871
        %v6284 = vpack.c.b16 %v5876, %v5872
        %v6285 = vpack.c.b16 %v5877, %v5873
        %v6286 = vpack.c.b16 %v5878, %v5874
        %v6287 = vpack.c.b16 %v5883, %v5879
        %v6288 = vpack.c.b16 %v5884, %v5880
        %v6289 = vpack.c.b16 %v5885, %v5881
        %v6290 = vpack.c.b16 %v5886, %v5882
        %v6291 = vpack.c.b16 %v5891, %v5887
        %v6292 = vpack.c.b16 %v5892, %v5888
        %v6293 = vpack.c.b16 %v5893, %v5889
        %v6294 = vpack.c.b16 %v5894, %v5890
        %v6295 = vpack.c.b16 %v5899, %v5895
        %v6296 = vpack.c.b16 %v5900, %v5896
        %v6297 = vpack.c.b16 %v5901, %v5897
        %v6298 = vpack.c.b16 %v5902, %v5898
        %v6299 = vpack.c.b16 %v5907, %v5903
        %v6300 = vpack.c.b16 %v5908, %v5904
        %v6301 = vpack.c.b16 %v5909, %v5905
        %v6302 = vpack.c.b16 %v5910, %v5906
        %v6303 = vpack.c.b16 %v5915, %v5911
        %v6304 = vpack.c.b16 %v5916, %v5912
        %v6305 = vpack.c.b16 %v5917, %v5913
        %v6306 = vpack.c.b16 %v5918, %v5914
        %v6307 = vpack.c.b16 %v5923, %v5919
        %v6308 = vpack.c.b16 %v5924, %v5920
        %v6309 = vpack.c.b16 %v5925, %v5921
        %v6310 = vpack.c.b16 %v5926, %v5922
        %v6311 = vpack.c.b16 %v5931, %v5927
        %v6312 = vpack.c.b16 %v5932, %v5928
        %v6313 = vpack.c.b16 %v5933, %v5929
        %v6314 = vpack.c.b16 %v5934, %v5930
        %v6315 = vpack.c.b16 %v5939, %v5935
        %v6316 = vpack.c.b16 %v5940, %v5936
        %v6317 = vpack.c.b16 %v5941, %v5937
        %v6318 = vpack.c.b16 %v5942, %v5938
        %v6319 = vpack.c.b16 %v5947, %v5943
        %v6320 = vpack.c.b16 %v5948, %v5944
        %v6321 = vpack.c.b16 %v5949, %v5945
        %v6322 = vpack.c.b16 %v5950, %v5946
        %v6323 = vpack.c.b16 %v5955, %v5951
        %v6324 = vpack.c.b16 %v5956, %v5952
        %v6325 = vpack.c.b16 %v5957, %v5953
        %v6326 = vpack.c.b16 %v5958, %v5954
        %v6327 = vpack.c.b16 %v5963, %v5959
        %v6328 = vpack.c.b16 %v5964, %v5960
        %v6329 = vpack.c.b16 %v5965, %v5961
        %v6330 = vpack.c.b16 %v5966, %v5962
        %v6331 = vpack.c.b16 %v5971, %v5967
        %v6332 = vpack.c.b16 %v5972, %v5968
        %v6333 = vpack.c.b16 %v5973, %v5969
        %v6334 = vpack.c.b16 %v5974, %v5970
        %v6335 = vpack.c.b16 %v5979, %v5975
        %v6336 = vpack.c.b16 %v5980, %v5976
        %v6337 = vpack.c.b16 %v5981, %v5977
        %v6338 = vpack.c.b16 %v5982, %v5978
        %v6339 = vpack.c.b16 %v5987, %v5983
        %v6340 = vpack.c.b16 %v5988, %v5984
        %v6341 = vpack.c.b16 %v5989, %v5985
        %v6342 = vpack.c.b16 %v5990, %v5986
        %v6343 = vpack.c.b16 %v5995, %v5991
        %v6344 = vpack.c.b16 %v5996, %v5992
        %v6345 = vpack.c.b16 %v5997, %v5993
        %v6346 = vpack.c.b16 %v5998, %v5994
        %v6347 = vpack.c.b16 %v6003, %v5999
        %v6348 = vpack.c.b16 %v6004, %v6000
        %v6349 = vpack.c.b16 %v6005, %v6001
        %v6350 = vpack.c.b16 %v6006, %v6002
        %v6351 = vpack.c.b16 %v6011, %v6007
        %v6352 = vpack.c.b16 %v6012, %v6008
        %v6353 = vpack.c.b16 %v6013, %v6009
        %v6354 = vpack.c.b16 %v6014, %v6010
        %v6355 = vpack.c.b16 %v6019, %v6015
        %v6356 = vpack.c.b16 %v6020, %v6016
        %v6357 = vpack.c.b16 %v6021, %v6017
        %v6358 = vpack.c.b16 %v6022, %v6018
        %v6359 = vpack.c.b16 %v6027, %v6023
        %v6360 = vpack.c.b16 %v6028, %v6024
        %v6361 = vpack.c.b16 %v6029, %v6025
        %v6362 = vpack.c.b16 %v6030, %v6026
        %v6363 = vpack.c.b16 %v6035, %v6031
        %v6364 = vpack.c.b16 %v6036, %v6032
        %v6365 = vpack.c.b16 %v6037, %v6033
        %v6366 = vpack.c.b16 %v6038, %v6034
        %v6367 = vpack.c.b16 %v6043, %v6039
        %v6368 = vpack.c.b16 %v6044, %v6040
        %v6369 = vpack.c.b16 %v6045, %v6041
        %v6370 = vpack.c.b16 %v6046, %v6042
        %v6371 = vpack.c.b16 %v6051, %v6047
        %v6372 = vpack.c.b16 %v6052, %v6048
        %v6373 = vpack.c.b16 %v6053, %v6049
        %v6374 = vpack.c.b16 %v6054, %v6050
        %v6375 = vpack.c.b16 %v6059, %v6055
        %v6376 = vpack.c.b16 %v6060, %v6056
        %v6377 = vpack.c.b16 %v6061, %v6057
        %v6378 = vpack.c.b16 %v6062, %v6058
        %v6379 = vpack.c.b16 %v6067, %v6063
        %v6380 = vpack.c.b16 %v6068, %v6064
        %v6381 = vpack.c.b16 %v6069, %v6065
        %v6382 = vpack.c.b16 %v6070, %v6066
        %v6383 = vpack.c.b16 %v6075, %v6071
        %v6384 = vpack.c.b16 %v6076, %v6072
        %v6385 = vpack.c.b16 %v6077, %v6073
        %v6386 = vpack.c.b16 %v6078, %v6074
        %v6387 = vpack.c.b16 %v6083, %v6079
        %v6388 = vpack.c.b16 %v6084, %v6080
        %v6389 = vpack.c.b16 %v6085, %v6081
        %v6390 = vpack.c.b16 %v6086, %v6082
        %v6391 = vpack.c.b16 %v6091, %v6087
        %v6392 = vpack.c.b16 %v6092, %v6088
        %v6393 = vpack.c.b16 %v6093, %v6089
        %v6394 = vpack.c.b16 %v6094, %v6090
        %v6395 = vpack.c.b16 %v6099, %v6095
        %v6396 = vpack.c.b16 %v6100, %v6096
        %v6397 = vpack.c.b16 %v6101, %v6097
        %v6398 = vpack.c.b16 %v6102, %v6098
        %v6399 = vpack.c.b16 %v6107, %v6103
        %v6400 = vpack.c.b16 %v6108, %v6104
        %v6401 = vpack.c.b16 %v6109, %v6105
        %v6402 = vpack.c.b16 %v6110, %v6106
        %v6403 = vpack.c.b16 %v6115, %v6111
        %v6404 = vpack.c.b16 %v6116, %v6112
        %v6405 = vpack.c.b16 %v6117, %v6113
        %v6406 = vpack.c.b16 %v6118, %v6114
        %v6407 = vpack.c.b16 %v6123, %v6119
        %v6408 = vpack.c.b16 %v6124, %v6120
        %v6409 = vpack.c.b16 %v6125, %v6121
        %v6410 = vpack.c.b16 %v6126, %v6122
        %v6411 = vpack.c.b16 %v6131, %v6127
        %v6412 = vpack.c.b16 %v6132, %v6128
        %v6413 = vpack.c.b16 %v6133, %v6129
        %v6414 = vpack.c.b16 %v6134, %v6130
        %v6415 = vpack.c.b16 %v6139, %v6135
        %v6416 = vpack.c.b16 %v6140, %v6136
        %v6417 = vpack.c.b16 %v6141, %v6137
        %v6418 = vpack.c.b16 %v6142, %v6138
        %v6419 = vpack.c.b16 %v6147, %v6143
        %v6420 = vpack.c.b16 %v6148, %v6144
        %v6421 = vpack.c.b16 %v6149, %v6145
        %v6422 = vpack.c.b16 %v6150, %v6146
        %v6423 = vpack.c.b16 %v6155, %v6151
        %v6424 = vpack.c.b16 %v6156, %v6152
        %v6425 = vpack.c.b16 %v6157, %v6153
        %v6426 = vpack.c.b16 %v6158, %v6154
        %v6427 = vpack.c.b16 %v6163, %v6159
        %v6428 = vpack.c.b16 %v6164, %v6160
        %v6429 = vpack.c.b16 %v6165, %v6161
        %v6430 = vpack.c.b16 %v6166, %v6162
        %v6431 = vpack.c.b16 %v6171, %v6167
        %v6432 = vpack.c.b16 %v6172, %v6168
        %v6433 = vpack.c.b16 %v6173, %v6169
        %v6434 = vpack.c.b16 %v6174, %v6170
        %v6435 = vpack.c.b16 %v6179, %v6175
        %v6436 = vpack.c.b16 %v6180, %v6176
        %v6437 = vpack.c.b16 %v6181, %v6177
        %v6438 = vpack.c.b16 %v6182, %v6178
        %6695 = vmatprep.subr.bf16.mxu0 %v6184
        %6696 = vmatpush1.bf16.msra.mxu0 %v6183
        %6697 = vmatprep.subr.bf16.mxu0 %v6188
        %6698 = vmatpush1.bf16.msra.mxu0 %v6187
        %6699 = vmatprep.subr.bf16.mxu0 %v6192
        %6700 = vmatpush1.bf16.msra.mxu0 %v6191
        %6701 = vmatprep.subr.bf16.mxu0 %v6196
        %6702 = vmatpush1.bf16.msra.mxu0 %v6195
        %6703 = vmatprep.subr.bf16.mxu0 %v6200
        %6704 = vmatpush1.bf16.msra.mxu0 %v6199
        %6705 = vmatprep.subr.bf16.mxu0 %v6204
        %6706 = vmatpush1.bf16.msra.mxu0 %v6203
        %6707 = vmatprep.subr.bf16.mxu0 %v6208
        %6708 = vmatpush1.bf16.msra.mxu0 %v6207
        %6709 = vmatprep.subr.bf16.mxu0 %v6212
        %6710 = vmatpush1.bf16.msra.mxu0 %v6211
        %6711 = vmatprep.subr.bf16.mxu0 %v6216
        %6712 = vmatpush1.bf16.msra.mxu0 %v6215
        %6713 = vmatprep.subr.bf16.mxu0 %v6220
        %6714 = vmatpush1.bf16.msra.mxu0 %v6219
        %6715 = vmatprep.subr.bf16.mxu0 %v6224
        %6716 = vmatpush1.bf16.msra.mxu0 %v6223
        %6717 = vmatprep.subr.bf16.mxu0 %v6228
        %6718 = vmatpush1.bf16.msra.mxu0 %v6227
        %6719 = vmatprep.subr.bf16.mxu0 %v6232
        %6720 = vmatpush1.bf16.msra.mxu0 %v6231
        %6721 = vmatprep.subr.bf16.mxu0 %v6236
        %6722 = vmatpush1.bf16.msra.mxu0 %v6235
        %6723 = vmatprep.subr.bf16.mxu0 %v6240
        %6724 = vmatpush1.bf16.msra.mxu0 %v6239
        %6725 = vmatprep.subr.bf16.mxu0 %v6244
        %6726 = vmatpush1.bf16.msra.mxu0 %v6243
        %6727 = vmatprep.mubr.bf16.mxu0 %v5010
        %6728 = vmatmul.mubr.bf16.gmra.mrb[0].mxu0 %v5009
        %v6729 = vpop.f32.mrb[0].mxu0
        %v6730 = vadd.f32 %v5398, %v6729
        %v6731 = vpop.f32.mrb[0].mxu0
        %v6732 = vadd.f32 %v5402, %v6731
        %v6733 = vpop.f32.mrb[0].mxu0
        %v6734 = vadd.f32 %v5398, %v6733
        %v6735 = vpop.f32.mrb[0].mxu0
        %v6736 = vadd.f32 %v5402, %v6735
        %6737 = vmatprep.mubr.bf16.mxu0 %v5018
        %6738 = vmatmul.mubr.bf16.gmra.mrb[0].mxu0 %v5017
        %v6739 = vpop.f32.mrb[0].mxu0
        %v6740 = vadd.f32 %v5398, %v6739
        %v6741 = vpop.f32.mrb[0].mxu0
        %v6742 = vadd.f32 %v5402, %v6741
        %v6743 = vpop.f32.mrb[0].mxu0
        %v6744 = vadd.f32 %v5398, %v6743
        %v6745 = vpop.f32.mrb[0].mxu0
        %v6746 = vadd.f32 %v5402, %v6745
        %6747 = vmatprep.mubr.bf16.mxu0 %v5026
        %6748 = vmatmul.mubr.bf16.gmra.mrb[0].mxu0 %v5025
        %v6749 = vpop.f32.mrb[0].mxu0
        %v6750 = vadd.f32 %v5398, %v6749
        %v6751 = vpop.f32.mrb[0].mxu0
        %v6752 = vadd.f32 %v5402, %v6751
        %v6753 = vpop.f32.mrb[0].mxu0
        %v6754 = vadd.f32 %v5398, %v6753
        %v6755 = vpop.f32.mrb[0].mxu0
        %v6756 = vadd.f32 %v5402, %v6755
        %6757 = vmatprep.mubr.bf16.mxu0 %v5034
        %6758 = vmatmul.mubr.bf16.gmra.mrb[0].mxu0 %v5033
        %v6759 = vpop.f32.mrb[0].mxu0
        %v6760 = vadd.f32 %v5398, %v6759
        %v6761 = vpop.f32.mrb[0].mxu0
        %v6762 = vadd.f32 %v5402, %v6761
        %v6763 = vpop.f32.mrb[0].mxu0
        %v6764 = vadd.f32 %v5398, %v6763
        %v6765 = vpop.f32.mrb[0].mxu0
        %v6766 = vadd.f32 %v5402, %v6765
        %6767 = vmatprep.mubr.bf16.mxu0 %v5042
        %6768 = vmatmul.mubr.bf16.gmra.mrb[0].mxu0 %v5041
        %v6769 = vpop.f32.mrb[0].mxu0
        %v6770 = vadd.f32 %v5398, %v6769
        %v6771 = vpop.f32.mrb[0].mxu0
        %v6772 = vadd.f32 %v5402, %v6771
        %v6773 = vpop.f32.mrb[0].mxu0
        %v6774 = vadd.f32 %v5398, %v6773
        %v6775 = vpop.f32.mrb[0].mxu0
        %v6776 = vadd.f32 %v5402, %v6775
        %6777 = vmatprep.mubr.bf16.mxu0 %v5050
        %6778 = vmatmul.mubr.bf16.gmra.mrb[0].mxu0 %v5049
        %v6779 = vpop.f32.mrb[0].mxu0
        %v6780 = vadd.f32 %v5398, %v6779
        %v6781 = vpop.f32.mrb[0].mxu0
        %v6782 = vadd.f32 %v5402, %v6781
        %v6783 = vpop.f32.mrb[0].mxu0
        %v6784 = vadd.f32 %v5398, %v6783
        %v6785 = vpop.f32.mrb[0].mxu0
        %v6786 = vadd.f32 %v5402, %v6785
        %6787 = vmatprep.mubr.bf16.mxu0 %v5058
        %6788 = vmatmul.mubr.bf16.gmra.mrb[0].mxu0 %v5057
        %v6789 = vpop.f32.mrb[0].mxu0
        %v6790 = vadd.f32 %v5398, %v6789
        %v6791 = vpop.f32.mrb[0].mxu0
        %v6792 = vadd.f32 %v5402, %v6791
        %v6793 = vpop.f32.mrb[0].mxu0
        %v6794 = vadd.f32 %v5398, %v6793
        %v6795 = vpop.f32.mrb[0].mxu0
        %v6796 = vadd.f32 %v5402, %v6795
        %6797 = vmatprep.mubr.bf16.mxu0 %v5066
        %6798 = vmatmul.mubr.bf16.gmra.mrb[0].mxu0 %v5065
        %v6799 = vpop.f32.mrb[0].mxu0
        %v6800 = vadd.f32 %v5398, %v6799
        %v6801 = vpop.f32.mrb[0].mxu0
        %v6802 = vadd.f32 %v5402, %v6801
        %v6803 = vpop.f32.mrb[0].mxu0
        %v6804 = vadd.f32 %v5398, %v6803
        %v6805 = vpop.f32.mrb[0].mxu0
        %v6806 = vadd.f32 %v5402, %v6805
        %6807 = vmatprep.mubr.bf16.mxu0 %v5074
        %6808 = vmatmul.mubr.bf16.gmra.mrb[0].mxu0 %v5073
        %v6809 = vpop.f32.mrb[0].mxu0
        %v6810 = vadd.f32 %v5398, %v6809
        %v6811 = vpop.f32.mrb[0].mxu0
        %v6812 = vadd.f32 %v5402, %v6811
        %v6813 = vpop.f32.mrb[0].mxu0
        %v6814 = vadd.f32 %v5398, %v6813
        %v6815 = vpop.f32.mrb[0].mxu0
        %v6816 = vadd.f32 %v5402, %v6815
        %6817 = vmatprep.mubr.bf16.mxu0 %v5082
        %6818 = vmatmul.mubr.bf16.gmra.mrb[0].mxu0 %v5081
        %v6819 = vpop.f32.mrb[0].mxu0
        %v6820 = vadd.f32 %v5398, %v6819
        %v6821 = vpop.f32.mrb[0].mxu0
        %v6822 = vadd.f32 %v5402, %v6821
        %v6823 = vpop.f32.mrb[0].mxu0
        %v6824 = vadd.f32 %v5398, %v6823
        %v6825 = vpop.f32.mrb[0].mxu0
        %v6826 = vadd.f32 %v5402, %v6825
        %6827 = vmatprep.mubr.bf16.mxu0 %v5090
        %6828 = vmatmul.mubr.bf16.gmra.mrb[0].mxu0 %v5089
        %v6829 = vpop.f32.mrb[0].mxu0
        %v6830 = vadd.f32 %v5398, %v6829
        %v6831 = vpop.f32.mrb[0].mxu0
        %v6832 = vadd.f32 %v5402, %v6831
        %v6833 = vpop.f32.mrb[0].mxu0
        %v6834 = vadd.f32 %v5398, %v6833
        %v6835 = vpop.f32.mrb[0].mxu0
        %v6836 = vadd.f32 %v5402, %v6835
        %6837 = vmatprep.mubr.bf16.mxu0 %v5098
        %6838 = vmatmul.mubr.bf16.gmra.mrb[0].mxu0 %v5097
        %v6839 = vpop.f32.mrb[0].mxu0
        %v6840 = vadd.f32 %v5398, %v6839
        %v6841 = vpop.f32.mrb[0].mxu0
        %v6842 = vadd.f32 %v5402, %v6841
        %v6843 = vpop.f32.mrb[0].mxu0
        %v6844 = vadd.f32 %v5398, %v6843
        %v6845 = vpop.f32.mrb[0].mxu0
        %v6846 = vadd.f32 %v5402, %v6845
        %6847 = vmatprep.mubr.bf16.mxu0 %v5106
        %6848 = vmatmul.mubr.bf16.gmra.mrb[0].mxu0 %v5105
        %v6849 = vpop.f32.mrb[0].mxu0
        %v6850 = vadd.f32 %v5398, %v6849
        %v6851 = vpop.f32.mrb[0].mxu0
        %v6852 = vadd.f32 %v5402, %v6851
        %v6853 = vpop.f32.mrb[0].mxu0
        %v6854 = vadd.f32 %v5398, %v6853
        %v6855 = vpop.f32.mrb[0].mxu0
        %v6856 = vadd.f32 %v5402, %v6855
        %6857 = vmatprep.mubr.bf16.mxu0 %v5114
        %6858 = vmatmul.mubr.bf16.gmra.mrb[0].mxu0 %v5113
        %v6859 = vpop.f32.mrb[0].mxu0
        %v6860 = vadd.f32 %v5398, %v6859
        %v6861 = vpop.f32.mrb[0].mxu0
        %v6862 = vadd.f32 %v5402, %v6861
        %v6863 = vpop.f32.mrb[0].mxu0
        %v6864 = vadd.f32 %v5398, %v6863
        %v6865 = vpop.f32.mrb[0].mxu0
        %v6866 = vadd.f32 %v5402, %v6865
        %6867 = vmatprep.mubr.bf16.mxu0 %v5122
        %6868 = vmatmul.mubr.bf16.gmra.mrb[0].mxu0 %v5121
        %v6869 = vpop.f32.mrb[0].mxu0
        %v6870 = vadd.f32 %v5398, %v6869
        %v6871 = vpop.f32.mrb[0].mxu0
        %v6872 = vadd.f32 %v5402, %v6871
        %v6873 = vpop.f32.mrb[0].mxu0
        %v6874 = vadd.f32 %v5398, %v6873
        %v6875 = vpop.f32.mrb[0].mxu0
        %v6876 = vadd.f32 %v5402, %v6875
        %6877 = vmatprep.mubr.bf16.mxu0 %v5130
        %6878 = vmatmul.mubr.bf16.gmra.mrb[0].mxu0 %v5129
        %v6879 = vpop.f32.mrb[0].mxu0
        %v6880 = vadd.f32 %v5398, %v6879
        %v6881 = vpop.f32.mrb[0].mxu0
        %v6882 = vadd.f32 %v5402, %v6881
        %v6883 = vpop.f32.mrb[0].mxu0
        %v6884 = vadd.f32 %v5398, %v6883
        %v6885 = vpop.f32.mrb[0].mxu0
        %v6886 = vadd.f32 %v5402, %v6885
        %6887 = vdwg.mxu0
        %6888 = vmatprep.subr.bf16.mxu0 %v6248
        %6889 = vmatpush1.bf16.msra.mxu0 %v6247
        %6890 = vmatprep.subr.bf16.mxu0 %v6252
        %6891 = vmatpush1.bf16.msra.mxu0 %v6251
        %6892 = vmatprep.subr.bf16.mxu0 %v6256
        %6893 = vmatpush1.bf16.msra.mxu0 %v6255
        %6894 = vmatprep.subr.bf16.mxu0 %v6260
        %6895 = vmatpush1.bf16.msra.mxu0 %v6259
        %6896 = vmatprep.subr.bf16.mxu0 %v6264
        %6897 = vmatpush1.bf16.msra.mxu0 %v6263
        %6898 = vmatprep.subr.bf16.mxu0 %v6268
        %6899 = vmatpush1.bf16.msra.mxu0 %v6267
        %6900 = vmatprep.subr.bf16.mxu0 %v6272
        %6901 = vmatpush1.bf16.msra.mxu0 %v6271
        %6902 = vmatprep.subr.bf16.mxu0 %v6276
        %6903 = vmatpush1.bf16.msra.mxu0 %v6275
        %6904 = vmatprep.subr.bf16.mxu0 %v6280
        %6905 = vmatpush1.bf16.msra.mxu0 %v6279
        %6906 = vmatprep.subr.bf16.mxu0 %v6284
        %6907 = vmatpush1.bf16.msra.mxu0 %v6283
        %6908 = vmatprep.subr.bf16.mxu0 %v6288
        %6909 = vmatpush1.bf16.msra.mxu0 %v6287
        %6910 = vmatprep.subr.bf16.mxu0 %v6292
        %6911 = vmatpush1.bf16.msra.mxu0 %v6291
        %6912 = vmatprep.subr.bf16.mxu0 %v6296
        %6913 = vmatpush1.bf16.msra.mxu0 %v6295
        %6914 = vmatprep.subr.bf16.mxu0 %v6300
        %6915 = vmatpush1.bf16.msra.mxu0 %v6299
        %6916 = vmatprep.subr.bf16.mxu0 %v6304
        %6917 = vmatpush1.bf16.msra.mxu0 %v6303
        %6918 = vmatprep.subr.bf16.mxu0 %v6308
        %6919 = vmatpush1.bf16.msra.mxu0 %v6307
        %6920 = vmatprep.mubr.bf16.mxu0 %v5012
        %6921 = vmatmul.mubr.bf16.gmra.mrb[0].mxu0 %v5011
        %v6922 = vpop.f32.mrb[0].mxu0
        %v6923 = vadd.f32 %v6730, %v6922
        %v6924 = vpop.f32.mrb[0].mxu0
        %v6925 = vadd.f32 %v6732, %v6924
        %v6926 = vpop.f32.mrb[0].mxu0
        %v6927 = vadd.f32 %v6734, %v6926
        %v6928 = vpop.f32.mrb[0].mxu0
        %v6929 = vadd.f32 %v6736, %v6928
        %6930 = vmatprep.mubr.bf16.mxu0 %v5020
        %6931 = vmatmul.mubr.bf16.gmra.mrb[0].mxu0 %v5019
        %v6932 = vpop.f32.mrb[0].mxu0
        %v6933 = vadd.f32 %v6740, %v6932
        %v6934 = vpop.f32.mrb[0].mxu0
        %v6935 = vadd.f32 %v6742, %v6934
        %v6936 = vpop.f32.mrb[0].mxu0
        %v6937 = vadd.f32 %v6744, %v6936
        %v6938 = vpop.f32.mrb[0].mxu0
        %v6939 = vadd.f32 %v6746, %v6938
        %6940 = vmatprep.mubr.bf16.mxu0 %v5028
        %6941 = vmatmul.mubr.bf16.gmra.mrb[0].mxu0 %v5027
        %v6942 = vpop.f32.mrb[0].mxu0
        %v6943 = vadd.f32 %v6750, %v6942
        %v6944 = vpop.f32.mrb[0].mxu0
        %v6945 = vadd.f32 %v6752, %v6944
        %v6946 = vpop.f32.mrb[0].mxu0
        %v6947 = vadd.f32 %v6754, %v6946
        %v6948 = vpop.f32.mrb[0].mxu0
        %v6949 = vadd.f32 %v6756, %v6948
        %6950 = vmatprep.mubr.bf16.mxu0 %v5036
        %6951 = vmatmul.mubr.bf16.gmra.mrb[0].mxu0 %v5035
        %v6952 = vpop.f32.mrb[0].mxu0
        %v6953 = vadd.f32 %v6760, %v6952
        %v6954 = vpop.f32.mrb[0].mxu0
        %v6955 = vadd.f32 %v6762, %v6954
        %v6956 = vpop.f32.mrb[0].mxu0
        %v6957 = vadd.f32 %v6764, %v6956
        %v6958 = vpop.f32.mrb[0].mxu0
        %v6959 = vadd.f32 %v6766, %v6958
        %6960 = vmatprep.mubr.bf16.mxu0 %v5044
        %6961 = vmatmul.mubr.bf16.gmra.mrb[0].mxu0 %v5043
        %v6962 = vpop.f32.mrb[0].mxu0
        %v6963 = vadd.f32 %v6770, %v6962
        %v6964 = vpop.f32.mrb[0].mxu0
        %v6965 = vadd.f32 %v6772, %v6964
        %v6966 = vpop.f32.mrb[0].mxu0
        %v6967 = vadd.f32 %v6774, %v6966
        %v6968 = vpop.f32.mrb[0].mxu0
        %v6969 = vadd.f32 %v6776, %v6968
        %6970 = vmatprep.mubr.bf16.mxu0 %v5052
        %6971 = vmatmul.mubr.bf16.gmra.mrb[0].mxu0 %v5051
        %v6972 = vpop.f32.mrb[0].mxu0
        %v6973 = vadd.f32 %v6780, %v6972
        %v6974 = vpop.f32.mrb[0].mxu0
        %v6975 = vadd.f32 %v6782, %v6974
        %v6976 = vpop.f32.mrb[0].mxu0
        %v6977 = vadd.f32 %v6784, %v6976
        %v6978 = vpop.f32.mrb[0].mxu0
        %v6979 = vadd.f32 %v6786, %v6978
        %6980 = vmatprep.mubr.bf16.mxu0 %v5060
        %6981 = vmatmul.mubr.bf16.gmra.mrb[0].mxu0 %v5059
        %v6982 = vpop.f32.mrb[0].mxu0
        %v6983 = vadd.f32 %v6790, %v6982
        %v6984 = vpop.f32.mrb[0].mxu0
        %v6985 = vadd.f32 %v6792, %v6984
        %v6986 = vpop.f32.mrb[0].mxu0
        %v6987 = vadd.f32 %v6794, %v6986
        %v6988 = vpop.f32.mrb[0].mxu0
        %v6989 = vadd.f32 %v6796, %v6988
        %6990 = vmatprep.mubr.bf16.mxu0 %v5068
        %6991 = vmatmul.mubr.bf16.gmra.mrb[0].mxu0 %v5067
        %v6992 = vpop.f32.mrb[0].mxu0
        %v6993 = vadd.f32 %v6800, %v6992
        %v6994 = vpop.f32.mrb[0].mxu0
        %v6995 = vadd.f32 %v6802, %v6994
        %v6996 = vpop.f32.mrb[0].mxu0
        %v6997 = vadd.f32 %v6804, %v6996
        %v6998 = vpop.f32.mrb[0].mxu0
        %v6999 = vadd.f32 %v6806, %v6998
        %7000 = vmatprep.mubr.bf16.mxu0 %v5076
        %7001 = vmatmul.mubr.bf16.gmra.mrb[0].mxu0 %v5075
        %v7002 = vpop.f32.mrb[0].mxu0
        %v7003 = vadd.f32 %v6810, %v7002
        %v7004 = vpop.f32.mrb[0].mxu0
        %v7005 = vadd.f32 %v6812, %v7004
        %v7006 = vpop.f32.mrb[0].mxu0
        %v7007 = vadd.f32 %v6814, %v7006
        %v7008 = vpop.f32.mrb[0].mxu0
        %v7009 = vadd.f32 %v6816, %v7008
        %7010 = vmatprep.mubr.bf16.mxu0 %v5084
        %7011 = vmatmul.mubr.bf16.gmra.mrb[0].mxu0 %v5083
        %v7012 = vpop.f32.mrb[0].mxu0
        %v7013 = vadd.f32 %v6820, %v7012
        %v7014 = vpop.f32.mrb[0].mxu0
        %v7015 = vadd.f32 %v6822, %v7014
        %v7016 = vpop.f32.mrb[0].mxu0
        %v7017 = vadd.f32 %v6824, %v7016
        %v7018 = vpop.f32.mrb[0].mxu0
        %v7019 = vadd.f32 %v6826, %v7018
        %7020 = vmatprep.mubr.bf16.mxu0 %v5092
        %7021 = vmatmul.mubr.bf16.gmra.mrb[0].mxu0 %v5091
        %v7022 = vpop.f32.mrb[0].mxu0
        %v7023 = vadd.f32 %v6830, %v7022
        %v7024 = vpop.f32.mrb[0].mxu0
        %v7025 = vadd.f32 %v6832, %v7024
        %v7026 = vpop.f32.mrb[0].mxu0
        %v7027 = vadd.f32 %v6834, %v7026
        %v7028 = vpop.f32.mrb[0].mxu0
        %v7029 = vadd.f32 %v6836, %v7028
        %7030 = vmatprep.mubr.bf16.mxu0 %v5100
        %7031 = vmatmul.mubr.bf16.gmra.mrb[0].mxu0 %v5099
        %v7032 = vpop.f32.mrb[0].mxu0
        %v7033 = vadd.f32 %v6840, %v7032
        %v7034 = vpop.f32.mrb[0].mxu0
        %v7035 = vadd.f32 %v6842, %v7034
        %v7036 = vpop.f32.mrb[0].mxu0
        %v7037 = vadd.f32 %v6844, %v7036
        %v7038 = vpop.f32.mrb[0].mxu0
        %v7039 = vadd.f32 %v6846, %v7038
        %7040 = vmatprep.mubr.bf16.mxu0 %v5108
        %7041 = vmatmul.mubr.bf16.gmra.mrb[0].mxu0 %v5107
        %v7042 = vpop.f32.mrb[0].mxu0
        %v7043 = vadd.f32 %v6850, %v7042
        %v7044 = vpop.f32.mrb[0].mxu0
        %v7045 = vadd.f32 %v6852, %v7044
        %v7046 = vpop.f32.mrb[0].mxu0
        %v7047 = vadd.f32 %v6854, %v7046
        %v7048 = vpop.f32.mrb[0].mxu0
        %v7049 = vadd.f32 %v6856, %v7048
        %7050 = vmatprep.mubr.bf16.mxu0 %v5116
        %7051 = vmatmul.mubr.bf16.gmra.mrb[0].mxu0 %v5115
        %v7052 = vpop.f32.mrb[0].mxu0
        %v7053 = vadd.f32 %v6860, %v7052
        %v7054 = vpop.f32.mrb[0].mxu0
        %v7055 = vadd.f32 %v6862, %v7054
        %v7056 = vpop.f32.mrb[0].mxu0
        %v7057 = vadd.f32 %v6864, %v7056
        %v7058 = vpop.f32.mrb[0].mxu0
        %v7059 = vadd.f32 %v6866, %v7058
        %7060 = vmatprep.mubr.bf16.mxu0 %v5124
        %7061 = vmatmul.mubr.bf16.gmra.mrb[0].mxu0 %v5123
        %v7062 = vpop.f32.mrb[0].mxu0
        %v7063 = vadd.f32 %v6870, %v7062
        %v7064 = vpop.f32.mrb[0].mxu0
        %v7065 = vadd.f32 %v6872, %v7064
        %v7066 = vpop.f32.mrb[0].mxu0
        %v7067 = vadd.f32 %v6874, %v7066
        %v7068 = vpop.f32.mrb[0].mxu0
        %v7069 = vadd.f32 %v6876, %v7068
        %7070 = vmatprep.mubr.bf16.mxu0 %v5132
        %7071 = vmatmul.mubr.bf16.gmra.mrb[0].mxu0 %v5131
        %v7072 = vpop.f32.mrb[0].mxu0
        %v7073 = vadd.f32 %v6880, %v7072
        %v7074 = vpop.f32.mrb[0].mxu0
        %v7075 = vadd.f32 %v6882, %v7074
        %v7076 = vpop.f32.mrb[0].mxu0
        %v7077 = vadd.f32 %v6884, %v7076
        %v7078 = vpop.f32.mrb[0].mxu0
        %v7079 = vadd.f32 %v6886, %v7078
        %7080 = vdwg.mxu0
        %7081 = vmatprep.subr.bf16.mxu0 %v6312
        %7082 = vmatpush1.bf16.msra.mxu0 %v6311
        %7083 = vmatprep.subr.bf16.mxu0 %v6316
        %7084 = vmatpush1.bf16.msra.mxu0 %v6315
        %7085 = vmatprep.subr.bf16.mxu0 %v6320
        %7086 = vmatpush1.bf16.msra.mxu0 %v6319
        %7087 = vmatprep.subr.bf16.mxu0 %v6324
        %7088 = vmatpush1.bf16.msra.mxu0 %v6323
        %7089 = vmatprep.subr.bf16.mxu0 %v6328
        %7090 = vmatpush1.bf16.msra.mxu0 %v6327
        %7091 = vmatprep.subr.bf16.mxu0 %v6332
        %7092 = vmatpush1.bf16.msra.mxu0 %v6331
        %7093 = vmatprep.subr.bf16.mxu0 %v6336
        %7094 = vmatpush1.bf16.msra.mxu0 %v6335
        %7095 = vmatprep.subr.bf16.mxu0 %v6340
        %7096 = vmatpush1.bf16.msra.mxu0 %v6339
        %7097 = vmatprep.subr.bf16.mxu0 %v6344
        %7098 = vmatpush1.bf16.msra.mxu0 %v6343
        %7099 = vmatprep.subr.bf16.mxu0 %v6348
        %7100 = vmatpush1.bf16.msra.mxu0 %v6347
        %7101 = vmatprep.subr.bf16.mxu0 %v6352
        %7102 = vmatpush1.bf16.msra.mxu0 %v6351
        %7103 = vmatprep.subr.bf16.mxu0 %v6356
        %7104 = vmatpush1.bf16.msra.mxu0 %v6355
        %7105 = vmatprep.subr.bf16.mxu0 %v6360
        %7106 = vmatpush1.bf16.msra.mxu0 %v6359
        %7107 = vmatprep.subr.bf16.mxu0 %v6364
        %7108 = vmatpush1.bf16.msra.mxu0 %v6363
        %7109 = vmatprep.subr.bf16.mxu0 %v6368
        %7110 = vmatpush1.bf16.msra.mxu0 %v6367
        %7111 = vmatprep.subr.bf16.mxu0 %v6372
        %7112 = vmatpush1.bf16.msra.mxu0 %v6371
        %7113 = vmatprep.mubr.bf16.mxu0 %v5014
        %7114 = vmatmul.mubr.bf16.gmra.mrb[0].mxu0 %v5013
        %v7115 = vpop.f32.mrb[0].mxu0
        %v7116 = vadd.f32 %v6923, %v7115
        %v7117 = vpop.f32.mrb[0].mxu0
        %v7118 = vadd.f32 %v6925, %v7117
        %v7119 = vpop.f32.mrb[0].mxu0
        %v7120 = vadd.f32 %v6927, %v7119
        %v7121 = vpop.f32.mrb[0].mxu0
        %v7122 = vadd.f32 %v6929, %v7121
        %7123 = vmatprep.mubr.bf16.mxu0 %v5022
        %7124 = vmatmul.mubr.bf16.gmra.mrb[0].mxu0 %v5021
        %v7125 = vpop.f32.mrb[0].mxu0
        %v7126 = vadd.f32 %v6933, %v7125
        %v7127 = vpop.f32.mrb[0].mxu0
        %v7128 = vadd.f32 %v6935, %v7127
        %v7129 = vpop.f32.mrb[0].mxu0
        %v7130 = vadd.f32 %v6937, %v7129
        %v7131 = vpop.f32.mrb[0].mxu0
        %v7132 = vadd.f32 %v6939, %v7131
        %7133 = vmatprep.mubr.bf16.mxu0 %v5030
        %7134 = vmatmul.mubr.bf16.gmra.mrb[0].mxu0 %v5029
        %v7135 = vpop.f32.mrb[0].mxu0
        %v7136 = vadd.f32 %v6943, %v7135
        %v7137 = vpop.f32.mrb[0].mxu0
        %v7138 = vadd.f32 %v6945, %v7137
        %v7139 = vpop.f32.mrb[0].mxu0
        %v7140 = vadd.f32 %v6947, %v7139
        %v7141 = vpop.f32.mrb[0].mxu0
        %v7142 = vadd.f32 %v6949, %v7141
        %7143 = vmatprep.mubr.bf16.mxu0 %v5038
        %7144 = vmatmul.mubr.bf16.gmra.mrb[0].mxu0 %v5037
        %v7145 = vpop.f32.mrb[0].mxu0
        %v7146 = vadd.f32 %v6953, %v7145
        %v7147 = vpop.f32.mrb[0].mxu0
        %v7148 = vadd.f32 %v6955, %v7147
        %v7149 = vpop.f32.mrb[0].mxu0
        %v7150 = vadd.f32 %v6957, %v7149
        %v7151 = vpop.f32.mrb[0].mxu0
        %v7152 = vadd.f32 %v6959, %v7151
        %7153 = vmatprep.mubr.bf16.mxu0 %v5046
        %7154 = vmatmul.mubr.bf16.gmra.mrb[0].mxu0 %v5045
        %v7155 = vpop.f32.mrb[0].mxu0
        %v7156 = vadd.f32 %v6963, %v7155
        %v7157 = vpop.f32.mrb[0].mxu0
        %v7158 = vadd.f32 %v6965, %v7157
        %v7159 = vpop.f32.mrb[0].mxu0
        %v7160 = vadd.f32 %v6967, %v7159
        %v7161 = vpop.f32.mrb[0].mxu0
        %v7162 = vadd.f32 %v6969, %v7161
        %7163 = vmatprep.mubr.bf16.mxu0 %v5054
        %7164 = vmatmul.mubr.bf16.gmra.mrb[0].mxu0 %v5053
        %v7165 = vpop.f32.mrb[0].mxu0
        %v7166 = vadd.f32 %v6973, %v7165
        %v7167 = vpop.f32.mrb[0].mxu0
        %v7168 = vadd.f32 %v6975, %v7167
        %v7169 = vpop.f32.mrb[0].mxu0
        %v7170 = vadd.f32 %v6977, %v7169
        %v7171 = vpop.f32.mrb[0].mxu0
        %v7172 = vadd.f32 %v6979, %v7171
        %7173 = vmatprep.mubr.bf16.mxu0 %v5062
        %7174 = vmatmul.mubr.bf16.gmra.mrb[0].mxu0 %v5061
        %v7175 = vpop.f32.mrb[0].mxu0
        %v7176 = vadd.f32 %v6983, %v7175
        %v7177 = vpop.f32.mrb[0].mxu0
        %v7178 = vadd.f32 %v6985, %v7177
        %v7179 = vpop.f32.mrb[0].mxu0
        %v7180 = vadd.f32 %v6987, %v7179
        %v7181 = vpop.f32.mrb[0].mxu0
        %v7182 = vadd.f32 %v6989, %v7181
        %7183 = vmatprep.mubr.bf16.mxu0 %v5070
        %7184 = vmatmul.mubr.bf16.gmra.mrb[0].mxu0 %v5069
        %v7185 = vpop.f32.mrb[0].mxu0
        %v7186 = vadd.f32 %v6993, %v7185
        %v7187 = vpop.f32.mrb[0].mxu0
        %v7188 = vadd.f32 %v6995, %v7187
        %v7189 = vpop.f32.mrb[0].mxu0
        %v7190 = vadd.f32 %v6997, %v7189
        %v7191 = vpop.f32.mrb[0].mxu0
        %v7192 = vadd.f32 %v6999, %v7191
        %7193 = vmatprep.mubr.bf16.mxu0 %v5078
        %7194 = vmatmul.mubr.bf16.gmra.mrb[0].mxu0 %v5077
        %v7195 = vpop.f32.mrb[0].mxu0
        %v7196 = vadd.f32 %v7003, %v7195
        %v7197 = vpop.f32.mrb[0].mxu0
        %v7198 = vadd.f32 %v7005, %v7197
        %v7199 = vpop.f32.mrb[0].mxu0
        %v7200 = vadd.f32 %v7007, %v7199
        %v7201 = vpop.f32.mrb[0].mxu0
        %v7202 = vadd.f32 %v7009, %v7201
        %7203 = vmatprep.mubr.bf16.mxu0 %v5086
        %7204 = vmatmul.mubr.bf16.gmra.mrb[0].mxu0 %v5085
        %v7205 = vpop.f32.mrb[0].mxu0
        %v7206 = vadd.f32 %v7013, %v7205
        %v7207 = vpop.f32.mrb[0].mxu0
        %v7208 = vadd.f32 %v7015, %v7207
        %v7209 = vpop.f32.mrb[0].mxu0
        %v7210 = vadd.f32 %v7017, %v7209
        %v7211 = vpop.f32.mrb[0].mxu0
        %v7212 = vadd.f32 %v7019, %v7211
        %7213 = vmatprep.mubr.bf16.mxu0 %v5094
        %7214 = vmatmul.mubr.bf16.gmra.mrb[0].mxu0 %v5093
        %v7215 = vpop.f32.mrb[0].mxu0
        %v7216 = vadd.f32 %v7023, %v7215
        %v7217 = vpop.f32.mrb[0].mxu0
        %v7218 = vadd.f32 %v7025, %v7217
        %v7219 = vpop.f32.mrb[0].mxu0
        %v7220 = vadd.f32 %v7027, %v7219
        %v7221 = vpop.f32.mrb[0].mxu0
        %v7222 = vadd.f32 %v7029, %v7221
        %7223 = vmatprep.mubr.bf16.mxu0 %v5102
        %7224 = vmatmul.mubr.bf16.gmra.mrb[0].mxu0 %v5101
        %v7225 = vpop.f32.mrb[0].mxu0
        %v7226 = vadd.f32 %v7033, %v7225
        %v7227 = vpop.f32.mrb[0].mxu0
        %v7228 = vadd.f32 %v7035, %v7227
        %v7229 = vpop.f32.mrb[0].mxu0
        %v7230 = vadd.f32 %v7037, %v7229
        %v7231 = vpop.f32.mrb[0].mxu0
        %v7232 = vadd.f32 %v7039, %v7231
        %7233 = vmatprep.mubr.bf16.mxu0 %v5110
        %7234 = vmatmul.mubr.bf16.gmra.mrb[0].mxu0 %v5109
        %v7235 = vpop.f32.mrb[0].mxu0
        %v7236 = vadd.f32 %v7043, %v7235
        %v7237 = vpop.f32.mrb[0].mxu0
        %v7238 = vadd.f32 %v7045, %v7237
        %v7239 = vpop.f32.mrb[0].mxu0
        %v7240 = vadd.f32 %v7047, %v7239
        %v7241 = vpop.f32.mrb[0].mxu0
        %v7242 = vadd.f32 %v7049, %v7241
        %7243 = vmatprep.mubr.bf16.mxu0 %v5118
        %7244 = vmatmul.mubr.bf16.gmra.mrb[0].mxu0 %v5117
        %v7245 = vpop.f32.mrb[0].mxu0
        %v7246 = vadd.f32 %v7053, %v7245
        %v7247 = vpop.f32.mrb[0].mxu0
        %v7248 = vadd.f32 %v7055, %v7247
        %v7249 = vpop.f32.mrb[0].mxu0
        %v7250 = vadd.f32 %v7057, %v7249
        %v7251 = vpop.f32.mrb[0].mxu0
        %v7252 = vadd.f32 %v7059, %v7251
        %7253 = vmatprep.mubr.bf16.mxu0 %v5126
        %7254 = vmatmul.mubr.bf16.gmra.mrb[0].mxu0 %v5125
        %v7255 = vpop.f32.mrb[0].mxu0
        %v7256 = vadd.f32 %v7063, %v7255
        %v7257 = vpop.f32.mrb[0].mxu0
        %v7258 = vadd.f32 %v7065, %v7257
        %v7259 = vpop.f32.mrb[0].mxu0
        %v7260 = vadd.f32 %v7067, %v7259
        %v7261 = vpop.f32.mrb[0].mxu0
        %v7262 = vadd.f32 %v7069, %v7261
        %7263 = vmatprep.mubr.bf16.mxu0 %v5134
        %7264 = vmatmul.mubr.bf16.gmra.mrb[0].mxu0 %v5133
        %v7265 = vpop.f32.mrb[0].mxu0
        %v7266 = vadd.f32 %v7073, %v7265
        %v7267 = vpop.f32.mrb[0].mxu0
        %v7268 = vadd.f32 %v7075, %v7267
        %v7269 = vpop.f32.mrb[0].mxu0
        %v7270 = vadd.f32 %v7077, %v7269
        %v7271 = vpop.f32.mrb[0].mxu0
        %v7272 = vadd.f32 %v7079, %v7271
        %7273 = vdwg.mxu0
        %7274 = vmatprep.subr.bf16.mxu0 %v6376
        %7275 = vmatpush1.bf16.msra.mxu0 %v6375
        %7276 = vmatprep.subr.bf16.mxu0 %v6380
        %7277 = vmatpush1.bf16.msra.mxu0 %v6379
        %7278 = vmatprep.subr.bf16.mxu0 %v6384
        %7279 = vmatpush1.bf16.msra.mxu0 %v6383
        %7280 = vmatprep.subr.bf16.mxu0 %v6388
        %7281 = vmatpush1.bf16.msra.mxu0 %v6387
        %7282 = vmatprep.subr.bf16.mxu0 %v6392
        %7283 = vmatpush1.bf16.msra.mxu0 %v6391
        %7284 = vmatprep.subr.bf16.mxu0 %v6396
        %7285 = vmatpush1.bf16.msra.mxu0 %v6395
        %7286 = vmatprep.subr.bf16.mxu0 %v6400
        %7287 = vmatpush1.bf16.msra.mxu0 %v6399
        %7288 = vmatprep.subr.bf16.mxu0 %v6404
        %7289 = vmatpush1.bf16.msra.mxu0 %v6403
        %7290 = vmatprep.subr.bf16.mxu0 %v6408
        %7291 = vmatpush1.bf16.msra.mxu0 %v6407
        %7292 = vmatprep.subr.bf16.mxu0 %v6412
        %7293 = vmatpush1.bf16.msra.mxu0 %v6411
        %7294 = vmatprep.subr.bf16.mxu0 %v6416
        %7295 = vmatpush1.bf16.msra.mxu0 %v6415
        %7296 = vmatprep.subr.bf16.mxu0 %v6420
        %7297 = vmatpush1.bf16.msra.mxu0 %v6419
        %7298 = vmatprep.subr.bf16.mxu0 %v6424
        %7299 = vmatpush1.bf16.msra.mxu0 %v6423
        %7300 = vmatprep.subr.bf16.mxu0 %v6428
        %7301 = vmatpush1.bf16.msra.mxu0 %v6427
        %7302 = vmatprep.subr.bf16.mxu0 %v6432
        %7303 = vmatpush1.bf16.msra.mxu0 %v6431
        %7304 = vmatprep.subr.bf16.mxu0 %v6436
        %7305 = vmatpush1.bf16.msra.mxu0 %v6435
        %7306 = vmatprep.mubr.bf16.mxu0 %v5016
        %7307 = vmatmul.mubr.bf16.gmra.mrb[0].mxu0 %v5015
        %v7308 = vpop.f32.mrb[0].mxu0
        %v7309 = vadd.f32 %v7116, %v7308
        %v7310 = vpop.f32.mrb[0].mxu0
        %v7311 = vadd.f32 %v7118, %v7310
        %v7312 = vpop.f32.mrb[0].mxu0
        %v7313 = vadd.f32 %v7120, %v7312
        %v7314 = vpop.f32.mrb[0].mxu0
        %v7315 = vadd.f32 %v7122, %v7314
        %7316 = vmatprep.mubr.bf16.mxu0 %v5024
        %7317 = vmatmul.mubr.bf16.gmra.mrb[0].mxu0 %v5023
        %v7318 = vpop.f32.mrb[0].mxu0
        %v7319 = vadd.f32 %v7126, %v7318
        %v7320 = vpop.f32.mrb[0].mxu0
        %v7321 = vadd.f32 %v7128, %v7320
        %v7322 = vpop.f32.mrb[0].mxu0
        %v7323 = vadd.f32 %v7130, %v7322
        %v7324 = vpop.f32.mrb[0].mxu0
        %v7325 = vadd.f32 %v7132, %v7324
        %7326 = vmatprep.mubr.bf16.mxu0 %v5032
        %7327 = vmatmul.mubr.bf16.gmra.mrb[0].mxu0 %v5031
        %v7328 = vpop.f32.mrb[0].mxu0
        %v7329 = vadd.f32 %v7136, %v7328
        %v7330 = vpop.f32.mrb[0].mxu0
        %v7331 = vadd.f32 %v7138, %v7330
        %v7332 = vpop.f32.mrb[0].mxu0
        %v7333 = vadd.f32 %v7140, %v7332
        %v7334 = vpop.f32.mrb[0].mxu0
        %v7335 = vadd.f32 %v7142, %v7334
        %7336 = vmatprep.mubr.bf16.mxu0 %v5040
        %7337 = vmatmul.mubr.bf16.gmra.mrb[0].mxu0 %v5039
        %v7338 = vpop.f32.mrb[0].mxu0
        %v7339 = vadd.f32 %v7146, %v7338
        %v7340 = vpop.f32.mrb[0].mxu0
        %v7341 = vadd.f32 %v7148, %v7340
        %v7342 = vpop.f32.mrb[0].mxu0
        %v7343 = vadd.f32 %v7150, %v7342
        %v7344 = vpop.f32.mrb[0].mxu0
        %v7345 = vadd.f32 %v7152, %v7344
        %7346 = vmatprep.mubr.bf16.mxu0 %v5048
        %7347 = vmatmul.mubr.bf16.gmra.mrb[0].mxu0 %v5047
        %v7348 = vpop.f32.mrb[0].mxu0
        %v7349 = vadd.f32 %v7156, %v7348
        %v7350 = vpop.f32.mrb[0].mxu0
        %v7351 = vadd.f32 %v7158, %v7350
        %v7352 = vpop.f32.mrb[0].mxu0
        %v7353 = vadd.f32 %v7160, %v7352
        %v7354 = vpop.f32.mrb[0].mxu0
        %v7355 = vadd.f32 %v7162, %v7354
        %7356 = vmatprep.mubr.bf16.mxu0 %v5056
        %7357 = vmatmul.mubr.bf16.gmra.mrb[0].mxu0 %v5055
        %v7358 = vpop.f32.mrb[0].mxu0
        %v7359 = vadd.f32 %v7166, %v7358
        %v7360 = vpop.f32.mrb[0].mxu0
        %v7361 = vadd.f32 %v7168, %v7360
        %v7362 = vpop.f32.mrb[0].mxu0
        %v7363 = vadd.f32 %v7170, %v7362
        %v7364 = vpop.f32.mrb[0].mxu0
        %v7365 = vadd.f32 %v7172, %v7364
        %7366 = vmatprep.mubr.bf16.mxu0 %v5064
        %7367 = vmatmul.mubr.bf16.gmra.mrb[0].mxu0 %v5063
        %v7368 = vpop.f32.mrb[0].mxu0
        %v7369 = vadd.f32 %v7176, %v7368
        %v7370 = vpop.f32.mrb[0].mxu0
        %v7371 = vadd.f32 %v7178, %v7370
        %v7372 = vpop.f32.mrb[0].mxu0
        %v7373 = vadd.f32 %v7180, %v7372
        %v7374 = vpop.f32.mrb[0].mxu0
        %v7375 = vadd.f32 %v7182, %v7374
        %7376 = vmatprep.mubr.bf16.mxu0 %v5072
        %7377 = vmatmul.mubr.bf16.gmra.mrb[0].mxu0 %v5071
        %v7378 = vpop.f32.mrb[0].mxu0
        %v7379 = vadd.f32 %v7186, %v7378
        %v7380 = vpop.f32.mrb[0].mxu0
        %v7381 = vadd.f32 %v7188, %v7380
        %v7382 = vpop.f32.mrb[0].mxu0
        %v7383 = vadd.f32 %v7190, %v7382
        %v7384 = vpop.f32.mrb[0].mxu0
        %v7385 = vadd.f32 %v7192, %v7384
        %7386 = vmatprep.mubr.bf16.mxu0 %v5080
        %7387 = vmatmul.mubr.bf16.gmra.mrb[0].mxu0 %v5079
        %v7388 = vpop.f32.mrb[0].mxu0
        %v7389 = vadd.f32 %v7196, %v7388
        %v7390 = vpop.f32.mrb[0].mxu0
        %v7391 = vadd.f32 %v7198, %v7390
        %v7392 = vpop.f32.mrb[0].mxu0
        %v7393 = vadd.f32 %v7200, %v7392
        %v7394 = vpop.f32.mrb[0].mxu0
        %v7395 = vadd.f32 %v7202, %v7394
        %7396 = vmatprep.mubr.bf16.mxu0 %v5088
        %7397 = vmatmul.mubr.bf16.gmra.mrb[0].mxu0 %v5087
        %v7398 = vpop.f32.mrb[0].mxu0
        %v7399 = vadd.f32 %v7206, %v7398
        %v7400 = vpop.f32.mrb[0].mxu0
        %v7401 = vadd.f32 %v7208, %v7400
        %v7402 = vpop.f32.mrb[0].mxu0
        %v7403 = vadd.f32 %v7210, %v7402
        %v7404 = vpop.f32.mrb[0].mxu0
        %v7405 = vadd.f32 %v7212, %v7404
        %7406 = vmatprep.mubr.bf16.mxu0 %v5096
        %7407 = vmatmul.mubr.bf16.gmra.mrb[0].mxu0 %v5095
        %v7408 = vpop.f32.mrb[0].mxu0
        %v7409 = vadd.f32 %v7216, %v7408
        %v7410 = vpop.f32.mrb[0].mxu0
        %v7411 = vadd.f32 %v7218, %v7410
        %v7412 = vpop.f32.mrb[0].mxu0
        %v7413 = vadd.f32 %v7220, %v7412
        %v7414 = vpop.f32.mrb[0].mxu0
        %v7415 = vadd.f32 %v7222, %v7414
        %7416 = vmatprep.mubr.bf16.mxu0 %v5104
        %7417 = vmatmul.mubr.bf16.gmra.mrb[0].mxu0 %v5103
        %v7418 = vpop.f32.mrb[0].mxu0
        %v7419 = vadd.f32 %v7226, %v7418
        %v7420 = vpop.f32.mrb[0].mxu0
        %v7421 = vadd.f32 %v7228, %v7420
        %v7422 = vpop.f32.mrb[0].mxu0
        %v7423 = vadd.f32 %v7230, %v7422
        %v7424 = vpop.f32.mrb[0].mxu0
        %v7425 = vadd.f32 %v7232, %v7424
        %7426 = vmatprep.mubr.bf16.mxu0 %v5112
        %7427 = vmatmul.mubr.bf16.gmra.mrb[0].mxu0 %v5111
        %v7428 = vpop.f32.mrb[0].mxu0
        %v7429 = vadd.f32 %v7236, %v7428
        %v7430 = vpop.f32.mrb[0].mxu0
        %v7431 = vadd.f32 %v7238, %v7430
        %v7432 = vpop.f32.mrb[0].mxu0
        %v7433 = vadd.f32 %v7240, %v7432
        %v7434 = vpop.f32.mrb[0].mxu0
        %v7435 = vadd.f32 %v7242, %v7434
        %7436 = vmatprep.mubr.bf16.mxu0 %v5120
        %7437 = vmatmul.mubr.bf16.gmra.mrb[0].mxu0 %v5119
        %v7438 = vpop.f32.mrb[0].mxu0
        %v7439 = vadd.f32 %v7246, %v7438
        %v7440 = vpop.f32.mrb[0].mxu0
        %v7441 = vadd.f32 %v7248, %v7440
        %v7442 = vpop.f32.mrb[0].mxu0
        %v7443 = vadd.f32 %v7250, %v7442
        %v7444 = vpop.f32.mrb[0].mxu0
        %v7445 = vadd.f32 %v7252, %v7444
        %7446 = vmatprep.mubr.bf16.mxu0 %v5128
        %7447 = vmatmul.mubr.bf16.gmra.mrb[0].mxu0 %v5127
        %v7448 = vpop.f32.mrb[0].mxu0
        %v7449 = vadd.f32 %v7256, %v7448
        %v7450 = vpop.f32.mrb[0].mxu0
        %v7451 = vadd.f32 %v7258, %v7450
        %v7452 = vpop.f32.mrb[0].mxu0
        %v7453 = vadd.f32 %v7260, %v7452
        %v7454 = vpop.f32.mrb[0].mxu0
        %v7455 = vadd.f32 %v7262, %v7454
        %7456 = vmatprep.mubr.bf16.mxu0 %v5136
        %7457 = vmatmul.mubr.bf16.gmra.mrb[0].mxu0 %v5135
        %v7458 = vpop.f32.mrb[0].mxu0
        %v7459 = vadd.f32 %v7266, %v7458
        %v7460 = vpop.f32.mrb[0].mxu0
        %v7461 = vadd.f32 %v7268, %v7460
        %v7462 = vpop.f32.mrb[0].mxu0
        %v7463 = vadd.f32 %v7270, %v7462
        %v7464 = vpop.f32.mrb[0].mxu0
        %v7465 = vadd.f32 %v7272, %v7464
        %7466 = vdwg.mxu0
        %7467 = vmatprep.subr.bf16.mxu0 %v6186
        %7468 = vmatpush1.bf16.msra.mxu0 %v6185
        %7469 = vmatprep.subr.bf16.mxu0 %v6190
        %7470 = vmatpush1.bf16.msra.mxu0 %v6189
        %7471 = vmatprep.subr.bf16.mxu0 %v6194
        %7472 = vmatpush1.bf16.msra.mxu0 %v6193
        %7473 = vmatprep.subr.bf16.mxu0 %v6198
        %7474 = vmatpush1.bf16.msra.mxu0 %v6197
        %7475 = vmatprep.subr.bf16.mxu0 %v6202
        %7476 = vmatpush1.bf16.msra.mxu0 %v6201
        %7477 = vmatprep.subr.bf16.mxu0 %v6206
        %7478 = vmatpush1.bf16.msra.mxu0 %v6205
        %7479 = vmatprep.subr.bf16.mxu0 %v6210
        %7480 = vmatpush1.bf16.msra.mxu0 %v6209
        %7481 = vmatprep.subr.bf16.mxu0 %v6214
        %7482 = vmatpush1.bf16.msra.mxu0 %v6213
        %7483 = vmatprep.subr.bf16.mxu0 %v6218
        %7484 = vmatpush1.bf16.msra.mxu0 %v6217
        %7485 = vmatprep.subr.bf16.mxu0 %v6222
        %7486 = vmatpush1.bf16.msra.mxu0 %v6221
        %7487 = vmatprep.subr.bf16.mxu0 %v6226
        %7488 = vmatpush1.bf16.msra.mxu0 %v6225
        %7489 = vmatprep.subr.bf16.mxu0 %v6230
        %7490 = vmatpush1.bf16.msra.mxu0 %v6229
        %7491 = vmatprep.subr.bf16.mxu0 %v6234
        %7492 = vmatpush1.bf16.msra.mxu0 %v6233
        %7493 = vmatprep.subr.bf16.mxu0 %v6238
        %7494 = vmatpush1.bf16.msra.mxu0 %v6237
        %7495 = vmatprep.subr.bf16.mxu0 %v6242
        %7496 = vmatpush1.bf16.msra.mxu0 %v6241
        %7497 = vmatprep.subr.bf16.mxu0 %v6246
        %7498 = vmatpush1.bf16.msra.mxu0 %v6245
        %7499 = vmatprep.mubr.bf16.mxu0 %v5010
        %7500 = vmatmul.mubr.bf16.gmra.mrb[0].mxu0 %v5009
        %v7501 = vpop.f32.mrb[0].mxu0
        %v7502 = vadd.f32 %v5406, %v7501
        %v7503 = vpop.f32.mrb[0].mxu0
        %v7504 = vadd.f32 %v5410, %v7503
        %v7505 = vpop.f32.mrb[0].mxu0
        %v7506 = vadd.f32 %v5406, %v7505
        %v7507 = vpop.f32.mrb[0].mxu0
        %v7508 = vadd.f32 %v5410, %v7507
        %7509 = vmatprep.mubr.bf16.mxu0 %v5018
        %7510 = vmatmul.mubr.bf16.gmra.mrb[0].mxu0 %v5017
        %v7511 = vpop.f32.mrb[0].mxu0
        %v7512 = vadd.f32 %v5406, %v7511
        %v7513 = vpop.f32.mrb[0].mxu0
        %v7514 = vadd.f32 %v5410, %v7513
        %v7515 = vpop.f32.mrb[0].mxu0
        %v7516 = vadd.f32 %v5406, %v7515
        %v7517 = vpop.f32.mrb[0].mxu0
        %v7518 = vadd.f32 %v5410, %v7517
        %7519 = vmatprep.mubr.bf16.mxu0 %v5026
        %7520 = vmatmul.mubr.bf16.gmra.mrb[0].mxu0 %v5025
        %v7521 = vpop.f32.mrb[0].mxu0
        %v7522 = vadd.f32 %v5406, %v7521
        %v7523 = vpop.f32.mrb[0].mxu0
        %v7524 = vadd.f32 %v5410, %v7523
        %v7525 = vpop.f32.mrb[0].mxu0
        %v7526 = vadd.f32 %v5406, %v7525
        %v7527 = vpop.f32.mrb[0].mxu0
        %v7528 = vadd.f32 %v5410, %v7527
        %7529 = vmatprep.mubr.bf16.mxu0 %v5034
        %7530 = vmatmul.mubr.bf16.gmra.mrb[0].mxu0 %v5033
        %v7531 = vpop.f32.mrb[0].mxu0
        %v7532 = vadd.f32 %v5406, %v7531
        %v7533 = vpop.f32.mrb[0].mxu0
        %v7534 = vadd.f32 %v5410, %v7533
        %v7535 = vpop.f32.mrb[0].mxu0
        %v7536 = vadd.f32 %v5406, %v7535
        %v7537 = vpop.f32.mrb[0].mxu0
        %v7538 = vadd.f32 %v5410, %v7537
        %7539 = vmatprep.mubr.bf16.mxu0 %v5042
        %7540 = vmatmul.mubr.bf16.gmra.mrb[0].mxu0 %v5041
        %v7541 = vpop.f32.mrb[0].mxu0
        %v7542 = vadd.f32 %v5406, %v7541
        %v7543 = vpop.f32.mrb[0].mxu0
        %v7544 = vadd.f32 %v5410, %v7543
        %v7545 = vpop.f32.mrb[0].mxu0
        %v7546 = vadd.f32 %v5406, %v7545
        %v7547 = vpop.f32.mrb[0].mxu0
        %v7548 = vadd.f32 %v5410, %v7547
        %7549 = vmatprep.mubr.bf16.mxu0 %v5050
        %7550 = vmatmul.mubr.bf16.gmra.mrb[0].mxu0 %v5049
        %v7551 = vpop.f32.mrb[0].mxu0
        %v7552 = vadd.f32 %v5406, %v7551
        %v7553 = vpop.f32.mrb[0].mxu0
        %v7554 = vadd.f32 %v5410, %v7553
        %v7555 = vpop.f32.mrb[0].mxu0
        %v7556 = vadd.f32 %v5406, %v7555
        %v7557 = vpop.f32.mrb[0].mxu0
        %v7558 = vadd.f32 %v5410, %v7557
        %7559 = vmatprep.mubr.bf16.mxu0 %v5058
        %7560 = vmatmul.mubr.bf16.gmra.mrb[0].mxu0 %v5057
        %v7561 = vpop.f32.mrb[0].mxu0
        %v7562 = vadd.f32 %v5406, %v7561
        %v7563 = vpop.f32.mrb[0].mxu0
        %v7564 = vadd.f32 %v5410, %v7563
        %v7565 = vpop.f32.mrb[0].mxu0
        %v7566 = vadd.f32 %v5406, %v7565
        %v7567 = vpop.f32.mrb[0].mxu0
        %v7568 = vadd.f32 %v5410, %v7567
        %7569 = vmatprep.mubr.bf16.mxu0 %v5066
        %7570 = vmatmul.mubr.bf16.gmra.mrb[0].mxu0 %v5065
        %v7571 = vpop.f32.mrb[0].mxu0
        %v7572 = vadd.f32 %v5406, %v7571
        %v7573 = vpop.f32.mrb[0].mxu0
        %v7574 = vadd.f32 %v5410, %v7573
        %v7575 = vpop.f32.mrb[0].mxu0
        %v7576 = vadd.f32 %v5406, %v7575
        %v7577 = vpop.f32.mrb[0].mxu0
        %v7578 = vadd.f32 %v5410, %v7577
        %7579 = vmatprep.mubr.bf16.mxu0 %v5074
        %7580 = vmatmul.mubr.bf16.gmra.mrb[0].mxu0 %v5073
        %v7581 = vpop.f32.mrb[0].mxu0
        %v7582 = vadd.f32 %v5406, %v7581
        %v7583 = vpop.f32.mrb[0].mxu0
        %v7584 = vadd.f32 %v5410, %v7583
        %v7585 = vpop.f32.mrb[0].mxu0
        %v7586 = vadd.f32 %v5406, %v7585
        %v7587 = vpop.f32.mrb[0].mxu0
        %v7588 = vadd.f32 %v5410, %v7587
        %7589 = vmatprep.mubr.bf16.mxu0 %v5082
        %7590 = vmatmul.mubr.bf16.gmra.mrb[0].mxu0 %v5081
        %v7591 = vpop.f32.mrb[0].mxu0
        %v7592 = vadd.f32 %v5406, %v7591
        %v7593 = vpop.f32.mrb[0].mxu0
        %v7594 = vadd.f32 %v5410, %v7593
        %v7595 = vpop.f32.mrb[0].mxu0
        %v7596 = vadd.f32 %v5406, %v7595
        %v7597 = vpop.f32.mrb[0].mxu0
        %v7598 = vadd.f32 %v5410, %v7597
        %7599 = vmatprep.mubr.bf16.mxu0 %v5090
        %7600 = vmatmul.mubr.bf16.gmra.mrb[0].mxu0 %v5089
        %v7601 = vpop.f32.mrb[0].mxu0
        %v7602 = vadd.f32 %v5406, %v7601
        %v7603 = vpop.f32.mrb[0].mxu0
        %v7604 = vadd.f32 %v5410, %v7603
        %v7605 = vpop.f32.mrb[0].mxu0
        %v7606 = vadd.f32 %v5406, %v7605
        %v7607 = vpop.f32.mrb[0].mxu0
        %v7608 = vadd.f32 %v5410, %v7607
        %7609 = vmatprep.mubr.bf16.mxu0 %v5098
        %7610 = vmatmul.mubr.bf16.gmra.mrb[0].mxu0 %v5097
        %v7611 = vpop.f32.mrb[0].mxu0
        %v7612 = vadd.f32 %v5406, %v7611
        %v7613 = vpop.f32.mrb[0].mxu0
        %v7614 = vadd.f32 %v5410, %v7613
        %v7615 = vpop.f32.mrb[0].mxu0
        %v7616 = vadd.f32 %v5406, %v7615
        %v7617 = vpop.f32.mrb[0].mxu0
        %v7618 = vadd.f32 %v5410, %v7617
        %7619 = vmatprep.mubr.bf16.mxu0 %v5106
        %7620 = vmatmul.mubr.bf16.gmra.mrb[0].mxu0 %v5105
        %v7621 = vpop.f32.mrb[0].mxu0
        %v7622 = vadd.f32 %v5406, %v7621
        %v7623 = vpop.f32.mrb[0].mxu0
        %v7624 = vadd.f32 %v5410, %v7623
        %v7625 = vpop.f32.mrb[0].mxu0
        %v7626 = vadd.f32 %v5406, %v7625
        %v7627 = vpop.f32.mrb[0].mxu0
        %v7628 = vadd.f32 %v5410, %v7627
        %7629 = vmatprep.mubr.bf16.mxu0 %v5114
        %7630 = vmatmul.mubr.bf16.gmra.mrb[0].mxu0 %v5113
        %v7631 = vpop.f32.mrb[0].mxu0
        %v7632 = vadd.f32 %v5406, %v7631
        %v7633 = vpop.f32.mrb[0].mxu0
        %v7634 = vadd.f32 %v5410, %v7633
        %v7635 = vpop.f32.mrb[0].mxu0
        %v7636 = vadd.f32 %v5406, %v7635
        %v7637 = vpop.f32.mrb[0].mxu0
        %v7638 = vadd.f32 %v5410, %v7637
        %7639 = vmatprep.mubr.bf16.mxu0 %v5122
        %7640 = vmatmul.mubr.bf16.gmra.mrb[0].mxu0 %v5121
        %v7641 = vpop.f32.mrb[0].mxu0
        %v7642 = vadd.f32 %v5406, %v7641
        %v7643 = vpop.f32.mrb[0].mxu0
        %v7644 = vadd.f32 %v5410, %v7643
        %v7645 = vpop.f32.mrb[0].mxu0
        %v7646 = vadd.f32 %v5406, %v7645
        %v7647 = vpop.f32.mrb[0].mxu0
        %v7648 = vadd.f32 %v5410, %v7647
        %7649 = vmatprep.mubr.bf16.mxu0 %v5130
        %7650 = vmatmul.mubr.bf16.gmra.mrb[0].mxu0 %v5129
        %v7651 = vpop.f32.mrb[0].mxu0
        %v7652 = vadd.f32 %v5406, %v7651
        %v7653 = vpop.f32.mrb[0].mxu0
        %v7654 = vadd.f32 %v5410, %v7653
        %v7655 = vpop.f32.mrb[0].mxu0
        %v7656 = vadd.f32 %v5406, %v7655
        %v7657 = vpop.f32.mrb[0].mxu0
        %v7658 = vadd.f32 %v5410, %v7657
        %7659 = vdwg.mxu0
        %7660 = vmatprep.subr.bf16.mxu0 %v6250
        %7661 = vmatpush1.bf16.msra.mxu0 %v6249
        %7662 = vmatprep.subr.bf16.mxu0 %v6254
        %7663 = vmatpush1.bf16.msra.mxu0 %v6253
        %7664 = vmatprep.subr.bf16.mxu0 %v6258
        %7665 = vmatpush1.bf16.msra.mxu0 %v6257
        %7666 = vmatprep.subr.bf16.mxu0 %v6262
        %7667 = vmatpush1.bf16.msra.mxu0 %v6261
        %7668 = vmatprep.subr.bf16.mxu0 %v6266
        %7669 = vmatpush1.bf16.msra.mxu0 %v6265
        %7670 = vmatprep.subr.bf16.mxu0 %v6270
        %7671 = vmatpush1.bf16.msra.mxu0 %v6269
        %7672 = vmatprep.subr.bf16.mxu0 %v6274
        %7673 = vmatpush1.bf16.msra.mxu0 %v6273
        %7674 = vmatprep.subr.bf16.mxu0 %v6278
        %7675 = vmatpush1.bf16.msra.mxu0 %v6277
        %7676 = vmatprep.subr.bf16.mxu0 %v6282
        %7677 = vmatpush1.bf16.msra.mxu0 %v6281
        %7678 = vmatprep.subr.bf16.mxu0 %v6286
        %7679 = vmatpush1.bf16.msra.mxu0 %v6285
        %7680 = vmatprep.subr.bf16.mxu0 %v6290
        %7681 = vmatpush1.bf16.msra.mxu0 %v6289
        %7682 = vmatprep.subr.bf16.mxu0 %v6294
        %7683 = vmatpush1.bf16.msra.mxu0 %v6293
        %7684 = vmatprep.subr.bf16.mxu0 %v6298
        %7685 = vmatpush1.bf16.msra.mxu0 %v6297
        %7686 = vmatprep.subr.bf16.mxu0 %v6302
        %7687 = vmatpush1.bf16.msra.mxu0 %v6301
        %7688 = vmatprep.subr.bf16.mxu0 %v6306
        %7689 = vmatpush1.bf16.msra.mxu0 %v6305
        %7690 = vmatprep.subr.bf16.mxu0 %v6310
        %7691 = vmatpush1.bf16.msra.mxu0 %v6309
        %7692 = vmatprep.mubr.bf16.mxu0 %v5012
        %7693 = vmatmul.mubr.bf16.gmra.mrb[0].mxu0 %v5011
        %v7694 = vpop.f32.mrb[0].mxu0
        %v7695 = vadd.f32 %v7502, %v7694
        %v7696 = vpop.f32.mrb[0].mxu0
        %v7697 = vadd.f32 %v7504, %v7696
        %v7698 = vpop.f32.mrb[0].mxu0
        %v7699 = vadd.f32 %v7506, %v7698
        %v7700 = vpop.f32.mrb[0].mxu0
        %v7701 = vadd.f32 %v7508, %v7700
        %7702 = vmatprep.mubr.bf16.mxu0 %v5020
        %7703 = vmatmul.mubr.bf16.gmra.mrb[0].mxu0 %v5019
        %v7704 = vpop.f32.mrb[0].mxu0
        %v7705 = vadd.f32 %v7512, %v7704
        %v7706 = vpop.f32.mrb[0].mxu0
        %v7707 = vadd.f32 %v7514, %v7706
        %v7708 = vpop.f32.mrb[0].mxu0
        %v7709 = vadd.f32 %v7516, %v7708
        %v7710 = vpop.f32.mrb[0].mxu0
        %v7711 = vadd.f32 %v7518, %v7710
        %7712 = vmatprep.mubr.bf16.mxu0 %v5028
        %7713 = vmatmul.mubr.bf16.gmra.mrb[0].mxu0 %v5027
        %v7714 = vpop.f32.mrb[0].mxu0
        %v7715 = vadd.f32 %v7522, %v7714
        %v7716 = vpop.f32.mrb[0].mxu0
        %v7717 = vadd.f32 %v7524, %v7716
        %v7718 = vpop.f32.mrb[0].mxu0
        %v7719 = vadd.f32 %v7526, %v7718
        %v7720 = vpop.f32.mrb[0].mxu0
        %v7721 = vadd.f32 %v7528, %v7720
        %7722 = vmatprep.mubr.bf16.mxu0 %v5036
        %7723 = vmatmul.mubr.bf16.gmra.mrb[0].mxu0 %v5035
        %v7724 = vpop.f32.mrb[0].mxu0
        %v7725 = vadd.f32 %v7532, %v7724
        %v7726 = vpop.f32.mrb[0].mxu0
        %v7727 = vadd.f32 %v7534, %v7726
        %v7728 = vpop.f32.mrb[0].mxu0
        %v7729 = vadd.f32 %v7536, %v7728
        %v7730 = vpop.f32.mrb[0].mxu0
        %v7731 = vadd.f32 %v7538, %v7730
        %7732 = vmatprep.mubr.bf16.mxu0 %v5044
        %7733 = vmatmul.mubr.bf16.gmra.mrb[0].mxu0 %v5043
        %v7734 = vpop.f32.mrb[0].mxu0
        %v7735 = vadd.f32 %v7542, %v7734
        %v7736 = vpop.f32.mrb[0].mxu0
        %v7737 = vadd.f32 %v7544, %v7736
        %v7738 = vpop.f32.mrb[0].mxu0
        %v7739 = vadd.f32 %v7546, %v7738
        %v7740 = vpop.f32.mrb[0].mxu0
        %v7741 = vadd.f32 %v7548, %v7740
        %7742 = vmatprep.mubr.bf16.mxu0 %v5052
        %7743 = vmatmul.mubr.bf16.gmra.mrb[0].mxu0 %v5051
        %v7744 = vpop.f32.mrb[0].mxu0
        %v7745 = vadd.f32 %v7552, %v7744
        %v7746 = vpop.f32.mrb[0].mxu0
        %v7747 = vadd.f32 %v7554, %v7746
        %v7748 = vpop.f32.mrb[0].mxu0
        %v7749 = vadd.f32 %v7556, %v7748
        %v7750 = vpop.f32.mrb[0].mxu0
        %v7751 = vadd.f32 %v7558, %v7750
        %7752 = vmatprep.mubr.bf16.mxu0 %v5060
        %7753 = vmatmul.mubr.bf16.gmra.mrb[0].mxu0 %v5059
        %v7754 = vpop.f32.mrb[0].mxu0
        %v7755 = vadd.f32 %v7562, %v7754
        %v7756 = vpop.f32.mrb[0].mxu0
        %v7757 = vadd.f32 %v7564, %v7756
        %v7758 = vpop.f32.mrb[0].mxu0
        %v7759 = vadd.f32 %v7566, %v7758
        %v7760 = vpop.f32.mrb[0].mxu0
        %v7761 = vadd.f32 %v7568, %v7760
        %7762 = vmatprep.mubr.bf16.mxu0 %v5068
        %7763 = vmatmul.mubr.bf16.gmra.mrb[0].mxu0 %v5067
        %v7764 = vpop.f32.mrb[0].mxu0
        %v7765 = vadd.f32 %v7572, %v7764
        %v7766 = vpop.f32.mrb[0].mxu0
        %v7767 = vadd.f32 %v7574, %v7766
        %v7768 = vpop.f32.mrb[0].mxu0
        %v7769 = vadd.f32 %v7576, %v7768
        %v7770 = vpop.f32.mrb[0].mxu0
        %v7771 = vadd.f32 %v7578, %v7770
        %7772 = vmatprep.mubr.bf16.mxu0 %v5076
        %7773 = vmatmul.mubr.bf16.gmra.mrb[0].mxu0 %v5075
        %v7774 = vpop.f32.mrb[0].mxu0
        %v7775 = vadd.f32 %v7582, %v7774
        %v7776 = vpop.f32.mrb[0].mxu0
        %v7777 = vadd.f32 %v7584, %v7776
        %v7778 = vpop.f32.mrb[0].mxu0
        %v7779 = vadd.f32 %v7586, %v7778
        %v7780 = vpop.f32.mrb[0].mxu0
        %v7781 = vadd.f32 %v7588, %v7780
        %7782 = vmatprep.mubr.bf16.mxu0 %v5084
        %7783 = vmatmul.mubr.bf16.gmra.mrb[0].mxu0 %v5083
        %v7784 = vpop.f32.mrb[0].mxu0
        %v7785 = vadd.f32 %v7592, %v7784
        %v7786 = vpop.f32.mrb[0].mxu0
        %v7787 = vadd.f32 %v7594, %v7786
        %v7788 = vpop.f32.mrb[0].mxu0
        %v7789 = vadd.f32 %v7596, %v7788
        %v7790 = vpop.f32.mrb[0].mxu0
        %v7791 = vadd.f32 %v7598, %v7790
        %7792 = vmatprep.mubr.bf16.mxu0 %v5092
        %7793 = vmatmul.mubr.bf16.gmra.mrb[0].mxu0 %v5091
        %v7794 = vpop.f32.mrb[0].mxu0
        %v7795 = vadd.f32 %v7602, %v7794
        %v7796 = vpop.f32.mrb[0].mxu0
        %v7797 = vadd.f32 %v7604, %v7796
        %v7798 = vpop.f32.mrb[0].mxu0
        %v7799 = vadd.f32 %v7606, %v7798
        %v7800 = vpop.f32.mrb[0].mxu0
        %v7801 = vadd.f32 %v7608, %v7800
        %7802 = vmatprep.mubr.bf16.mxu0 %v5100
        %7803 = vmatmul.mubr.bf16.gmra.mrb[0].mxu0 %v5099
        %v7804 = vpop.f32.mrb[0].mxu0
        %v7805 = vadd.f32 %v7612, %v7804
        %v7806 = vpop.f32.mrb[0].mxu0
        %v7807 = vadd.f32 %v7614, %v7806
        %v7808 = vpop.f32.mrb[0].mxu0
        %v7809 = vadd.f32 %v7616, %v7808
        %v7810 = vpop.f32.mrb[0].mxu0
        %v7811 = vadd.f32 %v7618, %v7810
        %7812 = vmatprep.mubr.bf16.mxu0 %v5108
        %7813 = vmatmul.mubr.bf16.gmra.mrb[0].mxu0 %v5107
        %v7814 = vpop.f32.mrb[0].mxu0
        %v7815 = vadd.f32 %v7622, %v7814
        %v7816 = vpop.f32.mrb[0].mxu0
        %v7817 = vadd.f32 %v7624, %v7816
        %v7818 = vpop.f32.mrb[0].mxu0
        %v7819 = vadd.f32 %v7626, %v7818
        %v7820 = vpop.f32.mrb[0].mxu0
        %v7821 = vadd.f32 %v7628, %v7820
        %7822 = vmatprep.mubr.bf16.mxu0 %v5116
        %7823 = vmatmul.mubr.bf16.gmra.mrb[0].mxu0 %v5115
        %v7824 = vpop.f32.mrb[0].mxu0
        %v7825 = vadd.f32 %v7632, %v7824
        %v7826 = vpop.f32.mrb[0].mxu0
        %v7827 = vadd.f32 %v7634, %v7826
        %v7828 = vpop.f32.mrb[0].mxu0
        %v7829 = vadd.f32 %v7636, %v7828
        %v7830 = vpop.f32.mrb[0].mxu0
        %v7831 = vadd.f32 %v7638, %v7830
        %7832 = vmatprep.mubr.bf16.mxu0 %v5124
        %7833 = vmatmul.mubr.bf16.gmra.mrb[0].mxu0 %v5123
        %v7834 = vpop.f32.mrb[0].mxu0
        %v7835 = vadd.f32 %v7642, %v7834
        %v7836 = vpop.f32.mrb[0].mxu0
        %v7837 = vadd.f32 %v7644, %v7836
        %v7838 = vpop.f32.mrb[0].mxu0
        %v7839 = vadd.f32 %v7646, %v7838
        %v7840 = vpop.f32.mrb[0].mxu0
        %v7841 = vadd.f32 %v7648, %v7840
        %7842 = vmatprep.mubr.bf16.mxu0 %v5132
        %7843 = vmatmul.mubr.bf16.gmra.mrb[0].mxu0 %v5131
        %v7844 = vpop.f32.mrb[0].mxu0
        %v7845 = vadd.f32 %v7652, %v7844
        %v7846 = vpop.f32.mrb[0].mxu0
        %v7847 = vadd.f32 %v7654, %v7846
        %v7848 = vpop.f32.mrb[0].mxu0
        %v7849 = vadd.f32 %v7656, %v7848
        %v7850 = vpop.f32.mrb[0].mxu0
        %v7851 = vadd.f32 %v7658, %v7850
        %7852 = vdwg.mxu0
        %7853 = vmatprep.subr.bf16.mxu0 %v6314
        %7854 = vmatpush1.bf16.msra.mxu0 %v6313
        %7855 = vmatprep.subr.bf16.mxu0 %v6318
        %7856 = vmatpush1.bf16.msra.mxu0 %v6317
        %7857 = vmatprep.subr.bf16.mxu0 %v6322
        %7858 = vmatpush1.bf16.msra.mxu0 %v6321
        %7859 = vmatprep.subr.bf16.mxu0 %v6326
        %7860 = vmatpush1.bf16.msra.mxu0 %v6325
        %7861 = vmatprep.subr.bf16.mxu0 %v6330
        %7862 = vmatpush1.bf16.msra.mxu0 %v6329
        %7863 = vmatprep.subr.bf16.mxu0 %v6334
        %7864 = vmatpush1.bf16.msra.mxu0 %v6333
        %7865 = vmatprep.subr.bf16.mxu0 %v6338
        %7866 = vmatpush1.bf16.msra.mxu0 %v6337
        %7867 = vmatprep.subr.bf16.mxu0 %v6342
        %7868 = vmatpush1.bf16.msra.mxu0 %v6341
        %7869 = vmatprep.subr.bf16.mxu0 %v6346
        %7870 = vmatpush1.bf16.msra.mxu0 %v6345
        %7871 = vmatprep.subr.bf16.mxu0 %v6350
        %7872 = vmatpush1.bf16.msra.mxu0 %v6349
        %7873 = vmatprep.subr.bf16.mxu0 %v6354
        %7874 = vmatpush1.bf16.msra.mxu0 %v6353
        %7875 = vmatprep.subr.bf16.mxu0 %v6358
        %7876 = vmatpush1.bf16.msra.mxu0 %v6357
        %7877 = vmatprep.subr.bf16.mxu0 %v6362
        %7878 = vmatpush1.bf16.msra.mxu0 %v6361
        %7879 = vmatprep.subr.bf16.mxu0 %v6366
        %7880 = vmatpush1.bf16.msra.mxu0 %v6365
        %7881 = vmatprep.subr.bf16.mxu0 %v6370
        %7882 = vmatpush1.bf16.msra.mxu0 %v6369
        %7883 = vmatprep.subr.bf16.mxu0 %v6374
        %7884 = vmatpush1.bf16.msra.mxu0 %v6373
        %7885 = vmatprep.mubr.bf16.mxu0 %v5014
        %7886 = vmatmul.mubr.bf16.gmra.mrb[0].mxu0 %v5013
        %v7887 = vpop.f32.mrb[0].mxu0
        %v7888 = vadd.f32 %v7695, %v7887
        %v7889 = vpop.f32.mrb[0].mxu0
        %v7890 = vadd.f32 %v7697, %v7889
        %v7891 = vpop.f32.mrb[0].mxu0
        %v7892 = vadd.f32 %v7699, %v7891
        %v7893 = vpop.f32.mrb[0].mxu0
        %v7894 = vadd.f32 %v7701, %v7893
        %7895 = vmatprep.mubr.bf16.mxu0 %v5022
        %7896 = vmatmul.mubr.bf16.gmra.mrb[0].mxu0 %v5021
        %v7897 = vpop.f32.mrb[0].mxu0
        %v7898 = vadd.f32 %v7705, %v7897
        %v7899 = vpop.f32.mrb[0].mxu0
        %v7900 = vadd.f32 %v7707, %v7899
        %v7901 = vpop.f32.mrb[0].mxu0
        %v7902 = vadd.f32 %v7709, %v7901
        %v7903 = vpop.f32.mrb[0].mxu0
        %v7904 = vadd.f32 %v7711, %v7903
        %7905 = vmatprep.mubr.bf16.mxu0 %v5030
        %7906 = vmatmul.mubr.bf16.gmra.mrb[0].mxu0 %v5029
        %v7907 = vpop.f32.mrb[0].mxu0
        %v7908 = vadd.f32 %v7715, %v7907
        %v7909 = vpop.f32.mrb[0].mxu0
        %v7910 = vadd.f32 %v7717, %v7909
        %v7911 = vpop.f32.mrb[0].mxu0
        %v7912 = vadd.f32 %v7719, %v7911
        %v7913 = vpop.f32.mrb[0].mxu0
        %v7914 = vadd.f32 %v7721, %v7913
        %7915 = vmatprep.mubr.bf16.mxu0 %v5038
        %7916 = vmatmul.mubr.bf16.gmra.mrb[0].mxu0 %v5037
        %v7917 = vpop.f32.mrb[0].mxu0
        %v7918 = vadd.f32 %v7725, %v7917
        %v7919 = vpop.f32.mrb[0].mxu0
        %v7920 = vadd.f32 %v7727, %v7919
        %v7921 = vpop.f32.mrb[0].mxu0
        %v7922 = vadd.f32 %v7729, %v7921
        %v7923 = vpop.f32.mrb[0].mxu0
        %v7924 = vadd.f32 %v7731, %v7923
        %7925 = vmatprep.mubr.bf16.mxu0 %v5046
        %7926 = vmatmul.mubr.bf16.gmra.mrb[0].mxu0 %v5045
        %v7927 = vpop.f32.mrb[0].mxu0
        %v7928 = vadd.f32 %v7735, %v7927
        %v7929 = vpop.f32.mrb[0].mxu0
        %v7930 = vadd.f32 %v7737, %v7929
        %v7931 = vpop.f32.mrb[0].mxu0
        %v7932 = vadd.f32 %v7739, %v7931
        %v7933 = vpop.f32.mrb[0].mxu0
        %v7934 = vadd.f32 %v7741, %v7933
        %7935 = vmatprep.mubr.bf16.mxu0 %v5054
        %7936 = vmatmul.mubr.bf16.gmra.mrb[0].mxu0 %v5053
        %v7937 = vpop.f32.mrb[0].mxu0
        %v7938 = vadd.f32 %v7745, %v7937
        %v7939 = vpop.f32.mrb[0].mxu0
        %v7940 = vadd.f32 %v7747, %v7939
        %v7941 = vpop.f32.mrb[0].mxu0
        %v7942 = vadd.f32 %v7749, %v7941
        %v7943 = vpop.f32.mrb[0].mxu0
        %v7944 = vadd.f32 %v7751, %v7943
        %7945 = vmatprep.mubr.bf16.mxu0 %v5062
        %7946 = vmatmul.mubr.bf16.gmra.mrb[0].mxu0 %v5061
        %v7947 = vpop.f32.mrb[0].mxu0
        %v7948 = vadd.f32 %v7755, %v7947
        %v7949 = vpop.f32.mrb[0].mxu0
        %v7950 = vadd.f32 %v7757, %v7949
        %v7951 = vpop.f32.mrb[0].mxu0
        %v7952 = vadd.f32 %v7759, %v7951
        %v7953 = vpop.f32.mrb[0].mxu0
        %v7954 = vadd.f32 %v7761, %v7953
        %7955 = vmatprep.mubr.bf16.mxu0 %v5070
        %7956 = vmatmul.mubr.bf16.gmra.mrb[0].mxu0 %v5069
        %v7957 = vpop.f32.mrb[0].mxu0
        %v7958 = vadd.f32 %v7765, %v7957
        %v7959 = vpop.f32.mrb[0].mxu0
        %v7960 = vadd.f32 %v7767, %v7959
        %v7961 = vpop.f32.mrb[0].mxu0
        %v7962 = vadd.f32 %v7769, %v7961
        %v7963 = vpop.f32.mrb[0].mxu0
        %v7964 = vadd.f32 %v7771, %v7963
        %7965 = vmatprep.mubr.bf16.mxu0 %v5078
        %7966 = vmatmul.mubr.bf16.gmra.mrb[0].mxu0 %v5077
        %v7967 = vpop.f32.mrb[0].mxu0
        %v7968 = vadd.f32 %v7775, %v7967
        %v7969 = vpop.f32.mrb[0].mxu0
        %v7970 = vadd.f32 %v7777, %v7969
        %v7971 = vpop.f32.mrb[0].mxu0
        %v7972 = vadd.f32 %v7779, %v7971
        %v7973 = vpop.f32.mrb[0].mxu0
        %v7974 = vadd.f32 %v7781, %v7973
        %7975 = vmatprep.mubr.bf16.mxu0 %v5086
        %7976 = vmatmul.mubr.bf16.gmra.mrb[0].mxu0 %v5085
        %v7977 = vpop.f32.mrb[0].mxu0
        %v7978 = vadd.f32 %v7785, %v7977
        %v7979 = vpop.f32.mrb[0].mxu0
        %v7980 = vadd.f32 %v7787, %v7979
        %v7981 = vpop.f32.mrb[0].mxu0
        %v7982 = vadd.f32 %v7789, %v7981
        %v7983 = vpop.f32.mrb[0].mxu0
        %v7984 = vadd.f32 %v7791, %v7983
        %7985 = vmatprep.mubr.bf16.mxu0 %v5094
        %7986 = vmatmul.mubr.bf16.gmra.mrb[0].mxu0 %v5093
        %v7987 = vpop.f32.mrb[0].mxu0
        %v7988 = vadd.f32 %v7795, %v7987
        %v7989 = vpop.f32.mrb[0].mxu0
        %v7990 = vadd.f32 %v7797, %v7989
        %v7991 = vpop.f32.mrb[0].mxu0
        %v7992 = vadd.f32 %v7799, %v7991
        %v7993 = vpop.f32.mrb[0].mxu0
        %v7994 = vadd.f32 %v7801, %v7993
        %7995 = vmatprep.mubr.bf16.mxu0 %v5102
        %7996 = vmatmul.mubr.bf16.gmra.mrb[0].mxu0 %v5101
        %v7997 = vpop.f32.mrb[0].mxu0
        %v7998 = vadd.f32 %v7805, %v7997
        %v7999 = vpop.f32.mrb[0].mxu0
        %v8000 = vadd.f32 %v7807, %v7999
        %v8001 = vpop.f32.mrb[0].mxu0
        %v8002 = vadd.f32 %v7809, %v8001
        %v8003 = vpop.f32.mrb[0].mxu0
        %v8004 = vadd.f32 %v7811, %v8003
        %8005 = vmatprep.mubr.bf16.mxu0 %v5110
        %8006 = vmatmul.mubr.bf16.gmra.mrb[0].mxu0 %v5109
        %v8007 = vpop.f32.mrb[0].mxu0
        %v8008 = vadd.f32 %v7815, %v8007
        %v8009 = vpop.f32.mrb[0].mxu0
        %v8010 = vadd.f32 %v7817, %v8009
        %v8011 = vpop.f32.mrb[0].mxu0
        %v8012 = vadd.f32 %v7819, %v8011
        %v8013 = vpop.f32.mrb[0].mxu0
        %v8014 = vadd.f32 %v7821, %v8013
        %8015 = vmatprep.mubr.bf16.mxu0 %v5118
        %8016 = vmatmul.mubr.bf16.gmra.mrb[0].mxu0 %v5117
        %v8017 = vpop.f32.mrb[0].mxu0
        %v8018 = vadd.f32 %v7825, %v8017
        %v8019 = vpop.f32.mrb[0].mxu0
        %v8020 = vadd.f32 %v7827, %v8019
        %v8021 = vpop.f32.mrb[0].mxu0
        %v8022 = vadd.f32 %v7829, %v8021
        %v8023 = vpop.f32.mrb[0].mxu0
        %v8024 = vadd.f32 %v7831, %v8023
        %8025 = vmatprep.mubr.bf16.mxu0 %v5126
        %8026 = vmatmul.mubr.bf16.gmra.mrb[0].mxu0 %v5125
        %v8027 = vpop.f32.mrb[0].mxu0
        %v8028 = vadd.f32 %v7835, %v8027
        %v8029 = vpop.f32.mrb[0].mxu0
        %v8030 = vadd.f32 %v7837, %v8029
        %v8031 = vpop.f32.mrb[0].mxu0
        %v8032 = vadd.f32 %v7839, %v8031
        %v8033 = vpop.f32.mrb[0].mxu0
        %v8034 = vadd.f32 %v7841, %v8033
        %8035 = vmatprep.mubr.bf16.mxu0 %v5134
        %8036 = vmatmul.mubr.bf16.gmra.mrb[0].mxu0 %v5133
        %v8037 = vpop.f32.mrb[0].mxu0
        %v8038 = vadd.f32 %v7845, %v8037
        %v8039 = vpop.f32.mrb[0].mxu0
        %v8040 = vadd.f32 %v7847, %v8039
        %v8041 = vpop.f32.mrb[0].mxu0
        %v8042 = vadd.f32 %v7849, %v8041
        %v8043 = vpop.f32.mrb[0].mxu0
        %v8044 = vadd.f32 %v7851, %v8043
        %8045 = vdwg.mxu0
        %8046 = vmatprep.subr.bf16.mxu0 %v6378
        %8047 = vmatpush1.bf16.msra.mxu0 %v6377
        %8048 = vmatprep.subr.bf16.mxu0 %v6382
        %8049 = vmatpush1.bf16.msra.mxu0 %v6381
        %8050 = vmatprep.subr.bf16.mxu0 %v6386
        %8051 = vmatpush1.bf16.msra.mxu0 %v6385
        %8052 = vmatprep.subr.bf16.mxu0 %v6390
        %8053 = vmatpush1.bf16.msra.mxu0 %v6389
        %8054 = vmatprep.subr.bf16.mxu0 %v6394
        %8055 = vmatpush1.bf16.msra.mxu0 %v6393
        %8056 = vmatprep.subr.bf16.mxu0 %v6398
        %8057 = vmatpush1.bf16.msra.mxu0 %v6397
        %8058 = vmatprep.subr.bf16.mxu0 %v6402
        %8059 = vmatpush1.bf16.msra.mxu0 %v6401
        %8060 = vmatprep.subr.bf16.mxu0 %v6406
        %8061 = vmatpush1.bf16.msra.mxu0 %v6405
        %8062 = vmatprep.subr.bf16.mxu0 %v6410
        %8063 = vmatpush1.bf16.msra.mxu0 %v6409
        %8064 = vmatprep.subr.bf16.mxu0 %v6414
        %8065 = vmatpush1.bf16.msra.mxu0 %v6413
        %8066 = vmatprep.subr.bf16.mxu0 %v6418
        %8067 = vmatpush1.bf16.msra.mxu0 %v6417
        %8068 = vmatprep.subr.bf16.mxu0 %v6422
        %8069 = vmatpush1.bf16.msra.mxu0 %v6421
        %8070 = vmatprep.subr.bf16.mxu0 %v6426
        %8071 = vmatpush1.bf16.msra.mxu0 %v6425
        %8072 = vmatprep.subr.bf16.mxu0 %v6430
        %8073 = vmatpush1.bf16.msra.mxu0 %v6429
        %8074 = vmatprep.subr.bf16.mxu0 %v6434
        %8075 = vmatpush1.bf16.msra.mxu0 %v6433
        %8076 = vmatprep.subr.bf16.mxu0 %v6438
        %8077 = vmatpush1.bf16.msra.mxu0 %v6437
        %8078 = vmatprep.mubr.bf16.mxu0 %v5016
        %8079 = vmatmul.mubr.bf16.gmra.mrb[0].mxu0 %v5015
        %v8080 = vpop.f32.mrb[0].mxu0
        %v8081 = vadd.f32 %v7888, %v8080
        %v8082 = vpop.f32.mrb[0].mxu0
        %v8083 = vadd.f32 %v7890, %v8082
        %v8084 = vpop.f32.mrb[0].mxu0
        %v8085 = vadd.f32 %v7892, %v8084
        %v8086 = vpop.f32.mrb[0].mxu0
        %v8087 = vadd.f32 %v7894, %v8086
        %8088 = vmatprep.mubr.bf16.mxu0 %v5024
        %8089 = vmatmul.mubr.bf16.gmra.mrb[0].mxu0 %v5023
        %v8090 = vpop.f32.mrb[0].mxu0
        %v8091 = vadd.f32 %v7898, %v8090
        %v8092 = vpop.f32.mrb[0].mxu0
        %v8093 = vadd.f32 %v7900, %v8092
        %v8094 = vpop.f32.mrb[0].mxu0
        %v8095 = vadd.f32 %v7902, %v8094
        %v8096 = vpop.f32.mrb[0].mxu0
        %v8097 = vadd.f32 %v7904, %v8096
        %8098 = vmatprep.mubr.bf16.mxu0 %v5032
        %8099 = vmatmul.mubr.bf16.gmra.mrb[0].mxu0 %v5031
        %v8100 = vpop.f32.mrb[0].mxu0
        %v8101 = vadd.f32 %v7908, %v8100
        %v8102 = vpop.f32.mrb[0].mxu0
        %v8103 = vadd.f32 %v7910, %v8102
        %v8104 = vpop.f32.mrb[0].mxu0
        %v8105 = vadd.f32 %v7912, %v8104
        %v8106 = vpop.f32.mrb[0].mxu0
        %v8107 = vadd.f32 %v7914, %v8106
        %8108 = vmatprep.mubr.bf16.mxu0 %v5040
        %8109 = vmatmul.mubr.bf16.gmra.mrb[0].mxu0 %v5039
        %v8110 = vpop.f32.mrb[0].mxu0
        %v8111 = vadd.f32 %v7918, %v8110
        %v8112 = vpop.f32.mrb[0].mxu0
        %v8113 = vadd.f32 %v7920, %v8112
        %v8114 = vpop.f32.mrb[0].mxu0
        %v8115 = vadd.f32 %v7922, %v8114
        %v8116 = vpop.f32.mrb[0].mxu0
        %v8117 = vadd.f32 %v7924, %v8116
        %8118 = vmatprep.mubr.bf16.mxu0 %v5048
        %8119 = vmatmul.mubr.bf16.gmra.mrb[0].mxu0 %v5047
        %v8120 = vpop.f32.mrb[0].mxu0
        %v8121 = vadd.f32 %v7928, %v8120
        %v8122 = vpop.f32.mrb[0].mxu0
        %v8123 = vadd.f32 %v7930, %v8122
        %v8124 = vpop.f32.mrb[0].mxu0
        %v8125 = vadd.f32 %v7932, %v8124
        %v8126 = vpop.f32.mrb[0].mxu0
        %v8127 = vadd.f32 %v7934, %v8126
        %8128 = vmatprep.mubr.bf16.mxu0 %v5056
        %8129 = vmatmul.mubr.bf16.gmra.mrb[0].mxu0 %v5055
        %v8130 = vpop.f32.mrb[0].mxu0
        %v8131 = vadd.f32 %v7938, %v8130
        %v8132 = vpop.f32.mrb[0].mxu0
        %v8133 = vadd.f32 %v7940, %v8132
        %v8134 = vpop.f32.mrb[0].mxu0
        %v8135 = vadd.f32 %v7942, %v8134
        %v8136 = vpop.f32.mrb[0].mxu0
        %v8137 = vadd.f32 %v7944, %v8136
        %8138 = vmatprep.mubr.bf16.mxu0 %v5064
        %8139 = vmatmul.mubr.bf16.gmra.mrb[0].mxu0 %v5063
        %v8140 = vpop.f32.mrb[0].mxu0
        %v8141 = vadd.f32 %v7948, %v8140
        %v8142 = vpop.f32.mrb[0].mxu0
        %v8143 = vadd.f32 %v7950, %v8142
        %v8144 = vpop.f32.mrb[0].mxu0
        %v8145 = vadd.f32 %v7952, %v8144
        %v8146 = vpop.f32.mrb[0].mxu0
        %v8147 = vadd.f32 %v7954, %v8146
        %8148 = vmatprep.mubr.bf16.mxu0 %v5072
        %8149 = vmatmul.mubr.bf16.gmra.mrb[0].mxu0 %v5071
        %v8150 = vpop.f32.mrb[0].mxu0
        %v8151 = vadd.f32 %v7958, %v8150
        %v8152 = vpop.f32.mrb[0].mxu0
        %v8153 = vadd.f32 %v7960, %v8152
        %v8154 = vpop.f32.mrb[0].mxu0
        %v8155 = vadd.f32 %v7962, %v8154
        %v8156 = vpop.f32.mrb[0].mxu0
        %v8157 = vadd.f32 %v7964, %v8156
        %8158 = vmatprep.mubr.bf16.mxu0 %v5080
        %8159 = vmatmul.mubr.bf16.gmra.mrb[0].mxu0 %v5079
        %v8160 = vpop.f32.mrb[0].mxu0
        %v8161 = vadd.f32 %v7968, %v8160
        %v8162 = vpop.f32.mrb[0].mxu0
        %v8163 = vadd.f32 %v7970, %v8162
        %v8164 = vpop.f32.mrb[0].mxu0
        %v8165 = vadd.f32 %v7972, %v8164
        %v8166 = vpop.f32.mrb[0].mxu0
        %v8167 = vadd.f32 %v7974, %v8166
        %8168 = vmatprep.mubr.bf16.mxu0 %v5088
        %8169 = vmatmul.mubr.bf16.gmra.mrb[0].mxu0 %v5087
        %v8170 = vpop.f32.mrb[0].mxu0
        %v8171 = vadd.f32 %v7978, %v8170
        %v8172 = vpop.f32.mrb[0].mxu0
        %v8173 = vadd.f32 %v7980, %v8172
        %v8174 = vpop.f32.mrb[0].mxu0
        %v8175 = vadd.f32 %v7982, %v8174
        %v8176 = vpop.f32.mrb[0].mxu0
        %v8177 = vadd.f32 %v7984, %v8176
        %8178 = vmatprep.mubr.bf16.mxu0 %v5096
        %8179 = vmatmul.mubr.bf16.gmra.mrb[0].mxu0 %v5095
        %v8180 = vpop.f32.mrb[0].mxu0
        %v8181 = vadd.f32 %v7988, %v8180
        %v8182 = vpop.f32.mrb[0].mxu0
        %v8183 = vadd.f32 %v7990, %v8182
        %v8184 = vpop.f32.mrb[0].mxu0
        %v8185 = vadd.f32 %v7992, %v8184
        %v8186 = vpop.f32.mrb[0].mxu0
        %v8187 = vadd.f32 %v7994, %v8186
        %8188 = vmatprep.mubr.bf16.mxu0 %v5104
        %8189 = vmatmul.mubr.bf16.gmra.mrb[0].mxu0 %v5103
        %v8190 = vpop.f32.mrb[0].mxu0
        %v8191 = vadd.f32 %v7998, %v8190
        %v8192 = vpop.f32.mrb[0].mxu0
        %v8193 = vadd.f32 %v8000, %v8192
        %v8194 = vpop.f32.mrb[0].mxu0
        %v8195 = vadd.f32 %v8002, %v8194
        %v8196 = vpop.f32.mrb[0].mxu0
        %v8197 = vadd.f32 %v8004, %v8196
        %8198 = vmatprep.mubr.bf16.mxu0 %v5112
        %8199 = vmatmul.mubr.bf16.gmra.mrb[0].mxu0 %v5111
        %v8200 = vpop.f32.mrb[0].mxu0
        %v8201 = vadd.f32 %v8008, %v8200
        %v8202 = vpop.f32.mrb[0].mxu0
        %v8203 = vadd.f32 %v8010, %v8202
        %v8204 = vpop.f32.mrb[0].mxu0
        %v8205 = vadd.f32 %v8012, %v8204
        %v8206 = vpop.f32.mrb[0].mxu0
        %v8207 = vadd.f32 %v8014, %v8206
        %8208 = vmatprep.mubr.bf16.mxu0 %v5120
        %8209 = vmatmul.mubr.bf16.gmra.mrb[0].mxu0 %v5119
        %v8210 = vpop.f32.mrb[0].mxu0
        %v8211 = vadd.f32 %v8018, %v8210
        %v8212 = vpop.f32.mrb[0].mxu0
        %v8213 = vadd.f32 %v8020, %v8212
        %v8214 = vpop.f32.mrb[0].mxu0
        %v8215 = vadd.f32 %v8022, %v8214
        %v8216 = vpop.f32.mrb[0].mxu0
        %v8217 = vadd.f32 %v8024, %v8216
        %8218 = vmatprep.mubr.bf16.mxu0 %v5128
        %8219 = vmatmul.mubr.bf16.gmra.mrb[0].mxu0 %v5127
        %v8220 = vpop.f32.mrb[0].mxu0
        %v8221 = vadd.f32 %v8028, %v8220
        %v8222 = vpop.f32.mrb[0].mxu0
        %v8223 = vadd.f32 %v8030, %v8222
        %v8224 = vpop.f32.mrb[0].mxu0
        %v8225 = vadd.f32 %v8032, %v8224
        %v8226 = vpop.f32.mrb[0].mxu0
        %v8227 = vadd.f32 %v8034, %v8226
        %8228 = vmatprep.mubr.bf16.mxu0 %v5136
        %8229 = vmatmul.mubr.bf16.gmra.mrb[0].mxu0 %v5135
        %v8230 = vpop.f32.mrb[0].mxu0
        %v8231 = vadd.f32 %v8038, %v8230
        %v8232 = vpop.f32.mrb[0].mxu0
        %v8233 = vadd.f32 %v8040, %v8232
        %v8234 = vpop.f32.mrb[0].mxu0
        %v8235 = vadd.f32 %v8042, %v8234
        %v8236 = vpop.f32.mrb[0].mxu0
        %v8237 = vadd.f32 %v8044, %v8236
        %8238 = vdwg.mxu0
        %v8239 = vmax.f32 %v7309, 0.0
        %v8240 = vmax.f32 %v7311, 0.0
        %v8241 = vmax.f32 %v8081, 0.0
        %v8242 = vmax.f32 %v8083, 0.0
        %v8243 = vmax.f32 %v7313, 0.0
        %v8244 = vmax.f32 %v7315, 0.0
        %v8245 = vmax.f32 %v8085, 0.0
        %v8246 = vmax.f32 %v8087, 0.0
        %v8247 = vmax.f32 %v7319, 0.0
        %v8248 = vmax.f32 %v7321, 0.0
        %v8249 = vmax.f32 %v8091, 0.0
        %v8250 = vmax.f32 %v8093, 0.0
        %v8251 = vmax.f32 %v7323, 0.0
        %v8252 = vmax.f32 %v7325, 0.0
        %v8253 = vmax.f32 %v8095, 0.0
        %v8254 = vmax.f32 %v8097, 0.0
        %v8255 = vmax.f32 %v7329, 0.0
        %v8256 = vmax.f32 %v7331, 0.0
        %v8257 = vmax.f32 %v8101, 0.0
        %v8258 = vmax.f32 %v8103, 0.0
        %v8259 = vmax.f32 %v7333, 0.0
        %v8260 = vmax.f32 %v7335, 0.0
        %v8261 = vmax.f32 %v8105, 0.0
        %v8262 = vmax.f32 %v8107, 0.0
        %v8263 = vmax.f32 %v7339, 0.0
        %v8264 = vmax.f32 %v7341, 0.0
        %v8265 = vmax.f32 %v8111, 0.0
        %v8266 = vmax.f32 %v8113, 0.0
        %v8267 = vmax.f32 %v7343, 0.0
        %v8268 = vmax.f32 %v7345, 0.0
        %v8269 = vmax.f32 %v8115, 0.0
        %v8270 = vmax.f32 %v8117, 0.0
        %v8271 = vmax.f32 %v7349, 0.0
        %v8272 = vmax.f32 %v7351, 0.0
        %v8273 = vmax.f32 %v8121, 0.0
        %v8274 = vmax.f32 %v8123, 0.0
        %v8275 = vmax.f32 %v7353, 0.0
        %v8276 = vmax.f32 %v7355, 0.0
        %v8277 = vmax.f32 %v8125, 0.0
        %v8278 = vmax.f32 %v8127, 0.0
        %v8279 = vmax.f32 %v7359, 0.0
        %v8280 = vmax.f32 %v7361, 0.0
        %v8281 = vmax.f32 %v8131, 0.0
        %v8282 = vmax.f32 %v8133, 0.0
        %v8283 = vmax.f32 %v7363, 0.0
        %v8284 = vmax.f32 %v7365, 0.0
        %v8285 = vmax.f32 %v8135, 0.0
        %v8286 = vmax.f32 %v8137, 0.0
        %v8287 = vmax.f32 %v7369, 0.0
        %v8288 = vmax.f32 %v7371, 0.0
        %v8289 = vmax.f32 %v8141, 0.0
        %v8290 = vmax.f32 %v8143, 0.0
        %v8291 = vmax.f32 %v7373, 0.0
        %v8292 = vmax.f32 %v7375, 0.0
        %v8293 = vmax.f32 %v8145, 0.0
        %v8294 = vmax.f32 %v8147, 0.0
        %v8295 = vmax.f32 %v7379, 0.0
        %v8296 = vmax.f32 %v7381, 0.0
        %v8297 = vmax.f32 %v8151, 0.0
        %v8298 = vmax.f32 %v8153, 0.0
        %v8299 = vmax.f32 %v7383, 0.0
        %v8300 = vmax.f32 %v7385, 0.0
        %v8301 = vmax.f32 %v8155, 0.0
        %v8302 = vmax.f32 %v8157, 0.0
        %v8303 = vmax.f32 %v7389, 0.0
        %v8304 = vmax.f32 %v7391, 0.0
        %v8305 = vmax.f32 %v8161, 0.0
        %v8306 = vmax.f32 %v8163, 0.0
        %v8307 = vmax.f32 %v7393, 0.0
        %v8308 = vmax.f32 %v7395, 0.0
        %v8309 = vmax.f32 %v8165, 0.0
        %v8310 = vmax.f32 %v8167, 0.0
        %v8311 = vmax.f32 %v7399, 0.0
        %v8312 = vmax.f32 %v7401, 0.0
        %v8313 = vmax.f32 %v8171, 0.0
        %v8314 = vmax.f32 %v8173, 0.0
        %v8315 = vmax.f32 %v7403, 0.0
        %v8316 = vmax.f32 %v7405, 0.0
        %v8317 = vmax.f32 %v8175, 0.0
        %v8318 = vmax.f32 %v8177, 0.0
        %v8319 = vmax.f32 %v7409, 0.0
        %v8320 = vmax.f32 %v7411, 0.0
        %v8321 = vmax.f32 %v8181, 0.0
        %v8322 = vmax.f32 %v8183, 0.0
        %v8323 = vmax.f32 %v7413, 0.0
        %v8324 = vmax.f32 %v7415, 0.0
        %v8325 = vmax.f32 %v8185, 0.0
        %v8326 = vmax.f32 %v8187, 0.0
        %v8327 = vmax.f32 %v7419, 0.0
        %v8328 = vmax.f32 %v7421, 0.0
        %v8329 = vmax.f32 %v8191, 0.0
        %v8330 = vmax.f32 %v8193, 0.0
        %v8331 = vmax.f32 %v7423, 0.0
        %v8332 = vmax.f32 %v7425, 0.0
        %v8333 = vmax.f32 %v8195, 0.0
        %v8334 = vmax.f32 %v8197, 0.0
        %v8335 = vmax.f32 %v7429, 0.0
        %v8336 = vmax.f32 %v7431, 0.0
        %v8337 = vmax.f32 %v8201, 0.0
        %v8338 = vmax.f32 %v8203, 0.0
        %v8339 = vmax.f32 %v7433, 0.0
        %v8340 = vmax.f32 %v7435, 0.0
        %v8341 = vmax.f32 %v8205, 0.0
        %v8342 = vmax.f32 %v8207, 0.0
        %v8343 = vmax.f32 %v7439, 0.0
        %v8344 = vmax.f32 %v7441, 0.0
        %v8345 = vmax.f32 %v8211, 0.0
        %v8346 = vmax.f32 %v8213, 0.0
        %v8347 = vmax.f32 %v7443, 0.0
        %v8348 = vmax.f32 %v7445, 0.0
        %v8349 = vmax.f32 %v8215, 0.0
        %v8350 = vmax.f32 %v8217, 0.0
        %v8351 = vmax.f32 %v7449, 0.0
        %v8352 = vmax.f32 %v7451, 0.0
        %v8353 = vmax.f32 %v8221, 0.0
        %v8354 = vmax.f32 %v8223, 0.0
        %v8355 = vmax.f32 %v7453, 0.0
        %v8356 = vmax.f32 %v7455, 0.0
        %v8357 = vmax.f32 %v8225, 0.0
        %v8358 = vmax.f32 %v8227, 0.0
        %v8359 = vmax.f32 %v7459, 0.0
        %v8360 = vmax.f32 %v7461, 0.0
        %v8361 = vmax.f32 %v8231, 0.0
        %v8362 = vmax.f32 %v8233, 0.0
        %v8363 = vmax.f32 %v7463, 0.0
        %v8364 = vmax.f32 %v7465, 0.0
        %v8365 = vmax.f32 %v8235, 0.0
        %v8366 = vmax.f32 %v8237, 0.0
        %v8367 = vpack.c.bf16 %v8243, %v8239
        %v8368 = vpack.c.bf16 %v8244, %v8240
        %v8369 = vpack.c.bf16 %v8245, %v8241
        %v8370 = vpack.c.bf16 %v8246, %v8242
        %v8371 = vpack.c.bf16 %v8251, %v8247
        %v8372 = vpack.c.bf16 %v8252, %v8248
        %v8373 = vpack.c.bf16 %v8253, %v8249
        %v8374 = vpack.c.bf16 %v8254, %v8250
        %v8375 = vpack.c.bf16 %v8259, %v8255
        %v8376 = vpack.c.bf16 %v8260, %v8256
        %v8377 = vpack.c.bf16 %v8261, %v8257
        %v8378 = vpack.c.bf16 %v8262, %v8258
        %v8379 = vpack.c.bf16 %v8267, %v8263
        %v8380 = vpack.c.bf16 %v8268, %v8264
        %v8381 = vpack.c.bf16 %v8269, %v8265
        %v8382 = vpack.c.bf16 %v8270, %v8266
        %v8383 = vpack.c.bf16 %v8275, %v8271
        %v8384 = vpack.c.bf16 %v8276, %v8272
        %v8385 = vpack.c.bf16 %v8277, %v8273
        %v8386 = vpack.c.bf16 %v8278, %v8274
        %v8387 = vpack.c.bf16 %v8283, %v8279
        %v8388 = vpack.c.bf16 %v8284, %v8280
        %v8389 = vpack.c.bf16 %v8285, %v8281
        %v8390 = vpack.c.bf16 %v8286, %v8282
        %v8391 = vpack.c.bf16 %v8291, %v8287
        %v8392 = vpack.c.bf16 %v8292, %v8288
        %v8393 = vpack.c.bf16 %v8293, %v8289
        %v8394 = vpack.c.bf16 %v8294, %v8290
        %v8395 = vpack.c.bf16 %v8299, %v8295
        %v8396 = vpack.c.bf16 %v8300, %v8296
        %v8397 = vpack.c.bf16 %v8301, %v8297
        %v8398 = vpack.c.bf16 %v8302, %v8298
        %v8399 = vpack.c.bf16 %v8307, %v8303
        %v8400 = vpack.c.bf16 %v8308, %v8304
        %v8401 = vpack.c.bf16 %v8309, %v8305
        %v8402 = vpack.c.bf16 %v8310, %v8306
        %v8403 = vpack.c.bf16 %v8315, %v8311
        %v8404 = vpack.c.bf16 %v8316, %v8312
        %v8405 = vpack.c.bf16 %v8317, %v8313
        %v8406 = vpack.c.bf16 %v8318, %v8314
        %v8407 = vpack.c.bf16 %v8323, %v8319
        %v8408 = vpack.c.bf16 %v8324, %v8320
        %v8409 = vpack.c.bf16 %v8325, %v8321
        %v8410 = vpack.c.bf16 %v8326, %v8322
        %v8411 = vpack.c.bf16 %v8331, %v8327
        %v8412 = vpack.c.bf16 %v8332, %v8328
        %v8413 = vpack.c.bf16 %v8333, %v8329
        %v8414 = vpack.c.bf16 %v8334, %v8330
        %v8415 = vpack.c.bf16 %v8339, %v8335
        %v8416 = vpack.c.bf16 %v8340, %v8336
        %v8417 = vpack.c.bf16 %v8341, %v8337
        %v8418 = vpack.c.bf16 %v8342, %v8338
        %v8419 = vpack.c.bf16 %v8347, %v8343
        %v8420 = vpack.c.bf16 %v8348, %v8344
        %v8421 = vpack.c.bf16 %v8349, %v8345
        %v8422 = vpack.c.bf16 %v8350, %v8346
        %v8423 = vpack.c.bf16 %v8355, %v8351
        %v8424 = vpack.c.bf16 %v8356, %v8352
        %v8425 = vpack.c.bf16 %v8357, %v8353
        %v8426 = vpack.c.bf16 %v8358, %v8354
        %v8427 = vpack.c.bf16 %v8363, %v8359
        %v8428 = vpack.c.bf16 %v8364, %v8360
        %v8429 = vpack.c.bf16 %v8365, %v8361
        %v8430 = vpack.c.bf16 %v8366, %v8362
        %v8431 = vld [vmem:[%s8] sm:$0xff]
        %v8432 = vld [vmem:[%s8 + $0x8] sm:$0xff]
        %v8433 = vld [vmem:[%s8 + $0x10] sm:$0xff]
        %v8434 = vld [vmem:[%s8 + $0x18] sm:$0xff]
        %v8435 = vld [vmem:[%s8 + $0x20] sm:$0xff]
        %v8436 = vld [vmem:[%s8 + $0x28] sm:$0xff]
        %v8437 = vld [vmem:[%s8 + $0x30] sm:$0xff]
        %v8438 = vld [vmem:[%s8 + $0x38] sm:$0xff]
        %v8439 = vld [vmem:[%s8 + $0x40] sm:$0xff]
        %v8440 = vld [vmem:[%s8 + $0x48] sm:$0xff]
        %v8441 = vld [vmem:[%s8 + $0x50] sm:$0xff]
        %v8442 = vld [vmem:[%s8 + $0x58] sm:$0xff]
        %v8443 = vld [vmem:[%s8 + $0x60] sm:$0xff]
        %v8444 = vld [vmem:[%s8 + $0x68] sm:$0xff]
        %v8445 = vld [vmem:[%s8 + $0x70] sm:$0xff]
        %v8446 = vld [vmem:[%s8 + $0x78] sm:$0xff]
        %v8447 = vld [vmem:[%s8 + $0x80] sm:$0xff]
        %v8448 = vld [vmem:[%s8 + $0x88] sm:$0xff]
        %v8449 = vld [vmem:[%s8 + $0x90] sm:$0xff]
        %v8450 = vld [vmem:[%s8 + $0x98] sm:$0xff]
        %v8451 = vld [vmem:[%s8 + $0xa0] sm:$0xff]
        %v8452 = vld [vmem:[%s8 + $0xa8] sm:$0xff]
        %v8453 = vld [vmem:[%s8 + $0xb0] sm:$0xff]
        %v8454 = vld [vmem:[%s8 + $0xb8] sm:$0xff]
        %v8455 = vld [vmem:[%s8 + $0xc0] sm:$0xff]
        %v8456 = vld [vmem:[%s8 + $0xc8] sm:$0xff]
        %v8457 = vld [vmem:[%s8 + $0xd0] sm:$0xff]
        %v8458 = vld [vmem:[%s8 + $0xd8] sm:$0xff]
        %v8459 = vld [vmem:[%s8 + $0xe0] sm:$0xff]
        %v8460 = vld [vmem:[%s8 + $0xe8] sm:$0xff]
        %v8461 = vld [vmem:[%s8 + $0xf0] sm:$0xff]
        %v8462 = vld [vmem:[%s8 + $0xf8] sm:$0xff]
        %v8463 = vld [vmem:[%s8 + $0x100] sm:$0xff]
        %v8464 = vld [vmem:[%s8 + $0x108] sm:$0xff]
        %v8465 = vld [vmem:[%s8 + $0x110] sm:$0xff]
        %v8466 = vld [vmem:[%s8 + $0x118] sm:$0xff]
        %v8467 = vld [vmem:[%s8 + $0x120] sm:$0xff]
        %v8468 = vld [vmem:[%s8 + $0x128] sm:$0xff]
        %v8469 = vld [vmem:[%s8 + $0x130] sm:$0xff]
        %v8470 = vld [vmem:[%s8 + $0x138] sm:$0xff]
        %v8471 = vld [vmem:[%s8 + $0x140] sm:$0xff]
        %v8472 = vld [vmem:[%s8 + $0x148] sm:$0xff]
        %v8473 = vld [vmem:[%s8 + $0x150] sm:$0xff]
        %v8474 = vld [vmem:[%s8 + $0x158] sm:$0xff]
        %v8475 = vld [vmem:[%s8 + $0x160] sm:$0xff]
        %v8476 = vld [vmem:[%s8 + $0x168] sm:$0xff]
        %v8477 = vld [vmem:[%s8 + $0x170] sm:$0xff]
        %v8478 = vld [vmem:[%s8 + $0x178] sm:$0xff]
        %v8479 = vld [vmem:[%s8 + $0x180] sm:$0xff]
        %v8480 = vld [vmem:[%s8 + $0x188] sm:$0xff]
        %v8481 = vld [vmem:[%s8 + $0x190] sm:$0xff]
        %v8482 = vld [vmem:[%s8 + $0x198] sm:$0xff]
        %v8483 = vld [vmem:[%s8 + $0x1a0] sm:$0xff]
        %v8484 = vld [vmem:[%s8 + $0x1a8] sm:$0xff]
        %v8485 = vld [vmem:[%s8 + $0x1b0] sm:$0xff]
        %v8486 = vld [vmem:[%s8 + $0x1b8] sm:$0xff]
        %v8487 = vld [vmem:[%s8 + $0x1c0] sm:$0xff]
        %v8488 = vld [vmem:[%s8 + $0x1c8] sm:$0xff]
        %v8489 = vld [vmem:[%s8 + $0x1d0] sm:$0xff]
        %v8490 = vld [vmem:[%s8 + $0x1d8] sm:$0xff]
        %v8491 = vld [vmem:[%s8 + $0x1e0] sm:$0xff]
        %v8492 = vld [vmem:[%s8 + $0x1e8] sm:$0xff]
        %v8493 = vld [vmem:[%s8 + $0x1f0] sm:$0xff]
        %v8494 = vld [vmem:[%s8 + $0x1f8] sm:$0xff]
        %v8495 = vld [vmem:[%s9] sm:$0x3]
        %v8497 = vlaneseq
        %v8498 = vshrl.u32 %v8497, 7
        %v8499 = vsub.s32 0, %v8498
        %v8500 = vrot.slane %v8495, %v8499
        %v8501 = vlaneseq
        %v8502 = vshrl.u32 %v8501, 7
        %v8503 = vsub.s32 1, %v8502
        %v8504 = vrot.slane %v8495, %v8503
        %v8571 = vunpack.c.l.b16 %v8431
        %v8572 = vunpack.c.h.b16 %v8431
        %v8573 = vunpack.c.l.b16 %v8432
        %v8574 = vunpack.c.h.b16 %v8432
        %v8575 = vunpack.c.l.b16 %v8433
        %v8576 = vunpack.c.h.b16 %v8433
        %v8577 = vunpack.c.l.b16 %v8434
        %v8578 = vunpack.c.h.b16 %v8434
        %v8579 = vunpack.c.l.b16 %v8435
        %v8580 = vunpack.c.h.b16 %v8435
        %v8581 = vunpack.c.l.b16 %v8436
        %v8582 = vunpack.c.h.b16 %v8436
        %v8583 = vunpack.c.l.b16 %v8437
        %v8584 = vunpack.c.h.b16 %v8437
        %v8585 = vunpack.c.l.b16 %v8438
        %v8586 = vunpack.c.h.b16 %v8438
        %v8587 = vunpack.c.l.b16 %v8439
        %v8588 = vunpack.c.h.b16 %v8439
        %v8589 = vunpack.c.l.b16 %v8440
        %v8590 = vunpack.c.h.b16 %v8440
        %v8591 = vunpack.c.l.b16 %v8441
        %v8592 = vunpack.c.h.b16 %v8441
        %v8593 = vunpack.c.l.b16 %v8442
        %v8594 = vunpack.c.h.b16 %v8442
        %v8595 = vunpack.c.l.b16 %v8443
        %v8596 = vunpack.c.h.b16 %v8443
        %v8597 = vunpack.c.l.b16 %v8444
        %v8598 = vunpack.c.h.b16 %v8444
        %v8599 = vunpack.c.l.b16 %v8445
        %v8600 = vunpack.c.h.b16 %v8445
        %v8601 = vunpack.c.l.b16 %v8446
        %v8602 = vunpack.c.h.b16 %v8446
        %v8603 = vunpack.c.l.b16 %v8447
        %v8604 = vunpack.c.h.b16 %v8447
        %v8605 = vunpack.c.l.b16 %v8448
        %v8606 = vunpack.c.h.b16 %v8448
        %v8607 = vunpack.c.l.b16 %v8449
        %v8608 = vunpack.c.h.b16 %v8449
        %v8609 = vunpack.c.l.b16 %v8450
        %v8610 = vunpack.c.h.b16 %v8450
        %v8611 = vunpack.c.l.b16 %v8451
        %v8612 = vunpack.c.h.b16 %v8451
        %v8613 = vunpack.c.l.b16 %v8452
        %v8614 = vunpack.c.h.b16 %v8452
        %v8615 = vunpack.c.l.b16 %v8453
        %v8616 = vunpack.c.h.b16 %v8453
        %v8617 = vunpack.c.l.b16 %v8454
        %v8618 = vunpack.c.h.b16 %v8454
        %v8619 = vunpack.c.l.b16 %v8455
        %v8620 = vunpack.c.h.b16 %v8455
        %v8621 = vunpack.c.l.b16 %v8456
        %v8622 = vunpack.c.h.b16 %v8456
        %v8623 = vunpack.c.l.b16 %v8457
        %v8624 = vunpack.c.h.b16 %v8457
        %v8625 = vunpack.c.l.b16 %v8458
        %v8626 = vunpack.c.h.b16 %v8458
        %v8627 = vunpack.c.l.b16 %v8459
        %v8628 = vunpack.c.h.b16 %v8459
        %v8629 = vunpack.c.l.b16 %v8460
        %v8630 = vunpack.c.h.b16 %v8460
        %v8631 = vunpack.c.l.b16 %v8461
        %v8632 = vunpack.c.h.b16 %v8461
        %v8633 = vunpack.c.l.b16 %v8462
        %v8634 = vunpack.c.h.b16 %v8462
        %v8635 = vunpack.c.l.b16 %v8463
        %v8636 = vunpack.c.h.b16 %v8463
        %v8637 = vunpack.c.l.b16 %v8464
        %v8638 = vunpack.c.h.b16 %v8464
        %v8639 = vunpack.c.l.b16 %v8465
        %v8640 = vunpack.c.h.b16 %v8465
        %v8641 = vunpack.c.l.b16 %v8466
        %v8642 = vunpack.c.h.b16 %v8466
        %v8643 = vunpack.c.l.b16 %v8467
        %v8644 = vunpack.c.h.b16 %v8467
        %v8645 = vunpack.c.l.b16 %v8468
        %v8646 = vunpack.c.h.b16 %v8468
        %v8647 = vunpack.c.l.b16 %v8469
        %v8648 = vunpack.c.h.b16 %v8469
        %v8649 = vunpack.c.l.b16 %v8470
        %v8650 = vunpack.c.h.b16 %v8470
        %v8651 = vunpack.c.l.b16 %v8471
        %v8652 = vunpack.c.h.b16 %v8471
        %v8653 = vunpack.c.l.b16 %v8472
        %v8654 = vunpack.c.h.b16 %v8472
        %v8655 = vunpack.c.l.b16 %v8473
        %v8656 = vunpack.c.h.b16 %v8473
        %v8657 = vunpack.c.l.b16 %v8474
        %v8658 = vunpack.c.h.b16 %v8474
        %v8659 = vunpack.c.l.b16 %v8475
        %v8660 = vunpack.c.h.b16 %v8475
        %v8661 = vunpack.c.l.b16 %v8476
        %v8662 = vunpack.c.h.b16 %v8476
        %v8663 = vunpack.c.l.b16 %v8477
        %v8664 = vunpack.c.h.b16 %v8477
        %v8665 = vunpack.c.l.b16 %v8478
        %v8666 = vunpack.c.h.b16 %v8478
        %v8667 = vunpack.c.l.b16 %v8479
        %v8668 = vunpack.c.h.b16 %v8479
        %v8669 = vunpack.c.l.b16 %v8480
        %v8670 = vunpack.c.h.b16 %v8480
        %v8671 = vunpack.c.l.b16 %v8481
        %v8672 = vunpack.c.h.b16 %v8481
        %v8673 = vunpack.c.l.b16 %v8482
        %v8674 = vunpack.c.h.b16 %v8482
        %v8675 = vunpack.c.l.b16 %v8483
        %v8676 = vunpack.c.h.b16 %v8483
        %v8677 = vunpack.c.l.b16 %v8484
        %v8678 = vunpack.c.h.b16 %v8484
        %v8679 = vunpack.c.l.b16 %v8485
        %v8680 = vunpack.c.h.b16 %v8485
        %v8681 = vunpack.c.l.b16 %v8486
        %v8682 = vunpack.c.h.b16 %v8486
        %v8683 = vunpack.c.l.b16 %v8487
        %v8684 = vunpack.c.h.b16 %v8487
        %v8685 = vunpack.c.l.b16 %v8488
        %v8686 = vunpack.c.h.b16 %v8488
        %v8687 = vunpack.c.l.b16 %v8489
        %v8688 = vunpack.c.h.b16 %v8489
        %v8689 = vunpack.c.l.b16 %v8490
        %v8690 = vunpack.c.h.b16 %v8490
        %v8691 = vunpack.c.l.b16 %v8491
        %v8692 = vunpack.c.h.b16 %v8491
        %v8693 = vunpack.c.l.b16 %v8492
        %v8694 = vunpack.c.h.b16 %v8492
        %v8695 = vunpack.c.l.b16 %v8493
        %v8696 = vunpack.c.h.b16 %v8493
        %v8697 = vunpack.c.l.b16 %v8494
        %v8698 = vunpack.c.h.b16 %v8494
        %v8699 = vpack.c.b16 %v8573, %v8571
        %v8700 = vpack.c.b16 %v8574, %v8572
        %v8701 = vpack.c.b16 %v8577, %v8575
        %v8702 = vpack.c.b16 %v8578, %v8576
        %v8703 = vpack.c.b16 %v8581, %v8579
        %v8704 = vpack.c.b16 %v8582, %v8580
        %v8705 = vpack.c.b16 %v8585, %v8583
        %v8706 = vpack.c.b16 %v8586, %v8584
        %v8707 = vpack.c.b16 %v8589, %v8587
        %v8708 = vpack.c.b16 %v8590, %v8588
        %v8709 = vpack.c.b16 %v8593, %v8591
        %v8710 = vpack.c.b16 %v8594, %v8592
        %v8711 = vpack.c.b16 %v8597, %v8595
        %v8712 = vpack.c.b16 %v8598, %v8596
        %v8713 = vpack.c.b16 %v8601, %v8599
        %v8714 = vpack.c.b16 %v8602, %v8600
        %v8715 = vpack.c.b16 %v8605, %v8603
        %v8716 = vpack.c.b16 %v8606, %v8604
        %v8717 = vpack.c.b16 %v8609, %v8607
        %v8718 = vpack.c.b16 %v8610, %v8608
        %v8719 = vpack.c.b16 %v8613, %v8611
        %v8720 = vpack.c.b16 %v8614, %v8612
        %v8721 = vpack.c.b16 %v8617, %v8615
        %v8722 = vpack.c.b16 %v8618, %v8616
        %v8723 = vpack.c.b16 %v8621, %v8619
        %v8724 = vpack.c.b16 %v8622, %v8620
        %v8725 = vpack.c.b16 %v8625, %v8623
        %v8726 = vpack.c.b16 %v8626, %v8624
        %v8727 = vpack.c.b16 %v8629, %v8627
        %v8728 = vpack.c.b16 %v8630, %v8628
        %v8729 = vpack.c.b16 %v8633, %v8631
        %v8730 = vpack.c.b16 %v8634, %v8632
        %v8731 = vpack.c.b16 %v8637, %v8635
        %v8732 = vpack.c.b16 %v8638, %v8636
        %v8733 = vpack.c.b16 %v8641, %v8639
        %v8734 = vpack.c.b16 %v8642, %v8640
        %v8735 = vpack.c.b16 %v8645, %v8643
        %v8736 = vpack.c.b16 %v8646, %v8644
        %v8737 = vpack.c.b16 %v8649, %v8647
        %v8738 = vpack.c.b16 %v8650, %v8648
        %v8739 = vpack.c.b16 %v8653, %v8651
        %v8740 = vpack.c.b16 %v8654, %v8652
        %v8741 = vpack.c.b16 %v8657, %v8655
        %v8742 = vpack.c.b16 %v8658, %v8656
        %v8743 = vpack.c.b16 %v8661, %v8659
        %v8744 = vpack.c.b16 %v8662, %v8660
        %v8745 = vpack.c.b16 %v8665, %v8663
        %v8746 = vpack.c.b16 %v8666, %v8664
        %v8747 = vpack.c.b16 %v8669, %v8667
        %v8748 = vpack.c.b16 %v8670, %v8668
        %v8749 = vpack.c.b16 %v8673, %v8671
        %v8750 = vpack.c.b16 %v8674, %v8672
        %v8751 = vpack.c.b16 %v8677, %v8675
        %v8752 = vpack.c.b16 %v8678, %v8676
        %v8753 = vpack.c.b16 %v8681, %v8679
        %v8754 = vpack.c.b16 %v8682, %v8680
        %v8755 = vpack.c.b16 %v8685, %v8683
        %v8756 = vpack.c.b16 %v8686, %v8684
        %v8757 = vpack.c.b16 %v8689, %v8687
        %v8758 = vpack.c.b16 %v8690, %v8688
        %v8759 = vpack.c.b16 %v8693, %v8691
        %v8760 = vpack.c.b16 %v8694, %v8692
        %v8761 = vpack.c.b16 %v8697, %v8695
        %v8762 = vpack.c.b16 %v8698, %v8696
        %8827 = vmatprep.subr.bf16.mxu0 %v8700
        %8828 = vmatpush1.bf16.msra.mxu0 %v8699
        %8829 = vmatprep.subr.bf16.mxu0 %v8702
        %8830 = vmatpush1.bf16.msra.mxu0 %v8701
        %8831 = vmatprep.subr.bf16.mxu0 %v8704
        %8832 = vmatpush1.bf16.msra.mxu0 %v8703
        %8833 = vmatprep.subr.bf16.mxu0 %v8706
        %8834 = vmatpush1.bf16.msra.mxu0 %v8705
        %8835 = vmatprep.subr.bf16.mxu0 %v8708
        %8836 = vmatpush1.bf16.msra.mxu0 %v8707
        %8837 = vmatprep.subr.bf16.mxu0 %v8710
        %8838 = vmatpush1.bf16.msra.mxu0 %v8709
        %8839 = vmatprep.subr.bf16.mxu0 %v8712
        %8840 = vmatpush1.bf16.msra.mxu0 %v8711
        %8841 = vmatprep.subr.bf16.mxu0 %v8714
        %8842 = vmatpush1.bf16.msra.mxu0 %v8713
        %8843 = vmatprep.subr.bf16.mxu0 %v8716
        %8844 = vmatpush1.bf16.msra.mxu0 %v8715
        %8845 = vmatprep.subr.bf16.mxu0 %v8718
        %8846 = vmatpush1.bf16.msra.mxu0 %v8717
        %8847 = vmatprep.subr.bf16.mxu0 %v8720
        %8848 = vmatpush1.bf16.msra.mxu0 %v8719
        %8849 = vmatprep.subr.bf16.mxu0 %v8722
        %8850 = vmatpush1.bf16.msra.mxu0 %v8721
        %8851 = vmatprep.subr.bf16.mxu0 %v8724
        %8852 = vmatpush1.bf16.msra.mxu0 %v8723
        %8853 = vmatprep.subr.bf16.mxu0 %v8726
        %8854 = vmatpush1.bf16.msra.mxu0 %v8725
        %8855 = vmatprep.subr.bf16.mxu0 %v8728
        %8856 = vmatpush1.bf16.msra.mxu0 %v8727
        %8857 = vmatprep.subr.bf16.mxu0 %v8730
        %8858 = vmatpush1.bf16.msra.mxu0 %v8729
        %8859 = vmatprep.mubr.bf16.mxu0 %v8368
        %8860 = vmatmul.mubr.bf16.gmra.mrb[0].mxu0 %v8367
        %v8861 = vpop.f32.mrb[0].mxu0
        %v8862 = vadd.f32 %v8500, %v8861
        %v8863 = vpop.f32.mrb[0].mxu0
        %v8864 = vadd.f32 %v8504, %v8863
        %v8865 = vpop.f32.mrb[0].mxu0
        %v8866 = vadd.f32 %v8500, %v8865
        %v8867 = vpop.f32.mrb[0].mxu0
        %v8868 = vadd.f32 %v8504, %v8867
        %8869 = vmatprep.mubr.bf16.mxu0 %v8372
        %8870 = vmatmul.mubr.bf16.gmra.mrb[0].mxu0 %v8371
        %v8871 = vpop.f32.mrb[0].mxu0
        %v8872 = vadd.f32 %v8500, %v8871
        %v8873 = vpop.f32.mrb[0].mxu0
        %v8874 = vadd.f32 %v8504, %v8873
        %v8875 = vpop.f32.mrb[0].mxu0
        %v8876 = vadd.f32 %v8500, %v8875
        %v8877 = vpop.f32.mrb[0].mxu0
        %v8878 = vadd.f32 %v8504, %v8877
        %8879 = vmatprep.mubr.bf16.mxu0 %v8376
        %8880 = vmatmul.mubr.bf16.gmra.mrb[0].mxu0 %v8375
        %v8881 = vpop.f32.mrb[0].mxu0
        %v8882 = vadd.f32 %v8500, %v8881
        %v8883 = vpop.f32.mrb[0].mxu0
        %v8884 = vadd.f32 %v8504, %v8883
        %v8885 = vpop.f32.mrb[0].mxu0
        %v8886 = vadd.f32 %v8500, %v8885
        %v8887 = vpop.f32.mrb[0].mxu0
        %v8888 = vadd.f32 %v8504, %v8887
        %8889 = vmatprep.mubr.bf16.mxu0 %v8380
        %8890 = vmatmul.mubr.bf16.gmra.mrb[0].mxu0 %v8379
        %v8891 = vpop.f32.mrb[0].mxu0
        %v8892 = vadd.f32 %v8500, %v8891
        %v8893 = vpop.f32.mrb[0].mxu0
        %v8894 = vadd.f32 %v8504, %v8893
        %v8895 = vpop.f32.mrb[0].mxu0
        %v8896 = vadd.f32 %v8500, %v8895
        %v8897 = vpop.f32.mrb[0].mxu0
        %v8898 = vadd.f32 %v8504, %v8897
        %8899 = vmatprep.mubr.bf16.mxu0 %v8384
        %8900 = vmatmul.mubr.bf16.gmra.mrb[0].mxu0 %v8383
        %v8901 = vpop.f32.mrb[0].mxu0
        %v8902 = vadd.f32 %v8500, %v8901
        %v8903 = vpop.f32.mrb[0].mxu0
        %v8904 = vadd.f32 %v8504, %v8903
        %v8905 = vpop.f32.mrb[0].mxu0
        %v8906 = vadd.f32 %v8500, %v8905
        %v8907 = vpop.f32.mrb[0].mxu0
        %v8908 = vadd.f32 %v8504, %v8907
        %8909 = vmatprep.mubr.bf16.mxu0 %v8388
        %8910 = vmatmul.mubr.bf16.gmra.mrb[0].mxu0 %v8387
        %v8911 = vpop.f32.mrb[0].mxu0
        %v8912 = vadd.f32 %v8500, %v8911
        %v8913 = vpop.f32.mrb[0].mxu0
        %v8914 = vadd.f32 %v8504, %v8913
        %v8915 = vpop.f32.mrb[0].mxu0
        %v8916 = vadd.f32 %v8500, %v8915
        %v8917 = vpop.f32.mrb[0].mxu0
        %v8918 = vadd.f32 %v8504, %v8917
        %8919 = vmatprep.mubr.bf16.mxu0 %v8392
        %8920 = vmatmul.mubr.bf16.gmra.mrb[0].mxu0 %v8391
        %v8921 = vpop.f32.mrb[0].mxu0
        %v8922 = vadd.f32 %v8500, %v8921
        %v8923 = vpop.f32.mrb[0].mxu0
        %v8924 = vadd.f32 %v8504, %v8923
        %v8925 = vpop.f32.mrb[0].mxu0
        %v8926 = vadd.f32 %v8500, %v8925
        %v8927 = vpop.f32.mrb[0].mxu0
        %v8928 = vadd.f32 %v8504, %v8927
        %8929 = vmatprep.mubr.bf16.mxu0 %v8396
        %8930 = vmatmul.mubr.bf16.gmra.mrb[0].mxu0 %v8395
        %v8931 = vpop.f32.mrb[0].mxu0
        %v8932 = vadd.f32 %v8500, %v8931
        %v8933 = vpop.f32.mrb[0].mxu0
        %v8934 = vadd.f32 %v8504, %v8933
        %v8935 = vpop.f32.mrb[0].mxu0
        %v8936 = vadd.f32 %v8500, %v8935
        %v8937 = vpop.f32.mrb[0].mxu0
        %v8938 = vadd.f32 %v8504, %v8937
        %8939 = vmatprep.mubr.bf16.mxu0 %v8400
        %8940 = vmatmul.mubr.bf16.gmra.mrb[0].mxu0 %v8399
        %v8941 = vpop.f32.mrb[0].mxu0
        %v8942 = vadd.f32 %v8500, %v8941
        %v8943 = vpop.f32.mrb[0].mxu0
        %v8944 = vadd.f32 %v8504, %v8943
        %v8945 = vpop.f32.mrb[0].mxu0
        %v8946 = vadd.f32 %v8500, %v8945
        %v8947 = vpop.f32.mrb[0].mxu0
        %v8948 = vadd.f32 %v8504, %v8947
        %8949 = vmatprep.mubr.bf16.mxu0 %v8404
        %8950 = vmatmul.mubr.bf16.gmra.mrb[0].mxu0 %v8403
        %v8951 = vpop.f32.mrb[0].mxu0
        %v8952 = vadd.f32 %v8500, %v8951
        %v8953 = vpop.f32.mrb[0].mxu0
        %v8954 = vadd.f32 %v8504, %v8953
        %v8955 = vpop.f32.mrb[0].mxu0
        %v8956 = vadd.f32 %v8500, %v8955
        %v8957 = vpop.f32.mrb[0].mxu0
        %v8958 = vadd.f32 %v8504, %v8957
        %8959 = vmatprep.mubr.bf16.mxu0 %v8408
        %8960 = vmatmul.mubr.bf16.gmra.mrb[0].mxu0 %v8407
        %v8961 = vpop.f32.mrb[0].mxu0
        %v8962 = vadd.f32 %v8500, %v8961
        %v8963 = vpop.f32.mrb[0].mxu0
        %v8964 = vadd.f32 %v8504, %v8963
        %v8965 = vpop.f32.mrb[0].mxu0
        %v8966 = vadd.f32 %v8500, %v8965
        %v8967 = vpop.f32.mrb[0].mxu0
        %v8968 = vadd.f32 %v8504, %v8967
        %8969 = vmatprep.mubr.bf16.mxu0 %v8412
        %8970 = vmatmul.mubr.bf16.gmra.mrb[0].mxu0 %v8411
        %v8971 = vpop.f32.mrb[0].mxu0
        %v8972 = vadd.f32 %v8500, %v8971
        %v8973 = vpop.f32.mrb[0].mxu0
        %v8974 = vadd.f32 %v8504, %v8973
        %v8975 = vpop.f32.mrb[0].mxu0
        %v8976 = vadd.f32 %v8500, %v8975
        %v8977 = vpop.f32.mrb[0].mxu0
        %v8978 = vadd.f32 %v8504, %v8977
        %8979 = vmatprep.mubr.bf16.mxu0 %v8416
        %8980 = vmatmul.mubr.bf16.gmra.mrb[0].mxu0 %v8415
        %v8981 = vpop.f32.mrb[0].mxu0
        %v8982 = vadd.f32 %v8500, %v8981
        %v8983 = vpop.f32.mrb[0].mxu0
        %v8984 = vadd.f32 %v8504, %v8983
        %v8985 = vpop.f32.mrb[0].mxu0
        %v8986 = vadd.f32 %v8500, %v8985
        %v8987 = vpop.f32.mrb[0].mxu0
        %v8988 = vadd.f32 %v8504, %v8987
        %8989 = vmatprep.mubr.bf16.mxu0 %v8420
        %8990 = vmatmul.mubr.bf16.gmra.mrb[0].mxu0 %v8419
        %v8991 = vpop.f32.mrb[0].mxu0
        %v8992 = vadd.f32 %v8500, %v8991
        %v8993 = vpop.f32.mrb[0].mxu0
        %v8994 = vadd.f32 %v8504, %v8993
        %v8995 = vpop.f32.mrb[0].mxu0
        %v8996 = vadd.f32 %v8500, %v8995
        %v8997 = vpop.f32.mrb[0].mxu0
        %v8998 = vadd.f32 %v8504, %v8997
        %8999 = vmatprep.mubr.bf16.mxu0 %v8424
        %9000 = vmatmul.mubr.bf16.gmra.mrb[0].mxu0 %v8423
        %v9001 = vpop.f32.mrb[0].mxu0
        %v9002 = vadd.f32 %v8500, %v9001
        %v9003 = vpop.f32.mrb[0].mxu0
        %v9004 = vadd.f32 %v8504, %v9003
        %v9005 = vpop.f32.mrb[0].mxu0
        %v9006 = vadd.f32 %v8500, %v9005
        %v9007 = vpop.f32.mrb[0].mxu0
        %v9008 = vadd.f32 %v8504, %v9007
        %9009 = vmatprep.mubr.bf16.mxu0 %v8428
        %9010 = vmatmul.mubr.bf16.gmra.mrb[0].mxu0 %v8427
        %v9011 = vpop.f32.mrb[0].mxu0
        %v9012 = vadd.f32 %v8500, %v9011
        %v9013 = vpop.f32.mrb[0].mxu0
        %v9014 = vadd.f32 %v8504, %v9013
        %v9015 = vpop.f32.mrb[0].mxu0
        %v9016 = vadd.f32 %v8500, %v9015
        %v9017 = vpop.f32.mrb[0].mxu0
        %v9018 = vadd.f32 %v8504, %v9017
        %9019 = vdwg.mxu0
        %9020 = vmatprep.subr.bf16.mxu0 %v8732
        %9021 = vmatpush1.bf16.msra.mxu0 %v8731
        %9022 = vmatprep.subr.bf16.mxu0 %v8734
        %9023 = vmatpush1.bf16.msra.mxu0 %v8733
        %9024 = vmatprep.subr.bf16.mxu0 %v8736
        %9025 = vmatpush1.bf16.msra.mxu0 %v8735
        %9026 = vmatprep.subr.bf16.mxu0 %v8738
        %9027 = vmatpush1.bf16.msra.mxu0 %v8737
        %9028 = vmatprep.subr.bf16.mxu0 %v8740
        %9029 = vmatpush1.bf16.msra.mxu0 %v8739
        %9030 = vmatprep.subr.bf16.mxu0 %v8742
        %9031 = vmatpush1.bf16.msra.mxu0 %v8741
        %9032 = vmatprep.subr.bf16.mxu0 %v8744
        %9033 = vmatpush1.bf16.msra.mxu0 %v8743
        %9034 = vmatprep.subr.bf16.mxu0 %v8746
        %9035 = vmatpush1.bf16.msra.mxu0 %v8745
        %9036 = vmatprep.subr.bf16.mxu0 %v8748
        %9037 = vmatpush1.bf16.msra.mxu0 %v8747
        %9038 = vmatprep.subr.bf16.mxu0 %v8750
        %9039 = vmatpush1.bf16.msra.mxu0 %v8749
        %9040 = vmatprep.subr.bf16.mxu0 %v8752
        %9041 = vmatpush1.bf16.msra.mxu0 %v8751
        %9042 = vmatprep.subr.bf16.mxu0 %v8754
        %9043 = vmatpush1.bf16.msra.mxu0 %v8753
        %9044 = vmatprep.subr.bf16.mxu0 %v8756
        %9045 = vmatpush1.bf16.msra.mxu0 %v8755
        %9046 = vmatprep.subr.bf16.mxu0 %v8758
        %9047 = vmatpush1.bf16.msra.mxu0 %v8757
        %9048 = vmatprep.subr.bf16.mxu0 %v8760
        %9049 = vmatpush1.bf16.msra.mxu0 %v8759
        %9050 = vmatprep.subr.bf16.mxu0 %v8762
        %9051 = vmatpush1.bf16.msra.mxu0 %v8761
        %9052 = vmatprep.mubr.bf16.mxu0 %v8370
        %9053 = vmatmul.mubr.bf16.gmra.mrb[0].mxu0 %v8369
        %v9054 = vpop.f32.mrb[0].mxu0
        %v9055 = vadd.f32 %v8862, %v9054
        %v9056 = vpop.f32.mrb[0].mxu0
        %v9057 = vadd.f32 %v8864, %v9056
        %v9058 = vpop.f32.mrb[0].mxu0
        %v9059 = vadd.f32 %v8866, %v9058
        %v9060 = vpop.f32.mrb[0].mxu0
        %v9061 = vadd.f32 %v8868, %v9060
        %9062 = vmatprep.mubr.bf16.mxu0 %v8374
        %9063 = vmatmul.mubr.bf16.gmra.mrb[0].mxu0 %v8373
        %v9064 = vpop.f32.mrb[0].mxu0
        %v9065 = vadd.f32 %v8872, %v9064
        %v9066 = vpop.f32.mrb[0].mxu0
        %v9067 = vadd.f32 %v8874, %v9066
        %v9068 = vpop.f32.mrb[0].mxu0
        %v9069 = vadd.f32 %v8876, %v9068
        %v9070 = vpop.f32.mrb[0].mxu0
        %v9071 = vadd.f32 %v8878, %v9070
        %9072 = vmatprep.mubr.bf16.mxu0 %v8378
        %9073 = vmatmul.mubr.bf16.gmra.mrb[0].mxu0 %v8377
        %v9074 = vpop.f32.mrb[0].mxu0
        %v9075 = vadd.f32 %v8882, %v9074
        %v9076 = vpop.f32.mrb[0].mxu0
        %v9077 = vadd.f32 %v8884, %v9076
        %v9078 = vpop.f32.mrb[0].mxu0
        %v9079 = vadd.f32 %v8886, %v9078
        %v9080 = vpop.f32.mrb[0].mxu0
        %v9081 = vadd.f32 %v8888, %v9080
        %9082 = vmatprep.mubr.bf16.mxu0 %v8382
        %9083 = vmatmul.mubr.bf16.gmra.mrb[0].mxu0 %v8381
        %v9084 = vpop.f32.mrb[0].mxu0
        %v9085 = vadd.f32 %v8892, %v9084
        %v9086 = vpop.f32.mrb[0].mxu0
        %v9087 = vadd.f32 %v8894, %v9086
        %v9088 = vpop.f32.mrb[0].mxu0
        %v9089 = vadd.f32 %v8896, %v9088
        %v9090 = vpop.f32.mrb[0].mxu0
        %v9091 = vadd.f32 %v8898, %v9090
        %9092 = vmatprep.mubr.bf16.mxu0 %v8386
        %9093 = vmatmul.mubr.bf16.gmra.mrb[0].mxu0 %v8385
        %v9094 = vpop.f32.mrb[0].mxu0
        %v9095 = vadd.f32 %v8902, %v9094
        %v9096 = vpop.f32.mrb[0].mxu0
        %v9097 = vadd.f32 %v8904, %v9096
        %v9098 = vpop.f32.mrb[0].mxu0
        %v9099 = vadd.f32 %v8906, %v9098
        %v9100 = vpop.f32.mrb[0].mxu0
        %v9101 = vadd.f32 %v8908, %v9100
        %9102 = vmatprep.mubr.bf16.mxu0 %v8390
        %9103 = vmatmul.mubr.bf16.gmra.mrb[0].mxu0 %v8389
        %v9104 = vpop.f32.mrb[0].mxu0
        %v9105 = vadd.f32 %v8912, %v9104
        %v9106 = vpop.f32.mrb[0].mxu0
        %v9107 = vadd.f32 %v8914, %v9106
        %v9108 = vpop.f32.mrb[0].mxu0
        %v9109 = vadd.f32 %v8916, %v9108
        %v9110 = vpop.f32.mrb[0].mxu0
        %v9111 = vadd.f32 %v8918, %v9110
        %9112 = vmatprep.mubr.bf16.mxu0 %v8394
        %9113 = vmatmul.mubr.bf16.gmra.mrb[0].mxu0 %v8393
        %v9114 = vpop.f32.mrb[0].mxu0
        %v9115 = vadd.f32 %v8922, %v9114
        %v9116 = vpop.f32.mrb[0].mxu0
        %v9117 = vadd.f32 %v8924, %v9116
        %v9118 = vpop.f32.mrb[0].mxu0
        %v9119 = vadd.f32 %v8926, %v9118
        %v9120 = vpop.f32.mrb[0].mxu0
        %v9121 = vadd.f32 %v8928, %v9120
        %9122 = vmatprep.mubr.bf16.mxu0 %v8398
        %9123 = vmatmul.mubr.bf16.gmra.mrb[0].mxu0 %v8397
        %v9124 = vpop.f32.mrb[0].mxu0
        %v9125 = vadd.f32 %v8932, %v9124
        %v9126 = vpop.f32.mrb[0].mxu0
        %v9127 = vadd.f32 %v8934, %v9126
        %v9128 = vpop.f32.mrb[0].mxu0
        %v9129 = vadd.f32 %v8936, %v9128
        %v9130 = vpop.f32.mrb[0].mxu0
        %v9131 = vadd.f32 %v8938, %v9130
        %9132 = vmatprep.mubr.bf16.mxu0 %v8402
        %9133 = vmatmul.mubr.bf16.gmra.mrb[0].mxu0 %v8401
        %v9134 = vpop.f32.mrb[0].mxu0
        %v9135 = vadd.f32 %v8942, %v9134
        %v9136 = vpop.f32.mrb[0].mxu0
        %v9137 = vadd.f32 %v8944, %v9136
        %v9138 = vpop.f32.mrb[0].mxu0
        %v9139 = vadd.f32 %v8946, %v9138
        %v9140 = vpop.f32.mrb[0].mxu0
        %v9141 = vadd.f32 %v8948, %v9140
        %9142 = vmatprep.mubr.bf16.mxu0 %v8406
        %9143 = vmatmul.mubr.bf16.gmra.mrb[0].mxu0 %v8405
        %v9144 = vpop.f32.mrb[0].mxu0
        %v9145 = vadd.f32 %v8952, %v9144
        %v9146 = vpop.f32.mrb[0].mxu0
        %v9147 = vadd.f32 %v8954, %v9146
        %v9148 = vpop.f32.mrb[0].mxu0
        %v9149 = vadd.f32 %v8956, %v9148
        %v9150 = vpop.f32.mrb[0].mxu0
        %v9151 = vadd.f32 %v8958, %v9150
        %9152 = vmatprep.mubr.bf16.mxu0 %v8410
        %9153 = vmatmul.mubr.bf16.gmra.mrb[0].mxu0 %v8409
        %v9154 = vpop.f32.mrb[0].mxu0
        %v9155 = vadd.f32 %v8962, %v9154
        %v9156 = vpop.f32.mrb[0].mxu0
        %v9157 = vadd.f32 %v8964, %v9156
        %v9158 = vpop.f32.mrb[0].mxu0
        %v9159 = vadd.f32 %v8966, %v9158
        %v9160 = vpop.f32.mrb[0].mxu0
        %v9161 = vadd.f32 %v8968, %v9160
        %9162 = vmatprep.mubr.bf16.mxu0 %v8414
        %9163 = vmatmul.mubr.bf16.gmra.mrb[0].mxu0 %v8413
        %v9164 = vpop.f32.mrb[0].mxu0
        %v9165 = vadd.f32 %v8972, %v9164
        %v9166 = vpop.f32.mrb[0].mxu0
        %v9167 = vadd.f32 %v8974, %v9166
        %v9168 = vpop.f32.mrb[0].mxu0
        %v9169 = vadd.f32 %v8976, %v9168
        %v9170 = vpop.f32.mrb[0].mxu0
        %v9171 = vadd.f32 %v8978, %v9170
        %9172 = vmatprep.mubr.bf16.mxu0 %v8418
        %9173 = vmatmul.mubr.bf16.gmra.mrb[0].mxu0 %v8417
        %v9174 = vpop.f32.mrb[0].mxu0
        %v9175 = vadd.f32 %v8982, %v9174
        %v9176 = vpop.f32.mrb[0].mxu0
        %v9177 = vadd.f32 %v8984, %v9176
        %v9178 = vpop.f32.mrb[0].mxu0
        %v9179 = vadd.f32 %v8986, %v9178
        %v9180 = vpop.f32.mrb[0].mxu0
        %v9181 = vadd.f32 %v8988, %v9180
        %9182 = vmatprep.mubr.bf16.mxu0 %v8422
        %9183 = vmatmul.mubr.bf16.gmra.mrb[0].mxu0 %v8421
        %v9184 = vpop.f32.mrb[0].mxu0
        %v9185 = vadd.f32 %v8992, %v9184
        %v9186 = vpop.f32.mrb[0].mxu0
        %v9187 = vadd.f32 %v8994, %v9186
        %v9188 = vpop.f32.mrb[0].mxu0
        %v9189 = vadd.f32 %v8996, %v9188
        %v9190 = vpop.f32.mrb[0].mxu0
        %v9191 = vadd.f32 %v8998, %v9190
        %9192 = vmatprep.mubr.bf16.mxu0 %v8426
        %9193 = vmatmul.mubr.bf16.gmra.mrb[0].mxu0 %v8425
        %v9194 = vpop.f32.mrb[0].mxu0
        %v9195 = vadd.f32 %v9002, %v9194
        %v9196 = vpop.f32.mrb[0].mxu0
        %v9197 = vadd.f32 %v9004, %v9196
        %v9198 = vpop.f32.mrb[0].mxu0
        %v9199 = vadd.f32 %v9006, %v9198
        %v9200 = vpop.f32.mrb[0].mxu0
        %v9201 = vadd.f32 %v9008, %v9200
        %9202 = vmatprep.mubr.bf16.mxu0 %v8430
        %9203 = vmatmul.mubr.bf16.gmra.mrb[0].mxu0 %v8429
        %v9204 = vpop.f32.mrb[0].mxu0
        %v9205 = vadd.f32 %v9012, %v9204
        %v9206 = vpop.f32.mrb[0].mxu0
        %v9207 = vadd.f32 %v9014, %v9206
        %v9208 = vpop.f32.mrb[0].mxu0
        %v9209 = vadd.f32 %v9016, %v9208
        %v9210 = vpop.f32.mrb[0].mxu0
        %v9211 = vadd.f32 %v9018, %v9210
        %9212 = vdwg.mxu0
        %v9213 = vmax.f32 %v9055, 0.0
        %v9214 = vmax.f32 %v9057, 0.0
        %v9215 = vmax.f32 %v9059, 0.0
        %v9216 = vmax.f32 %v9061, 0.0
        %v9217 = vmax.f32 %v9065, 0.0
        %v9218 = vmax.f32 %v9067, 0.0
        %v9219 = vmax.f32 %v9069, 0.0
        %v9220 = vmax.f32 %v9071, 0.0
        %v9221 = vmax.f32 %v9075, 0.0
        %v9222 = vmax.f32 %v9077, 0.0
        %v9223 = vmax.f32 %v9079, 0.0
        %v9224 = vmax.f32 %v9081, 0.0
        %v9225 = vmax.f32 %v9085, 0.0
        %v9226 = vmax.f32 %v9087, 0.0
        %v9227 = vmax.f32 %v9089, 0.0
        %v9228 = vmax.f32 %v9091, 0.0
        %v9229 = vmax.f32 %v9095, 0.0
        %v9230 = vmax.f32 %v9097, 0.0
        %v9231 = vmax.f32 %v9099, 0.0
        %v9232 = vmax.f32 %v9101, 0.0
        %v9233 = vmax.f32 %v9105, 0.0
        %v9234 = vmax.f32 %v9107, 0.0
        %v9235 = vmax.f32 %v9109, 0.0
        %v9236 = vmax.f32 %v9111, 0.0
        %v9237 = vmax.f32 %v9115, 0.0
        %v9238 = vmax.f32 %v9117, 0.0
        %v9239 = vmax.f32 %v9119, 0.0
        %v9240 = vmax.f32 %v9121, 0.0
        %v9241 = vmax.f32 %v9125, 0.0
        %v9242 = vmax.f32 %v9127, 0.0
        %v9243 = vmax.f32 %v9129, 0.0
        %v9244 = vmax.f32 %v9131, 0.0
        %v9245 = vmax.f32 %v9135, 0.0
        %v9246 = vmax.f32 %v9137, 0.0
        %v9247 = vmax.f32 %v9139, 0.0
        %v9248 = vmax.f32 %v9141, 0.0
        %v9249 = vmax.f32 %v9145, 0.0
        %v9250 = vmax.f32 %v9147, 0.0
        %v9251 = vmax.f32 %v9149, 0.0
        %v9252 = vmax.f32 %v9151, 0.0
        %v9253 = vmax.f32 %v9155, 0.0
        %v9254 = vmax.f32 %v9157, 0.0
        %v9255 = vmax.f32 %v9159, 0.0
        %v9256 = vmax.f32 %v9161, 0.0
        %v9257 = vmax.f32 %v9165, 0.0
        %v9258 = vmax.f32 %v9167, 0.0
        %v9259 = vmax.f32 %v9169, 0.0
        %v9260 = vmax.f32 %v9171, 0.0
        %v9261 = vmax.f32 %v9175, 0.0
        %v9262 = vmax.f32 %v9177, 0.0
        %v9263 = vmax.f32 %v9179, 0.0
        %v9264 = vmax.f32 %v9181, 0.0
        %v9265 = vmax.f32 %v9185, 0.0
        %v9266 = vmax.f32 %v9187, 0.0
        %v9267 = vmax.f32 %v9189, 0.0
        %v9268 = vmax.f32 %v9191, 0.0
        %v9269 = vmax.f32 %v9195, 0.0
        %v9270 = vmax.f32 %v9197, 0.0
        %v9271 = vmax.f32 %v9199, 0.0
        %v9272 = vmax.f32 %v9201, 0.0
        %v9273 = vmax.f32 %v9205, 0.0
        %v9274 = vmax.f32 %v9207, 0.0
        %v9275 = vmax.f32 %v9209, 0.0
        %v9276 = vmax.f32 %v9211, 0.0
        %v9277 = vld [vmem:[%s10] sm:$0x3]
        %v9279 = vlaneseq
        %v9280 = vshrl.u32 %v9279, 7
        %v9281 = vsub.s32 0, %v9280
        %v9282 = vrot.slane %v9277, %v9281
        %v9283 = vlaneseq
        %v9284 = vshrl.u32 %v9283, 7
        %v9285 = vsub.s32 1, %v9284
        %v9286 = vrot.slane %v9277, %v9285
        %v9289 = vmul.f32 %v9213, %v9282
        %v9290 = vmul.f32 %v9214, %v9286
        %v9291 = vmul.f32 %v9215, %v9282
        %v9292 = vmul.f32 %v9216, %v9286
        %v9293 = vmul.f32 %v9217, %v9282
        %v9294 = vmul.f32 %v9218, %v9286
        %v9295 = vmul.f32 %v9219, %v9282
        %v9296 = vmul.f32 %v9220, %v9286
        %v9297 = vmul.f32 %v9221, %v9282
        %v9298 = vmul.f32 %v9222, %v9286
        %v9299 = vmul.f32 %v9223, %v9282
        %v9300 = vmul.f32 %v9224, %v9286
        %v9301 = vmul.f32 %v9225, %v9282
        %v9302 = vmul.f32 %v9226, %v9286
        %v9303 = vmul.f32 %v9227, %v9282
        %v9304 = vmul.f32 %v9228, %v9286
        %v9305 = vmul.f32 %v9229, %v9282
        %v9306 = vmul.f32 %v9230, %v9286
        %v9307 = vmul.f32 %v9231, %v9282
        %v9308 = vmul.f32 %v9232, %v9286
        %v9309 = vmul.f32 %v9233, %v9282
        %v9310 = vmul.f32 %v9234, %v9286
        %v9311 = vmul.f32 %v9235, %v9282
        %v9312 = vmul.f32 %v9236, %v9286
        %v9313 = vmul.f32 %v9237, %v9282
        %v9314 = vmul.f32 %v9238, %v9286
        %v9315 = vmul.f32 %v9239, %v9282
        %v9316 = vmul.f32 %v9240, %v9286
        %v9317 = vmul.f32 %v9241, %v9282
        %v9318 = vmul.f32 %v9242, %v9286
        %v9319 = vmul.f32 %v9243, %v9282
        %v9320 = vmul.f32 %v9244, %v9286
        %v9321 = vmul.f32 %v9245, %v9282
        %v9322 = vmul.f32 %v9246, %v9286
        %v9323 = vmul.f32 %v9247, %v9282
        %v9324 = vmul.f32 %v9248, %v9286
        %v9325 = vmul.f32 %v9249, %v9282
        %v9326 = vmul.f32 %v9250, %v9286
        %v9327 = vmul.f32 %v9251, %v9282
        %v9328 = vmul.f32 %v9252, %v9286
        %v9329 = vmul.f32 %v9253, %v9282
        %v9330 = vmul.f32 %v9254, %v9286
        %v9331 = vmul.f32 %v9255, %v9282
        %v9332 = vmul.f32 %v9256, %v9286
        %v9333 = vmul.f32 %v9257, %v9282
        %v9334 = vmul.f32 %v9258, %v9286
        %v9335 = vmul.f32 %v9259, %v9282
        %v9336 = vmul.f32 %v9260, %v9286
        %v9337 = vmul.f32 %v9261, %v9282
        %v9338 = vmul.f32 %v9262, %v9286
        %v9339 = vmul.f32 %v9263, %v9282
        %v9340 = vmul.f32 %v9264, %v9286
        %v9341 = vmul.f32 %v9265, %v9282
        %v9342 = vmul.f32 %v9266, %v9286
        %v9343 = vmul.f32 %v9267, %v9282
        %v9344 = vmul.f32 %v9268, %v9286
        %v9345 = vmul.f32 %v9269, %v9282
        %v9346 = vmul.f32 %v9270, %v9286
        %v9347 = vmul.f32 %v9271, %v9282
        %v9348 = vmul.f32 %v9272, %v9286
        %v9349 = vmul.f32 %v9273, %v9282
        %v9350 = vmul.f32 %v9274, %v9286
        %v9351 = vmul.f32 %v9275, %v9282
        %v9352 = vmul.f32 %v9276, %v9286
        %v9353 = vadd.f32 %v9289, %v9290
        %9354 = vadd.xlane.f32.xlu0 %v9353
        %v9355 = vpop.xlane.xlu0 %9354
        %v9356 = vadd.f32 %v9291, %v9292
        %9357 = vadd.xlane.f32.xlu0 %v9356
        %v9358 = vpop.xlane.xlu0 %9357
        %v9359 = vadd.f32 %v9293, %v9294
        %9360 = vadd.xlane.f32.xlu0 %v9359
        %v9361 = vpop.xlane.xlu0 %9360
        %v9362 = vadd.f32 %v9295, %v9296
        %9363 = vadd.xlane.f32.xlu0 %v9362
        %v9364 = vpop.xlane.xlu0 %9363
        %v9365 = vadd.f32 %v9297, %v9298
        %9366 = vadd.xlane.f32.xlu0 %v9365
        %v9367 = vpop.xlane.xlu0 %9366
        %v9368 = vadd.f32 %v9299, %v9300
        %9369 = vadd.xlane.f32.xlu0 %v9368
        %v9370 = vpop.xlane.xlu0 %9369
        %v9371 = vadd.f32 %v9301, %v9302
        %9372 = vadd.xlane.f32.xlu0 %v9371
        %v9373 = vpop.xlane.xlu0 %9372
        %v9374 = vadd.f32 %v9303, %v9304
        %9375 = vadd.xlane.f32.xlu0 %v9374
        %v9376 = vpop.xlane.xlu0 %9375
        %v9377 = vadd.f32 %v9305, %v9306
        %9378 = vadd.xlane.f32.xlu0 %v9377
        %v9379 = vpop.xlane.xlu0 %9378
        %v9380 = vadd.f32 %v9307, %v9308
        %9381 = vadd.xlane.f32.xlu0 %v9380
        %v9382 = vpop.xlane.xlu0 %9381
        %v9383 = vadd.f32 %v9309, %v9310
        %9384 = vadd.xlane.f32.xlu0 %v9383
        %v9385 = vpop.xlane.xlu0 %9384
        %v9386 = vadd.f32 %v9311, %v9312
        %9387 = vadd.xlane.f32.xlu0 %v9386
        %v9388 = vpop.xlane.xlu0 %9387
        %v9389 = vadd.f32 %v9313, %v9314
        %9390 = vadd.xlane.f32.xlu0 %v9389
        %v9391 = vpop.xlane.xlu0 %9390
        %v9392 = vadd.f32 %v9315, %v9316
        %9393 = vadd.xlane.f32.xlu0 %v9392
        %v9394 = vpop.xlane.xlu0 %9393
        %v9395 = vadd.f32 %v9317, %v9318
        %9396 = vadd.xlane.f32.xlu0 %v9395
        %v9397 = vpop.xlane.xlu0 %9396
        %v9398 = vadd.f32 %v9319, %v9320
        %9399 = vadd.xlane.f32.xlu0 %v9398
        %v9400 = vpop.xlane.xlu0 %9399
        %v9401 = vadd.f32 %v9321, %v9322
        %9402 = vadd.xlane.f32.xlu0 %v9401
        %v9403 = vpop.xlane.xlu0 %9402
        %v9404 = vadd.f32 %v9323, %v9324
        %9405 = vadd.xlane.f32.xlu0 %v9404
        %v9406 = vpop.xlane.xlu0 %9405
        %v9407 = vadd.f32 %v9325, %v9326
        %9408 = vadd.xlane.f32.xlu0 %v9407
        %v9409 = vpop.xlane.xlu0 %9408
        %v9410 = vadd.f32 %v9327, %v9328
        %9411 = vadd.xlane.f32.xlu0 %v9410
        %v9412 = vpop.xlane.xlu0 %9411
        %v9413 = vadd.f32 %v9329, %v9330
        %9414 = vadd.xlane.f32.xlu0 %v9413
        %v9415 = vpop.xlane.xlu0 %9414
        %v9416 = vadd.f32 %v9331, %v9332
        %9417 = vadd.xlane.f32.xlu0 %v9416
        %v9418 = vpop.xlane.xlu0 %9417
        %v9419 = vadd.f32 %v9333, %v9334
        %9420 = vadd.xlane.f32.xlu0 %v9419
        %v9421 = vpop.xlane.xlu0 %9420
        %v9422 = vadd.f32 %v9335, %v9336
        %9423 = vadd.xlane.f32.xlu0 %v9422
        %v9424 = vpop.xlane.xlu0 %9423
        %v9425 = vadd.f32 %v9337, %v9338
        %9426 = vadd.xlane.f32.xlu0 %v9425
        %v9427 = vpop.xlane.xlu0 %9426
        %v9428 = vadd.f32 %v9339, %v9340
        %9429 = vadd.xlane.f32.xlu0 %v9428
        %v9430 = vpop.xlane.xlu0 %9429
        %v9431 = vadd.f32 %v9341, %v9342
        %9432 = vadd.xlane.f32.xlu0 %v9431
        %v9433 = vpop.xlane.xlu0 %9432
        %v9434 = vadd.f32 %v9343, %v9344
        %9435 = vadd.xlane.f32.xlu0 %v9434
        %v9436 = vpop.xlane.xlu0 %9435
        %v9437 = vadd.f32 %v9345, %v9346
        %9438 = vadd.xlane.f32.xlu0 %v9437
        %v9439 = vpop.xlane.xlu0 %9438
        %v9440 = vadd.f32 %v9347, %v9348
        %9441 = vadd.xlane.f32.xlu0 %v9440
        %v9442 = vpop.xlane.xlu0 %9441
        %v9443 = vadd.f32 %v9349, %v9350
        %9444 = vadd.xlane.f32.xlu0 %v9443
        %v9445 = vpop.xlane.xlu0 %9444
        %v9446 = vadd.f32 %v9351, %v9352
        %9447 = vadd.xlane.f32.xlu0 %v9446
        %v9448 = vpop.xlane.xlu0 %9447
        %v9449 = vld [vmem:[%s476] sm:$0xff]
        %v9450 = vld [vmem:[%s476 + $0x8] sm:$0xff]
        %v9451 = vld [vmem:[%s476 + $0x10] sm:$0xff]
        %v9452 = vld [vmem:[%s476 + $0x18] sm:$0xff]
        %v9453 = vld [vmem:[%s476 + $0x20] sm:$0xff]
        %v9454 = vld [vmem:[%s476 + $0x28] sm:$0xff]
        %v9455 = vld [vmem:[%s476 + $0x30] sm:$0xff]
        %v9456 = vld [vmem:[%s476 + $0x38] sm:$0xff]
        %v9457 = vld [vmem:[%s476 + $0x40] sm:$0xff]
        %v9458 = vld [vmem:[%s476 + $0x48] sm:$0xff]
        %v9459 = vld [vmem:[%s476 + $0x50] sm:$0xff]
        %v9460 = vld [vmem:[%s476 + $0x58] sm:$0xff]
        %v9461 = vld [vmem:[%s476 + $0x60] sm:$0xff]
        %v9462 = vld [vmem:[%s476 + $0x68] sm:$0xff]
        %v9463 = vld [vmem:[%s476 + $0x70] sm:$0xff]
        %v9464 = vld [vmem:[%s476 + $0x78] sm:$0xff]
        %v9465 = vld [vmem:[%s476 + $0x80] sm:$0xff]
        %v9466 = vld [vmem:[%s476 + $0x88] sm:$0xff]
        %v9467 = vld [vmem:[%s476 + $0x90] sm:$0xff]
        %v9468 = vld [vmem:[%s476 + $0x98] sm:$0xff]
        %v9469 = vld [vmem:[%s476 + $0xa0] sm:$0xff]
        %v9470 = vld [vmem:[%s476 + $0xa8] sm:$0xff]
        %v9471 = vld [vmem:[%s476 + $0xb0] sm:$0xff]
        %v9472 = vld [vmem:[%s476 + $0xb8] sm:$0xff]
        %v9473 = vld [vmem:[%s476 + $0xc0] sm:$0xff]
        %v9474 = vld [vmem:[%s476 + $0xc8] sm:$0xff]
        %v9475 = vld [vmem:[%s476 + $0xd0] sm:$0xff]
        %v9476 = vld [vmem:[%s476 + $0xd8] sm:$0xff]
        %v9477 = vld [vmem:[%s476 + $0xe0] sm:$0xff]
        %v9478 = vld [vmem:[%s476 + $0xe8] sm:$0xff]
        %v9479 = vld [vmem:[%s476 + $0xf0] sm:$0xff]
        %v9480 = vld [vmem:[%s476 + $0xf8] sm:$0xff]
        %s9481 = sld [smem:[#allocation5]]
        %v9482 = vstv %s9481
        %v9483 = vmul.f32 %v9449, %v9482
        %v9484 = vmul.f32 %v9450, %v9482
        %v9485 = vmul.f32 %v9451, %v9482
        %v9486 = vmul.f32 %v9452, %v9482
        %v9487 = vmul.f32 %v9453, %v9482
        %v9488 = vmul.f32 %v9454, %v9482
        %v9489 = vmul.f32 %v9455, %v9482
        %v9490 = vmul.f32 %v9456, %v9482
        %v9491 = vmul.f32 %v9457, %v9482
        %v9492 = vmul.f32 %v9458, %v9482
        %v9493 = vmul.f32 %v9459, %v9482
        %v9494 = vmul.f32 %v9460, %v9482
        %v9495 = vmul.f32 %v9461, %v9482
        %v9496 = vmul.f32 %v9462, %v9482
        %v9497 = vmul.f32 %v9463, %v9482
        %v9498 = vmul.f32 %v9464, %v9482
        %v9499 = vmul.f32 %v9465, %v9482
        %v9500 = vmul.f32 %v9466, %v9482
        %v9501 = vmul.f32 %v9467, %v9482
        %v9502 = vmul.f32 %v9468, %v9482
        %v9503 = vmul.f32 %v9469, %v9482
        %v9504 = vmul.f32 %v9470, %v9482
        %v9505 = vmul.f32 %v9471, %v9482
        %v9506 = vmul.f32 %v9472, %v9482
        %v9507 = vmul.f32 %v9473, %v9482
        %v9508 = vmul.f32 %v9474, %v9482
        %v9509 = vmul.f32 %v9475, %v9482
        %v9510 = vmul.f32 %v9476, %v9482
        %v9511 = vmul.f32 %v9477, %v9482
        %v9512 = vmul.f32 %v9478, %v9482
        %v9513 = vmul.f32 %v9479, %v9482
        %v9514 = vmul.f32 %v9480, %v9482
        %v9515 = vadd.f32 %v9355, %v9483
        %v9516 = vadd.f32 %v9358, %v9484
        %v9517 = vadd.f32 %v9361, %v9485
        %v9518 = vadd.f32 %v9364, %v9486
        %v9519 = vadd.f32 %v9367, %v9487
        %v9520 = vadd.f32 %v9370, %v9488
        %v9521 = vadd.f32 %v9373, %v9489
        %v9522 = vadd.f32 %v9376, %v9490
        %v9523 = vadd.f32 %v9379, %v9491
        %v9524 = vadd.f32 %v9382, %v9492
        %v9525 = vadd.f32 %v9385, %v9493
        %v9526 = vadd.f32 %v9388, %v9494
        %v9527 = vadd.f32 %v9391, %v9495
        %v9528 = vadd.f32 %v9394, %v9496
        %v9529 = vadd.f32 %v9397, %v9497
        %v9530 = vadd.f32 %v9400, %v9498
        %v9531 = vadd.f32 %v9403, %v9499
        %v9532 = vadd.f32 %v9406, %v9500
        %v9533 = vadd.f32 %v9409, %v9501
        %v9534 = vadd.f32 %v9412, %v9502
        %v9535 = vadd.f32 %v9415, %v9503
        %v9536 = vadd.f32 %v9418, %v9504
        %v9537 = vadd.f32 %v9421, %v9505
        %v9538 = vadd.f32 %v9424, %v9506
        %v9539 = vadd.f32 %v9427, %v9507
        %v9540 = vadd.f32 %v9430, %v9508
        %v9541 = vadd.f32 %v9433, %v9509
        %v9542 = vadd.f32 %v9436, %v9510
        %v9543 = vadd.f32 %v9439, %v9511
        %v9544 = vadd.f32 %v9442, %v9512
        %v9545 = vadd.f32 %v9445, %v9513
        %v9546 = vadd.f32 %v9448, %v9514
        %v9547 = vld [vmem:[%s482] sm:$0xff]
        %v9548 = vld [vmem:[%s482 + $0x8] sm:$0xff]
        %v9549 = vld [vmem:[%s482 + $0x10] sm:$0xff]
        %v9550 = vld [vmem:[%s482 + $0x18] sm:$0xff]
        %v9551 = vld [vmem:[%s482 + $0x20] sm:$0xff]
        %v9552 = vld [vmem:[%s482 + $0x28] sm:$0xff]
        %v9553 = vld [vmem:[%s482 + $0x30] sm:$0xff]
        %v9554 = vld [vmem:[%s482 + $0x38] sm:$0xff]
        %v9555 = vld [vmem:[%s482 + $0x40] sm:$0xff]
        %v9556 = vld [vmem:[%s482 + $0x48] sm:$0xff]
        %v9557 = vld [vmem:[%s482 + $0x50] sm:$0xff]
        %v9558 = vld [vmem:[%s482 + $0x58] sm:$0xff]
        %v9559 = vld [vmem:[%s482 + $0x60] sm:$0xff]
        %v9560 = vld [vmem:[%s482 + $0x68] sm:$0xff]
        %v9561 = vld [vmem:[%s482 + $0x70] sm:$0xff]
        %v9562 = vld [vmem:[%s482 + $0x78] sm:$0xff]
        %v9563 = vld [vmem:[%s482 + $0x80] sm:$0xff]
        %v9564 = vld [vmem:[%s482 + $0x88] sm:$0xff]
        %v9565 = vld [vmem:[%s482 + $0x90] sm:$0xff]
        %v9566 = vld [vmem:[%s482 + $0x98] sm:$0xff]
        %v9567 = vld [vmem:[%s482 + $0xa0] sm:$0xff]
        %v9568 = vld [vmem:[%s482 + $0xa8] sm:$0xff]
        %v9569 = vld [vmem:[%s482 + $0xb0] sm:$0xff]
        %v9570 = vld [vmem:[%s482 + $0xb8] sm:$0xff]
        %v9571 = vld [vmem:[%s482 + $0xc0] sm:$0xff]
        %v9572 = vld [vmem:[%s482 + $0xc8] sm:$0xff]
        %v9573 = vld [vmem:[%s482 + $0xd0] sm:$0xff]
        %v9574 = vld [vmem:[%s482 + $0xd8] sm:$0xff]
        %v9575 = vld [vmem:[%s482 + $0xe0] sm:$0xff]
        %v9576 = vld [vmem:[%s482 + $0xe8] sm:$0xff]
        %v9577 = vld [vmem:[%s482 + $0xf0] sm:$0xff]
        %v9578 = vld [vmem:[%s482 + $0xf8] sm:$0xff]
        %s9579 = sld [smem:[#allocation5 + $0x1]]
        %v9580 = vstv %s9579
        %v9581 = vmul.f32 %v9547, %v9580
        %v9582 = vmul.f32 %v9548, %v9580
        %v9583 = vmul.f32 %v9549, %v9580
        %v9584 = vmul.f32 %v9550, %v9580
        %v9585 = vmul.f32 %v9551, %v9580
        %v9586 = vmul.f32 %v9552, %v9580
        %v9587 = vmul.f32 %v9553, %v9580
        %v9588 = vmul.f32 %v9554, %v9580
        %v9589 = vmul.f32 %v9555, %v9580
        %v9590 = vmul.f32 %v9556, %v9580
        %v9591 = vmul.f32 %v9557, %v9580
        %v9592 = vmul.f32 %v9558, %v9580
        %v9593 = vmul.f32 %v9559, %v9580
        %v9594 = vmul.f32 %v9560, %v9580
        %v9595 = vmul.f32 %v9561, %v9580
        %v9596 = vmul.f32 %v9562, %v9580
        %v9597 = vmul.f32 %v9563, %v9580
        %v9598 = vmul.f32 %v9564, %v9580
        %v9599 = vmul.f32 %v9565, %v9580
        %v9600 = vmul.f32 %v9566, %v9580
        %v9601 = vmul.f32 %v9567, %v9580
        %v9602 = vmul.f32 %v9568, %v9580
        %v9603 = vmul.f32 %v9569, %v9580
        %v9604 = vmul.f32 %v9570, %v9580
        %v9605 = vmul.f32 %v9571, %v9580
        %v9606 = vmul.f32 %v9572, %v9580
        %v9607 = vmul.f32 %v9573, %v9580
        %v9608 = vmul.f32 %v9574, %v9580
        %v9609 = vmul.f32 %v9575, %v9580
        %v9610 = vmul.f32 %v9576, %v9580
        %v9611 = vmul.f32 %v9577, %v9580
        %v9612 = vmul.f32 %v9578, %v9580
        %v9613 = vadd.f32 %v9515, %v9581
        %v9614 = vadd.f32 %v9516, %v9582
        %v9615 = vadd.f32 %v9517, %v9583
        %v9616 = vadd.f32 %v9518, %v9584
        %v9617 = vadd.f32 %v9519, %v9585
        %v9618 = vadd.f32 %v9520, %v9586
        %v9619 = vadd.f32 %v9521, %v9587
        %v9620 = vadd.f32 %v9522, %v9588
        %v9621 = vadd.f32 %v9523, %v9589
        %v9622 = vadd.f32 %v9524, %v9590
        %v9623 = vadd.f32 %v9525, %v9591
        %v9624 = vadd.f32 %v9526, %v9592
        %v9625 = vadd.f32 %v9527, %v9593
        %v9626 = vadd.f32 %v9528, %v9594
        %v9627 = vadd.f32 %v9529, %v9595
        %v9628 = vadd.f32 %v9530, %v9596
        %v9629 = vadd.f32 %v9531, %v9597
        %v9630 = vadd.f32 %v9532, %v9598
        %v9631 = vadd.f32 %v9533, %v9599
        %v9632 = vadd.f32 %v9534, %v9600
        %v9633 = vadd.f32 %v9535, %v9601
        %v9634 = vadd.f32 %v9536, %v9602
        %v9635 = vadd.f32 %v9537, %v9603
        %v9636 = vadd.f32 %v9538, %v9604
        %v9637 = vadd.f32 %v9539, %v9605
        %v9638 = vadd.f32 %v9540, %v9606
        %v9639 = vadd.f32 %v9541, %v9607
        %v9640 = vadd.f32 %v9542, %v9608
        %v9641 = vadd.f32 %v9543, %v9609
        %v9642 = vadd.f32 %v9544, %v9610
        %v9643 = vadd.f32 %v9545, %v9611
        %v9644 = vadd.f32 %v9546, %v9612
        %s9645 = sld [smem:[#allocation5 + $0x2]]
        %v9646 = vstv %s9645
        %v9647 = vadd.f32 %v9613, %v9646
        %v9648 = vadd.f32 %v9614, %v9646
        %v9649 = vadd.f32 %v9615, %v9646
        %v9650 = vadd.f32 %v9616, %v9646
        %v9651 = vadd.f32 %v9617, %v9646
        %v9652 = vadd.f32 %v9618, %v9646
        %v9653 = vadd.f32 %v9619, %v9646
        %v9654 = vadd.f32 %v9620, %v9646
        %v9655 = vadd.f32 %v9621, %v9646
        %v9656 = vadd.f32 %v9622, %v9646
        %v9657 = vadd.f32 %v9623, %v9646
        %v9658 = vadd.f32 %v9624, %v9646
        %v9659 = vadd.f32 %v9625, %v9646
        %v9660 = vadd.f32 %v9626, %v9646
        %v9661 = vadd.f32 %v9627, %v9646
        %v9662 = vadd.f32 %v9628, %v9646
        %v9663 = vadd.f32 %v9629, %v9646
        %v9664 = vadd.f32 %v9630, %v9646
        %v9665 = vadd.f32 %v9631, %v9646
        %v9666 = vadd.f32 %v9632, %v9646
        %v9667 = vadd.f32 %v9633, %v9646
        %v9668 = vadd.f32 %v9634, %v9646
        %v9669 = vadd.f32 %v9635, %v9646
        %v9670 = vadd.f32 %v9636, %v9646
        %v9671 = vadd.f32 %v9637, %v9646
        %v9672 = vadd.f32 %v9638, %v9646
        %v9673 = vadd.f32 %v9639, %v9646
        %v9674 = vadd.f32 %v9640, %v9646
        %v9675 = vadd.f32 %v9641, %v9646
        %v9676 = vadd.f32 %v9642, %v9646
        %v9677 = vadd.f32 %v9643, %v9646
        %v9678 = vadd.f32 %v9644, %v9646
        %vm9679 = vcmask 7168
        %9680 = vst.msk [vmem:[%s488] sm:$0xff] %vm9679, %v9647
        %9681 = vst.msk [vmem:[%s488 + $0x8] sm:$0xff] %vm9679, %v9648
        %9682 = vst.msk [vmem:[%s488 + $0x10] sm:$0xff] %vm9679, %v9649
        %9683 = vst.msk [vmem:[%s488 + $0x18] sm:$0xff] %vm9679, %v9650
        %9684 = vst.msk [vmem:[%s488 + $0x20] sm:$0xff] %vm9679, %v9651
        %9685 = vst.msk [vmem:[%s488 + $0x28] sm:$0xff] %vm9679, %v9652
        %9686 = vst.msk [vmem:[%s488 + $0x30] sm:$0xff] %vm9679, %v9653
        %9687 = vst.msk [vmem:[%s488 + $0x38] sm:$0xff] %vm9679, %v9654
        %9688 = vst.msk [vmem:[%s488 + $0x40] sm:$0xff] %vm9679, %v9655
        %9689 = vst.msk [vmem:[%s488 + $0x48] sm:$0xff] %vm9679, %v9656
        %9690 = vst.msk [vmem:[%s488 + $0x50] sm:$0xff] %vm9679, %v9657
        %9691 = vst.msk [vmem:[%s488 + $0x58] sm:$0xff] %vm9679, %v9658
        %9692 = vst.msk [vmem:[%s488 + $0x60] sm:$0xff] %vm9679, %v9659
        %9693 = vst.msk [vmem:[%s488 + $0x68] sm:$0xff] %vm9679, %v9660
        %9694 = vst.msk [vmem:[%s488 + $0x70] sm:$0xff] %vm9679, %v9661
        %9695 = vst.msk [vmem:[%s488 + $0x78] sm:$0xff] %vm9679, %v9662
        %9696 = vst.msk [vmem:[%s488 + $0x80] sm:$0xff] %vm9679, %v9663
        %9697 = vst.msk [vmem:[%s488 + $0x88] sm:$0xff] %vm9679, %v9664
        %9698 = vst.msk [vmem:[%s488 + $0x90] sm:$0xff] %vm9679, %v9665
        %9699 = vst.msk [vmem:[%s488 + $0x98] sm:$0xff] %vm9679, %v9666
        %9700 = vst.msk [vmem:[%s488 + $0xa0] sm:$0xff] %vm9679, %v9667
        %9701 = vst.msk [vmem:[%s488 + $0xa8] sm:$0xff] %vm9679, %v9668
        %9702 = vst.msk [vmem:[%s488 + $0xb0] sm:$0xff] %vm9679, %v9669
        %9703 = vst.msk [vmem:[%s488 + $0xb8] sm:$0xff] %vm9679, %v9670
        %9704 = vst.msk [vmem:[%s488 + $0xc0] sm:$0xff] %vm9679, %v9671
        %9705 = vst.msk [vmem:[%s488 + $0xc8] sm:$0xff] %vm9679, %v9672
        %9706 = vst.msk [vmem:[%s488 + $0xd0] sm:$0xff] %vm9679, %v9673
        %9707 = vst.msk [vmem:[%s488 + $0xd8] sm:$0xff] %vm9679, %v9674
        %9708 = vst.msk [vmem:[%s488 + $0xe0] sm:$0xff] %vm9679, %v9675
        %9709 = vst.msk [vmem:[%s488 + $0xe8] sm:$0xff] %vm9679, %v9676
        %9710 = vst.msk [vmem:[%s488 + $0xf0] sm:$0xff] %vm9679, %v9677
        %9711 = vst.msk [vmem:[%s488 + $0xf8] sm:$0xff] %vm9679, %v9678
        %s9712 = smul.u32 32, %s25
        %p9713 = scmp.lt.s32.totalorder %s9712, 63
        %s9714 = scalar_select %p9713, %s9712, 63
        %s9715 = smul.addr %s9714, 8
        %s9716 = scalar_lea.vmem %s12, %s9715
        // Predicated region
        $region77: #{tpu_custom_call.1} parent=67 // pred_check
          %p9717 = pneg %p310
        $region78: #{tpu_custom_call.1} parent=67 // pred_check_branch
          %9719 = sbr.rel (%p9717) target = $region80
        $region79: #{tpu_custom_call.1} parent=67 // pred_region
          %s9720 = smul.u32 32, %s25
        $region80: #{tpu_custom_call.1} parent=67 // pred_fallthru
          _
      $region68: #{tpu_custom_call.1} parent=5 // pred_fallthru
        _
      %p9721 = scmp.le.s32.totalorder 2, %s20
      // Predicated region
      $region81: #{tpu_custom_call.1} parent=5 // pred_check
        %p9722 = pneg %p9721
      $region82: #{tpu_custom_call.1} parent=5 // pred_check_branch
        %9724 = sbr.rel (%p9722) target = $region84
      $region83: #{tpu_custom_call.1} parent=5 // pred_region
        %s9725 = ssub.s32 %s20, 2
        // Predicated region
        $region85: #{tpu_custom_call.1} parent=83 // pred_check
          %p9726 = pneg %p316
        $region86: #{tpu_custom_call.1} parent=83 // pred_check_branch
          %9728 = sbr.rel (%p9726) target = $region88
        $region87: #{tpu_custom_call.1} parent=83 // pred_region
          %s9729 = smul.u32 32, %s26
          %p9730 = scmp.lt.s32.totalorder %s9729, 63
          %s9731 = scalar_select %p9730, %s9729, 63
          %s9732 = smul.addr %s9731, 8
          %s9733 = scalar_lea.vmem %s12, %s9732
        $region88: #{tpu_custom_call.1} parent=83 // pred_fallthru
          _
      $region84: #{tpu_custom_call.1} parent=5 // pred_fallthru
        _
    $region6: #{tpu_custom_call.1} parent=1 // loop_footer
      %s24 = sadd.s32 1, %s20
    $region7: #{tpu_custom_call.1} parent=1 // loop_footer_branch
      %19 = sbr.rel target = $region3
    $region8: #{tpu_custom_call.1} parent=1 // loop_exit
      _
    %9734 = vsyncpa [#allocation3], 1
    %s9735 = scalar_lea.sflag [#allocation3], 1
    %9736 = vsyncpa %s9735, 1
    %9737 = vsyncpa [#allocation4], 1
    %s9738 = scalar_lea.sflag [#allocation4], 1
    %9739 = vsyncpa %s9738, 1

</llo_original>
